<compile_context>
chip_gen: v7x
topology: tpu7x:2x2x1
jax: 0.10.0
libtpu: 0.0.40
codegen_flags: <defaults>
</compile_context>

<pallas_src>
import jax
import jax.numpy as jnp
from jax.experimental import pallas as pl
from jax.experimental.pallas import tpu as pltpu

BN_EPS = 0.001


def _round_up(x, m):
    return ((x + m - 1) // m) * m


# ----------------------------- Pallas kernels -------------------------------

def _matmul_bn_relu_kernel(p_ref, w_ref, scale_ref, shift_ref, o_ref):
    """One (tm, tn) output tile; full-K contraction in a single MXU dot."""
    acc = jnp.dot(p_ref[...], w_ref[...], preferred_element_type=jnp.float32)
    y = acc * scale_ref[...] + shift_ref[...]
    o_ref[...] = jnp.maximum(y, 0.0).astype(o_ref.dtype)


def _maxpool_kernel(p_ref, o_ref):
    # p_ref: (9, tr, 128) stacked 3x3 window taps -> elementwise max over taps.
    o_ref[...] = jnp.max(p_ref[...], axis=0)


# ----------------------------- wrappers / glue -------------------------------

def _fused_conv_matmul(patches, w2, scale, shift, out_dtype):
    """patches (M, K) bf16, w2 (K, Cout) bf16, scale/shift (Cout,) f32.

    Returns (M, Cout) in out_dtype.  No padding of M or K (full-extent blocks
    are exempt from the (8,128) divisibility rule); only Cout is padded to a
    lane-dense multiple of 128.
    """
    M, K = patches.shape
    Cout = w2.shape[1]

    # M tiling: use a clean divisor if one exists, otherwise one full-extent
    # block (avoids any jnp.pad pass over the activation patches).
    if M % 256 == 0:
        tm = 256
    elif M % 128 == 0:
        tm = 128
    else:
        tm = M
    m_blocks = M // tm

    # Cout: pad to multiple of 128 so output stores are lane-dense.
    Coutp = _round_up(Cout, 128)
    # Prefer 256-wide tiles (v6e/v7x MXU width) but guarantee >= 2 output
    # blocks so both v7x TensorCores get work under "parallel" semantics.
    if Coutp % 256 == 0 and m_blocks * (Coutp // 256) >= 2:
        tn = 256
    else:
        tn = 128
    n_blocks = Coutp // tn

    w = jnp.pad(w2, ((0, 0), (0, Coutp - Cout)))
    sc = jnp.pad(scale.reshape(1, Cout), ((0, 0), (0, Coutp - Cout)))
    sh = jnp.pad(shift.reshape(1, Cout), ((0, 0), (0, Coutp - Cout)))

    out = pl.pallas_call(
        _matmul_bn_relu_kernel,
        out_shape=jax.ShapeDtypeStruct((M, Coutp), out_dtype),
        grid_spec=pltpu.PrefetchScalarGridSpec(
            num_scalar_prefetch=0,
            grid=(m_blocks, n_blocks),
            in_specs=[
                pl.BlockSpec((tm, K), lambda i, j: (i, 0)),   # activations
                pl.BlockSpec((K, tn), lambda i, j: (0, j)),   # weights
                pl.BlockSpec((1, tn), lambda i, j: (0, j)),   # BN scale
                pl.BlockSpec((1, tn), lambda i, j: (0, j)),   # BN shift
            ],
            out_specs=pl.BlockSpec((tm, tn), lambda i, j: (i, j)),
        ),
        compiler_params=pltpu.CompilerParams(
            dimension_semantics=("parallel", "parallel")),
    )(patches, w, sc, sh)
    return out[:, :Cout]


def _im2col(x_nhwc, kh, kw, stride, padding):
    N, H, W, C = x_nhwc.shape
    if padding:
        x_nhwc = jnp.pad(
            x_nhwc, ((0, 0), (padding, padding), (padding, padding), (0, 0)))
    Hp, Wp = H + 2 * padding, W + 2 * padding
    Ho = (Hp - kh) // stride + 1
    Wo = (Wp - kw) // stride + 1
    cols = []
    for di in range(kh):
        for dj in range(kw):
            sl = x_nhwc[:, di:di + (Ho - 1) * stride + 1:stride,
                           dj:dj + (Wo - 1) * stride + 1:stride, :]
            cols.append(sl)
    patches = jnp.concatenate(cols, axis=-1)          # (N, Ho, Wo, kh*kw*C)
    return patches.reshape(N * Ho * Wo, kh * kw * C), (N, Ho, Wo)


def basic_conv2d(x_nhwc, params, *, stride, padding, out_dtype=jnp.float32):
    """Conv2d(bias=False) + BatchNorm2d(eps=1e-3) + ReLU, fused in Pallas."""
    w, gamma, beta, mean, var = params
    Cout, Cin, kh, kw = w.shape
    x_bf16 = x_nhwc.astype(jnp.bfloat16)

    if kh == 1 and kw == 1 and stride == 1 and padding == 0:
        N, H, W, C = x_nhwc.shape
        patches = x_bf16.reshape(N * H * W, C)          # 1x1: no im2col needed
        N_, Ho, Wo = N, H, W
    else:
        patches, (N_, Ho, Wo) = _im2col(x_bf16, kh, kw, stride, padding)

    # weight (Cout, Cin, kh, kw) -> ((kh,kw,Cin) flattened, Cout), match patch order.
    w2 = jnp.transpose(w, (2, 3, 1, 0)).reshape(kh * kw * Cin, Cout)
    w2 = w2.astype(jnp.bfloat16)

    inv = gamma / jnp.sqrt(var + BN_EPS)
    scale = inv
    shift = beta - mean * inv

    out = _fused_conv_matmul(patches, w2, scale, shift, out_dtype)
    return out.reshape(N_, Ho, Wo, Cout)


def maxpool_3x3_s2(x_nhwc):
    N, H, W, C = x_nhwc.shape
    Ho = (H - 3) // 2 + 1
    Wo = (W - 3) // 2 + 1
    L = N * Ho * Wo * C

    taps = []
    for di in range(3):
        for dj in range(3):
            sl = x_nhwc[:, di:di + (Ho - 1) * 2 + 1:2,
                           dj:dj + (Wo - 1) * 2 + 1:2, :]
            taps.append(sl.reshape(L))
    stacked = jnp.stack(taps, axis=0)                  # (9, L)

    # Lane-dense layout: view the flattened taps as (rows, 128) so stores are
    # unmasked full-lane writes even for tiny channel counts.
    Lp = _round_up(L, 128)
    stacked = jnp.pad(stacked, ((0, 0), (0, Lp - L)))
    R = Lp // 128
    stacked = stacked.reshape(9, R, 128)

    if R % 512 == 0:
        tr = 512
    elif R % 256 == 0:
        tr = 256
    else:
        tr = R                                          # full-extent block

    out = pl.pallas_call(
        _maxpool_kernel,
        out_shape=jax.ShapeDtypeStruct((R, 128), x_nhwc.dtype),
        grid_spec=pltpu.PrefetchScalarGridSpec(
            num_scalar_prefetch=0,
            grid=(R // tr,),
            in_specs=[pl.BlockSpec((9, tr, 128), lambda i: (0, i, 0))],
            out_specs=pl.BlockSpec((tr, 128), lambda i: (i, 0)),
        ),
        compiler_params=pltpu.CompilerParams(
            dimension_semantics=("parallel",)),
    )(stacked)
    return out.reshape(Lp)[:L].reshape(N, Ho, Wo, C)


def reduction_a_forward(x_nchw, params):
    x = jnp.transpose(x_nchw, (0, 2, 3, 1))            # NCHW -> NHWC
    b1 = basic_conv2d(x, params["b1"], stride=2, padding=0)              # 384 ch
    # Intermediate branch-2 layers emit bf16 (next layer casts to bf16 anyway).
    b2 = basic_conv2d(x, params["b2_0"], stride=1, padding=0,
                      out_dtype=jnp.bfloat16)                            # 192 ch
    b2 = basic_conv2d(b2, params["b2_1"], stride=1, padding=1,
                      out_dtype=jnp.bfloat16)                            # 224 ch
    b2 = basic_conv2d(b2, params["b2_2"], stride=2, padding=0)           # 256 ch
    b3 = maxpool_3x3_s2(x)                                               # in_ch
    out = jnp.concatenate([b1, b2, b3], axis=-1)       # channel concat (NHWC)
    return jnp.transpose(out, (0, 3, 1, 2))            # NHWC -> NCHW


# ----------------------------- parameter init --------------------------------

def make_conv_bn_params(key, cin, cout, k):
    kw_, kg, kb, km, kv = jax.random.split(key, 5)
    w = 0.05 * jax.random.normal(kw_, (cout, cin, k, k), jnp.float32)
    gamma = 1.0 + 0.1 * jax.random.normal(kg, (cout,), jnp.float32)
    beta = 0.05 * jax.random.normal(kb, (cout,), jnp.float32)
    mean = 0.02 * jax.random.normal(km, (cout,), jnp.float32)
    var = 0.5 + jnp.abs(jax.random.normal(kv, (cout,), jnp.float32)) * 0.1
    return (w, gamma, beta, mean, var)


def make_reduction_a_params(key, in_channels):
    k1, k2, k3, k4 = jax.random.split(key, 4)
    return {
        "b1":   make_conv_bn_params(k1, in_channels, 384, 3),
        "b2_0": make_conv_bn_params(k2, in_channels, 192, 1),
        "b2_1": make_conv_bn_params(k3, 192, 224, 3),
        "b2_2": make_conv_bn_params(k4, 224, 256, 3),
    }


# ----------------------------- pure-JAX reference ----------------------------

def _ref_conv_bn_relu(x_nhwc, params, stride, padding):
    w, gamma, beta, mean, var = params
    y = jax.lax.conv_general_dilated(
        x_nhwc.astype(jnp.bfloat16),
        jnp.transpose(w, (2, 3, 1, 0)).astype(jnp.bfloat16),
        window_strides=(stride, stride),
        padding=[(padding, padding), (padding, padding)],
        dimension_numbers=("NHWC", "HWIO", "NHWC"),
        preferred_element_type=jnp.float32)
    inv = gamma / jnp.sqrt(var + BN_EPS)
    return jnp.maximum(y * inv + (beta - mean * inv), 0.0)


def _ref_forward(x_nchw, params):
    x = jnp.transpose(x_nchw, (0, 2, 3, 1))
    b1 = _ref_conv_bn_relu(x, params["b1"], 2, 0)
    b2 = _ref_conv_bn_relu(x, params["b2_0"], 1, 0)
    b2 = _ref_conv_bn_relu(b2, params["b2_1"], 1, 1)
    b2 = _ref_conv_bn_relu(b2, params["b2_2"], 2, 0)
    b3 = jax.lax.reduce_window(x, -jnp.inf, jax.lax.max,
                               (1, 3, 3, 1), (1, 2, 2, 1), "VALID")
    out = jnp.concatenate([b1, b2, b3], axis=-1)
    return jnp.transpose(out, (0, 3, 1, 2))


# --------------------------------- main ---------------------------------------

if __name__ == "__main__":
    key = jax.random.PRNGKey(0)
    k_x, k_p = jax.random.split(key)

    N, C, H, W = 2, 4, 16, 16                    # small NCHW input
    x = jax.random.normal(k_x, (N, C, H, W), jnp.float32)
    params = make_reduction_a_params(k_p, C)

    out = jax.jit(reduction_a_forward)(x, params)
    out = jax.block_until_ready(out)

    # expected output: (N, 384 + 256 + C, 7, 7)
    assert out.shape == (N, 384 + 256 + C, 7, 7), out.shape

    ref = jax.block_until_ready(_ref_forward(x, params))
    assert jnp.allclose(out, ref, rtol=1e-3, atol=1e-3), float(
        jnp.max(jnp.abs(out - ref)))

    print("KERNEL_OK")
</pallas_src>

<mosaic_0001>
module attributes {stable_mosaic.version = 11 : i64} {
  func.func @_maxpool_kernel(%arg0: i32, %arg1: memref<9x4x128xf32, #tpu.memory_space<vmem>>, %arg2: memref<4x128xf32, #tpu.memory_space<vmem>>) attributes {dimension_semantics = [#tpu.dimension_semantics<parallel>], iteration_bounds = array<i64: 1>, scalar_prefetch = 0 : i64, scratch_operands = 0 : i64, tpu.core_type = #tpu.core_type<tc>, window_params = [{transform_indices = @transform_0, window_bounds = array<i64: 9, 4, 128>}, {transform_indices = @transform_1, window_bounds = array<i64: 4, 128>}]} {
    %c0 = arith.constant 0 : index
    %c0_0 = arith.constant 0 : index
    %c0_1 = arith.constant 0 : index
    %0 = vector.load %arg1[%c0, %c0_0, %c0_1] : memref<9x4x128xf32, #tpu.memory_space<vmem>>, vector<9x4x128xf32>
    %cst = arith.constant dense<0xFF800000> : vector<4x128xf32>
    %1 = vector.multi_reduction <maximumf>, %0, %cst [0] : vector<9x4x128xf32> to vector<4x128xf32>
    %c0_2 = arith.constant 0 : index
    %c0_3 = arith.constant 0 : index
    %2 = vector.load %arg2[%c0_2, %c0_3] : memref<4x128xf32, #tpu.memory_space<vmem>>, vector<4x128xf32>
    tpu.vector_store %arg2[%c0_2, %c0_3], %1 {strides = array<i32>} : memref<4x128xf32, #tpu.memory_space<vmem>>, vector<4x128xf32>,
    return
  }
  func.func @transform_0(%arg0: i32) -> (i32, i32, i32) {
    %c0_i32 = arith.constant 0 : i32
    %c0_i32_0 = arith.constant 0 : i32
    %c0_i32_1 = arith.constant 0 : i32
    return %c0_i32, %arg0, %c0_i32_0 : i32, i32, i32
  }
  func.func @transform_1(%arg0: i32) -> (i32, i32) {
    %c0_i32 = arith.constant 0 : i32
    %c0_i32_0 = arith.constant 0 : i32
    return %arg0, %c0_i32 : i32, i32
  }
}

module attributes {stable_mosaic.version = 11 : i64} {
  func.func @_matmul_bn_relu_kernel(%arg0: i32, %arg1: i32, %arg2: memref<256x4xbf16, #tpu.memory_space<vmem>>, %arg3: memref<4x256xbf16, #tpu.memory_space<vmem>>, %arg4: memref<1x256xf32, #tpu.memory_space<vmem>>, %arg5: memref<1x256xf32, #tpu.memory_space<vmem>>, %arg6: memref<256x256xbf16, #tpu.memory_space<vmem>>) attributes {dimension_semantics = [#tpu.dimension_semantics<parallel>, #tpu.dimension_semantics<parallel>], iteration_bounds = array<i64: 2, 1>, scalar_prefetch = 0 : i64, scratch_operands = 0 : i64, tpu.core_type = #tpu.core_type<tc>, window_params = [{transform_indices = @transform_0, window_bounds = array<i64: 256, 4>}, {transform_indices = @transform_1, window_bounds = array<i64: 4, 256>}, {transform_indices = @transform_2, window_bounds = array<i64: 1, 256>}, {transform_indices = @transform_3, window_bounds = array<i64: 1, 256>}, {transform_indices = @transform_4, window_bounds = array<i64: 256, 256>}]} {
    %c0 = arith.constant 0 : index
    %c0_0 = arith.constant 0 : index
    %0 = vector.load %arg2[%c0, %c0_0] : memref<256x4xbf16, #tpu.memory_space<vmem>>, vector<256x4xbf16>
    %c0_1 = arith.constant 0 : index
    %c0_2 = arith.constant 0 : index
    %1 = vector.load %arg3[%c0_1, %c0_2] : memref<4x256xbf16, #tpu.memory_space<vmem>>, vector<4x256xbf16>
    %cst = arith.constant dense<0.000000e+00> : vector<256x256xf32>
    %2 = tpu.matmul %0, %1, %cst {dimension_numbers = #tpu.dot_dimension_numbers<[1], [0], [0], [1], [0, 0, 1, 1], [], []>} : vector<256x4xbf16>, vector<4x256xbf16>, vector<256x256xf32> -> vector<256x256xf32>
    %c0_3 = arith.constant 0 : index
    %c0_4 = arith.constant 0 : index
    %3 = vector.load %arg4[%c0_3, %c0_4] : memref<1x256xf32, #tpu.memory_space<vmem>>, vector<1x256xf32>
    %4 = vector.broadcast %3 : vector<1x256xf32> to vector<256x256xf32>
    %5 = arith.mulf %2, %4 : vector<256x256xf32>
    %c0_5 = arith.constant 0 : index
    %c0_6 = arith.constant 0 : index
    %6 = vector.load %arg5[%c0_5, %c0_6] : memref<1x256xf32, #tpu.memory_space<vmem>>, vector<1x256xf32>
    %7 = vector.broadcast %6 : vector<1x256xf32> to vector<256x256xf32>
    %8 = arith.addf %5, %7 : vector<256x256xf32>
    %cst_7 = arith.constant 0.000000e+00 : f32
    %9 = vector.broadcast %cst_7 : f32 to vector<256x256xf32>
    %10 = arith.maximumf %8, %9 : vector<256x256xf32>
    %11 = arith.truncf %10 : vector<256x256xf32> to vector<256x256xbf16>
    %c0_8 = arith.constant 0 : index
    %c0_9 = arith.constant 0 : index
    %12 = vector.load %arg6[%c0_8, %c0_9] : memref<256x256xbf16, #tpu.memory_space<vmem>>, vector<256x256xbf16>
    tpu.vector_store %arg6[%c0_8, %c0_9], %11 {strides = array<i32>} : memref<256x256xbf16, #tpu.memory_space<vmem>>, vector<256x256xbf16>,
    return
  }
  func.func @transform_0(%arg0: i32, %arg1: i32) -> (i32, i32) {
    %c0_i32 = arith.constant 0 : i32
    %c0_i32_0 = arith.constant 0 : i32
    return %arg0, %c0_i32 : i32, i32
  }
  func.func @transform_1(%arg0: i32, %arg1: i32) -> (i32, i32) {
    %c0_i32 = arith.constant 0 : i32
    %c0_i32_0 = arith.constant 0 : i32
    return %c0_i32, %arg1 : i32, i32
  }
  func.func @transform_2(%arg0: i32, %arg1: i32) -> (i32, i32) {
    %c0_i32 = arith.constant 0 : i32
    %c0_i32_0 = arith.constant 0 : i32
    return %c0_i32, %arg1 : i32, i32
  }
  func.func @transform_3(%arg0: i32, %arg1: i32) -> (i32, i32) {
    %c0_i32 = arith.constant 0 : i32
    %c0_i32_0 = arith.constant 0 : i32
    return %c0_i32, %arg1 : i32, i32
  }
  func.func @transform_4(%arg0: i32, %arg1: i32) -> (i32, i32) {
    %c0_i32 = arith.constant 0 : i32
    return %arg0, %arg1 : i32, i32
  }
}

module attributes {stable_mosaic.version = 11 : i64} {
  func.func @_matmul_bn_relu_kernel(%arg0: i32, %arg1: i32, %arg2: memref<256x1728xbf16, #tpu.memory_space<vmem>>, %arg3: memref<1728x256xbf16, #tpu.memory_space<vmem>>, %arg4: memref<1x256xf32, #tpu.memory_space<vmem>>, %arg5: memref<1x256xf32, #tpu.memory_space<vmem>>, %arg6: memref<256x256xbf16, #tpu.memory_space<vmem>>) attributes {dimension_semantics = [#tpu.dimension_semantics<parallel>, #tpu.dimension_semantics<parallel>], iteration_bounds = array<i64: 2, 1>, scalar_prefetch = 0 : i64, scratch_operands = 0 : i64, tpu.core_type = #tpu.core_type<tc>, window_params = [{transform_indices = @transform_0, window_bounds = array<i64: 256, 1728>}, {transform_indices = @transform_1, window_bounds = array<i64: 1728, 256>}, {transform_indices = @transform_2, window_bounds = array<i64: 1, 256>}, {transform_indices = @transform_3, window_bounds = array<i64: 1, 256>}, {transform_indices = @transform_4, window_bounds = array<i64: 256, 256>}]} {
    %c0 = arith.constant 0 : index
    %c0_0 = arith.constant 0 : index
    %0 = vector.load %arg2[%c0, %c0_0] : memref<256x1728xbf16, #tpu.memory_space<vmem>>, vector<256x1728xbf16>
    %c0_1 = arith.constant 0 : index
    %c0_2 = arith.constant 0 : index
    %1 = vector.load %arg3[%c0_1, %c0_2] : memref<1728x256xbf16, #tpu.memory_space<vmem>>, vector<1728x256xbf16>
    %cst = arith.constant dense<0.000000e+00> : vector<256x256xf32>
    %2 = tpu.matmul %0, %1, %cst {dimension_numbers = #tpu.dot_dimension_numbers<[1], [0], [0], [1], [0, 0, 1, 1], [], []>} : vector<256x1728xbf16>, vector<1728x256xbf16>, vector<256x256xf32> -> vector<256x256xf32>
    %c0_3 = arith.constant 0 : index
    %c0_4 = arith.constant 0 : index
    %3 = vector.load %arg4[%c0_3, %c0_4] : memref<1x256xf32, #tpu.memory_space<vmem>>, vector<1x256xf32>
    %4 = vector.broadcast %3 : vector<1x256xf32> to vector<256x256xf32>
    %5 = arith.mulf %2, %4 : vector<256x256xf32>
    %c0_5 = arith.constant 0 : index
    %c0_6 = arith.constant 0 : index
    %6 = vector.load %arg5[%c0_5, %c0_6] : memref<1x256xf32, #tpu.memory_space<vmem>>, vector<1x256xf32>
    %7 = vector.broadcast %6 : vector<1x256xf32> to vector<256x256xf32>
    %8 = arith.addf %5, %7 : vector<256x256xf32>
    %cst_7 = arith.constant 0.000000e+00 : f32
    %9 = vector.broadcast %cst_7 : f32 to vector<256x256xf32>
    %10 = arith.maximumf %8, %9 : vector<256x256xf32>
    %11 = arith.truncf %10 : vector<256x256xf32> to vector<256x256xbf16>
    %c0_8 = arith.constant 0 : index
    %c0_9 = arith.constant 0 : index
    %12 = vector.load %arg6[%c0_8, %c0_9] : memref<256x256xbf16, #tpu.memory_space<vmem>>, vector<256x256xbf16>
    tpu.vector_store %arg6[%c0_8, %c0_9], %11 {strides = array<i32>} : memref<256x256xbf16, #tpu.memory_space<vmem>>, vector<256x256xbf16>,
    return
  }
  func.func @transform_0(%arg0: i32, %arg1: i32) -> (i32, i32) {
    %c0_i32 = arith.constant 0 : i32
    %c0_i32_0 = arith.constant 0 : i32
    return %arg0, %c0_i32 : i32, i32
  }
  func.func @transform_1(%arg0: i32, %arg1: i32) -> (i32, i32) {
    %c0_i32 = arith.constant 0 : i32
    %c0_i32_0 = arith.constant 0 : i32
    return %c0_i32, %arg1 : i32, i32
  }
  func.func @transform_2(%arg0: i32, %arg1: i32) -> (i32, i32) {
    %c0_i32 = arith.constant 0 : i32
    %c0_i32_0 = arith.constant 0 : i32
    return %c0_i32, %arg1 : i32, i32
  }
  func.func @transform_3(%arg0: i32, %arg1: i32) -> (i32, i32) {
    %c0_i32 = arith.constant 0 : i32
    %c0_i32_0 = arith.constant 0 : i32
    return %c0_i32, %arg1 : i32, i32
  }
  func.func @transform_4(%arg0: i32, %arg1: i32) -> (i32, i32) {
    %c0_i32 = arith.constant 0 : i32
    return %arg0, %arg1 : i32, i32
  }
}

module attributes {stable_mosaic.version = 11 : i64} {
  func.func @_matmul_bn_relu_kernel(%arg0: i32, %arg1: i32, %arg2: memref<98x2016xbf16, #tpu.memory_space<vmem>>, %arg3: memref<2016x128xbf16, #tpu.memory_space<vmem>>, %arg4: memref<1x128xf32, #tpu.memory_space<vmem>>, %arg5: memref<1x128xf32, #tpu.memory_space<vmem>>, %arg6: memref<98x128xf32, #tpu.memory_space<vmem>>) attributes {dimension_semantics = [#tpu.dimension_semantics<parallel>, #tpu.dimension_semantics<parallel>], iteration_bounds = array<i64: 1, 2>, scalar_prefetch = 0 : i64, scratch_operands = 0 : i64, tpu.core_type = #tpu.core_type<tc>, window_params = [{transform_indices = @transform_0, window_bounds = array<i64: 98, 2016>}, {transform_indices = @transform_1, window_bounds = array<i64: 2016, 128>}, {transform_indices = @transform_2, window_bounds = array<i64: 1, 128>}, {transform_indices = @transform_3, window_bounds = array<i64: 1, 128>}, {transform_indices = @transform_4, window_bounds = array<i64: 98, 128>}]} {
    %c0 = arith.constant 0 : index
    %c0_0 = arith.constant 0 : index
    %0 = vector.load %arg2[%c0, %c0_0] : memref<98x2016xbf16, #tpu.memory_space<vmem>>, vector<98x2016xbf16>
    %c0_1 = arith.constant 0 : index
    %c0_2 = arith.constant 0 : index
    %1 = vector.load %arg3[%c0_1, %c0_2] : memref<2016x128xbf16, #tpu.memory_space<vmem>>, vector<2016x128xbf16>
    %cst = arith.constant dense<0.000000e+00> : vector<98x128xf32>
    %2 = tpu.matmul %0, %1, %cst {dimension_numbers = #tpu.dot_dimension_numbers<[1], [0], [0], [1], [0, 0, 1, 1], [], []>} : vector<98x2016xbf16>, vector<2016x128xbf16>, vector<98x128xf32> -> vector<98x128xf32>
    %c0_3 = arith.constant 0 : index
    %c0_4 = arith.constant 0 : index
    %3 = vector.load %arg4[%c0_3, %c0_4] : memref<1x128xf32, #tpu.memory_space<vmem>>, vector<1x128xf32>
    %4 = vector.broadcast %3 : vector<1x128xf32> to vector<98x128xf32>
    %5 = arith.mulf %2, %4 : vector<98x128xf32>
    %c0_5 = arith.constant 0 : index
    %c0_6 = arith.constant 0 : index
    %6 = vector.load %arg5[%c0_5, %c0_6] : memref<1x128xf32, #tpu.memory_space<vmem>>, vector<1x128xf32>
    %7 = vector.broadcast %6 : vector<1x128xf32> to vector<98x128xf32>
    %8 = arith.addf %5, %7 : vector<98x128xf32>
    %cst_7 = arith.constant 0.000000e+00 : f32
    %9 = vector.broadcast %cst_7 : f32 to vector<98x128xf32>
    %10 = arith.maximumf %8, %9 : vector<98x128xf32>
    %c0_8 = arith.constant 0 : index
    %c0_9 = arith.constant 0 : index
    %11 = vector.load %arg6[%c0_8, %c0_9] : memref<98x128xf32, #tpu.memory_space<vmem>>, vector<98x128xf32>
    tpu.vector_store %arg6[%c0_8, %c0_9], %10 {strides = array<i32>} : memref<98x128xf32, #tpu.memory_space<vmem>>, vector<98x128xf32>,
    return
  }
  func.func @transform_0(%arg0: i32, %arg1: i32) -> (i32, i32) {
    %c0_i32 = arith.constant 0 : i32
    %c0_i32_0 = arith.constant 0 : i32
    return %arg0, %c0_i32 : i32, i32
  }
  func.func @transform_1(%arg0: i32, %arg1: i32) -> (i32, i32) {
    %c0_i32 = arith.constant 0 : i32
    %c0_i32_0 = arith.constant 0 : i32
    return %c0_i32, %arg1 : i32, i32
  }
  func.func @transform_2(%arg0: i32, %arg1: i32) -> (i32, i32) {
    %c0_i32 = arith.constant 0 : i32
    %c0_i32_0 = arith.constant 0 : i32
    return %c0_i32, %arg1 : i32, i32
  }
  func.func @transform_3(%arg0: i32, %arg1: i32) -> (i32, i32) {
    %c0_i32 = arith.constant 0 : i32
    %c0_i32_0 = arith.constant 0 : i32
    return %c0_i32, %arg1 : i32, i32
  }
  func.func @transform_4(%arg0: i32, %arg1: i32) -> (i32, i32) {
    %c0_i32 = arith.constant 0 : i32
    return %arg0, %arg1 : i32, i32
  }
}

module attributes {stable_mosaic.version = 11 : i64} {
  func.func @_matmul_bn_relu_kernel(%arg0: i32, %arg1: i32, %arg2: memref<98x36xbf16, #tpu.memory_space<vmem>>, %arg3: memref<36x128xbf16, #tpu.memory_space<vmem>>, %arg4: memref<1x128xf32, #tpu.memory_space<vmem>>, %arg5: memref<1x128xf32, #tpu.memory_space<vmem>>, %arg6: memref<98x128xf32, #tpu.memory_space<vmem>>) attributes {dimension_semantics = [#tpu.dimension_semantics<parallel>, #tpu.dimension_semantics<parallel>], iteration_bounds = array<i64: 1, 3>, scalar_prefetch = 0 : i64, scratch_operands = 0 : i64, tpu.core_type = #tpu.core_type<tc>, window_params = [{transform_indices = @transform_0, window_bounds = array<i64: 98, 36>}, {transform_indices = @transform_1, window_bounds = array<i64: 36, 128>}, {transform_indices = @transform_2, window_bounds = array<i64: 1, 128>}, {transform_indices = @transform_3, window_bounds = array<i64: 1, 128>}, {transform_indices = @transform_4, window_bounds = array<i64: 98, 128>}]} {
    %c0 = arith.constant 0 : index
    %c0_0 = arith.constant 0 : index
    %0 = vector.load %arg2[%c0, %c0_0] : memref<98x36xbf16, #tpu.memory_space<vmem>>, vector<98x36xbf16>
    %c0_1 = arith.constant 0 : index
    %c0_2 = arith.constant 0 : index
    %1 = vector.load %arg3[%c0_1, %c0_2] : memref<36x128xbf16, #tpu.memory_space<vmem>>, vector<36x128xbf16>
    %cst = arith.constant dense<0.000000e+00> : vector<98x128xf32>
    %2 = tpu.matmul %0, %1, %cst {dimension_numbers = #tpu.dot_dimension_numbers<[1], [0], [0], [1], [0, 0, 1, 1], [], []>} : vector<98x36xbf16>, vector<36x128xbf16>, vector<98x128xf32> -> vector<98x128xf32>
    %c0_3 = arith.constant 0 : index
    %c0_4 = arith.constant 0 : index
    %3 = vector.load %arg4[%c0_3, %c0_4] : memref<1x128xf32, #tpu.memory_space<vmem>>, vector<1x128xf32>
    %4 = vector.broadcast %3 : vector<1x128xf32> to vector<98x128xf32>
    %5 = arith.mulf %2, %4 : vector<98x128xf32>
    %c0_5 = arith.constant 0 : index
    %c0_6 = arith.constant 0 : index
    %6 = vector.load %arg5[%c0_5, %c0_6] : memref<1x128xf32, #tpu.memory_space<vmem>>, vector<1x128xf32>
    %7 = vector.broadcast %6 : vector<1x128xf32> to vector<98x128xf32>
    %8 = arith.addf %5, %7 : vector<98x128xf32>
    %cst_7 = arith.constant 0.000000e+00 : f32
    %9 = vector.broadcast %cst_7 : f32 to vector<98x128xf32>
    %10 = arith.maximumf %8, %9 : vector<98x128xf32>
    %c0_8 = arith.constant 0 : index
    %c0_9 = arith.constant 0 : index
    %11 = vector.load %arg6[%c0_8, %c0_9] : memref<98x128xf32, #tpu.memory_space<vmem>>, vector<98x128xf32>
    tpu.vector_store %arg6[%c0_8, %c0_9], %10 {strides = array<i32>} : memref<98x128xf32, #tpu.memory_space<vmem>>, vector<98x128xf32>,
    return
  }
  func.func @transform_0(%arg0: i32, %arg1: i32) -> (i32, i32) {
    %c0_i32 = arith.constant 0 : i32
    %c0_i32_0 = arith.constant 0 : i32
    return %arg0, %c0_i32 : i32, i32
  }
  func.func @transform_1(%arg0: i32, %arg1: i32) -> (i32, i32) {
    %c0_i32 = arith.constant 0 : i32
    %c0_i32_0 = arith.constant 0 : i32
    return %c0_i32, %arg1 : i32, i32
  }
  func.func @transform_2(%arg0: i32, %arg1: i32) -> (i32, i32) {
    %c0_i32 = arith.constant 0 : i32
    %c0_i32_0 = arith.constant 0 : i32
    return %c0_i32, %arg1 : i32, i32
  }
  func.func @transform_3(%arg0: i32, %arg1: i32) -> (i32, i32) {
    %c0_i32 = arith.constant 0 : i32
    %c0_i32_0 = arith.constant 0 : i32
    return %c0_i32, %arg1 : i32, i32
  }
  func.func @transform_4(%arg0: i32, %arg1: i32) -> (i32, i32) {
    %c0_i32 = arith.constant 0 : i32
    return %arg0, %arg1 : i32, i32
  }
}

</mosaic_0001>

<llo_original>
// kernel: reduction_a_forward.9
$region0: #{reduction_a_forward.9}
  #allocation0 [shape = 'u32[]', space=smem, size = 0x4, offset = 0x4, fixed_abs, tag = 'smem constant byte address 0x4 - core index']
  #allocation1 [shape = 'u32[144,128]{1,0:T(1,128)}', space=vmem, size = 0x12000, scoped, tag = 'internal scratch']
  %s0 = inlined_call_operand.vmem [shape: f32[9,4,128], index: 0, kind: input, shape index: {}]
  %s1 = inlined_call_operand.vmem [shape: f32[4,128], index: 1, kind: output, shape index: {}]
  %s2 = sld [smem:[#allocation0]]
  $region14: #{reduction_a_forward.9} parent=0
    _
  %s4 = ssub.s32 1, %s2
  %s5 = scalar_select 0, %s4, %s2
  // Predicated region
  $region2: #{reduction_a_forward.9} parent=0 // pred_check
    _
  $region3: #{reduction_a_forward.9} parent=0 // pred_check_branch
    %7 = sbr.rel (0) target = $region5
  $region4: #{reduction_a_forward.9} parent=0 // pred_region
    _
  $region5: #{reduction_a_forward.9} parent=0 // pred_fallthru
    _
  %v8 = vld [vmem:[%s0] sm:$0xf]
  %v9 = vld [vmem:[%s0 + $0x4] sm:$0xf]
  %v10 = vld [vmem:[%s0 + $0x8] sm:$0xf]
  %v11 = vld [vmem:[%s0 + $0xc] sm:$0xf]
  %v12 = vld [vmem:[%s0 + $0x10] sm:$0xf]
  %v13 = vld [vmem:[%s0 + $0x14] sm:$0xf]
  %v14 = vld [vmem:[%s0 + $0x18] sm:$0xf]
  %v15 = vld [vmem:[%s0 + $0x1c] sm:$0xf]
  %v16 = vld [vmem:[%s0 + $0x20] sm:$0xf]
  %vm17 = vcmask 1043456
  %v18 = vsel %vm17, %v8, -inf
  %v19 = vsel %vm17, %v9, -inf
  %v20 = vsel %vm17, %v10, -inf
  %v21 = vsel %vm17, %v11, -inf
  %v22 = vsel %vm17, %v12, -inf
  %v23 = vmax.f32 %v18, %v22
  %v24 = vsel %vm17, %v13, -inf
  %v25 = vmax.f32 %v19, %v24
  %v26 = vsel %vm17, %v14, -inf
  %v27 = vmax.f32 %v20, %v26
  %v28 = vsel %vm17, %v15, -inf
  %v29 = vmax.f32 %v21, %v28
  %v30 = vsel %vm17, %v16, -inf
  %v31 = vmax.f32 %v23, %v30
  %v32 = vmax.f32 %v31, %v25
  %v33 = vmax.f32 %v27, %v29
  %v34 = vmax.f32 %v32, %v33
  %35 = vst [vmem:[%s1] sm:$0xf] %v34
  // Predicated region
  $region6: #{reduction_a_forward.9} parent=0 // pred_check
    _
  $region7: #{reduction_a_forward.9} parent=0 // pred_check_branch
    %37 = sbr.rel (0) target = $region9
  $region8: #{reduction_a_forward.9} parent=0 // pred_region
    _
  $region9: #{reduction_a_forward.9} parent=0 // pred_fallthru
    _
  // Predicated region
  $region10: #{reduction_a_forward.9} parent=0 // pred_check
    _
  $region11: #{reduction_a_forward.9} parent=0 // pred_check_branch
    %39 = sbr.rel (0) target = $region13
  $region12: #{reduction_a_forward.9} parent=0 // pred_region
    _
  $region13: #{reduction_a_forward.9} parent=0 // pred_fallthru
    _

// kernel: reduction_a_forward.6
$region0: #{reduction_a_forward.6}
  #allocation0 [shape = 'u32[]', space=smem, size = 0x4, offset = 0x4, fixed_abs, tag = 'smem constant byte address 0x4 - core index']
  #allocation1 [shape = 'u32[144,128]{1,0:T(1,128)}', space=vmem, size = 0x12000, scoped, tag = 'internal scratch']
  %s0 = inlined_call_operand.vmem [shape: bf16[512,4], index: 0, kind: input, shape index: {}]
  %s1 = inlined_call_operand.vmem [shape: bf16[4,256], index: 1, kind: input, shape index: {}]
  %s2 = inlined_call_operand.vmem [shape: f32[1,256], index: 2, kind: input, shape index: {}]
  %s3 = inlined_call_operand.vmem [shape: f32[1,256], index: 3, kind: input, shape index: {}]
  %s4 = inlined_call_operand.vmem [shape: bf16[512,256], index: 4, kind: output, shape index: {}]
  %s5 = sld [smem:[#allocation0]]
  $region49: #{reduction_a_forward.6} parent=0
    _
  %s7 = ssub.s32 1, %s5
  %s8 = scalar_select 0, %s7, %s5
  loop: start=0, step=1, limit=4
  $region2: #{reduction_a_forward.6} parent=0 // loop_pre_header
    _
  $region3: #{reduction_a_forward.6} parent=0 // loop_header
    %s10 = sphi 0, %s14
    %p11 = scmp.ge.s32.totalorder %s10, 4
    %s17 = sphi 0, %s29
    %s18 = sphi 0, %s25
    %s19 = sphi 0, %s17
    %s20 = sphi 0, %s18
    %s21 = sphi 0, %s19
    %s22 = sphi 0, %s20
    %s32 = sphi 0, %s34
    %s35 = sphi 0, %s32
    %s36 = sphi 0, %s35
    %s52 = sphi 0, %s36
    %s58 = sphi 0, %s60
    %s61 = sphi 0, %s58
    %s62 = sphi 0, %s61
    %s78 = sphi 0, %s62
    %s84 = sphi 0, %s86
    %s87 = sphi 0, %s84
    %s88 = sphi 0, %s87
    %s104 = sphi 0, %s88
    %s110 = sphi 0, %s112
    %s113 = sphi 0, %s110
    %s114 = sphi 0, %s113
    %s130 = sphi 0, %s114
    %s138 = sphi 0, %s140
    %s141 = sphi 0, %s138
    %s142 = sphi 0, %s141
    %s158 = sphi 0, %s142
  $region4: #{reduction_a_forward.6} parent=0 // loop_header_branch
    %13 = sbr.rel (%p11) target = $region8
  $region5: #{reduction_a_forward.6} parent=0 // loop_body
    %s15 = ssub.s32 %s10, 1
    %s16 = ssub.s32 %s10, 2
    %s23 = sadd.s32 1, %s18
    %p24 = scmp.ge.s32.totalorder %s23, 1
    %s25 = scalar_select %p24, 0, %s23
    %s26 = sadd.s32 1, %s17
    %s27 = scalar_select %p24, %s26, %s17
    %p28 = scmp.ge.s32.totalorder %s27, 2
    %s29 = scalar_select %p28, 0, %s27
    %s30 = ssub.s32 %s17, %s29
    %p31 = scmp.eq.s32.totalorder %s30, 0
    %s33 = sadd.s32 %s32, 1
    %s34 = scalar_select %p31, %s32, %s33
    %p37 = pneg %p31
    %p38 = scmp.eq.s32.totalorder %s10, 1
    %p39 = por %p37, %p38
    %p40 = scmp.ne.s32.totalorder %s32, %s35
    %p41 = scmp.eq.s32.totalorder %s10, 0
    %p42 = por %p40, %p41
    %p43 = scmp.ne.s32.totalorder %s32, %s35
    %p44 = scmp.eq.s32.totalorder %s15, 1
    %p45 = por %p43, %p44
    %p46 = scmp.ne.s32.totalorder %s35, %s36
    %p47 = scmp.eq.s32.totalorder %s15, 0
    %p48 = por %p46, %p47
    %p49 = scmp.ne.s32.totalorder %s35, %s36
    %p50 = scmp.eq.s32.totalorder %s16, 1
    %p51 = por %p49, %p50
    %p53 = scmp.ne.s32.totalorder %s36, %s52
    %p54 = scmp.eq.s32.totalorder %s16, 0
    %p55 = por %p53, %p54
    %s56 = ssub.s32 %s18, %s25
    %p57 = scmp.eq.s32.totalorder %s56, 0
    %s59 = sadd.s32 %s58, 1
    %s60 = scalar_select %p57, %s58, %s59
    %p63 = pneg %p57
    %p64 = scmp.eq.s32.totalorder %s10, 1
    %p65 = por %p63, %p64
    %p66 = scmp.ne.s32.totalorder %s58, %s61
    %p67 = scmp.eq.s32.totalorder %s10, 0
    %p68 = por %p66, %p67
    %p69 = scmp.ne.s32.totalorder %s58, %s61
    %p70 = scmp.eq.s32.totalorder %s15, 1
    %p71 = por %p69, %p70
    %p72 = scmp.ne.s32.totalorder %s61, %s62
    %p73 = scmp.eq.s32.totalorder %s15, 0
    %p74 = por %p72, %p73
    %p75 = scmp.ne.s32.totalorder %s61, %s62
    %p76 = scmp.eq.s32.totalorder %s16, 1
    %p77 = por %p75, %p76
    %p79 = scmp.ne.s32.totalorder %s62, %s78
    %p80 = scmp.eq.s32.totalorder %s16, 0
    %p81 = por %p79, %p80
    %s82 = ssub.s32 %s18, %s25
    %p83 = scmp.eq.s32.totalorder %s82, 0
    %s85 = sadd.s32 %s84, 1
    %s86 = scalar_select %p83, %s84, %s85
    %p89 = pneg %p83
    %p90 = scmp.eq.s32.totalorder %s10, 1
    %p91 = por %p89, %p90
    %p92 = scmp.ne.s32.totalorder %s84, %s87
    %p93 = scmp.eq.s32.totalorder %s10, 0
    %p94 = por %p92, %p93
    %p95 = scmp.ne.s32.totalorder %s84, %s87
    %p96 = scmp.eq.s32.totalorder %s15, 1
    %p97 = por %p95, %p96
    %p98 = scmp.ne.s32.totalorder %s87, %s88
    %p99 = scmp.eq.s32.totalorder %s15, 0
    %p100 = por %p98, %p99
    %p101 = scmp.ne.s32.totalorder %s87, %s88
    %p102 = scmp.eq.s32.totalorder %s16, 1
    %p103 = por %p101, %p102
    %p105 = scmp.ne.s32.totalorder %s88, %s104
    %p106 = scmp.eq.s32.totalorder %s16, 0
    %p107 = por %p105, %p106
    %s108 = ssub.s32 %s18, %s25
    %p109 = scmp.eq.s32.totalorder %s108, 0
    %s111 = sadd.s32 %s110, 1
    %s112 = scalar_select %p109, %s110, %s111
    %p115 = pneg %p109
    %p116 = scmp.eq.s32.totalorder %s10, 1
    %p117 = por %p115, %p116
    %p118 = scmp.ne.s32.totalorder %s110, %s113
    %p119 = scmp.eq.s32.totalorder %s10, 0
    %p120 = por %p118, %p119
    %p121 = scmp.ne.s32.totalorder %s110, %s113
    %p122 = scmp.eq.s32.totalorder %s15, 1
    %p123 = por %p121, %p122
    %p124 = scmp.ne.s32.totalorder %s113, %s114
    %p125 = scmp.eq.s32.totalorder %s15, 0
    %p126 = por %p124, %p125
    %p127 = scmp.ne.s32.totalorder %s113, %s114
    %p128 = scmp.eq.s32.totalorder %s16, 1
    %p129 = por %p127, %p128
    %p131 = scmp.ne.s32.totalorder %s114, %s130
    %p132 = scmp.eq.s32.totalorder %s16, 0
    %p133 = por %p131, %p132
    %s134 = ssub.s32 %s17, %s29
    %s135 = ssub.s32 %s18, %s25
    %s136 = sor.u32 %s134, %s135
    %p137 = scmp.eq.s32.totalorder %s136, 0
    %s139 = sadd.s32 %s138, 1
    %s140 = scalar_select %p137, %s138, %s139
    %p143 = pneg %p137
    %p144 = scmp.eq.s32.totalorder %s10, 1
    %p145 = por %p143, %p144
    %p146 = scmp.ne.s32.totalorder %s138, %s141
    %p147 = scmp.eq.s32.totalorder %s10, 0
    %p148 = por %p146, %p147
    %p149 = scmp.ne.s32.totalorder %s138, %s141
    %p150 = scmp.eq.s32.totalorder %s15, 1
    %p151 = por %p149, %p150
    %p152 = scmp.ne.s32.totalorder %s141, %s142
    %p153 = scmp.eq.s32.totalorder %s15, 0
    %p154 = por %p152, %p153
    %p155 = scmp.ne.s32.totalorder %s141, %s142
    %p156 = scmp.eq.s32.totalorder %s16, 1
    %p157 = por %p155, %p156
    %p159 = scmp.ne.s32.totalorder %s142, %s158
    %p160 = scmp.eq.s32.totalorder %s16, 0
    %p161 = por %p159, %p160
    %p162 = scmp.le.s32.totalorder 1, %s10
    %p163 = scmp.lt.s32.totalorder %s10, 3
    %p164 = pnand %p162, %p163
    %p165 = pneg %p164
    // Predicated region
    $region9: #{reduction_a_forward.6} parent=5 // pred_check
      _
    $region10: #{reduction_a_forward.6} parent=5 // pred_check_branch
      %167 = sbr.rel (%p164) target = $region12
    $region11: #{reduction_a_forward.6} parent=5 // pred_region
      %s168 = ssub.s32 %s10, 1
      // Predicated region
      $region13: #{reduction_a_forward.6} parent=11 // pred_check
        %p169 = pneg %p74
      $region14: #{reduction_a_forward.6} parent=11 // pred_check_branch
        %171 = sbr.rel (%p169) target = $region16
      $region15: #{reduction_a_forward.6} parent=11 // pred_region
        %s172 = smul.u32 2, %s20
        %p173 = scmp.lt.s32.totalorder %s172, 1
        %s174 = scalar_select %p173, %s172, 1
        %s175 = smul.addr %s174, 2
        %s176 = scalar_lea.vmem %s1, %s175
        %s177 = smul.u32 2, %s20
      $region16: #{reduction_a_forward.6} parent=11 // pred_fallthru
        _
      // Predicated region
      $region17: #{reduction_a_forward.6} parent=11 // pred_check
        %p178 = pneg %p100
      $region18: #{reduction_a_forward.6} parent=11 // pred_check_branch
        %180 = sbr.rel (%p178) target = $region20
      $region19: #{reduction_a_forward.6} parent=11 // pred_region
        %s181 = smul.u32 2, %s20
        %p182 = scmp.lt.s32.totalorder %s181, 1
        %s183 = scalar_select %p182, %s181, 1
        %s184 = scalar_lea.vmem %s2, %s183
        %s185 = smul.u32 2, %s20
      $region20: #{reduction_a_forward.6} parent=11 // pred_fallthru
        _
      // Predicated region
      $region21: #{reduction_a_forward.6} parent=11 // pred_check
        %p186 = pneg %p126
      $region22: #{reduction_a_forward.6} parent=11 // pred_check_branch
        %188 = sbr.rel (%p186) target = $region24
      $region23: #{reduction_a_forward.6} parent=11 // pred_region
        %s189 = smul.u32 2, %s20
        %p190 = scmp.lt.s32.totalorder %s189, 1
        %s191 = scalar_select %p190, %s189, 1
        %s192 = scalar_lea.vmem %s3, %s191
        %s193 = smul.u32 2, %s20
      $region24: #{reduction_a_forward.6} parent=11 // pred_fallthru
        _
    $region12: #{reduction_a_forward.6} parent=5 // pred_fallthru
      _
    %p194 = scmp.lt.s32.totalorder %s10, 2
    // Predicated region
    $region25: #{reduction_a_forward.6} parent=5 // pred_check
      %p195 = pneg %p194
    $region26: #{reduction_a_forward.6} parent=5 // pred_check_branch
      %197 = sbr.rel (%p195) target = $region28
    $region27: #{reduction_a_forward.6} parent=5 // pred_region
      // Predicated region
      $region29: #{reduction_a_forward.6} parent=27 // pred_check
        %p198 = pneg %p42
      $region30: #{reduction_a_forward.6} parent=27 // pred_check_branch
        %200 = sbr.rel (%p198) target = $region32
      $region31: #{reduction_a_forward.6} parent=27 // pred_region
        %s201 = smul.u32 32, %s17
        %p202 = scmp.lt.s32.totalorder %s201, 63
        %s203 = scalar_select %p202, %s201, 63
        %s204 = smul.addr %s203, 4
        %s205 = scalar_lea.vmem %s0, %s204
        %s206 = smul.u32 32, %s17
      $region32: #{reduction_a_forward.6} parent=27 // pred_fallthru
        _
    $region28: #{reduction_a_forward.6} parent=5 // pred_fallthru
      _
    %p207 = scmp.le.s32.totalorder 1, %s10
    %p208 = scmp.lt.s32.totalorder %s10, 3
    %p209 = pnand %p207, %p208
    %p210 = pneg %p209
    // Predicated region
    $region33: #{reduction_a_forward.6} parent=5 // pred_check
      _
    $region34: #{reduction_a_forward.6} parent=5 // pred_check_branch
      %212 = sbr.rel (%p209) target = $region36
    $region35: #{reduction_a_forward.6} parent=5 // pred_region
      %s213 = ssub.s32 %s10, 1
      %s214 = smul.u32 32, %s19
      %p215 = scmp.lt.s32.totalorder %s214, 63
      %s216 = scalar_select %p215, %s214, 63
      %s217 = smul.addr %s216, 4
      %s218 = scalar_lea.vmem %s0, %s217
      %p219 = pneg %p48
      %p220 = pneg %p45
      %s221 = smul.u32 2, %s20
      %p222 = scmp.lt.s32.totalorder %s221, 1
      %s223 = scalar_select %p222, %s221, 1
      %s224 = smul.addr %s223, 2
      %s225 = scalar_lea.vmem %s1, %s224
      %p226 = pneg %p74
      %p227 = pneg %p71
      %s228 = smul.u32 2, %s20
      %p229 = scmp.lt.s32.totalorder %s228, 1
      %s230 = scalar_select %p229, %s228, 1
      %s231 = scalar_lea.vmem %s2, %s230
      %p232 = pneg %p100
      %p233 = pneg %p97
      %s234 = smul.u32 2, %s20
      %p235 = scmp.lt.s32.totalorder %s234, 1
      %s236 = scalar_select %p235, %s234, 1
      %s237 = scalar_lea.vmem %s3, %s236
      %p238 = pneg %p126
      %p239 = pneg %p123
      %p240 = pneg %p154
      %p241 = pneg %p151
      %s242 = smul.u32 32, %s19
      %s243 = smul.u32 2, %s20
      %p244 = scmp.lt.s32.totalorder %s242, 63
      %s245 = scalar_select %p244, %s242, 63
      %p246 = scmp.lt.s32.totalorder %s243, 1
      %s247 = scalar_select %p246, %s243, 1
      %s248 = smul.addr %s245, 2
      %s249 = sadd.s32 %s247, %s248
      %s250 = smul.addr %s249, 4
      %s251 = scalar_lea.vmem %s4, %s250
      %s252 = smul.u32 32, %s19
      %p253 = scmp.lt.s32.totalorder %s252, 63
      %s254 = scalar_select %p253, %s252, 63
      %s255 = smul.addr %s254, 4
      %s256 = scalar_lea.vmem %s0, %s255
      %s257 = smul.u32 32, %s19
      %s258 = smul.u32 2, %s20
      %p259 = scmp.lt.s32.totalorder %s258, 1
      %s260 = scalar_select %p259, %s258, 1
      %s261 = smul.addr %s260, 2
      %s262 = scalar_lea.vmem %s1, %s261
      %s263 = smul.u32 2, %s20
      %s264 = smul.u32 2, %s20
      %p265 = scmp.lt.s32.totalorder %s264, 1
      %s266 = scalar_select %p265, %s264, 1
      %s267 = scalar_lea.vmem %s2, %s266
      %s268 = smul.u32 2, %s20
      %s269 = smul.u32 2, %s20
      %p270 = scmp.lt.s32.totalorder %s269, 1
      %s271 = scalar_select %p270, %s269, 1
      %s272 = scalar_lea.vmem %s3, %s271
      %s273 = smul.u32 2, %s20
      %s274 = smul.u32 32, %s19
      %s275 = smul.u32 2, %s20
      %p276 = scmp.lt.s32.totalorder %s274, 63
      %s277 = scalar_select %p276, %s274, 63
      %p278 = scmp.lt.s32.totalorder %s275, 1
      %s279 = scalar_select %p278, %s275, 1
      %s280 = smul.addr %s277, 2
      %s281 = sadd.s32 %s279, %s280
      %s282 = smul.addr %s281, 4
      %s283 = scalar_lea.vmem %s4, %s282
      %s284 = smul.u32 32, %s19
      %s285 = smul.u32 2, %s20
      %v287 = vld [vmem:[%s256] sm:$0xf]
      %v288 = vld [vmem:[%s256 + $0x4] sm:$0xf]
      %v289 = vld [vmem:[%s256 + $0x8] sm:$0xf]
      %v290 = vld [vmem:[%s256 + $0xc] sm:$0xf]
      %v291 = vld [vmem:[%s256 + $0x10] sm:$0xf]
      %v292 = vld [vmem:[%s256 + $0x14] sm:$0xf]
      %v293 = vld [vmem:[%s256 + $0x18] sm:$0xf]
      %v294 = vld [vmem:[%s256 + $0x1c] sm:$0xf]
      %v295 = vld [vmem:[%s256 + $0x20] sm:$0xf]
      %v296 = vld [vmem:[%s256 + $0x24] sm:$0xf]
      %v297 = vld [vmem:[%s256 + $0x28] sm:$0xf]
      %v298 = vld [vmem:[%s256 + $0x2c] sm:$0xf]
      %v299 = vld [vmem:[%s256 + $0x30] sm:$0xf]
      %v300 = vld [vmem:[%s256 + $0x34] sm:$0xf]
      %v301 = vld [vmem:[%s256 + $0x38] sm:$0xf]
      %v302 = vld [vmem:[%s256 + $0x3c] sm:$0xf]
      %v303 = vld [vmem:[%s256 + $0x40] sm:$0xf]
      %v304 = vld [vmem:[%s256 + $0x44] sm:$0xf]
      %v305 = vld [vmem:[%s256 + $0x48] sm:$0xf]
      %v306 = vld [vmem:[%s256 + $0x4c] sm:$0xf]
      %v307 = vld [vmem:[%s256 + $0x50] sm:$0xf]
      %v308 = vld [vmem:[%s256 + $0x54] sm:$0xf]
      %v309 = vld [vmem:[%s256 + $0x58] sm:$0xf]
      %v310 = vld [vmem:[%s256 + $0x5c] sm:$0xf]
      %v311 = vld [vmem:[%s256 + $0x60] sm:$0xf]
      %v312 = vld [vmem:[%s256 + $0x64] sm:$0xf]
      %v313 = vld [vmem:[%s256 + $0x68] sm:$0xf]
      %v314 = vld [vmem:[%s256 + $0x6c] sm:$0xf]
      %v315 = vld [vmem:[%s256 + $0x70] sm:$0xf]
      %v316 = vld [vmem:[%s256 + $0x74] sm:$0xf]
      %v317 = vld [vmem:[%s256 + $0x78] sm:$0xf]
      %v318 = vld [vmem:[%s256 + $0x7c] sm:$0xf]
      %v319 = vld [vmem:[%s262] sm:$0xf]
      %v352 = vunpack.c.l.b16 %v287
      %v353 = vunpack.c.l.b16 %v288
      %v354 = vunpack.c.l.b16 %v289
      %v355 = vunpack.c.l.b16 %v290
      %v356 = vunpack.c.l.b16 %v291
      %v357 = vunpack.c.l.b16 %v292
      %v358 = vunpack.c.l.b16 %v293
      %v359 = vunpack.c.l.b16 %v294
      %v360 = vunpack.c.l.b16 %v295
      %v361 = vunpack.c.l.b16 %v296
      %v362 = vunpack.c.l.b16 %v297
      %v363 = vunpack.c.l.b16 %v298
      %v364 = vunpack.c.l.b16 %v299
      %v365 = vunpack.c.l.b16 %v300
      %v366 = vunpack.c.l.b16 %v301
      %v367 = vunpack.c.l.b16 %v302
      %v368 = vunpack.c.l.b16 %v303
      %v369 = vunpack.c.l.b16 %v304
      %v370 = vunpack.c.l.b16 %v305
      %v371 = vunpack.c.l.b16 %v306
      %v372 = vunpack.c.l.b16 %v307
      %v373 = vunpack.c.l.b16 %v308
      %v374 = vunpack.c.l.b16 %v309
      %v375 = vunpack.c.l.b16 %v310
      %v376 = vunpack.c.l.b16 %v311
      %v377 = vunpack.c.l.b16 %v312
      %v378 = vunpack.c.l.b16 %v313
      %v379 = vunpack.c.l.b16 %v314
      %v380 = vunpack.c.l.b16 %v315
      %v381 = vunpack.c.l.b16 %v316
      %v382 = vunpack.c.l.b16 %v317
      %v383 = vunpack.c.l.b16 %v318
      %v384 = vpack.c.b16 %v353, %v352
      %v385 = vpack.c.b16 %v355, %v354
      %v386 = vpack.c.b16 %v357, %v356
      %v387 = vpack.c.b16 %v359, %v358
      %v388 = vpack.c.b16 %v361, %v360
      %v389 = vpack.c.b16 %v363, %v362
      %v390 = vpack.c.b16 %v365, %v364
      %v391 = vpack.c.b16 %v367, %v366
      %v392 = vpack.c.b16 %v369, %v368
      %v393 = vpack.c.b16 %v371, %v370
      %v394 = vpack.c.b16 %v373, %v372
      %v395 = vpack.c.b16 %v375, %v374
      %v396 = vpack.c.b16 %v377, %v376
      %v397 = vpack.c.b16 %v379, %v378
      %v398 = vpack.c.b16 %v381, %v380
      %v399 = vpack.c.b16 %v383, %v382
      %v402 = vunpack.c.l.s4 1983009808
      %v403 = vunpack.c.0.s8 %v402
      %v404 = vlaneseq
      %v405 = vshrl.u32 %v404, 7
      %v406 = vsub.s32 %v403, %v405
      %v407 = vrot.slane %v319, %v406
      %v408 = vcombine.high %v407, %v407
      %vm409 = vcmask 31744
      %v411 = vsel %vm409, %v384, 0
      %v414 = vsel %vm409, %v385, 0
      %v417 = vsel %vm409, %v386, 0
      %v420 = vsel %vm409, %v387, 0
      %v423 = vsel %vm409, %v388, 0
      %v426 = vsel %vm409, %v389, 0
      %v429 = vsel %vm409, %v390, 0
      %v432 = vsel %vm409, %v391, 0
      %v435 = vsel %vm409, %v392, 0
      %v438 = vsel %vm409, %v393, 0
      %v441 = vsel %vm409, %v394, 0
      %v444 = vsel %vm409, %v395, 0
      %v447 = vsel %vm409, %v396, 0
      %v450 = vsel %vm409, %v397, 0
      %v453 = vsel %vm409, %v398, 0
      %v456 = vsel %vm409, %v399, 0
      %vm458 = vcmask 1041408
      %v460 = vsel %vm458, %v407, 0
      %v463 = vsel %vm458, %v408, 0
      %465 = vmatprep.subr.bf16.mxu0 %v463
      %466 = vmatpush1.bf16.msra.mxu0 %v460
      %467 = vmatprep.subr.bf16.mxu0 0
      %468 = vmatpush1.bf16.msra.mxu0 0
      %469 = vmatprep.subr.bf16.mxu0 0
      %470 = vmatpush1.bf16.msra.mxu0 0
      %471 = vmatprep.subr.bf16.mxu0 0
      %472 = vmatpush1.bf16.msra.mxu0 0
      %473 = vmatprep.subr.bf16.mxu0 0
      %474 = vmatpush1.bf16.msra.mxu0 0
      %475 = vmatprep.subr.bf16.mxu0 0
      %476 = vmatpush1.bf16.msra.mxu0 0
      %477 = vmatprep.subr.bf16.mxu0 0
      %478 = vmatpush1.bf16.msra.mxu0 0
      %479 = vmatprep.subr.bf16.mxu0 0
      %480 = vmatpush1.bf16.msra.mxu0 0
      %481 = vmatprep.subr.bf16.mxu0 0
      %482 = vmatpush1.bf16.msra.mxu0 0
      %483 = vmatprep.subr.bf16.mxu0 0
      %484 = vmatpush1.bf16.msra.mxu0 0
      %485 = vmatprep.subr.bf16.mxu0 0
      %486 = vmatpush1.bf16.msra.mxu0 0
      %487 = vmatprep.subr.bf16.mxu0 0
      %488 = vmatpush1.bf16.msra.mxu0 0
      %489 = vmatprep.subr.bf16.mxu0 0
      %490 = vmatpush1.bf16.msra.mxu0 0
      %491 = vmatprep.subr.bf16.mxu0 0
      %492 = vmatpush1.bf16.msra.mxu0 0
      %493 = vmatprep.subr.bf16.mxu0 0
      %494 = vmatpush1.bf16.msra.mxu0 0
      %495 = vmatprep.subr.bf16.mxu0 0
      %496 = vmatpush1.bf16.msra.mxu0 0
      %497 = vmatprep.mubr.bf16.mxu0 0
      %498 = vmatmul.mubr.bf16.gmra.mrb[0].mxu0 %v411
      %v499 = vpop.f32.mrb[0].mxu0
      %v500 = vadd.f32 0.0, %v499
      %v501 = vpop.f32.mrb[0].mxu0
      %v502 = vadd.f32 0.0, %v501
      %v503 = vpop.f32.mrb[0].mxu0
      %v504 = vadd.f32 0.0, %v503
      %v505 = vpop.f32.mrb[0].mxu0
      %v506 = vadd.f32 0.0, %v505
      %507 = vmatprep.mubr.bf16.mxu0 0
      %508 = vmatmul.mubr.bf16.gmra.mrb[0].mxu0 %v414
      %v509 = vpop.f32.mrb[0].mxu0
      %v510 = vadd.f32 0.0, %v509
      %v511 = vpop.f32.mrb[0].mxu0
      %v512 = vadd.f32 0.0, %v511
      %v513 = vpop.f32.mrb[0].mxu0
      %v514 = vadd.f32 0.0, %v513
      %v515 = vpop.f32.mrb[0].mxu0
      %v516 = vadd.f32 0.0, %v515
      %517 = vmatprep.mubr.bf16.mxu0 0
      %518 = vmatmul.mubr.bf16.gmra.mrb[0].mxu0 %v417
      %v519 = vpop.f32.mrb[0].mxu0
      %v520 = vadd.f32 0.0, %v519
      %v521 = vpop.f32.mrb[0].mxu0
      %v522 = vadd.f32 0.0, %v521
      %v523 = vpop.f32.mrb[0].mxu0
      %v524 = vadd.f32 0.0, %v523
      %v525 = vpop.f32.mrb[0].mxu0
      %v526 = vadd.f32 0.0, %v525
      %527 = vmatprep.mubr.bf16.mxu0 0
      %528 = vmatmul.mubr.bf16.gmra.mrb[0].mxu0 %v420
      %v529 = vpop.f32.mrb[0].mxu0
      %v530 = vadd.f32 0.0, %v529
      %v531 = vpop.f32.mrb[0].mxu0
      %v532 = vadd.f32 0.0, %v531
      %v533 = vpop.f32.mrb[0].mxu0
      %v534 = vadd.f32 0.0, %v533
      %v535 = vpop.f32.mrb[0].mxu0
      %v536 = vadd.f32 0.0, %v535
      %537 = vmatprep.mubr.bf16.mxu0 0
      %538 = vmatmul.mubr.bf16.gmra.mrb[0].mxu0 %v423
      %v539 = vpop.f32.mrb[0].mxu0
      %v540 = vadd.f32 0.0, %v539
      %v541 = vpop.f32.mrb[0].mxu0
      %v542 = vadd.f32 0.0, %v541
      %v543 = vpop.f32.mrb[0].mxu0
      %v544 = vadd.f32 0.0, %v543
      %v545 = vpop.f32.mrb[0].mxu0
      %v546 = vadd.f32 0.0, %v545
      %547 = vmatprep.mubr.bf16.mxu0 0
      %548 = vmatmul.mubr.bf16.gmra.mrb[0].mxu0 %v426
      %v549 = vpop.f32.mrb[0].mxu0
      %v550 = vadd.f32 0.0, %v549
      %v551 = vpop.f32.mrb[0].mxu0
      %v552 = vadd.f32 0.0, %v551
      %v553 = vpop.f32.mrb[0].mxu0
      %v554 = vadd.f32 0.0, %v553
      %v555 = vpop.f32.mrb[0].mxu0
      %v556 = vadd.f32 0.0, %v555
      %557 = vmatprep.mubr.bf16.mxu0 0
      %558 = vmatmul.mubr.bf16.gmra.mrb[0].mxu0 %v429
      %v559 = vpop.f32.mrb[0].mxu0
      %v560 = vadd.f32 0.0, %v559
      %v561 = vpop.f32.mrb[0].mxu0
      %v562 = vadd.f32 0.0, %v561
      %v563 = vpop.f32.mrb[0].mxu0
      %v564 = vadd.f32 0.0, %v563
      %v565 = vpop.f32.mrb[0].mxu0
      %v566 = vadd.f32 0.0, %v565
      %567 = vmatprep.mubr.bf16.mxu0 0
      %568 = vmatmul.mubr.bf16.gmra.mrb[0].mxu0 %v432
      %v569 = vpop.f32.mrb[0].mxu0
      %v570 = vadd.f32 0.0, %v569
      %v571 = vpop.f32.mrb[0].mxu0
      %v572 = vadd.f32 0.0, %v571
      %v573 = vpop.f32.mrb[0].mxu0
      %v574 = vadd.f32 0.0, %v573
      %v575 = vpop.f32.mrb[0].mxu0
      %v576 = vadd.f32 0.0, %v575
      %577 = vmatprep.mubr.bf16.mxu0 0
      %578 = vmatmul.mubr.bf16.gmra.mrb[0].mxu0 %v435
      %v579 = vpop.f32.mrb[0].mxu0
      %v580 = vadd.f32 0.0, %v579
      %v581 = vpop.f32.mrb[0].mxu0
      %v582 = vadd.f32 0.0, %v581
      %v583 = vpop.f32.mrb[0].mxu0
      %v584 = vadd.f32 0.0, %v583
      %v585 = vpop.f32.mrb[0].mxu0
      %v586 = vadd.f32 0.0, %v585
      %587 = vmatprep.mubr.bf16.mxu0 0
      %588 = vmatmul.mubr.bf16.gmra.mrb[0].mxu0 %v438
      %v589 = vpop.f32.mrb[0].mxu0
      %v590 = vadd.f32 0.0, %v589
      %v591 = vpop.f32.mrb[0].mxu0
      %v592 = vadd.f32 0.0, %v591
      %v593 = vpop.f32.mrb[0].mxu0
      %v594 = vadd.f32 0.0, %v593
      %v595 = vpop.f32.mrb[0].mxu0
      %v596 = vadd.f32 0.0, %v595
      %597 = vmatprep.mubr.bf16.mxu0 0
      %598 = vmatmul.mubr.bf16.gmra.mrb[0].mxu0 %v441
      %v599 = vpop.f32.mrb[0].mxu0
      %v600 = vadd.f32 0.0, %v599
      %v601 = vpop.f32.mrb[0].mxu0
      %v602 = vadd.f32 0.0, %v601
      %v603 = vpop.f32.mrb[0].mxu0
      %v604 = vadd.f32 0.0, %v603
      %v605 = vpop.f32.mrb[0].mxu0
      %v606 = vadd.f32 0.0, %v605
      %607 = vmatprep.mubr.bf16.mxu0 0
      %608 = vmatmul.mubr.bf16.gmra.mrb[0].mxu0 %v444
      %v609 = vpop.f32.mrb[0].mxu0
      %v610 = vadd.f32 0.0, %v609
      %v611 = vpop.f32.mrb[0].mxu0
      %v612 = vadd.f32 0.0, %v611
      %v613 = vpop.f32.mrb[0].mxu0
      %v614 = vadd.f32 0.0, %v613
      %v615 = vpop.f32.mrb[0].mxu0
      %v616 = vadd.f32 0.0, %v615
      %617 = vmatprep.mubr.bf16.mxu0 0
      %618 = vmatmul.mubr.bf16.gmra.mrb[0].mxu0 %v447
      %v619 = vpop.f32.mrb[0].mxu0
      %v620 = vadd.f32 0.0, %v619
      %v621 = vpop.f32.mrb[0].mxu0
      %v622 = vadd.f32 0.0, %v621
      %v623 = vpop.f32.mrb[0].mxu0
      %v624 = vadd.f32 0.0, %v623
      %v625 = vpop.f32.mrb[0].mxu0
      %v626 = vadd.f32 0.0, %v625
      %627 = vmatprep.mubr.bf16.mxu0 0
      %628 = vmatmul.mubr.bf16.gmra.mrb[0].mxu0 %v450
      %v629 = vpop.f32.mrb[0].mxu0
      %v630 = vadd.f32 0.0, %v629
      %v631 = vpop.f32.mrb[0].mxu0
      %v632 = vadd.f32 0.0, %v631
      %v633 = vpop.f32.mrb[0].mxu0
      %v634 = vadd.f32 0.0, %v633
      %v635 = vpop.f32.mrb[0].mxu0
      %v636 = vadd.f32 0.0, %v635
      %637 = vmatprep.mubr.bf16.mxu0 0
      %638 = vmatmul.mubr.bf16.gmra.mrb[0].mxu0 %v453
      %v639 = vpop.f32.mrb[0].mxu0
      %v640 = vadd.f32 0.0, %v639
      %v641 = vpop.f32.mrb[0].mxu0
      %v642 = vadd.f32 0.0, %v641
      %v643 = vpop.f32.mrb[0].mxu0
      %v644 = vadd.f32 0.0, %v643
      %v645 = vpop.f32.mrb[0].mxu0
      %v646 = vadd.f32 0.0, %v645
      %647 = vmatprep.mubr.bf16.mxu0 0
      %648 = vmatmul.mubr.bf16.gmra.mrb[0].mxu0 %v456
      %v649 = vpop.f32.mrb[0].mxu0
      %v650 = vadd.f32 0.0, %v649
      %v651 = vpop.f32.mrb[0].mxu0
      %v652 = vadd.f32 0.0, %v651
      %v653 = vpop.f32.mrb[0].mxu0
      %v654 = vadd.f32 0.0, %v653
      %v655 = vpop.f32.mrb[0].mxu0
      %v656 = vadd.f32 0.0, %v655
      %657 = vdwg.mxu0
      %v658 = vld [vmem:[%s267] sm:$0x3]
      %v660 = vlaneseq
      %v661 = vshrl.u32 %v660, 7
      %v662 = vsub.s32 0, %v661
      %v663 = vrot.slane %v658, %v662
      %v664 = vlaneseq
      %v665 = vshrl.u32 %v664, 7
      %v666 = vsub.s32 1, %v665
      %v667 = vrot.slane %v658, %v666
      %v670 = vmul.f32 %v500, %v663
      %v671 = vmul.f32 %v502, %v667
      %v672 = vmul.f32 %v504, %v663
      %v673 = vmul.f32 %v506, %v667
      %v674 = vmul.f32 %v510, %v663
      %v675 = vmul.f32 %v512, %v667
      %v676 = vmul.f32 %v514, %v663
      %v677 = vmul.f32 %v516, %v667
      %v678 = vmul.f32 %v520, %v663
      %v679 = vmul.f32 %v522, %v667
      %v680 = vmul.f32 %v524, %v663
      %v681 = vmul.f32 %v526, %v667
      %v682 = vmul.f32 %v530, %v663
      %v683 = vmul.f32 %v532, %v667
      %v684 = vmul.f32 %v534, %v663
      %v685 = vmul.f32 %v536, %v667
      %v686 = vmul.f32 %v540, %v663
      %v687 = vmul.f32 %v542, %v667
      %v688 = vmul.f32 %v544, %v663
      %v689 = vmul.f32 %v546, %v667
      %v690 = vmul.f32 %v550, %v663
      %v691 = vmul.f32 %v552, %v667
      %v692 = vmul.f32 %v554, %v663
      %v693 = vmul.f32 %v556, %v667
      %v694 = vmul.f32 %v560, %v663
      %v695 = vmul.f32 %v562, %v667
      %v696 = vmul.f32 %v564, %v663
      %v697 = vmul.f32 %v566, %v667
      %v698 = vmul.f32 %v570, %v663
      %v699 = vmul.f32 %v572, %v667
      %v700 = vmul.f32 %v574, %v663
      %v701 = vmul.f32 %v576, %v667
      %v702 = vmul.f32 %v580, %v663
      %v703 = vmul.f32 %v582, %v667
      %v704 = vmul.f32 %v584, %v663
      %v705 = vmul.f32 %v586, %v667
      %v706 = vmul.f32 %v590, %v663
      %v707 = vmul.f32 %v592, %v667
      %v708 = vmul.f32 %v594, %v663
      %v709 = vmul.f32 %v596, %v667
      %v710 = vmul.f32 %v600, %v663
      %v711 = vmul.f32 %v602, %v667
      %v712 = vmul.f32 %v604, %v663
      %v713 = vmul.f32 %v606, %v667
      %v714 = vmul.f32 %v610, %v663
      %v715 = vmul.f32 %v612, %v667
      %v716 = vmul.f32 %v614, %v663
      %v717 = vmul.f32 %v616, %v667
      %v718 = vmul.f32 %v620, %v663
      %v719 = vmul.f32 %v622, %v667
      %v720 = vmul.f32 %v624, %v663
      %v721 = vmul.f32 %v626, %v667
      %v722 = vmul.f32 %v630, %v663
      %v723 = vmul.f32 %v632, %v667
      %v724 = vmul.f32 %v634, %v663
      %v725 = vmul.f32 %v636, %v667
      %v726 = vmul.f32 %v640, %v663
      %v727 = vmul.f32 %v642, %v667
      %v728 = vmul.f32 %v644, %v663
      %v729 = vmul.f32 %v646, %v667
      %v730 = vmul.f32 %v650, %v663
      %v731 = vmul.f32 %v652, %v667
      %v732 = vmul.f32 %v654, %v663
      %v733 = vmul.f32 %v656, %v667
      %v734 = vld [vmem:[%s272] sm:$0x3]
      %v736 = vlaneseq
      %v737 = vshrl.u32 %v736, 7
      %v738 = vsub.s32 0, %v737
      %v739 = vrot.slane %v734, %v738
      %v740 = vlaneseq
      %v741 = vshrl.u32 %v740, 7
      %v742 = vsub.s32 1, %v741
      %v743 = vrot.slane %v734, %v742
      %v746 = vadd.f32 %v670, %v739
      %v747 = vadd.f32 %v671, %v743
      %v748 = vadd.f32 %v672, %v739
      %v749 = vadd.f32 %v673, %v743
      %v750 = vadd.f32 %v674, %v739
      %v751 = vadd.f32 %v675, %v743
      %v752 = vadd.f32 %v676, %v739
      %v753 = vadd.f32 %v677, %v743
      %v754 = vadd.f32 %v678, %v739
      %v755 = vadd.f32 %v679, %v743
      %v756 = vadd.f32 %v680, %v739
      %v757 = vadd.f32 %v681, %v743
      %v758 = vadd.f32 %v682, %v739
      %v759 = vadd.f32 %v683, %v743
      %v760 = vadd.f32 %v684, %v739
      %v761 = vadd.f32 %v685, %v743
      %v762 = vadd.f32 %v686, %v739
      %v763 = vadd.f32 %v687, %v743
      %v764 = vadd.f32 %v688, %v739
      %v765 = vadd.f32 %v689, %v743
      %v766 = vadd.f32 %v690, %v739
      %v767 = vadd.f32 %v691, %v743
      %v768 = vadd.f32 %v692, %v739
      %v769 = vadd.f32 %v693, %v743
      %v770 = vadd.f32 %v694, %v739
      %v771 = vadd.f32 %v695, %v743
      %v772 = vadd.f32 %v696, %v739
      %v773 = vadd.f32 %v697, %v743
      %v774 = vadd.f32 %v698, %v739
      %v775 = vadd.f32 %v699, %v743
      %v776 = vadd.f32 %v700, %v739
      %v777 = vadd.f32 %v701, %v743
      %v778 = vadd.f32 %v702, %v739
      %v779 = vadd.f32 %v703, %v743
      %v780 = vadd.f32 %v704, %v739
      %v781 = vadd.f32 %v705, %v743
      %v782 = vadd.f32 %v706, %v739
      %v783 = vadd.f32 %v707, %v743
      %v784 = vadd.f32 %v708, %v739
      %v785 = vadd.f32 %v709, %v743
      %v786 = vadd.f32 %v710, %v739
      %v787 = vadd.f32 %v711, %v743
      %v788 = vadd.f32 %v712, %v739
      %v789 = vadd.f32 %v713, %v743
      %v790 = vadd.f32 %v714, %v739
      %v791 = vadd.f32 %v715, %v743
      %v792 = vadd.f32 %v716, %v739
      %v793 = vadd.f32 %v717, %v743
      %v794 = vadd.f32 %v718, %v739
      %v795 = vadd.f32 %v719, %v743
      %v796 = vadd.f32 %v720, %v739
      %v797 = vadd.f32 %v721, %v743
      %v798 = vadd.f32 %v722, %v739
      %v799 = vadd.f32 %v723, %v743
      %v800 = vadd.f32 %v724, %v739
      %v801 = vadd.f32 %v725, %v743
      %v802 = vadd.f32 %v726, %v739
      %v803 = vadd.f32 %v727, %v743
      %v804 = vadd.f32 %v728, %v739
      %v805 = vadd.f32 %v729, %v743
      %v806 = vadd.f32 %v730, %v739
      %v807 = vadd.f32 %v731, %v743
      %v808 = vadd.f32 %v732, %v739
      %v809 = vadd.f32 %v733, %v743
      %v810 = vmax.f32 %v746, 0.0
      %v811 = vmax.f32 %v747, 0.0
      %v812 = vmax.f32 %v748, 0.0
      %v813 = vmax.f32 %v749, 0.0
      %v814 = vmax.f32 %v750, 0.0
      %v815 = vmax.f32 %v751, 0.0
      %v816 = vmax.f32 %v752, 0.0
      %v817 = vmax.f32 %v753, 0.0
      %v818 = vmax.f32 %v754, 0.0
      %v819 = vmax.f32 %v755, 0.0
      %v820 = vmax.f32 %v756, 0.0
      %v821 = vmax.f32 %v757, 0.0
      %v822 = vmax.f32 %v758, 0.0
      %v823 = vmax.f32 %v759, 0.0
      %v824 = vmax.f32 %v760, 0.0
      %v825 = vmax.f32 %v761, 0.0
      %v826 = vmax.f32 %v762, 0.0
      %v827 = vmax.f32 %v763, 0.0
      %v828 = vmax.f32 %v764, 0.0
      %v829 = vmax.f32 %v765, 0.0
      %v830 = vmax.f32 %v766, 0.0
      %v831 = vmax.f32 %v767, 0.0
      %v832 = vmax.f32 %v768, 0.0
      %v833 = vmax.f32 %v769, 0.0
      %v834 = vmax.f32 %v770, 0.0
      %v835 = vmax.f32 %v771, 0.0
      %v836 = vmax.f32 %v772, 0.0
      %v837 = vmax.f32 %v773, 0.0
      %v838 = vmax.f32 %v774, 0.0
      %v839 = vmax.f32 %v775, 0.0
      %v840 = vmax.f32 %v776, 0.0
      %v841 = vmax.f32 %v777, 0.0
      %v842 = vmax.f32 %v778, 0.0
      %v843 = vmax.f32 %v779, 0.0
      %v844 = vmax.f32 %v780, 0.0
      %v845 = vmax.f32 %v781, 0.0
      %v846 = vmax.f32 %v782, 0.0
      %v847 = vmax.f32 %v783, 0.0
      %v848 = vmax.f32 %v784, 0.0
      %v849 = vmax.f32 %v785, 0.0
      %v850 = vmax.f32 %v786, 0.0
      %v851 = vmax.f32 %v787, 0.0
      %v852 = vmax.f32 %v788, 0.0
      %v853 = vmax.f32 %v789, 0.0
      %v854 = vmax.f32 %v790, 0.0
      %v855 = vmax.f32 %v791, 0.0
      %v856 = vmax.f32 %v792, 0.0
      %v857 = vmax.f32 %v793, 0.0
      %v858 = vmax.f32 %v794, 0.0
      %v859 = vmax.f32 %v795, 0.0
      %v860 = vmax.f32 %v796, 0.0
      %v861 = vmax.f32 %v797, 0.0
      %v862 = vmax.f32 %v798, 0.0
      %v863 = vmax.f32 %v799, 0.0
      %v864 = vmax.f32 %v800, 0.0
      %v865 = vmax.f32 %v801, 0.0
      %v866 = vmax.f32 %v802, 0.0
      %v867 = vmax.f32 %v803, 0.0
      %v868 = vmax.f32 %v804, 0.0
      %v869 = vmax.f32 %v805, 0.0
      %v870 = vmax.f32 %v806, 0.0
      %v871 = vmax.f32 %v807, 0.0
      %v872 = vmax.f32 %v808, 0.0
      %v873 = vmax.f32 %v809, 0.0
      %v874 = vpack.c.bf16 %v812, %v810
      %v875 = vpack.c.bf16 %v813, %v811
      %v876 = vpack.c.bf16 %v816, %v814
      %v877 = vpack.c.bf16 %v817, %v815
      %v878 = vpack.c.bf16 %v820, %v818
      %v879 = vpack.c.bf16 %v821, %v819
      %v880 = vpack.c.bf16 %v824, %v822
      %v881 = vpack.c.bf16 %v825, %v823
      %v882 = vpack.c.bf16 %v828, %v826
      %v883 = vpack.c.bf16 %v829, %v827
      %v884 = vpack.c.bf16 %v832, %v830
      %v885 = vpack.c.bf16 %v833, %v831
      %v886 = vpack.c.bf16 %v836, %v834
      %v887 = vpack.c.bf16 %v837, %v835
      %v888 = vpack.c.bf16 %v840, %v838
      %v889 = vpack.c.bf16 %v841, %v839
      %v890 = vpack.c.bf16 %v844, %v842
      %v891 = vpack.c.bf16 %v845, %v843
      %v892 = vpack.c.bf16 %v848, %v846
      %v893 = vpack.c.bf16 %v849, %v847
      %v894 = vpack.c.bf16 %v852, %v850
      %v895 = vpack.c.bf16 %v853, %v851
      %v896 = vpack.c.bf16 %v856, %v854
      %v897 = vpack.c.bf16 %v857, %v855
      %v898 = vpack.c.bf16 %v860, %v858
      %v899 = vpack.c.bf16 %v861, %v859
      %v900 = vpack.c.bf16 %v864, %v862
      %v901 = vpack.c.bf16 %v865, %v863
      %v902 = vpack.c.bf16 %v868, %v866
      %v903 = vpack.c.bf16 %v869, %v867
      %v904 = vpack.c.bf16 %v872, %v870
      %v905 = vpack.c.bf16 %v873, %v871
      %v938 = vunpack.c.l.b16 %v874
      %v939 = vunpack.c.l.b16 %v875
      %v940 = vunpack.c.h.b16 %v874
      %v941 = vunpack.c.h.b16 %v875
      %v942 = vunpack.c.l.b16 %v876
      %v943 = vunpack.c.l.b16 %v877
      %v944 = vunpack.c.h.b16 %v876
      %v945 = vunpack.c.h.b16 %v877
      %v946 = vunpack.c.l.b16 %v878
      %v947 = vunpack.c.l.b16 %v879
      %v948 = vunpack.c.h.b16 %v878
      %v949 = vunpack.c.h.b16 %v879
      %v950 = vunpack.c.l.b16 %v880
      %v951 = vunpack.c.l.b16 %v881
      %v952 = vunpack.c.h.b16 %v880
      %v953 = vunpack.c.h.b16 %v881
      %v954 = vunpack.c.l.b16 %v882
      %v955 = vunpack.c.l.b16 %v883
      %v956 = vunpack.c.h.b16 %v882
      %v957 = vunpack.c.h.b16 %v883
      %v958 = vunpack.c.l.b16 %v884
      %v959 = vunpack.c.l.b16 %v885
      %v960 = vunpack.c.h.b16 %v884
      %v961 = vunpack.c.h.b16 %v885
      %v962 = vunpack.c.l.b16 %v886
      %v963 = vunpack.c.l.b16 %v887
      %v964 = vunpack.c.h.b16 %v886
      %v965 = vunpack.c.h.b16 %v887
      %v966 = vunpack.c.l.b16 %v888
      %v967 = vunpack.c.l.b16 %v889
      %v968 = vunpack.c.h.b16 %v888
      %v969 = vunpack.c.h.b16 %v889
      %v970 = vunpack.c.l.b16 %v890
      %v971 = vunpack.c.l.b16 %v891
      %v972 = vunpack.c.h.b16 %v890
      %v973 = vunpack.c.h.b16 %v891
      %v974 = vunpack.c.l.b16 %v892
      %v975 = vunpack.c.l.b16 %v893
      %v976 = vunpack.c.h.b16 %v892
      %v977 = vunpack.c.h.b16 %v893
      %v978 = vunpack.c.l.b16 %v894
      %v979 = vunpack.c.l.b16 %v895
      %v980 = vunpack.c.h.b16 %v894
      %v981 = vunpack.c.h.b16 %v895
      %v982 = vunpack.c.l.b16 %v896
      %v983 = vunpack.c.l.b16 %v897
      %v984 = vunpack.c.h.b16 %v896
      %v985 = vunpack.c.h.b16 %v897
      %v986 = vunpack.c.l.b16 %v898
      %v987 = vunpack.c.l.b16 %v899
      %v988 = vunpack.c.h.b16 %v898
      %v989 = vunpack.c.h.b16 %v899
      %v990 = vunpack.c.l.b16 %v900
      %v991 = vunpack.c.l.b16 %v901
      %v992 = vunpack.c.h.b16 %v900
      %v993 = vunpack.c.h.b16 %v901
      %v994 = vunpack.c.l.b16 %v902
      %v995 = vunpack.c.l.b16 %v903
      %v996 = vunpack.c.h.b16 %v902
      %v997 = vunpack.c.h.b16 %v903
      %v998 = vunpack.c.l.b16 %v904
      %v999 = vunpack.c.l.b16 %v905
      %v1000 = vunpack.c.h.b16 %v904
      %v1001 = vunpack.c.h.b16 %v905
      %v1002 = vpack.c.b16 %v939, %v938
      %v1003 = vpack.c.b16 %v941, %v940
      %v1004 = vpack.c.b16 %v943, %v942
      %v1005 = vpack.c.b16 %v945, %v944
      %v1006 = vpack.c.b16 %v947, %v946
      %v1007 = vpack.c.b16 %v949, %v948
      %v1008 = vpack.c.b16 %v951, %v950
      %v1009 = vpack.c.b16 %v953, %v952
      %v1010 = vpack.c.b16 %v955, %v954
      %v1011 = vpack.c.b16 %v957, %v956
      %v1012 = vpack.c.b16 %v959, %v958
      %v1013 = vpack.c.b16 %v961, %v960
      %v1014 = vpack.c.b16 %v963, %v962
      %v1015 = vpack.c.b16 %v965, %v964
      %v1016 = vpack.c.b16 %v967, %v966
      %v1017 = vpack.c.b16 %v969, %v968
      %v1018 = vpack.c.b16 %v971, %v970
      %v1019 = vpack.c.b16 %v973, %v972
      %v1020 = vpack.c.b16 %v975, %v974
      %v1021 = vpack.c.b16 %v977, %v976
      %v1022 = vpack.c.b16 %v979, %v978
      %v1023 = vpack.c.b16 %v981, %v980
      %v1024 = vpack.c.b16 %v983, %v982
      %v1025 = vpack.c.b16 %v985, %v984
      %v1026 = vpack.c.b16 %v987, %v986
      %v1027 = vpack.c.b16 %v989, %v988
      %v1028 = vpack.c.b16 %v991, %v990
      %v1029 = vpack.c.b16 %v993, %v992
      %v1030 = vpack.c.b16 %v995, %v994
      %v1031 = vpack.c.b16 %v997, %v996
      %v1032 = vpack.c.b16 %v999, %v998
      %v1033 = vpack.c.b16 %v1001, %v1000
      %1066 = vst [vmem:[%s283] sm:$0xff] %v1002
      %1067 = vst [vmem:[%s283 + $0x8] sm:$0xff] %v1003
      %1068 = vst [vmem:[%s283 + $0x10] sm:$0xff] %v1004
      %1069 = vst [vmem:[%s283 + $0x18] sm:$0xff] %v1005
      %1070 = vst [vmem:[%s283 + $0x20] sm:$0xff] %v1006
      %1071 = vst [vmem:[%s283 + $0x28] sm:$0xff] %v1007
      %1072 = vst [vmem:[%s283 + $0x30] sm:$0xff] %v1008
      %1073 = vst [vmem:[%s283 + $0x38] sm:$0xff] %v1009
      %1074 = vst [vmem:[%s283 + $0x40] sm:$0xff] %v1010
      %1075 = vst [vmem:[%s283 + $0x48] sm:$0xff] %v1011
      %1076 = vst [vmem:[%s283 + $0x50] sm:$0xff] %v1012
      %1077 = vst [vmem:[%s283 + $0x58] sm:$0xff] %v1013
      %1078 = vst [vmem:[%s283 + $0x60] sm:$0xff] %v1014
      %1079 = vst [vmem:[%s283 + $0x68] sm:$0xff] %v1015
      %1080 = vst [vmem:[%s283 + $0x70] sm:$0xff] %v1016
      %1081 = vst [vmem:[%s283 + $0x78] sm:$0xff] %v1017
      %1082 = vst [vmem:[%s283 + $0x80] sm:$0xff] %v1018
      %1083 = vst [vmem:[%s283 + $0x88] sm:$0xff] %v1019
      %1084 = vst [vmem:[%s283 + $0x90] sm:$0xff] %v1020
      %1085 = vst [vmem:[%s283 + $0x98] sm:$0xff] %v1021
      %1086 = vst [vmem:[%s283 + $0xa0] sm:$0xff] %v1022
      %1087 = vst [vmem:[%s283 + $0xa8] sm:$0xff] %v1023
      %1088 = vst [vmem:[%s283 + $0xb0] sm:$0xff] %v1024
      %1089 = vst [vmem:[%s283 + $0xb8] sm:$0xff] %v1025
      %1090 = vst [vmem:[%s283 + $0xc0] sm:$0xff] %v1026
      %1091 = vst [vmem:[%s283 + $0xc8] sm:$0xff] %v1027
      %1092 = vst [vmem:[%s283 + $0xd0] sm:$0xff] %v1028
      %1093 = vst [vmem:[%s283 + $0xd8] sm:$0xff] %v1029
      %1094 = vst [vmem:[%s283 + $0xe0] sm:$0xff] %v1030
      %1095 = vst [vmem:[%s283 + $0xe8] sm:$0xff] %v1031
      %1096 = vst [vmem:[%s283 + $0xf0] sm:$0xff] %v1032
      %1097 = vst [vmem:[%s283 + $0xf8] sm:$0xff] %v1033
      %s1098 = smul.u32 32, %s19
      %s1099 = smul.u32 2, %s20
      %p1100 = scmp.lt.s32.totalorder %s1098, 63
      %s1101 = scalar_select %p1100, %s1098, 63
      %p1102 = scmp.lt.s32.totalorder %s1099, 1
      %s1103 = scalar_select %p1102, %s1099, 1
      %s1104 = smul.addr %s1101, 2
      %s1105 = sadd.s32 %s1103, %s1104
      %s1106 = smul.addr %s1105, 4
      %s1107 = scalar_lea.vmem %s4, %s1106
      // Predicated region
      $region37: #{reduction_a_forward.6} parent=35 // pred_check
        %p1108 = pneg %p151
      $region38: #{reduction_a_forward.6} parent=35 // pred_check_branch
        %1110 = sbr.rel (%p1108) target = $region40
      $region39: #{reduction_a_forward.6} parent=35 // pred_region
        %s1111 = smul.u32 32, %s19
        %s1112 = smul.u32 2, %s20
      $region40: #{reduction_a_forward.6} parent=35 // pred_fallthru
        _
    $region36: #{reduction_a_forward.6} parent=5 // pred_fallthru
      _
    %p1113 = scmp.le.s32.totalorder 2, %s10
    // Predicated region
    $region41: #{reduction_a_forward.6} parent=5 // pred_check
      %p1114 = pneg %p1113
    $region42: #{reduction_a_forward.6} parent=5 // pred_check_branch
      %1116 = sbr.rel (%p1114) target = $region44
    $region43: #{reduction_a_forward.6} parent=5 // pred_region
      %s1117 = ssub.s32 %s10, 2
      // Predicated region
      $region45: #{reduction_a_forward.6} parent=43 // pred_check
        %p1118 = pneg %p157
      $region46: #{reduction_a_forward.6} parent=43 // pred_check_branch
        %1120 = sbr.rel (%p1118) target = $region48
      $region47: #{reduction_a_forward.6} parent=43 // pred_region
        %s1121 = smul.u32 32, %s21
        %s1122 = smul.u32 2, %s22
        %p1123 = scmp.lt.s32.totalorder %s1121, 63
        %s1124 = scalar_select %p1123, %s1121, 63
        %p1125 = scmp.lt.s32.totalorder %s1122, 1
        %s1126 = scalar_select %p1125, %s1122, 1
        %s1127 = smul.addr %s1124, 2
        %s1128 = sadd.s32 %s1126, %s1127
        %s1129 = smul.addr %s1128, 4
        %s1130 = scalar_lea.vmem %s4, %s1129
      $region48: #{reduction_a_forward.6} parent=43 // pred_fallthru
        _
    $region44: #{reduction_a_forward.6} parent=5 // pred_fallthru
      _
  $region6: #{reduction_a_forward.6} parent=0 // loop_footer
    %s14 = sadd.s32 1, %s10
  $region7: #{reduction_a_forward.6} parent=0 // loop_footer_branch
    %9 = sbr.rel target = $region3
  $region8: #{reduction_a_forward.6} parent=0 // loop_exit
    _

// kernel: reduction_a_forward.7
$region0: #{reduction_a_forward.7}
  #allocation0 [shape = 'u32[]', space=smem, size = 0x4, offset = 0x4, fixed_abs, tag = 'smem constant byte address 0x4 - core index']
  #allocation1 [shape = 'u32[144,128]{1,0:T(1,128)}', space=vmem, size = 0x12000, scoped, tag = 'internal scratch']
  %s0 = inlined_call_operand.vmem [shape: bf16[512,1728], index: 0, kind: input, shape index: {}]
  %s1 = inlined_call_operand.vmem [shape: bf16[1728,256], index: 1, kind: input, shape index: {}]
  %s2 = inlined_call_operand.vmem [shape: f32[1,256], index: 2, kind: input, shape index: {}]
  %s3 = inlined_call_operand.vmem [shape: f32[1,256], index: 3, kind: input, shape index: {}]
  %s4 = inlined_call_operand.vmem [shape: bf16[512,256], index: 4, kind: output, shape index: {}]
  %s5 = sld [smem:[#allocation0]]
  $region49: #{reduction_a_forward.7} parent=0
    _
  %s7 = ssub.s32 1, %s5
  %s8 = scalar_select 0, %s7, %s5
  loop: start=0, step=1, limit=4
  $region2: #{reduction_a_forward.7} parent=0 // loop_pre_header
    _
  $region3: #{reduction_a_forward.7} parent=0 // loop_header
    %s10 = sphi 0, %s14
    %p11 = scmp.ge.s32.totalorder %s10, 4
    %s17 = sphi 0, %s29
    %s18 = sphi 0, %s25
    %s19 = sphi 0, %s17
    %s20 = sphi 0, %s18
    %s21 = sphi 0, %s19
    %s22 = sphi 0, %s20
    %s32 = sphi 0, %s34
    %s35 = sphi 0, %s32
    %s36 = sphi 0, %s35
    %s52 = sphi 0, %s36
    %s58 = sphi 0, %s60
    %s61 = sphi 0, %s58
    %s62 = sphi 0, %s61
    %s78 = sphi 0, %s62
    %s84 = sphi 0, %s86
    %s87 = sphi 0, %s84
    %s88 = sphi 0, %s87
    %s104 = sphi 0, %s88
    %s110 = sphi 0, %s112
    %s113 = sphi 0, %s110
    %s114 = sphi 0, %s113
    %s130 = sphi 0, %s114
    %s138 = sphi 0, %s140
    %s141 = sphi 0, %s138
    %s142 = sphi 0, %s141
    %s158 = sphi 0, %s142
  $region4: #{reduction_a_forward.7} parent=0 // loop_header_branch
    %13 = sbr.rel (%p11) target = $region8
  $region5: #{reduction_a_forward.7} parent=0 // loop_body
    %s15 = ssub.s32 %s10, 1
    %s16 = ssub.s32 %s10, 2
    %s23 = sadd.s32 1, %s18
    %p24 = scmp.ge.s32.totalorder %s23, 1
    %s25 = scalar_select %p24, 0, %s23
    %s26 = sadd.s32 1, %s17
    %s27 = scalar_select %p24, %s26, %s17
    %p28 = scmp.ge.s32.totalorder %s27, 2
    %s29 = scalar_select %p28, 0, %s27
    %s30 = ssub.s32 %s17, %s29
    %p31 = scmp.eq.s32.totalorder %s30, 0
    %s33 = sadd.s32 %s32, 1
    %s34 = scalar_select %p31, %s32, %s33
    %p37 = pneg %p31
    %p38 = scmp.eq.s32.totalorder %s10, 1
    %p39 = por %p37, %p38
    %p40 = scmp.ne.s32.totalorder %s32, %s35
    %p41 = scmp.eq.s32.totalorder %s10, 0
    %p42 = por %p40, %p41
    %p43 = scmp.ne.s32.totalorder %s32, %s35
    %p44 = scmp.eq.s32.totalorder %s15, 1
    %p45 = por %p43, %p44
    %p46 = scmp.ne.s32.totalorder %s35, %s36
    %p47 = scmp.eq.s32.totalorder %s15, 0
    %p48 = por %p46, %p47
    %p49 = scmp.ne.s32.totalorder %s35, %s36
    %p50 = scmp.eq.s32.totalorder %s16, 1
    %p51 = por %p49, %p50
    %p53 = scmp.ne.s32.totalorder %s36, %s52
    %p54 = scmp.eq.s32.totalorder %s16, 0
    %p55 = por %p53, %p54
    %s56 = ssub.s32 %s18, %s25
    %p57 = scmp.eq.s32.totalorder %s56, 0
    %s59 = sadd.s32 %s58, 1
    %s60 = scalar_select %p57, %s58, %s59
    %p63 = pneg %p57
    %p64 = scmp.eq.s32.totalorder %s10, 1
    %p65 = por %p63, %p64
    %p66 = scmp.ne.s32.totalorder %s58, %s61
    %p67 = scmp.eq.s32.totalorder %s10, 0
    %p68 = por %p66, %p67
    %p69 = scmp.ne.s32.totalorder %s58, %s61
    %p70 = scmp.eq.s32.totalorder %s15, 1
    %p71 = por %p69, %p70
    %p72 = scmp.ne.s32.totalorder %s61, %s62
    %p73 = scmp.eq.s32.totalorder %s15, 0
    %p74 = por %p72, %p73
    %p75 = scmp.ne.s32.totalorder %s61, %s62
    %p76 = scmp.eq.s32.totalorder %s16, 1
    %p77 = por %p75, %p76
    %p79 = scmp.ne.s32.totalorder %s62, %s78
    %p80 = scmp.eq.s32.totalorder %s16, 0
    %p81 = por %p79, %p80
    %s82 = ssub.s32 %s18, %s25
    %p83 = scmp.eq.s32.totalorder %s82, 0
    %s85 = sadd.s32 %s84, 1
    %s86 = scalar_select %p83, %s84, %s85
    %p89 = pneg %p83
    %p90 = scmp.eq.s32.totalorder %s10, 1
    %p91 = por %p89, %p90
    %p92 = scmp.ne.s32.totalorder %s84, %s87
    %p93 = scmp.eq.s32.totalorder %s10, 0
    %p94 = por %p92, %p93
    %p95 = scmp.ne.s32.totalorder %s84, %s87
    %p96 = scmp.eq.s32.totalorder %s15, 1
    %p97 = por %p95, %p96
    %p98 = scmp.ne.s32.totalorder %s87, %s88
    %p99 = scmp.eq.s32.totalorder %s15, 0
    %p100 = por %p98, %p99
    %p101 = scmp.ne.s32.totalorder %s87, %s88
    %p102 = scmp.eq.s32.totalorder %s16, 1
    %p103 = por %p101, %p102
    %p105 = scmp.ne.s32.totalorder %s88, %s104
    %p106 = scmp.eq.s32.totalorder %s16, 0
    %p107 = por %p105, %p106
    %s108 = ssub.s32 %s18, %s25
    %p109 = scmp.eq.s32.totalorder %s108, 0
    %s111 = sadd.s32 %s110, 1
    %s112 = scalar_select %p109, %s110, %s111
    %p115 = pneg %p109
    %p116 = scmp.eq.s32.totalorder %s10, 1
    %p117 = por %p115, %p116
    %p118 = scmp.ne.s32.totalorder %s110, %s113
    %p119 = scmp.eq.s32.totalorder %s10, 0
    %p120 = por %p118, %p119
    %p121 = scmp.ne.s32.totalorder %s110, %s113
    %p122 = scmp.eq.s32.totalorder %s15, 1
    %p123 = por %p121, %p122
    %p124 = scmp.ne.s32.totalorder %s113, %s114
    %p125 = scmp.eq.s32.totalorder %s15, 0
    %p126 = por %p124, %p125
    %p127 = scmp.ne.s32.totalorder %s113, %s114
    %p128 = scmp.eq.s32.totalorder %s16, 1
    %p129 = por %p127, %p128
    %p131 = scmp.ne.s32.totalorder %s114, %s130
    %p132 = scmp.eq.s32.totalorder %s16, 0
    %p133 = por %p131, %p132
    %s134 = ssub.s32 %s17, %s29
    %s135 = ssub.s32 %s18, %s25
    %s136 = sor.u32 %s134, %s135
    %p137 = scmp.eq.s32.totalorder %s136, 0
    %s139 = sadd.s32 %s138, 1
    %s140 = scalar_select %p137, %s138, %s139
    %p143 = pneg %p137
    %p144 = scmp.eq.s32.totalorder %s10, 1
    %p145 = por %p143, %p144
    %p146 = scmp.ne.s32.totalorder %s138, %s141
    %p147 = scmp.eq.s32.totalorder %s10, 0
    %p148 = por %p146, %p147
    %p149 = scmp.ne.s32.totalorder %s138, %s141
    %p150 = scmp.eq.s32.totalorder %s15, 1
    %p151 = por %p149, %p150
    %p152 = scmp.ne.s32.totalorder %s141, %s142
    %p153 = scmp.eq.s32.totalorder %s15, 0
    %p154 = por %p152, %p153
    %p155 = scmp.ne.s32.totalorder %s141, %s142
    %p156 = scmp.eq.s32.totalorder %s16, 1
    %p157 = por %p155, %p156
    %p159 = scmp.ne.s32.totalorder %s142, %s158
    %p160 = scmp.eq.s32.totalorder %s16, 0
    %p161 = por %p159, %p160
    %p162 = scmp.le.s32.totalorder 1, %s10
    %p163 = scmp.lt.s32.totalorder %s10, 3
    %p164 = pnand %p162, %p163
    %p165 = pneg %p164
    // Predicated region
    $region9: #{reduction_a_forward.7} parent=5 // pred_check
      _
    $region10: #{reduction_a_forward.7} parent=5 // pred_check_branch
      %167 = sbr.rel (%p164) target = $region12
    $region11: #{reduction_a_forward.7} parent=5 // pred_region
      %s168 = ssub.s32 %s10, 1
      // Predicated region
      $region13: #{reduction_a_forward.7} parent=11 // pred_check
        %p169 = pneg %p74
      $region14: #{reduction_a_forward.7} parent=11 // pred_check_branch
        %171 = sbr.rel (%p169) target = $region16
      $region15: #{reduction_a_forward.7} parent=11 // pred_region
        %s172 = smul.u32 2, %s20
        %p173 = scmp.lt.s32.totalorder %s172, 1
        %s174 = scalar_select %p173, %s172, 1
        %s175 = smul.addr %s174, 4
        %s176 = scalar_lea.vmem %s1, %s175
        %s177 = smul.u32 2, %s20
      $region16: #{reduction_a_forward.7} parent=11 // pred_fallthru
        _
      // Predicated region
      $region17: #{reduction_a_forward.7} parent=11 // pred_check
        %p178 = pneg %p100
      $region18: #{reduction_a_forward.7} parent=11 // pred_check_branch
        %180 = sbr.rel (%p178) target = $region20
      $region19: #{reduction_a_forward.7} parent=11 // pred_region
        %s181 = smul.u32 2, %s20
        %p182 = scmp.lt.s32.totalorder %s181, 1
        %s183 = scalar_select %p182, %s181, 1
        %s184 = scalar_lea.vmem %s2, %s183
        %s185 = smul.u32 2, %s20
      $region20: #{reduction_a_forward.7} parent=11 // pred_fallthru
        _
      // Predicated region
      $region21: #{reduction_a_forward.7} parent=11 // pred_check
        %p186 = pneg %p126
      $region22: #{reduction_a_forward.7} parent=11 // pred_check_branch
        %188 = sbr.rel (%p186) target = $region24
      $region23: #{reduction_a_forward.7} parent=11 // pred_region
        %s189 = smul.u32 2, %s20
        %p190 = scmp.lt.s32.totalorder %s189, 1
        %s191 = scalar_select %p190, %s189, 1
        %s192 = scalar_lea.vmem %s3, %s191
        %s193 = smul.u32 2, %s20
      $region24: #{reduction_a_forward.7} parent=11 // pred_fallthru
        _
    $region12: #{reduction_a_forward.7} parent=5 // pred_fallthru
      _
    %p194 = scmp.lt.s32.totalorder %s10, 2
    // Predicated region
    $region25: #{reduction_a_forward.7} parent=5 // pred_check
      %p195 = pneg %p194
    $region26: #{reduction_a_forward.7} parent=5 // pred_check_branch
      %197 = sbr.rel (%p195) target = $region28
    $region27: #{reduction_a_forward.7} parent=5 // pred_region
      // Predicated region
      $region29: #{reduction_a_forward.7} parent=27 // pred_check
        %p198 = pneg %p42
      $region30: #{reduction_a_forward.7} parent=27 // pred_check_branch
        %200 = sbr.rel (%p198) target = $region32
      $region31: #{reduction_a_forward.7} parent=27 // pred_region
        %s201 = smul.u32 32, %s17
        %p202 = scmp.lt.s32.totalorder %s201, 63
        %s203 = scalar_select %p202, %s201, 63
        %s204 = smul.addr %s203, 14
        %s205 = smul.addr %s204, 4
        %s206 = scalar_lea.vmem %s0, %s205
        %s207 = smul.u32 32, %s17
      $region32: #{reduction_a_forward.7} parent=27 // pred_fallthru
        _
    $region28: #{reduction_a_forward.7} parent=5 // pred_fallthru
      _
    %p208 = scmp.le.s32.totalorder 1, %s10
    %p209 = scmp.lt.s32.totalorder %s10, 3
    %p210 = pnand %p208, %p209
    %p211 = pneg %p210
    // Predicated region
    $region33: #{reduction_a_forward.7} parent=5 // pred_check
      _
    $region34: #{reduction_a_forward.7} parent=5 // pred_check_branch
      %213 = sbr.rel (%p210) target = $region36
    $region35: #{reduction_a_forward.7} parent=5 // pred_region
      %s214 = ssub.s32 %s10, 1
      %s215 = smul.u32 32, %s19
      %p216 = scmp.lt.s32.totalorder %s215, 63
      %s217 = scalar_select %p216, %s215, 63
      %s218 = smul.addr %s217, 14
      %s219 = smul.addr %s218, 4
      %s220 = scalar_lea.vmem %s0, %s219
      %p221 = pneg %p48
      %p222 = pneg %p45
      %s223 = smul.u32 2, %s20
      %p224 = scmp.lt.s32.totalorder %s223, 1
      %s225 = scalar_select %p224, %s223, 1
      %s226 = smul.addr %s225, 4
      %s227 = scalar_lea.vmem %s1, %s226
      %p228 = pneg %p74
      %p229 = pneg %p71
      %s230 = smul.u32 2, %s20
      %p231 = scmp.lt.s32.totalorder %s230, 1
      %s232 = scalar_select %p231, %s230, 1
      %s233 = scalar_lea.vmem %s2, %s232
      %p234 = pneg %p100
      %p235 = pneg %p97
      %s236 = smul.u32 2, %s20
      %p237 = scmp.lt.s32.totalorder %s236, 1
      %s238 = scalar_select %p237, %s236, 1
      %s239 = scalar_lea.vmem %s3, %s238
      %p240 = pneg %p126
      %p241 = pneg %p123
      %p242 = pneg %p154
      %p243 = pneg %p151
      %s244 = smul.u32 32, %s19
      %s245 = smul.u32 2, %s20
      %p246 = scmp.lt.s32.totalorder %s244, 63
      %s247 = scalar_select %p246, %s244, 63
      %p248 = scmp.lt.s32.totalorder %s245, 1
      %s249 = scalar_select %p248, %s245, 1
      %s250 = smul.addr %s247, 2
      %s251 = sadd.s32 %s249, %s250
      %s252 = smul.addr %s251, 4
      %s253 = scalar_lea.vmem %s4, %s252
      %s254 = smul.u32 32, %s19
      %p255 = scmp.lt.s32.totalorder %s254, 63
      %s256 = scalar_select %p255, %s254, 63
      %s257 = smul.addr %s256, 14
      %s258 = smul.addr %s257, 4
      %s259 = scalar_lea.vmem %s0, %s258
      %s260 = smul.u32 32, %s19
      %s261 = smul.u32 2, %s20
      %p262 = scmp.lt.s32.totalorder %s261, 1
      %s263 = scalar_select %p262, %s261, 1
      %s264 = smul.addr %s263, 4
      %s265 = scalar_lea.vmem %s1, %s264
      %s266 = smul.u32 2, %s20
      %s267 = smul.u32 2, %s20
      %p268 = scmp.lt.s32.totalorder %s267, 1
      %s269 = scalar_select %p268, %s267, 1
      %s270 = scalar_lea.vmem %s2, %s269
      %s271 = smul.u32 2, %s20
      %s272 = smul.u32 2, %s20
      %p273 = scmp.lt.s32.totalorder %s272, 1
      %s274 = scalar_select %p273, %s272, 1
      %s275 = scalar_lea.vmem %s3, %s274
      %s276 = smul.u32 2, %s20
      %s277 = smul.u32 32, %s19
      %s278 = smul.u32 2, %s20
      %p279 = scmp.lt.s32.totalorder %s277, 63
      %s280 = scalar_select %p279, %s277, 63
      %p281 = scmp.lt.s32.totalorder %s278, 1
      %s282 = scalar_select %p281, %s278, 1
      %s283 = smul.addr %s280, 2
      %s284 = sadd.s32 %s282, %s283
      %s285 = smul.addr %s284, 4
      %s286 = scalar_lea.vmem %s4, %s285
      %s287 = smul.u32 32, %s19
      %s288 = smul.u32 2, %s20
      %v290 = vld [vmem:[%s259] sm:$0xff]
      %v291 = vld [vmem:[%s259 + $0x8] sm:$0xff]
      %v292 = vld [vmem:[%s259 + $0x10] sm:$0xff]
      %v293 = vld [vmem:[%s259 + $0x18] sm:$0xff]
      %v294 = vld [vmem:[%s259 + $0x20] sm:$0xff]
      %v295 = vld [vmem:[%s259 + $0x28] sm:$0xff]
      %v296 = vld [vmem:[%s259 + $0x30] sm:$0xff]
      %v297 = vld [vmem:[%s259 + $0x38] sm:$0xff]
      %v298 = vld [vmem:[%s259 + $0x40] sm:$0xff]
      %v299 = vld [vmem:[%s259 + $0x48] sm:$0xff]
      %v300 = vld [vmem:[%s259 + $0x50] sm:$0xff]
      %v301 = vld [vmem:[%s259 + $0x58] sm:$0xff]
      %v302 = vld [vmem:[%s259 + $0x60] sm:$0xff]
      %v303 = vld [vmem:[%s259 + $0x68] sm:$0xff]
      %v304 = vld [vmem:[%s259 + $0x70] sm:$0xff]
      %v305 = vld [vmem:[%s259 + $0x78] sm:$0xff]
      %v306 = vld [vmem:[%s259 + $0x80] sm:$0xff]
      %v307 = vld [vmem:[%s259 + $0x88] sm:$0xff]
      %v308 = vld [vmem:[%s259 + $0x90] sm:$0xff]
      %v309 = vld [vmem:[%s259 + $0x98] sm:$0xff]
      %v310 = vld [vmem:[%s259 + $0xa0] sm:$0xff]
      %v311 = vld [vmem:[%s259 + $0xa8] sm:$0xff]
      %v312 = vld [vmem:[%s259 + $0xb0] sm:$0xff]
      %v313 = vld [vmem:[%s259 + $0xb8] sm:$0xff]
      %v314 = vld [vmem:[%s259 + $0xc0] sm:$0xff]
      %v315 = vld [vmem:[%s259 + $0xc8] sm:$0xff]
      %v316 = vld [vmem:[%s259 + $0xd0] sm:$0xff]
      %v317 = vld [vmem:[%s259 + $0xd8] sm:$0xff]
      %v318 = vld [vmem:[%s259 + $0xe0] sm:$0xff]
      %v319 = vld [vmem:[%s259 + $0xe8] sm:$0xff]
      %v320 = vld [vmem:[%s259 + $0xf0] sm:$0xff]
      %v321 = vld [vmem:[%s259 + $0xf8] sm:$0xff]
      %v322 = vld [vmem:[%s259 + $0x100] sm:$0xff]
      %v323 = vld [vmem:[%s259 + $0x108] sm:$0xff]
      %v324 = vld [vmem:[%s259 + $0x110] sm:$0xff]
      %v325 = vld [vmem:[%s259 + $0x118] sm:$0xff]
      %v326 = vld [vmem:[%s259 + $0x120] sm:$0xff]
      %v327 = vld [vmem:[%s259 + $0x128] sm:$0xff]
      %v328 = vld [vmem:[%s259 + $0x130] sm:$0xff]
      %v329 = vld [vmem:[%s259 + $0x138] sm:$0xff]
      %v330 = vld [vmem:[%s259 + $0x140] sm:$0xff]
      %v331 = vld [vmem:[%s259 + $0x148] sm:$0xff]
      %v332 = vld [vmem:[%s259 + $0x150] sm:$0xff]
      %v333 = vld [vmem:[%s259 + $0x158] sm:$0xff]
      %v334 = vld [vmem:[%s259 + $0x160] sm:$0xff]
      %v335 = vld [vmem:[%s259 + $0x168] sm:$0xff]
      %v336 = vld [vmem:[%s259 + $0x170] sm:$0xff]
      %v337 = vld [vmem:[%s259 + $0x178] sm:$0xff]
      %v338 = vld [vmem:[%s259 + $0x180] sm:$0xff]
      %v339 = vld [vmem:[%s259 + $0x188] sm:$0xff]
      %v340 = vld [vmem:[%s259 + $0x190] sm:$0xff]
      %v341 = vld [vmem:[%s259 + $0x198] sm:$0xff]
      %v342 = vld [vmem:[%s259 + $0x1a0] sm:$0xff]
      %v343 = vld [vmem:[%s259 + $0x1a8] sm:$0xff]
      %v344 = vld [vmem:[%s259 + $0x1b0] sm:$0xff]
      %v345 = vld [vmem:[%s259 + $0x1b8] sm:$0xff]
      %v346 = vld [vmem:[%s259 + $0x1c0] sm:$0xff]
      %v347 = vld [vmem:[%s259 + $0x1c8] sm:$0xff]
      %v348 = vld [vmem:[%s259 + $0x1d0] sm:$0xff]
      %v349 = vld [vmem:[%s259 + $0x1d8] sm:$0xff]
      %v350 = vld [vmem:[%s259 + $0x1e0] sm:$0xff]
      %v351 = vld [vmem:[%s259 + $0x1e8] sm:$0xff]
      %v352 = vld [vmem:[%s259 + $0x1f0] sm:$0xff]
      %v353 = vld [vmem:[%s259 + $0x1f8] sm:$0xff]
      %v354 = vld [vmem:[%s259 + $0x200] sm:$0xff]
      %v355 = vld [vmem:[%s259 + $0x208] sm:$0xff]
      %v356 = vld [vmem:[%s259 + $0x210] sm:$0xff]
      %v357 = vld [vmem:[%s259 + $0x218] sm:$0xff]
      %v358 = vld [vmem:[%s259 + $0x220] sm:$0xff]
      %v359 = vld [vmem:[%s259 + $0x228] sm:$0xff]
      %v360 = vld [vmem:[%s259 + $0x230] sm:$0xff]
      %v361 = vld [vmem:[%s259 + $0x238] sm:$0xff]
      %v362 = vld [vmem:[%s259 + $0x240] sm:$0xff]
      %v363 = vld [vmem:[%s259 + $0x248] sm:$0xff]
      %v364 = vld [vmem:[%s259 + $0x250] sm:$0xff]
      %v365 = vld [vmem:[%s259 + $0x258] sm:$0xff]
      %v366 = vld [vmem:[%s259 + $0x260] sm:$0xff]
      %v367 = vld [vmem:[%s259 + $0x268] sm:$0xff]
      %v368 = vld [vmem:[%s259 + $0x270] sm:$0xff]
      %v369 = vld [vmem:[%s259 + $0x278] sm:$0xff]
      %v370 = vld [vmem:[%s259 + $0x280] sm:$0xff]
      %v371 = vld [vmem:[%s259 + $0x288] sm:$0xff]
      %v372 = vld [vmem:[%s259 + $0x290] sm:$0xff]
      %v373 = vld [vmem:[%s259 + $0x298] sm:$0xff]
      %v374 = vld [vmem:[%s259 + $0x2a0] sm:$0xff]
      %v375 = vld [vmem:[%s259 + $0x2a8] sm:$0xff]
      %v376 = vld [vmem:[%s259 + $0x2b0] sm:$0xff]
      %v377 = vld [vmem:[%s259 + $0x2b8] sm:$0xff]
      %v378 = vld [vmem:[%s259 + $0x2c0] sm:$0xff]
      %v379 = vld [vmem:[%s259 + $0x2c8] sm:$0xff]
      %v380 = vld [vmem:[%s259 + $0x2d0] sm:$0xff]
      %v381 = vld [vmem:[%s259 + $0x2d8] sm:$0xff]
      %v382 = vld [vmem:[%s259 + $0x2e0] sm:$0xff]
      %v383 = vld [vmem:[%s259 + $0x2e8] sm:$0xff]
      %v384 = vld [vmem:[%s259 + $0x2f0] sm:$0xff]
      %v385 = vld [vmem:[%s259 + $0x2f8] sm:$0xff]
      %v386 = vld [vmem:[%s259 + $0x300] sm:$0xff]
      %v387 = vld [vmem:[%s259 + $0x308] sm:$0xff]
      %v388 = vld [vmem:[%s259 + $0x310] sm:$0xff]
      %v389 = vld [vmem:[%s259 + $0x318] sm:$0xff]
      %v390 = vld [vmem:[%s259 + $0x320] sm:$0xff]
      %v391 = vld [vmem:[%s259 + $0x328] sm:$0xff]
      %v392 = vld [vmem:[%s259 + $0x330] sm:$0xff]
      %v393 = vld [vmem:[%s259 + $0x338] sm:$0xff]
      %v394 = vld [vmem:[%s259 + $0x340] sm:$0xff]
      %v395 = vld [vmem:[%s259 + $0x348] sm:$0xff]
      %v396 = vld [vmem:[%s259 + $0x350] sm:$0xff]
      %v397 = vld [vmem:[%s259 + $0x358] sm:$0xff]
      %v398 = vld [vmem:[%s259 + $0x360] sm:$0xff]
      %v399 = vld [vmem:[%s259 + $0x368] sm:$0xff]
      %v400 = vld [vmem:[%s259 + $0x370] sm:$0xff]
      %v401 = vld [vmem:[%s259 + $0x378] sm:$0xff]
      %v402 = vld [vmem:[%s259 + $0x380] sm:$0xff]
      %v403 = vld [vmem:[%s259 + $0x388] sm:$0xff]
      %v404 = vld [vmem:[%s259 + $0x390] sm:$0xff]
      %v405 = vld [vmem:[%s259 + $0x398] sm:$0xff]
      %v406 = vld [vmem:[%s259 + $0x3a0] sm:$0xff]
      %v407 = vld [vmem:[%s259 + $0x3a8] sm:$0xff]
      %v408 = vld [vmem:[%s259 + $0x3b0] sm:$0xff]
      %v409 = vld [vmem:[%s259 + $0x3b8] sm:$0xff]
      %v410 = vld [vmem:[%s259 + $0x3c0] sm:$0xff]
      %v411 = vld [vmem:[%s259 + $0x3c8] sm:$0xff]
      %v412 = vld [vmem:[%s259 + $0x3d0] sm:$0xff]
      %v413 = vld [vmem:[%s259 + $0x3d8] sm:$0xff]
      %v414 = vld [vmem:[%s259 + $0x3e0] sm:$0xff]
      %v415 = vld [vmem:[%s259 + $0x3e8] sm:$0xff]
      %v416 = vld [vmem:[%s259 + $0x3f0] sm:$0xff]
      %v417 = vld [vmem:[%s259 + $0x3f8] sm:$0xff]
      %v418 = vld [vmem:[%s259 + $0x400] sm:$0xff]
      %v419 = vld [vmem:[%s259 + $0x408] sm:$0xff]
      %v420 = vld [vmem:[%s259 + $0x410] sm:$0xff]
      %v421 = vld [vmem:[%s259 + $0x418] sm:$0xff]
      %v422 = vld [vmem:[%s259 + $0x420] sm:$0xff]
      %v423 = vld [vmem:[%s259 + $0x428] sm:$0xff]
      %v424 = vld [vmem:[%s259 + $0x430] sm:$0xff]
      %v425 = vld [vmem:[%s259 + $0x438] sm:$0xff]
      %v426 = vld [vmem:[%s259 + $0x440] sm:$0xff]
      %v427 = vld [vmem:[%s259 + $0x448] sm:$0xff]
      %v428 = vld [vmem:[%s259 + $0x450] sm:$0xff]
      %v429 = vld [vmem:[%s259 + $0x458] sm:$0xff]
      %v430 = vld [vmem:[%s259 + $0x460] sm:$0xff]
      %v431 = vld [vmem:[%s259 + $0x468] sm:$0xff]
      %v432 = vld [vmem:[%s259 + $0x470] sm:$0xff]
      %v433 = vld [vmem:[%s259 + $0x478] sm:$0xff]
      %v434 = vld [vmem:[%s259 + $0x480] sm:$0xff]
      %v435 = vld [vmem:[%s259 + $0x488] sm:$0xff]
      %v436 = vld [vmem:[%s259 + $0x490] sm:$0xff]
      %v437 = vld [vmem:[%s259 + $0x498] sm:$0xff]
      %v438 = vld [vmem:[%s259 + $0x4a0] sm:$0xff]
      %v439 = vld [vmem:[%s259 + $0x4a8] sm:$0xff]
      %v440 = vld [vmem:[%s259 + $0x4b0] sm:$0xff]
      %v441 = vld [vmem:[%s259 + $0x4b8] sm:$0xff]
      %v442 = vld [vmem:[%s259 + $0x4c0] sm:$0xff]
      %v443 = vld [vmem:[%s259 + $0x4c8] sm:$0xff]
      %v444 = vld [vmem:[%s259 + $0x4d0] sm:$0xff]
      %v445 = vld [vmem:[%s259 + $0x4d8] sm:$0xff]
      %v446 = vld [vmem:[%s259 + $0x4e0] sm:$0xff]
      %v447 = vld [vmem:[%s259 + $0x4e8] sm:$0xff]
      %v448 = vld [vmem:[%s259 + $0x4f0] sm:$0xff]
      %v449 = vld [vmem:[%s259 + $0x4f8] sm:$0xff]
      %v450 = vld [vmem:[%s259 + $0x500] sm:$0xff]
      %v451 = vld [vmem:[%s259 + $0x508] sm:$0xff]
      %v452 = vld [vmem:[%s259 + $0x510] sm:$0xff]
      %v453 = vld [vmem:[%s259 + $0x518] sm:$0xff]
      %v454 = vld [vmem:[%s259 + $0x520] sm:$0xff]
      %v455 = vld [vmem:[%s259 + $0x528] sm:$0xff]
      %v456 = vld [vmem:[%s259 + $0x530] sm:$0xff]
      %v457 = vld [vmem:[%s259 + $0x538] sm:$0xff]
      %v458 = vld [vmem:[%s259 + $0x540] sm:$0xff]
      %v459 = vld [vmem:[%s259 + $0x548] sm:$0xff]
      %v460 = vld [vmem:[%s259 + $0x550] sm:$0xff]
      %v461 = vld [vmem:[%s259 + $0x558] sm:$0xff]
      %v462 = vld [vmem:[%s259 + $0x560] sm:$0xff]
      %v463 = vld [vmem:[%s259 + $0x568] sm:$0xff]
      %v464 = vld [vmem:[%s259 + $0x570] sm:$0xff]
      %v465 = vld [vmem:[%s259 + $0x578] sm:$0xff]
      %v466 = vld [vmem:[%s259 + $0x580] sm:$0xff]
      %v467 = vld [vmem:[%s259 + $0x588] sm:$0xff]
      %v468 = vld [vmem:[%s259 + $0x590] sm:$0xff]
      %v469 = vld [vmem:[%s259 + $0x598] sm:$0xff]
      %v470 = vld [vmem:[%s259 + $0x5a0] sm:$0xff]
      %v471 = vld [vmem:[%s259 + $0x5a8] sm:$0xff]
      %v472 = vld [vmem:[%s259 + $0x5b0] sm:$0xff]
      %v473 = vld [vmem:[%s259 + $0x5b8] sm:$0xff]
      %v474 = vld [vmem:[%s259 + $0x5c0] sm:$0xff]
      %v475 = vld [vmem:[%s259 + $0x5c8] sm:$0xff]
      %v476 = vld [vmem:[%s259 + $0x5d0] sm:$0xff]
      %v477 = vld [vmem:[%s259 + $0x5d8] sm:$0xff]
      %v478 = vld [vmem:[%s259 + $0x5e0] sm:$0xff]
      %v479 = vld [vmem:[%s259 + $0x5e8] sm:$0xff]
      %v480 = vld [vmem:[%s259 + $0x5f0] sm:$0xff]
      %v481 = vld [vmem:[%s259 + $0x5f8] sm:$0xff]
      %v482 = vld [vmem:[%s259 + $0x600] sm:$0xff]
      %v483 = vld [vmem:[%s259 + $0x608] sm:$0xff]
      %v484 = vld [vmem:[%s259 + $0x610] sm:$0xff]
      %v485 = vld [vmem:[%s259 + $0x618] sm:$0xff]
      %v486 = vld [vmem:[%s259 + $0x620] sm:$0xff]
      %v487 = vld [vmem:[%s259 + $0x628] sm:$0xff]
      %v488 = vld [vmem:[%s259 + $0x630] sm:$0xff]
      %v489 = vld [vmem:[%s259 + $0x638] sm:$0xff]
      %v490 = vld [vmem:[%s259 + $0x640] sm:$0xff]
      %v491 = vld [vmem:[%s259 + $0x648] sm:$0xff]
      %v492 = vld [vmem:[%s259 + $0x650] sm:$0xff]
      %v493 = vld [vmem:[%s259 + $0x658] sm:$0xff]
      %v494 = vld [vmem:[%s259 + $0x660] sm:$0xff]
      %v495 = vld [vmem:[%s259 + $0x668] sm:$0xff]
      %v496 = vld [vmem:[%s259 + $0x670] sm:$0xff]
      %v497 = vld [vmem:[%s259 + $0x678] sm:$0xff]
      %v498 = vld [vmem:[%s259 + $0x680] sm:$0xff]
      %v499 = vld [vmem:[%s259 + $0x688] sm:$0xff]
      %v500 = vld [vmem:[%s259 + $0x690] sm:$0xff]
      %v501 = vld [vmem:[%s259 + $0x698] sm:$0xff]
      %v502 = vld [vmem:[%s259 + $0x6a0] sm:$0xff]
      %v503 = vld [vmem:[%s259 + $0x6a8] sm:$0xff]
      %v504 = vld [vmem:[%s259 + $0x6b0] sm:$0xff]
      %v505 = vld [vmem:[%s259 + $0x6b8] sm:$0xff]
      %v506 = vld [vmem:[%s259 + $0x6c0] sm:$0xff]
      %v507 = vld [vmem:[%s259 + $0x6c8] sm:$0xff]
      %v508 = vld [vmem:[%s259 + $0x6d0] sm:$0xff]
      %v509 = vld [vmem:[%s259 + $0x6d8] sm:$0xff]
      %v510 = vld [vmem:[%s259 + $0x6e0] sm:$0xff]
      %v511 = vld [vmem:[%s259 + $0x6e8] sm:$0xff]
      %v512 = vld [vmem:[%s259 + $0x6f0] sm:$0xff]
      %v513 = vld [vmem:[%s259 + $0x6f8] sm:$0xff]
      %v514 = vld [vmem:[%s265] sm:$0xff]
      %v515 = vld [vmem:[%s265 + $0x8] sm:$0xff]
      %v516 = vld [vmem:[%s265 + $0x10] sm:$0xff]
      %v517 = vld [vmem:[%s265 + $0x18] sm:$0xff]
      %v518 = vld [vmem:[%s265 + $0x20] sm:$0xff]
      %v519 = vld [vmem:[%s265 + $0x28] sm:$0xff]
      %v520 = vld [vmem:[%s265 + $0x30] sm:$0xff]
      %v521 = vld [vmem:[%s265 + $0x38] sm:$0xff]
      %v522 = vld [vmem:[%s265 + $0x40] sm:$0xff]
      %v523 = vld [vmem:[%s265 + $0x48] sm:$0xff]
      %v524 = vld [vmem:[%s265 + $0x50] sm:$0xff]
      %v525 = vld [vmem:[%s265 + $0x58] sm:$0xff]
      %v526 = vld [vmem:[%s265 + $0x60] sm:$0xff]
      %v527 = vld [vmem:[%s265 + $0x68] sm:$0xff]
      %v528 = vld [vmem:[%s265 + $0x70] sm:$0xff]
      %v529 = vld [vmem:[%s265 + $0x78] sm:$0xff]
      %v530 = vld [vmem:[%s265 + $0x80] sm:$0xff]
      %v531 = vld [vmem:[%s265 + $0x88] sm:$0xff]
      %v532 = vld [vmem:[%s265 + $0x90] sm:$0xff]
      %v533 = vld [vmem:[%s265 + $0x98] sm:$0xff]
      %v534 = vld [vmem:[%s265 + $0xa0] sm:$0xff]
      %v535 = vld [vmem:[%s265 + $0xa8] sm:$0xff]
      %v536 = vld [vmem:[%s265 + $0xb0] sm:$0xff]
      %v537 = vld [vmem:[%s265 + $0xb8] sm:$0xff]
      %v538 = vld [vmem:[%s265 + $0xc0] sm:$0xff]
      %v539 = vld [vmem:[%s265 + $0xc8] sm:$0xff]
      %v540 = vld [vmem:[%s265 + $0xd0] sm:$0xff]
      %v541 = vld [vmem:[%s265 + $0xd8] sm:$0xff]
      %v542 = vld [vmem:[%s265 + $0xe0] sm:$0xff]
      %v543 = vld [vmem:[%s265 + $0xe8] sm:$0xff]
      %v544 = vld [vmem:[%s265 + $0xf0] sm:$0xff]
      %v545 = vld [vmem:[%s265 + $0xf8] sm:$0xff]
      %v546 = vld [vmem:[%s265 + $0x100] sm:$0xff]
      %v547 = vld [vmem:[%s265 + $0x108] sm:$0xff]
      %v548 = vld [vmem:[%s265 + $0x110] sm:$0xff]
      %v549 = vld [vmem:[%s265 + $0x118] sm:$0xff]
      %v550 = vld [vmem:[%s265 + $0x120] sm:$0xff]
      %v551 = vld [vmem:[%s265 + $0x128] sm:$0xff]
      %v552 = vld [vmem:[%s265 + $0x130] sm:$0xff]
      %v553 = vld [vmem:[%s265 + $0x138] sm:$0xff]
      %v554 = vld [vmem:[%s265 + $0x140] sm:$0xff]
      %v555 = vld [vmem:[%s265 + $0x148] sm:$0xff]
      %v556 = vld [vmem:[%s265 + $0x150] sm:$0xff]
      %v557 = vld [vmem:[%s265 + $0x158] sm:$0xff]
      %v558 = vld [vmem:[%s265 + $0x160] sm:$0xff]
      %v559 = vld [vmem:[%s265 + $0x168] sm:$0xff]
      %v560 = vld [vmem:[%s265 + $0x170] sm:$0xff]
      %v561 = vld [vmem:[%s265 + $0x178] sm:$0xff]
      %v562 = vld [vmem:[%s265 + $0x180] sm:$0xff]
      %v563 = vld [vmem:[%s265 + $0x188] sm:$0xff]
      %v564 = vld [vmem:[%s265 + $0x190] sm:$0xff]
      %v565 = vld [vmem:[%s265 + $0x198] sm:$0xff]
      %v566 = vld [vmem:[%s265 + $0x1a0] sm:$0xff]
      %v567 = vld [vmem:[%s265 + $0x1a8] sm:$0xff]
      %v568 = vld [vmem:[%s265 + $0x1b0] sm:$0xff]
      %v569 = vld [vmem:[%s265 + $0x1b8] sm:$0xff]
      %v570 = vld [vmem:[%s265 + $0x1c0] sm:$0xff]
      %v571 = vld [vmem:[%s265 + $0x1c8] sm:$0xff]
      %v572 = vld [vmem:[%s265 + $0x1d0] sm:$0xff]
      %v573 = vld [vmem:[%s265 + $0x1d8] sm:$0xff]
      %v574 = vld [vmem:[%s265 + $0x1e0] sm:$0xff]
      %v575 = vld [vmem:[%s265 + $0x1e8] sm:$0xff]
      %v576 = vld [vmem:[%s265 + $0x1f0] sm:$0xff]
      %v577 = vld [vmem:[%s265 + $0x1f8] sm:$0xff]
      %v578 = vld [vmem:[%s265 + $0x200] sm:$0xff]
      %v579 = vld [vmem:[%s265 + $0x208] sm:$0xff]
      %v580 = vld [vmem:[%s265 + $0x210] sm:$0xff]
      %v581 = vld [vmem:[%s265 + $0x218] sm:$0xff]
      %v582 = vld [vmem:[%s265 + $0x220] sm:$0xff]
      %v583 = vld [vmem:[%s265 + $0x228] sm:$0xff]
      %v584 = vld [vmem:[%s265 + $0x230] sm:$0xff]
      %v585 = vld [vmem:[%s265 + $0x238] sm:$0xff]
      %v586 = vld [vmem:[%s265 + $0x240] sm:$0xff]
      %v587 = vld [vmem:[%s265 + $0x248] sm:$0xff]
      %v588 = vld [vmem:[%s265 + $0x250] sm:$0xff]
      %v589 = vld [vmem:[%s265 + $0x258] sm:$0xff]
      %v590 = vld [vmem:[%s265 + $0x260] sm:$0xff]
      %v591 = vld [vmem:[%s265 + $0x268] sm:$0xff]
      %v592 = vld [vmem:[%s265 + $0x270] sm:$0xff]
      %v593 = vld [vmem:[%s265 + $0x278] sm:$0xff]
      %v594 = vld [vmem:[%s265 + $0x280] sm:$0xff]
      %v595 = vld [vmem:[%s265 + $0x288] sm:$0xff]
      %v596 = vld [vmem:[%s265 + $0x290] sm:$0xff]
      %v597 = vld [vmem:[%s265 + $0x298] sm:$0xff]
      %v598 = vld [vmem:[%s265 + $0x2a0] sm:$0xff]
      %v599 = vld [vmem:[%s265 + $0x2a8] sm:$0xff]
      %v600 = vld [vmem:[%s265 + $0x2b0] sm:$0xff]
      %v601 = vld [vmem:[%s265 + $0x2b8] sm:$0xff]
      %v602 = vld [vmem:[%s265 + $0x2c0] sm:$0xff]
      %v603 = vld [vmem:[%s265 + $0x2c8] sm:$0xff]
      %v604 = vld [vmem:[%s265 + $0x2d0] sm:$0xff]
      %v605 = vld [vmem:[%s265 + $0x2d8] sm:$0xff]
      %v606 = vld [vmem:[%s265 + $0x2e0] sm:$0xff]
      %v607 = vld [vmem:[%s265 + $0x2e8] sm:$0xff]
      %v608 = vld [vmem:[%s265 + $0x2f0] sm:$0xff]
      %v609 = vld [vmem:[%s265 + $0x2f8] sm:$0xff]
      %v610 = vld [vmem:[%s265 + $0x300] sm:$0xff]
      %v611 = vld [vmem:[%s265 + $0x308] sm:$0xff]
      %v612 = vld [vmem:[%s265 + $0x310] sm:$0xff]
      %v613 = vld [vmem:[%s265 + $0x318] sm:$0xff]
      %v614 = vld [vmem:[%s265 + $0x320] sm:$0xff]
      %v615 = vld [vmem:[%s265 + $0x328] sm:$0xff]
      %v616 = vld [vmem:[%s265 + $0x330] sm:$0xff]
      %v617 = vld [vmem:[%s265 + $0x338] sm:$0xff]
      %v618 = vld [vmem:[%s265 + $0x340] sm:$0xff]
      %v619 = vld [vmem:[%s265 + $0x348] sm:$0xff]
      %v620 = vld [vmem:[%s265 + $0x350] sm:$0xff]
      %v621 = vld [vmem:[%s265 + $0x358] sm:$0xff]
      %v622 = vld [vmem:[%s265 + $0x360] sm:$0xff]
      %v623 = vld [vmem:[%s265 + $0x368] sm:$0xff]
      %v624 = vld [vmem:[%s265 + $0x370] sm:$0xff]
      %v625 = vld [vmem:[%s265 + $0x378] sm:$0xff]
      %v626 = vld [vmem:[%s265 + $0x380] sm:$0xff]
      %v627 = vld [vmem:[%s265 + $0x388] sm:$0xff]
      %v628 = vld [vmem:[%s265 + $0x390] sm:$0xff]
      %v629 = vld [vmem:[%s265 + $0x398] sm:$0xff]
      %v630 = vld [vmem:[%s265 + $0x3a0] sm:$0xff]
      %v631 = vld [vmem:[%s265 + $0x3a8] sm:$0xff]
      %v632 = vld [vmem:[%s265 + $0x3b0] sm:$0xff]
      %v633 = vld [vmem:[%s265 + $0x3b8] sm:$0xff]
      %v634 = vld [vmem:[%s265 + $0x3c0] sm:$0xff]
      %v635 = vld [vmem:[%s265 + $0x3c8] sm:$0xff]
      %v636 = vld [vmem:[%s265 + $0x3d0] sm:$0xff]
      %v637 = vld [vmem:[%s265 + $0x3d8] sm:$0xff]
      %v638 = vld [vmem:[%s265 + $0x3e0] sm:$0xff]
      %v639 = vld [vmem:[%s265 + $0x3e8] sm:$0xff]
      %v640 = vld [vmem:[%s265 + $0x3f0] sm:$0xff]
      %v641 = vld [vmem:[%s265 + $0x3f8] sm:$0xff]
      %v642 = vld [vmem:[%s265 + $0x400] sm:$0xff]
      %v643 = vld [vmem:[%s265 + $0x408] sm:$0xff]
      %v644 = vld [vmem:[%s265 + $0x410] sm:$0xff]
      %v645 = vld [vmem:[%s265 + $0x418] sm:$0xff]
      %v646 = vld [vmem:[%s265 + $0x420] sm:$0xff]
      %v647 = vld [vmem:[%s265 + $0x428] sm:$0xff]
      %v648 = vld [vmem:[%s265 + $0x430] sm:$0xff]
      %v649 = vld [vmem:[%s265 + $0x438] sm:$0xff]
      %v650 = vld [vmem:[%s265 + $0x440] sm:$0xff]
      %v651 = vld [vmem:[%s265 + $0x448] sm:$0xff]
      %v652 = vld [vmem:[%s265 + $0x450] sm:$0xff]
      %v653 = vld [vmem:[%s265 + $0x458] sm:$0xff]
      %v654 = vld [vmem:[%s265 + $0x460] sm:$0xff]
      %v655 = vld [vmem:[%s265 + $0x468] sm:$0xff]
      %v656 = vld [vmem:[%s265 + $0x470] sm:$0xff]
      %v657 = vld [vmem:[%s265 + $0x478] sm:$0xff]
      %v658 = vld [vmem:[%s265 + $0x480] sm:$0xff]
      %v659 = vld [vmem:[%s265 + $0x488] sm:$0xff]
      %v660 = vld [vmem:[%s265 + $0x490] sm:$0xff]
      %v661 = vld [vmem:[%s265 + $0x498] sm:$0xff]
      %v662 = vld [vmem:[%s265 + $0x4a0] sm:$0xff]
      %v663 = vld [vmem:[%s265 + $0x4a8] sm:$0xff]
      %v664 = vld [vmem:[%s265 + $0x4b0] sm:$0xff]
      %v665 = vld [vmem:[%s265 + $0x4b8] sm:$0xff]
      %v666 = vld [vmem:[%s265 + $0x4c0] sm:$0xff]
      %v667 = vld [vmem:[%s265 + $0x4c8] sm:$0xff]
      %v668 = vld [vmem:[%s265 + $0x4d0] sm:$0xff]
      %v669 = vld [vmem:[%s265 + $0x4d8] sm:$0xff]
      %v670 = vld [vmem:[%s265 + $0x4e0] sm:$0xff]
      %v671 = vld [vmem:[%s265 + $0x4e8] sm:$0xff]
      %v672 = vld [vmem:[%s265 + $0x4f0] sm:$0xff]
      %v673 = vld [vmem:[%s265 + $0x4f8] sm:$0xff]
      %v674 = vld [vmem:[%s265 + $0x500] sm:$0xff]
      %v675 = vld [vmem:[%s265 + $0x508] sm:$0xff]
      %v676 = vld [vmem:[%s265 + $0x510] sm:$0xff]
      %v677 = vld [vmem:[%s265 + $0x518] sm:$0xff]
      %v678 = vld [vmem:[%s265 + $0x520] sm:$0xff]
      %v679 = vld [vmem:[%s265 + $0x528] sm:$0xff]
      %v680 = vld [vmem:[%s265 + $0x530] sm:$0xff]
      %v681 = vld [vmem:[%s265 + $0x538] sm:$0xff]
      %v682 = vld [vmem:[%s265 + $0x540] sm:$0xff]
      %v683 = vld [vmem:[%s265 + $0x548] sm:$0xff]
      %v684 = vld [vmem:[%s265 + $0x550] sm:$0xff]
      %v685 = vld [vmem:[%s265 + $0x558] sm:$0xff]
      %v686 = vld [vmem:[%s265 + $0x560] sm:$0xff]
      %v687 = vld [vmem:[%s265 + $0x568] sm:$0xff]
      %v688 = vld [vmem:[%s265 + $0x570] sm:$0xff]
      %v689 = vld [vmem:[%s265 + $0x578] sm:$0xff]
      %v690 = vld [vmem:[%s265 + $0x580] sm:$0xff]
      %v691 = vld [vmem:[%s265 + $0x588] sm:$0xff]
      %v692 = vld [vmem:[%s265 + $0x590] sm:$0xff]
      %v693 = vld [vmem:[%s265 + $0x598] sm:$0xff]
      %v694 = vld [vmem:[%s265 + $0x5a0] sm:$0xff]
      %v695 = vld [vmem:[%s265 + $0x5a8] sm:$0xff]
      %v696 = vld [vmem:[%s265 + $0x5b0] sm:$0xff]
      %v697 = vld [vmem:[%s265 + $0x5b8] sm:$0xff]
      %v698 = vld [vmem:[%s265 + $0x5c0] sm:$0xff]
      %v699 = vld [vmem:[%s265 + $0x5c8] sm:$0xff]
      %v700 = vld [vmem:[%s265 + $0x5d0] sm:$0xff]
      %v701 = vld [vmem:[%s265 + $0x5d8] sm:$0xff]
      %v702 = vld [vmem:[%s265 + $0x5e0] sm:$0xff]
      %v703 = vld [vmem:[%s265 + $0x5e8] sm:$0xff]
      %v704 = vld [vmem:[%s265 + $0x5f0] sm:$0xff]
      %v705 = vld [vmem:[%s265 + $0x5f8] sm:$0xff]
      %v706 = vld [vmem:[%s265 + $0x600] sm:$0xff]
      %v707 = vld [vmem:[%s265 + $0x608] sm:$0xff]
      %v708 = vld [vmem:[%s265 + $0x610] sm:$0xff]
      %v709 = vld [vmem:[%s265 + $0x618] sm:$0xff]
      %v710 = vld [vmem:[%s265 + $0x620] sm:$0xff]
      %v711 = vld [vmem:[%s265 + $0x628] sm:$0xff]
      %v712 = vld [vmem:[%s265 + $0x630] sm:$0xff]
      %v713 = vld [vmem:[%s265 + $0x638] sm:$0xff]
      %v714 = vld [vmem:[%s265 + $0x640] sm:$0xff]
      %v715 = vld [vmem:[%s265 + $0x648] sm:$0xff]
      %v716 = vld [vmem:[%s265 + $0x650] sm:$0xff]
      %v717 = vld [vmem:[%s265 + $0x658] sm:$0xff]
      %v718 = vld [vmem:[%s265 + $0x660] sm:$0xff]
      %v719 = vld [vmem:[%s265 + $0x668] sm:$0xff]
      %v720 = vld [vmem:[%s265 + $0x670] sm:$0xff]
      %v721 = vld [vmem:[%s265 + $0x678] sm:$0xff]
      %v722 = vld [vmem:[%s265 + $0x680] sm:$0xff]
      %v723 = vld [vmem:[%s265 + $0x688] sm:$0xff]
      %v724 = vld [vmem:[%s265 + $0x690] sm:$0xff]
      %v725 = vld [vmem:[%s265 + $0x698] sm:$0xff]
      %v726 = vld [vmem:[%s265 + $0x6a0] sm:$0xff]
      %v727 = vld [vmem:[%s265 + $0x6a8] sm:$0xff]
      %v728 = vld [vmem:[%s265 + $0x6b0] sm:$0xff]
      %v729 = vld [vmem:[%s265 + $0x6b8] sm:$0xff]
      %v954 = vunpack.c.l.b16 %v290
      %v955 = vunpack.c.h.b16 %v290
      %v956 = vunpack.c.l.b16 %v291
      %v957 = vunpack.c.h.b16 %v291
      %v958 = vunpack.c.l.b16 %v292
      %v959 = vunpack.c.h.b16 %v292
      %v960 = vunpack.c.l.b16 %v293
      %v961 = vunpack.c.h.b16 %v293
      %v962 = vunpack.c.l.b16 %v294
      %v963 = vunpack.c.h.b16 %v294
      %v964 = vunpack.c.l.b16 %v295
      %v965 = vunpack.c.h.b16 %v295
      %v966 = vunpack.c.l.b16 %v296
      %v967 = vunpack.c.h.b16 %v296
      %v968 = vunpack.c.l.b16 %v297
      %v969 = vunpack.c.h.b16 %v297
      %v970 = vunpack.c.l.b16 %v298
      %v971 = vunpack.c.h.b16 %v298
      %v972 = vunpack.c.l.b16 %v299
      %v973 = vunpack.c.h.b16 %v299
      %v974 = vunpack.c.l.b16 %v300
      %v975 = vunpack.c.h.b16 %v300
      %v976 = vunpack.c.l.b16 %v301
      %v977 = vunpack.c.h.b16 %v301
      %v978 = vunpack.c.l.b16 %v302
      %v979 = vunpack.c.h.b16 %v302
      %v980 = vunpack.c.l.b16 %v303
      %v981 = vunpack.c.h.b16 %v303
      %v982 = vunpack.c.l.b16 %v304
      %v983 = vunpack.c.h.b16 %v304
      %v984 = vunpack.c.l.b16 %v305
      %v985 = vunpack.c.h.b16 %v305
      %v986 = vunpack.c.l.b16 %v306
      %v987 = vunpack.c.h.b16 %v306
      %v988 = vunpack.c.l.b16 %v307
      %v989 = vunpack.c.h.b16 %v307
      %v990 = vunpack.c.l.b16 %v308
      %v991 = vunpack.c.h.b16 %v308
      %v992 = vunpack.c.l.b16 %v309
      %v993 = vunpack.c.h.b16 %v309
      %v994 = vunpack.c.l.b16 %v310
      %v995 = vunpack.c.h.b16 %v310
      %v996 = vunpack.c.l.b16 %v311
      %v997 = vunpack.c.h.b16 %v311
      %v998 = vunpack.c.l.b16 %v312
      %v999 = vunpack.c.h.b16 %v312
      %v1000 = vunpack.c.l.b16 %v313
      %v1001 = vunpack.c.h.b16 %v313
      %v1002 = vunpack.c.l.b16 %v314
      %v1003 = vunpack.c.h.b16 %v314
      %v1004 = vunpack.c.l.b16 %v315
      %v1005 = vunpack.c.h.b16 %v315
      %v1006 = vunpack.c.l.b16 %v316
      %v1007 = vunpack.c.h.b16 %v316
      %v1008 = vunpack.c.l.b16 %v317
      %v1009 = vunpack.c.h.b16 %v317
      %v1010 = vunpack.c.l.b16 %v318
      %v1011 = vunpack.c.h.b16 %v318
      %v1012 = vunpack.c.l.b16 %v319
      %v1013 = vunpack.c.h.b16 %v319
      %v1014 = vunpack.c.l.b16 %v320
      %v1015 = vunpack.c.h.b16 %v320
      %v1016 = vunpack.c.l.b16 %v321
      %v1017 = vunpack.c.h.b16 %v321
      %v1018 = vunpack.c.l.b16 %v322
      %v1019 = vunpack.c.h.b16 %v322
      %v1020 = vunpack.c.l.b16 %v323
      %v1021 = vunpack.c.h.b16 %v323
      %v1022 = vunpack.c.l.b16 %v324
      %v1023 = vunpack.c.h.b16 %v324
      %v1024 = vunpack.c.l.b16 %v325
      %v1025 = vunpack.c.h.b16 %v325
      %v1026 = vunpack.c.l.b16 %v326
      %v1027 = vunpack.c.h.b16 %v326
      %v1028 = vunpack.c.l.b16 %v327
      %v1029 = vunpack.c.h.b16 %v327
      %v1030 = vunpack.c.l.b16 %v328
      %v1031 = vunpack.c.h.b16 %v328
      %v1032 = vunpack.c.l.b16 %v329
      %v1033 = vunpack.c.h.b16 %v329
      %v1034 = vunpack.c.l.b16 %v330
      %v1035 = vunpack.c.h.b16 %v330
      %v1036 = vunpack.c.l.b16 %v331
      %v1037 = vunpack.c.h.b16 %v331
      %v1038 = vunpack.c.l.b16 %v332
      %v1039 = vunpack.c.h.b16 %v332
      %v1040 = vunpack.c.l.b16 %v333
      %v1041 = vunpack.c.h.b16 %v333
      %v1042 = vunpack.c.l.b16 %v334
      %v1043 = vunpack.c.h.b16 %v334
      %v1044 = vunpack.c.l.b16 %v335
      %v1045 = vunpack.c.h.b16 %v335
      %v1046 = vunpack.c.l.b16 %v336
      %v1047 = vunpack.c.h.b16 %v336
      %v1048 = vunpack.c.l.b16 %v337
      %v1049 = vunpack.c.h.b16 %v337
      %v1050 = vunpack.c.l.b16 %v338
      %v1051 = vunpack.c.h.b16 %v338
      %v1052 = vunpack.c.l.b16 %v339
      %v1053 = vunpack.c.h.b16 %v339
      %v1054 = vunpack.c.l.b16 %v340
      %v1055 = vunpack.c.h.b16 %v340
      %v1056 = vunpack.c.l.b16 %v341
      %v1057 = vunpack.c.h.b16 %v341
      %v1058 = vunpack.c.l.b16 %v342
      %v1059 = vunpack.c.h.b16 %v342
      %v1060 = vunpack.c.l.b16 %v343
      %v1061 = vunpack.c.h.b16 %v343
      %v1062 = vunpack.c.l.b16 %v344
      %v1063 = vunpack.c.h.b16 %v344
      %v1064 = vunpack.c.l.b16 %v345
      %v1065 = vunpack.c.h.b16 %v345
      %v1066 = vunpack.c.l.b16 %v346
      %v1067 = vunpack.c.h.b16 %v346
      %v1068 = vunpack.c.l.b16 %v347
      %v1069 = vunpack.c.h.b16 %v347
      %v1070 = vunpack.c.l.b16 %v348
      %v1071 = vunpack.c.h.b16 %v348
      %v1072 = vunpack.c.l.b16 %v349
      %v1073 = vunpack.c.h.b16 %v349
      %v1074 = vunpack.c.l.b16 %v350
      %v1075 = vunpack.c.h.b16 %v350
      %v1076 = vunpack.c.l.b16 %v351
      %v1077 = vunpack.c.h.b16 %v351
      %v1078 = vunpack.c.l.b16 %v352
      %v1079 = vunpack.c.h.b16 %v352
      %v1080 = vunpack.c.l.b16 %v353
      %v1081 = vunpack.c.h.b16 %v353
      %v1082 = vunpack.c.l.b16 %v354
      %v1083 = vunpack.c.h.b16 %v354
      %v1084 = vunpack.c.l.b16 %v355
      %v1085 = vunpack.c.h.b16 %v355
      %v1086 = vunpack.c.l.b16 %v356
      %v1087 = vunpack.c.h.b16 %v356
      %v1088 = vunpack.c.l.b16 %v357
      %v1089 = vunpack.c.h.b16 %v357
      %v1090 = vunpack.c.l.b16 %v358
      %v1091 = vunpack.c.h.b16 %v358
      %v1092 = vunpack.c.l.b16 %v359
      %v1093 = vunpack.c.h.b16 %v359
      %v1094 = vunpack.c.l.b16 %v360
      %v1095 = vunpack.c.h.b16 %v360
      %v1096 = vunpack.c.l.b16 %v361
      %v1097 = vunpack.c.h.b16 %v361
      %v1098 = vunpack.c.l.b16 %v362
      %v1099 = vunpack.c.h.b16 %v362
      %v1100 = vunpack.c.l.b16 %v363
      %v1101 = vunpack.c.h.b16 %v363
      %v1102 = vunpack.c.l.b16 %v364
      %v1103 = vunpack.c.h.b16 %v364
      %v1104 = vunpack.c.l.b16 %v365
      %v1105 = vunpack.c.h.b16 %v365
      %v1106 = vunpack.c.l.b16 %v366
      %v1107 = vunpack.c.h.b16 %v366
      %v1108 = vunpack.c.l.b16 %v367
      %v1109 = vunpack.c.h.b16 %v367
      %v1110 = vunpack.c.l.b16 %v368
      %v1111 = vunpack.c.h.b16 %v368
      %v1112 = vunpack.c.l.b16 %v369
      %v1113 = vunpack.c.h.b16 %v369
      %v1114 = vunpack.c.l.b16 %v370
      %v1115 = vunpack.c.h.b16 %v370
      %v1116 = vunpack.c.l.b16 %v371
      %v1117 = vunpack.c.h.b16 %v371
      %v1118 = vunpack.c.l.b16 %v372
      %v1119 = vunpack.c.h.b16 %v372
      %v1120 = vunpack.c.l.b16 %v373
      %v1121 = vunpack.c.h.b16 %v373
      %v1122 = vunpack.c.l.b16 %v374
      %v1123 = vunpack.c.h.b16 %v374
      %v1124 = vunpack.c.l.b16 %v375
      %v1125 = vunpack.c.h.b16 %v375
      %v1126 = vunpack.c.l.b16 %v376
      %v1127 = vunpack.c.h.b16 %v376
      %v1128 = vunpack.c.l.b16 %v377
      %v1129 = vunpack.c.h.b16 %v377
      %v1130 = vunpack.c.l.b16 %v378
      %v1131 = vunpack.c.h.b16 %v378
      %v1132 = vunpack.c.l.b16 %v379
      %v1133 = vunpack.c.h.b16 %v379
      %v1134 = vunpack.c.l.b16 %v380
      %v1135 = vunpack.c.h.b16 %v380
      %v1136 = vunpack.c.l.b16 %v381
      %v1137 = vunpack.c.h.b16 %v381
      %v1138 = vunpack.c.l.b16 %v382
      %v1139 = vunpack.c.h.b16 %v382
      %v1140 = vunpack.c.l.b16 %v383
      %v1141 = vunpack.c.h.b16 %v383
      %v1142 = vunpack.c.l.b16 %v384
      %v1143 = vunpack.c.h.b16 %v384
      %v1144 = vunpack.c.l.b16 %v385
      %v1145 = vunpack.c.h.b16 %v385
      %v1146 = vunpack.c.l.b16 %v386
      %v1147 = vunpack.c.h.b16 %v386
      %v1148 = vunpack.c.l.b16 %v387
      %v1149 = vunpack.c.h.b16 %v387
      %v1150 = vunpack.c.l.b16 %v388
      %v1151 = vunpack.c.h.b16 %v388
      %v1152 = vunpack.c.l.b16 %v389
      %v1153 = vunpack.c.h.b16 %v389
      %v1154 = vunpack.c.l.b16 %v390
      %v1155 = vunpack.c.h.b16 %v390
      %v1156 = vunpack.c.l.b16 %v391
      %v1157 = vunpack.c.h.b16 %v391
      %v1158 = vunpack.c.l.b16 %v392
      %v1159 = vunpack.c.h.b16 %v392
      %v1160 = vunpack.c.l.b16 %v393
      %v1161 = vunpack.c.h.b16 %v393
      %v1162 = vunpack.c.l.b16 %v394
      %v1163 = vunpack.c.h.b16 %v394
      %v1164 = vunpack.c.l.b16 %v395
      %v1165 = vunpack.c.h.b16 %v395
      %v1166 = vunpack.c.l.b16 %v396
      %v1167 = vunpack.c.h.b16 %v396
      %v1168 = vunpack.c.l.b16 %v397
      %v1169 = vunpack.c.h.b16 %v397
      %v1170 = vunpack.c.l.b16 %v398
      %v1171 = vunpack.c.h.b16 %v398
      %v1172 = vunpack.c.l.b16 %v399
      %v1173 = vunpack.c.h.b16 %v399
      %v1174 = vunpack.c.l.b16 %v400
      %v1175 = vunpack.c.h.b16 %v400
      %v1176 = vunpack.c.l.b16 %v401
      %v1177 = vunpack.c.h.b16 %v401
      %v1178 = vunpack.c.l.b16 %v402
      %v1179 = vunpack.c.h.b16 %v402
      %v1180 = vunpack.c.l.b16 %v403
      %v1181 = vunpack.c.h.b16 %v403
      %v1182 = vunpack.c.l.b16 %v404
      %v1183 = vunpack.c.h.b16 %v404
      %v1184 = vunpack.c.l.b16 %v405
      %v1185 = vunpack.c.h.b16 %v405
      %v1186 = vunpack.c.l.b16 %v406
      %v1187 = vunpack.c.h.b16 %v406
      %v1188 = vunpack.c.l.b16 %v407
      %v1189 = vunpack.c.h.b16 %v407
      %v1190 = vunpack.c.l.b16 %v408
      %v1191 = vunpack.c.h.b16 %v408
      %v1192 = vunpack.c.l.b16 %v409
      %v1193 = vunpack.c.h.b16 %v409
      %v1194 = vunpack.c.l.b16 %v410
      %v1195 = vunpack.c.h.b16 %v410
      %v1196 = vunpack.c.l.b16 %v411
      %v1197 = vunpack.c.h.b16 %v411
      %v1198 = vunpack.c.l.b16 %v412
      %v1199 = vunpack.c.h.b16 %v412
      %v1200 = vunpack.c.l.b16 %v413
      %v1201 = vunpack.c.h.b16 %v413
      %v1202 = vunpack.c.l.b16 %v414
      %v1203 = vunpack.c.h.b16 %v414
      %v1204 = vunpack.c.l.b16 %v415
      %v1205 = vunpack.c.h.b16 %v415
      %v1206 = vunpack.c.l.b16 %v416
      %v1207 = vunpack.c.h.b16 %v416
      %v1208 = vunpack.c.l.b16 %v417
      %v1209 = vunpack.c.h.b16 %v417
      %v1210 = vunpack.c.l.b16 %v418
      %v1211 = vunpack.c.h.b16 %v418
      %v1212 = vunpack.c.l.b16 %v419
      %v1213 = vunpack.c.h.b16 %v419
      %v1214 = vunpack.c.l.b16 %v420
      %v1215 = vunpack.c.h.b16 %v420
      %v1216 = vunpack.c.l.b16 %v421
      %v1217 = vunpack.c.h.b16 %v421
      %v1218 = vunpack.c.l.b16 %v422
      %v1219 = vunpack.c.h.b16 %v422
      %v1220 = vunpack.c.l.b16 %v423
      %v1221 = vunpack.c.h.b16 %v423
      %v1222 = vunpack.c.l.b16 %v424
      %v1223 = vunpack.c.h.b16 %v424
      %v1224 = vunpack.c.l.b16 %v425
      %v1225 = vunpack.c.h.b16 %v425
      %v1226 = vunpack.c.l.b16 %v426
      %v1227 = vunpack.c.h.b16 %v426
      %v1228 = vunpack.c.l.b16 %v427
      %v1229 = vunpack.c.h.b16 %v427
      %v1230 = vunpack.c.l.b16 %v428
      %v1231 = vunpack.c.h.b16 %v428
      %v1232 = vunpack.c.l.b16 %v429
      %v1233 = vunpack.c.h.b16 %v429
      %v1234 = vunpack.c.l.b16 %v430
      %v1235 = vunpack.c.h.b16 %v430
      %v1236 = vunpack.c.l.b16 %v431
      %v1237 = vunpack.c.h.b16 %v431
      %v1238 = vunpack.c.l.b16 %v432
      %v1239 = vunpack.c.h.b16 %v432
      %v1240 = vunpack.c.l.b16 %v433
      %v1241 = vunpack.c.h.b16 %v433
      %v1242 = vunpack.c.l.b16 %v434
      %v1243 = vunpack.c.h.b16 %v434
      %v1244 = vunpack.c.l.b16 %v435
      %v1245 = vunpack.c.h.b16 %v435
      %v1246 = vunpack.c.l.b16 %v436
      %v1247 = vunpack.c.h.b16 %v436
      %v1248 = vunpack.c.l.b16 %v437
      %v1249 = vunpack.c.h.b16 %v437
      %v1250 = vunpack.c.l.b16 %v438
      %v1251 = vunpack.c.h.b16 %v438
      %v1252 = vunpack.c.l.b16 %v439
      %v1253 = vunpack.c.h.b16 %v439
      %v1254 = vunpack.c.l.b16 %v440
      %v1255 = vunpack.c.h.b16 %v440
      %v1256 = vunpack.c.l.b16 %v441
      %v1257 = vunpack.c.h.b16 %v441
      %v1258 = vunpack.c.l.b16 %v442
      %v1259 = vunpack.c.h.b16 %v442
      %v1260 = vunpack.c.l.b16 %v443
      %v1261 = vunpack.c.h.b16 %v443
      %v1262 = vunpack.c.l.b16 %v444
      %v1263 = vunpack.c.h.b16 %v444
      %v1264 = vunpack.c.l.b16 %v445
      %v1265 = vunpack.c.h.b16 %v445
      %v1266 = vunpack.c.l.b16 %v446
      %v1267 = vunpack.c.h.b16 %v446
      %v1268 = vunpack.c.l.b16 %v447
      %v1269 = vunpack.c.h.b16 %v447
      %v1270 = vunpack.c.l.b16 %v448
      %v1271 = vunpack.c.h.b16 %v448
      %v1272 = vunpack.c.l.b16 %v449
      %v1273 = vunpack.c.h.b16 %v449
      %v1274 = vunpack.c.l.b16 %v450
      %v1275 = vunpack.c.h.b16 %v450
      %v1276 = vunpack.c.l.b16 %v451
      %v1277 = vunpack.c.h.b16 %v451
      %v1278 = vunpack.c.l.b16 %v452
      %v1279 = vunpack.c.h.b16 %v452
      %v1280 = vunpack.c.l.b16 %v453
      %v1281 = vunpack.c.h.b16 %v453
      %v1282 = vunpack.c.l.b16 %v454
      %v1283 = vunpack.c.h.b16 %v454
      %v1284 = vunpack.c.l.b16 %v455
      %v1285 = vunpack.c.h.b16 %v455
      %v1286 = vunpack.c.l.b16 %v456
      %v1287 = vunpack.c.h.b16 %v456
      %v1288 = vunpack.c.l.b16 %v457
      %v1289 = vunpack.c.h.b16 %v457
      %v1290 = vunpack.c.l.b16 %v458
      %v1291 = vunpack.c.h.b16 %v458
      %v1292 = vunpack.c.l.b16 %v459
      %v1293 = vunpack.c.h.b16 %v459
      %v1294 = vunpack.c.l.b16 %v460
      %v1295 = vunpack.c.h.b16 %v460
      %v1296 = vunpack.c.l.b16 %v461
      %v1297 = vunpack.c.h.b16 %v461
      %v1298 = vunpack.c.l.b16 %v462
      %v1299 = vunpack.c.h.b16 %v462
      %v1300 = vunpack.c.l.b16 %v463
      %v1301 = vunpack.c.h.b16 %v463
      %v1302 = vunpack.c.l.b16 %v464
      %v1303 = vunpack.c.h.b16 %v464
      %v1304 = vunpack.c.l.b16 %v465
      %v1305 = vunpack.c.h.b16 %v465
      %v1306 = vunpack.c.l.b16 %v466
      %v1307 = vunpack.c.h.b16 %v466
      %v1308 = vunpack.c.l.b16 %v467
      %v1309 = vunpack.c.h.b16 %v467
      %v1310 = vunpack.c.l.b16 %v468
      %v1311 = vunpack.c.h.b16 %v468
      %v1312 = vunpack.c.l.b16 %v469
      %v1313 = vunpack.c.h.b16 %v469
      %v1314 = vunpack.c.l.b16 %v470
      %v1315 = vunpack.c.h.b16 %v470
      %v1316 = vunpack.c.l.b16 %v471
      %v1317 = vunpack.c.h.b16 %v471
      %v1318 = vunpack.c.l.b16 %v472
      %v1319 = vunpack.c.h.b16 %v472
      %v1320 = vunpack.c.l.b16 %v473
      %v1321 = vunpack.c.h.b16 %v473
      %v1322 = vunpack.c.l.b16 %v474
      %v1323 = vunpack.c.h.b16 %v474
      %v1324 = vunpack.c.l.b16 %v475
      %v1325 = vunpack.c.h.b16 %v475
      %v1326 = vunpack.c.l.b16 %v476
      %v1327 = vunpack.c.h.b16 %v476
      %v1328 = vunpack.c.l.b16 %v477
      %v1329 = vunpack.c.h.b16 %v477
      %v1330 = vunpack.c.l.b16 %v478
      %v1331 = vunpack.c.h.b16 %v478
      %v1332 = vunpack.c.l.b16 %v479
      %v1333 = vunpack.c.h.b16 %v479
      %v1334 = vunpack.c.l.b16 %v480
      %v1335 = vunpack.c.h.b16 %v480
      %v1336 = vunpack.c.l.b16 %v481
      %v1337 = vunpack.c.h.b16 %v481
      %v1338 = vunpack.c.l.b16 %v482
      %v1339 = vunpack.c.h.b16 %v482
      %v1340 = vunpack.c.l.b16 %v483
      %v1341 = vunpack.c.h.b16 %v483
      %v1342 = vunpack.c.l.b16 %v484
      %v1343 = vunpack.c.h.b16 %v484
      %v1344 = vunpack.c.l.b16 %v485
      %v1345 = vunpack.c.h.b16 %v485
      %v1346 = vunpack.c.l.b16 %v486
      %v1347 = vunpack.c.h.b16 %v486
      %v1348 = vunpack.c.l.b16 %v487
      %v1349 = vunpack.c.h.b16 %v487
      %v1350 = vunpack.c.l.b16 %v488
      %v1351 = vunpack.c.h.b16 %v488
      %v1352 = vunpack.c.l.b16 %v489
      %v1353 = vunpack.c.h.b16 %v489
      %v1354 = vunpack.c.l.b16 %v490
      %v1355 = vunpack.c.h.b16 %v490
      %v1356 = vunpack.c.l.b16 %v491
      %v1357 = vunpack.c.h.b16 %v491
      %v1358 = vunpack.c.l.b16 %v492
      %v1359 = vunpack.c.h.b16 %v492
      %v1360 = vunpack.c.l.b16 %v493
      %v1361 = vunpack.c.h.b16 %v493
      %v1362 = vunpack.c.l.b16 %v494
      %v1363 = vunpack.c.h.b16 %v494
      %v1364 = vunpack.c.l.b16 %v495
      %v1365 = vunpack.c.h.b16 %v495
      %v1366 = vunpack.c.l.b16 %v496
      %v1367 = vunpack.c.h.b16 %v496
      %v1368 = vunpack.c.l.b16 %v497
      %v1369 = vunpack.c.h.b16 %v497
      %v1370 = vunpack.c.l.b16 %v498
      %v1371 = vunpack.c.h.b16 %v498
      %v1372 = vunpack.c.l.b16 %v499
      %v1373 = vunpack.c.h.b16 %v499
      %v1374 = vunpack.c.l.b16 %v500
      %v1375 = vunpack.c.h.b16 %v500
      %v1376 = vunpack.c.l.b16 %v501
      %v1377 = vunpack.c.h.b16 %v501
      %v1378 = vunpack.c.l.b16 %v502
      %v1379 = vunpack.c.h.b16 %v502
      %v1380 = vunpack.c.l.b16 %v503
      %v1381 = vunpack.c.h.b16 %v503
      %v1382 = vunpack.c.l.b16 %v504
      %v1383 = vunpack.c.h.b16 %v504
      %v1384 = vunpack.c.l.b16 %v505
      %v1385 = vunpack.c.h.b16 %v505
      %v1386 = vunpack.c.l.b16 %v506
      %v1387 = vunpack.c.h.b16 %v506
      %v1388 = vunpack.c.l.b16 %v507
      %v1389 = vunpack.c.h.b16 %v507
      %v1390 = vunpack.c.l.b16 %v508
      %v1391 = vunpack.c.h.b16 %v508
      %v1392 = vunpack.c.l.b16 %v509
      %v1393 = vunpack.c.h.b16 %v509
      %v1394 = vunpack.c.l.b16 %v510
      %v1395 = vunpack.c.h.b16 %v510
      %v1396 = vunpack.c.l.b16 %v511
      %v1397 = vunpack.c.h.b16 %v511
      %v1398 = vunpack.c.l.b16 %v512
      %v1399 = vunpack.c.h.b16 %v512
      %v1400 = vunpack.c.l.b16 %v513
      %v1401 = vunpack.c.h.b16 %v513
      %v1402 = vpack.c.b16 %v968, %v954
      %v1403 = vpack.c.b16 %v969, %v955
      %v1404 = vpack.c.b16 %v970, %v956
      %v1405 = vpack.c.b16 %v971, %v957
      %v1406 = vpack.c.b16 %v972, %v958
      %v1407 = vpack.c.b16 %v973, %v959
      %v1408 = vpack.c.b16 %v974, %v960
      %v1409 = vpack.c.b16 %v975, %v961
      %v1410 = vpack.c.b16 %v976, %v962
      %v1411 = vpack.c.b16 %v977, %v963
      %v1412 = vpack.c.b16 %v978, %v964
      %v1413 = vpack.c.b16 %v979, %v965
      %v1414 = vpack.c.b16 %v980, %v966
      %v1415 = vpack.c.b16 %v981, %v967
      %v1416 = vpack.c.b16 %v996, %v982
      %v1417 = vpack.c.b16 %v997, %v983
      %v1418 = vpack.c.b16 %v998, %v984
      %v1419 = vpack.c.b16 %v999, %v985
      %v1420 = vpack.c.b16 %v1000, %v986
      %v1421 = vpack.c.b16 %v1001, %v987
      %v1422 = vpack.c.b16 %v1002, %v988
      %v1423 = vpack.c.b16 %v1003, %v989
      %v1424 = vpack.c.b16 %v1004, %v990
      %v1425 = vpack.c.b16 %v1005, %v991
      %v1426 = vpack.c.b16 %v1006, %v992
      %v1427 = vpack.c.b16 %v1007, %v993
      %v1428 = vpack.c.b16 %v1008, %v994
      %v1429 = vpack.c.b16 %v1009, %v995
      %v1430 = vpack.c.b16 %v1024, %v1010
      %v1431 = vpack.c.b16 %v1025, %v1011
      %v1432 = vpack.c.b16 %v1026, %v1012
      %v1433 = vpack.c.b16 %v1027, %v1013
      %v1434 = vpack.c.b16 %v1028, %v1014
      %v1435 = vpack.c.b16 %v1029, %v1015
      %v1436 = vpack.c.b16 %v1030, %v1016
      %v1437 = vpack.c.b16 %v1031, %v1017
      %v1438 = vpack.c.b16 %v1032, %v1018
      %v1439 = vpack.c.b16 %v1033, %v1019
      %v1440 = vpack.c.b16 %v1034, %v1020
      %v1441 = vpack.c.b16 %v1035, %v1021
      %v1442 = vpack.c.b16 %v1036, %v1022
      %v1443 = vpack.c.b16 %v1037, %v1023
      %v1444 = vpack.c.b16 %v1052, %v1038
      %v1445 = vpack.c.b16 %v1053, %v1039
      %v1446 = vpack.c.b16 %v1054, %v1040
      %v1447 = vpack.c.b16 %v1055, %v1041
      %v1448 = vpack.c.b16 %v1056, %v1042
      %v1449 = vpack.c.b16 %v1057, %v1043
      %v1450 = vpack.c.b16 %v1058, %v1044
      %v1451 = vpack.c.b16 %v1059, %v1045
      %v1452 = vpack.c.b16 %v1060, %v1046
      %v1453 = vpack.c.b16 %v1061, %v1047
      %v1454 = vpack.c.b16 %v1062, %v1048
      %v1455 = vpack.c.b16 %v1063, %v1049
      %v1456 = vpack.c.b16 %v1064, %v1050
      %v1457 = vpack.c.b16 %v1065, %v1051
      %v1458 = vpack.c.b16 %v1080, %v1066
      %v1459 = vpack.c.b16 %v1081, %v1067
      %v1460 = vpack.c.b16 %v1082, %v1068
      %v1461 = vpack.c.b16 %v1083, %v1069
      %v1462 = vpack.c.b16 %v1084, %v1070
      %v1463 = vpack.c.b16 %v1085, %v1071
      %v1464 = vpack.c.b16 %v1086, %v1072
      %v1465 = vpack.c.b16 %v1087, %v1073
      %v1466 = vpack.c.b16 %v1088, %v1074
      %v1467 = vpack.c.b16 %v1089, %v1075
      %v1468 = vpack.c.b16 %v1090, %v1076
      %v1469 = vpack.c.b16 %v1091, %v1077
      %v1470 = vpack.c.b16 %v1092, %v1078
      %v1471 = vpack.c.b16 %v1093, %v1079
      %v1472 = vpack.c.b16 %v1108, %v1094
      %v1473 = vpack.c.b16 %v1109, %v1095
      %v1474 = vpack.c.b16 %v1110, %v1096
      %v1475 = vpack.c.b16 %v1111, %v1097
      %v1476 = vpack.c.b16 %v1112, %v1098
      %v1477 = vpack.c.b16 %v1113, %v1099
      %v1478 = vpack.c.b16 %v1114, %v1100
      %v1479 = vpack.c.b16 %v1115, %v1101
      %v1480 = vpack.c.b16 %v1116, %v1102
      %v1481 = vpack.c.b16 %v1117, %v1103
      %v1482 = vpack.c.b16 %v1118, %v1104
      %v1483 = vpack.c.b16 %v1119, %v1105
      %v1484 = vpack.c.b16 %v1120, %v1106
      %v1485 = vpack.c.b16 %v1121, %v1107
      %v1486 = vpack.c.b16 %v1136, %v1122
      %v1487 = vpack.c.b16 %v1137, %v1123
      %v1488 = vpack.c.b16 %v1138, %v1124
      %v1489 = vpack.c.b16 %v1139, %v1125
      %v1490 = vpack.c.b16 %v1140, %v1126
      %v1491 = vpack.c.b16 %v1141, %v1127
      %v1492 = vpack.c.b16 %v1142, %v1128
      %v1493 = vpack.c.b16 %v1143, %v1129
      %v1494 = vpack.c.b16 %v1144, %v1130
      %v1495 = vpack.c.b16 %v1145, %v1131
      %v1496 = vpack.c.b16 %v1146, %v1132
      %v1497 = vpack.c.b16 %v1147, %v1133
      %v1498 = vpack.c.b16 %v1148, %v1134
      %v1499 = vpack.c.b16 %v1149, %v1135
      %v1500 = vpack.c.b16 %v1164, %v1150
      %v1501 = vpack.c.b16 %v1165, %v1151
      %v1502 = vpack.c.b16 %v1166, %v1152
      %v1503 = vpack.c.b16 %v1167, %v1153
      %v1504 = vpack.c.b16 %v1168, %v1154
      %v1505 = vpack.c.b16 %v1169, %v1155
      %v1506 = vpack.c.b16 %v1170, %v1156
      %v1507 = vpack.c.b16 %v1171, %v1157
      %v1508 = vpack.c.b16 %v1172, %v1158
      %v1509 = vpack.c.b16 %v1173, %v1159
      %v1510 = vpack.c.b16 %v1174, %v1160
      %v1511 = vpack.c.b16 %v1175, %v1161
      %v1512 = vpack.c.b16 %v1176, %v1162
      %v1513 = vpack.c.b16 %v1177, %v1163
      %v1514 = vpack.c.b16 %v1192, %v1178
      %v1515 = vpack.c.b16 %v1193, %v1179
      %v1516 = vpack.c.b16 %v1194, %v1180
      %v1517 = vpack.c.b16 %v1195, %v1181
      %v1518 = vpack.c.b16 %v1196, %v1182
      %v1519 = vpack.c.b16 %v1197, %v1183
      %v1520 = vpack.c.b16 %v1198, %v1184
      %v1521 = vpack.c.b16 %v1199, %v1185
      %v1522 = vpack.c.b16 %v1200, %v1186
      %v1523 = vpack.c.b16 %v1201, %v1187
      %v1524 = vpack.c.b16 %v1202, %v1188
      %v1525 = vpack.c.b16 %v1203, %v1189
      %v1526 = vpack.c.b16 %v1204, %v1190
      %v1527 = vpack.c.b16 %v1205, %v1191
      %v1528 = vpack.c.b16 %v1220, %v1206
      %v1529 = vpack.c.b16 %v1221, %v1207
      %v1530 = vpack.c.b16 %v1222, %v1208
      %v1531 = vpack.c.b16 %v1223, %v1209
      %v1532 = vpack.c.b16 %v1224, %v1210
      %v1533 = vpack.c.b16 %v1225, %v1211
      %v1534 = vpack.c.b16 %v1226, %v1212
      %v1535 = vpack.c.b16 %v1227, %v1213
      %v1536 = vpack.c.b16 %v1228, %v1214
      %v1537 = vpack.c.b16 %v1229, %v1215
      %v1538 = vpack.c.b16 %v1230, %v1216
      %v1539 = vpack.c.b16 %v1231, %v1217
      %v1540 = vpack.c.b16 %v1232, %v1218
      %v1541 = vpack.c.b16 %v1233, %v1219
      %v1542 = vpack.c.b16 %v1248, %v1234
      %v1543 = vpack.c.b16 %v1249, %v1235
      %v1544 = vpack.c.b16 %v1250, %v1236
      %v1545 = vpack.c.b16 %v1251, %v1237
      %v1546 = vpack.c.b16 %v1252, %v1238
      %v1547 = vpack.c.b16 %v1253, %v1239
      %v1548 = vpack.c.b16 %v1254, %v1240
      %v1549 = vpack.c.b16 %v1255, %v1241
      %v1550 = vpack.c.b16 %v1256, %v1242
      %v1551 = vpack.c.b16 %v1257, %v1243
      %v1552 = vpack.c.b16 %v1258, %v1244
      %v1553 = vpack.c.b16 %v1259, %v1245
      %v1554 = vpack.c.b16 %v1260, %v1246
      %v1555 = vpack.c.b16 %v1261, %v1247
      %v1556 = vpack.c.b16 %v1276, %v1262
      %v1557 = vpack.c.b16 %v1277, %v1263
      %v1558 = vpack.c.b16 %v1278, %v1264
      %v1559 = vpack.c.b16 %v1279, %v1265
      %v1560 = vpack.c.b16 %v1280, %v1266
      %v1561 = vpack.c.b16 %v1281, %v1267
      %v1562 = vpack.c.b16 %v1282, %v1268
      %v1563 = vpack.c.b16 %v1283, %v1269
      %v1564 = vpack.c.b16 %v1284, %v1270
      %v1565 = vpack.c.b16 %v1285, %v1271
      %v1566 = vpack.c.b16 %v1286, %v1272
      %v1567 = vpack.c.b16 %v1287, %v1273
      %v1568 = vpack.c.b16 %v1288, %v1274
      %v1569 = vpack.c.b16 %v1289, %v1275
      %v1570 = vpack.c.b16 %v1304, %v1290
      %v1571 = vpack.c.b16 %v1305, %v1291
      %v1572 = vpack.c.b16 %v1306, %v1292
      %v1573 = vpack.c.b16 %v1307, %v1293
      %v1574 = vpack.c.b16 %v1308, %v1294
      %v1575 = vpack.c.b16 %v1309, %v1295
      %v1576 = vpack.c.b16 %v1310, %v1296
      %v1577 = vpack.c.b16 %v1311, %v1297
      %v1578 = vpack.c.b16 %v1312, %v1298
      %v1579 = vpack.c.b16 %v1313, %v1299
      %v1580 = vpack.c.b16 %v1314, %v1300
      %v1581 = vpack.c.b16 %v1315, %v1301
      %v1582 = vpack.c.b16 %v1316, %v1302
      %v1583 = vpack.c.b16 %v1317, %v1303
      %v1584 = vpack.c.b16 %v1332, %v1318
      %v1585 = vpack.c.b16 %v1333, %v1319
      %v1586 = vpack.c.b16 %v1334, %v1320
      %v1587 = vpack.c.b16 %v1335, %v1321
      %v1588 = vpack.c.b16 %v1336, %v1322
      %v1589 = vpack.c.b16 %v1337, %v1323
      %v1590 = vpack.c.b16 %v1338, %v1324
      %v1591 = vpack.c.b16 %v1339, %v1325
      %v1592 = vpack.c.b16 %v1340, %v1326
      %v1593 = vpack.c.b16 %v1341, %v1327
      %v1594 = vpack.c.b16 %v1342, %v1328
      %v1595 = vpack.c.b16 %v1343, %v1329
      %v1596 = vpack.c.b16 %v1344, %v1330
      %v1597 = vpack.c.b16 %v1345, %v1331
      %v1598 = vpack.c.b16 %v1360, %v1346
      %v1599 = vpack.c.b16 %v1361, %v1347
      %v1600 = vpack.c.b16 %v1362, %v1348
      %v1601 = vpack.c.b16 %v1363, %v1349
      %v1602 = vpack.c.b16 %v1364, %v1350
      %v1603 = vpack.c.b16 %v1365, %v1351
      %v1604 = vpack.c.b16 %v1366, %v1352
      %v1605 = vpack.c.b16 %v1367, %v1353
      %v1606 = vpack.c.b16 %v1368, %v1354
      %v1607 = vpack.c.b16 %v1369, %v1355
      %v1608 = vpack.c.b16 %v1370, %v1356
      %v1609 = vpack.c.b16 %v1371, %v1357
      %v1610 = vpack.c.b16 %v1372, %v1358
      %v1611 = vpack.c.b16 %v1373, %v1359
      %v1612 = vpack.c.b16 %v1388, %v1374
      %v1613 = vpack.c.b16 %v1389, %v1375
      %v1614 = vpack.c.b16 %v1390, %v1376
      %v1615 = vpack.c.b16 %v1391, %v1377
      %v1616 = vpack.c.b16 %v1392, %v1378
      %v1617 = vpack.c.b16 %v1393, %v1379
      %v1618 = vpack.c.b16 %v1394, %v1380
      %v1619 = vpack.c.b16 %v1395, %v1381
      %v1620 = vpack.c.b16 %v1396, %v1382
      %v1621 = vpack.c.b16 %v1397, %v1383
      %v1622 = vpack.c.b16 %v1398, %v1384
      %v1623 = vpack.c.b16 %v1399, %v1385
      %v1624 = vpack.c.b16 %v1400, %v1386
      %v1625 = vpack.c.b16 %v1401, %v1387
      %v2050 = vunpack.c.l.b16 %v514
      %v2051 = vunpack.c.h.b16 %v514
      %v2052 = vunpack.c.l.b16 %v515
      %v2053 = vunpack.c.h.b16 %v515
      %v2054 = vunpack.c.l.b16 %v516
      %v2055 = vunpack.c.h.b16 %v516
      %v2056 = vunpack.c.l.b16 %v517
      %v2057 = vunpack.c.h.b16 %v517
      %v2058 = vunpack.c.l.b16 %v518
      %v2059 = vunpack.c.h.b16 %v518
      %v2060 = vunpack.c.l.b16 %v519
      %v2061 = vunpack.c.h.b16 %v519
      %v2062 = vunpack.c.l.b16 %v520
      %v2063 = vunpack.c.h.b16 %v520
      %v2064 = vunpack.c.l.b16 %v521
      %v2065 = vunpack.c.h.b16 %v521
      %v2066 = vunpack.c.l.b16 %v522
      %v2067 = vunpack.c.h.b16 %v522
      %v2068 = vunpack.c.l.b16 %v523
      %v2069 = vunpack.c.h.b16 %v523
      %v2070 = vunpack.c.l.b16 %v524
      %v2071 = vunpack.c.h.b16 %v524
      %v2072 = vunpack.c.l.b16 %v525
      %v2073 = vunpack.c.h.b16 %v525
      %v2074 = vunpack.c.l.b16 %v526
      %v2075 = vunpack.c.h.b16 %v526
      %v2076 = vunpack.c.l.b16 %v527
      %v2077 = vunpack.c.h.b16 %v527
      %v2078 = vunpack.c.l.b16 %v528
      %v2079 = vunpack.c.h.b16 %v528
      %v2080 = vunpack.c.l.b16 %v529
      %v2081 = vunpack.c.h.b16 %v529
      %v2082 = vunpack.c.l.b16 %v530
      %v2083 = vunpack.c.h.b16 %v530
      %v2084 = vunpack.c.l.b16 %v531
      %v2085 = vunpack.c.h.b16 %v531
      %v2086 = vunpack.c.l.b16 %v532
      %v2087 = vunpack.c.h.b16 %v532
      %v2088 = vunpack.c.l.b16 %v533
      %v2089 = vunpack.c.h.b16 %v533
      %v2090 = vunpack.c.l.b16 %v534
      %v2091 = vunpack.c.h.b16 %v534
      %v2092 = vunpack.c.l.b16 %v535
      %v2093 = vunpack.c.h.b16 %v535
      %v2094 = vunpack.c.l.b16 %v536
      %v2095 = vunpack.c.h.b16 %v536
      %v2096 = vunpack.c.l.b16 %v537
      %v2097 = vunpack.c.h.b16 %v537
      %v2098 = vunpack.c.l.b16 %v538
      %v2099 = vunpack.c.h.b16 %v538
      %v2100 = vunpack.c.l.b16 %v539
      %v2101 = vunpack.c.h.b16 %v539
      %v2102 = vunpack.c.l.b16 %v540
      %v2103 = vunpack.c.h.b16 %v540
      %v2104 = vunpack.c.l.b16 %v541
      %v2105 = vunpack.c.h.b16 %v541
      %v2106 = vunpack.c.l.b16 %v542
      %v2107 = vunpack.c.h.b16 %v542
      %v2108 = vunpack.c.l.b16 %v543
      %v2109 = vunpack.c.h.b16 %v543
      %v2110 = vunpack.c.l.b16 %v544
      %v2111 = vunpack.c.h.b16 %v544
      %v2112 = vunpack.c.l.b16 %v545
      %v2113 = vunpack.c.h.b16 %v545
      %v2114 = vunpack.c.l.b16 %v546
      %v2115 = vunpack.c.h.b16 %v546
      %v2116 = vunpack.c.l.b16 %v547
      %v2117 = vunpack.c.h.b16 %v547
      %v2118 = vunpack.c.l.b16 %v548
      %v2119 = vunpack.c.h.b16 %v548
      %v2120 = vunpack.c.l.b16 %v549
      %v2121 = vunpack.c.h.b16 %v549
      %v2122 = vunpack.c.l.b16 %v550
      %v2123 = vunpack.c.h.b16 %v550
      %v2124 = vunpack.c.l.b16 %v551
      %v2125 = vunpack.c.h.b16 %v551
      %v2126 = vunpack.c.l.b16 %v552
      %v2127 = vunpack.c.h.b16 %v552
      %v2128 = vunpack.c.l.b16 %v553
      %v2129 = vunpack.c.h.b16 %v553
      %v2130 = vunpack.c.l.b16 %v554
      %v2131 = vunpack.c.h.b16 %v554
      %v2132 = vunpack.c.l.b16 %v555
      %v2133 = vunpack.c.h.b16 %v555
      %v2134 = vunpack.c.l.b16 %v556
      %v2135 = vunpack.c.h.b16 %v556
      %v2136 = vunpack.c.l.b16 %v557
      %v2137 = vunpack.c.h.b16 %v557
      %v2138 = vunpack.c.l.b16 %v558
      %v2139 = vunpack.c.h.b16 %v558
      %v2140 = vunpack.c.l.b16 %v559
      %v2141 = vunpack.c.h.b16 %v559
      %v2142 = vunpack.c.l.b16 %v560
      %v2143 = vunpack.c.h.b16 %v560
      %v2144 = vunpack.c.l.b16 %v561
      %v2145 = vunpack.c.h.b16 %v561
      %v2146 = vunpack.c.l.b16 %v562
      %v2147 = vunpack.c.h.b16 %v562
      %v2148 = vunpack.c.l.b16 %v563
      %v2149 = vunpack.c.h.b16 %v563
      %v2150 = vunpack.c.l.b16 %v564
      %v2151 = vunpack.c.h.b16 %v564
      %v2152 = vunpack.c.l.b16 %v565
      %v2153 = vunpack.c.h.b16 %v565
      %v2154 = vunpack.c.l.b16 %v566
      %v2155 = vunpack.c.h.b16 %v566
      %v2156 = vunpack.c.l.b16 %v567
      %v2157 = vunpack.c.h.b16 %v567
      %v2158 = vunpack.c.l.b16 %v568
      %v2159 = vunpack.c.h.b16 %v568
      %v2160 = vunpack.c.l.b16 %v569
      %v2161 = vunpack.c.h.b16 %v569
      %v2162 = vunpack.c.l.b16 %v570
      %v2163 = vunpack.c.h.b16 %v570
      %v2164 = vunpack.c.l.b16 %v571
      %v2165 = vunpack.c.h.b16 %v571
      %v2166 = vunpack.c.l.b16 %v572
      %v2167 = vunpack.c.h.b16 %v572
      %v2168 = vunpack.c.l.b16 %v573
      %v2169 = vunpack.c.h.b16 %v573
      %v2170 = vunpack.c.l.b16 %v574
      %v2171 = vunpack.c.h.b16 %v574
      %v2172 = vunpack.c.l.b16 %v575
      %v2173 = vunpack.c.h.b16 %v575
      %v2174 = vunpack.c.l.b16 %v576
      %v2175 = vunpack.c.h.b16 %v576
      %v2176 = vunpack.c.l.b16 %v577
      %v2177 = vunpack.c.h.b16 %v577
      %v2178 = vunpack.c.l.b16 %v578
      %v2179 = vunpack.c.h.b16 %v578
      %v2180 = vunpack.c.l.b16 %v579
      %v2181 = vunpack.c.h.b16 %v579
      %v2182 = vunpack.c.l.b16 %v580
      %v2183 = vunpack.c.h.b16 %v580
      %v2184 = vunpack.c.l.b16 %v581
      %v2185 = vunpack.c.h.b16 %v581
      %v2186 = vunpack.c.l.b16 %v582
      %v2187 = vunpack.c.h.b16 %v582
      %v2188 = vunpack.c.l.b16 %v583
      %v2189 = vunpack.c.h.b16 %v583
      %v2190 = vunpack.c.l.b16 %v584
      %v2191 = vunpack.c.h.b16 %v584
      %v2192 = vunpack.c.l.b16 %v585
      %v2193 = vunpack.c.h.b16 %v585
      %v2194 = vunpack.c.l.b16 %v586
      %v2195 = vunpack.c.h.b16 %v586
      %v2196 = vunpack.c.l.b16 %v587
      %v2197 = vunpack.c.h.b16 %v587
      %v2198 = vunpack.c.l.b16 %v588
      %v2199 = vunpack.c.h.b16 %v588
      %v2200 = vunpack.c.l.b16 %v589
      %v2201 = vunpack.c.h.b16 %v589
      %v2202 = vunpack.c.l.b16 %v590
      %v2203 = vunpack.c.h.b16 %v590
      %v2204 = vunpack.c.l.b16 %v591
      %v2205 = vunpack.c.h.b16 %v591
      %v2206 = vunpack.c.l.b16 %v592
      %v2207 = vunpack.c.h.b16 %v592
      %v2208 = vunpack.c.l.b16 %v593
      %v2209 = vunpack.c.h.b16 %v593
      %v2210 = vunpack.c.l.b16 %v594
      %v2211 = vunpack.c.h.b16 %v594
      %v2212 = vunpack.c.l.b16 %v595
      %v2213 = vunpack.c.h.b16 %v595
      %v2214 = vunpack.c.l.b16 %v596
      %v2215 = vunpack.c.h.b16 %v596
      %v2216 = vunpack.c.l.b16 %v597
      %v2217 = vunpack.c.h.b16 %v597
      %v2218 = vunpack.c.l.b16 %v598
      %v2219 = vunpack.c.h.b16 %v598
      %v2220 = vunpack.c.l.b16 %v599
      %v2221 = vunpack.c.h.b16 %v599
      %v2222 = vunpack.c.l.b16 %v600
      %v2223 = vunpack.c.h.b16 %v600
      %v2224 = vunpack.c.l.b16 %v601
      %v2225 = vunpack.c.h.b16 %v601
      %v2226 = vunpack.c.l.b16 %v602
      %v2227 = vunpack.c.h.b16 %v602
      %v2228 = vunpack.c.l.b16 %v603
      %v2229 = vunpack.c.h.b16 %v603
      %v2230 = vunpack.c.l.b16 %v604
      %v2231 = vunpack.c.h.b16 %v604
      %v2232 = vunpack.c.l.b16 %v605
      %v2233 = vunpack.c.h.b16 %v605
      %v2234 = vunpack.c.l.b16 %v606
      %v2235 = vunpack.c.h.b16 %v606
      %v2236 = vunpack.c.l.b16 %v607
      %v2237 = vunpack.c.h.b16 %v607
      %v2238 = vunpack.c.l.b16 %v608
      %v2239 = vunpack.c.h.b16 %v608
      %v2240 = vunpack.c.l.b16 %v609
      %v2241 = vunpack.c.h.b16 %v609
      %v2242 = vunpack.c.l.b16 %v610
      %v2243 = vunpack.c.h.b16 %v610
      %v2244 = vunpack.c.l.b16 %v611
      %v2245 = vunpack.c.h.b16 %v611
      %v2246 = vunpack.c.l.b16 %v612
      %v2247 = vunpack.c.h.b16 %v612
      %v2248 = vunpack.c.l.b16 %v613
      %v2249 = vunpack.c.h.b16 %v613
      %v2250 = vunpack.c.l.b16 %v614
      %v2251 = vunpack.c.h.b16 %v614
      %v2252 = vunpack.c.l.b16 %v615
      %v2253 = vunpack.c.h.b16 %v615
      %v2254 = vunpack.c.l.b16 %v616
      %v2255 = vunpack.c.h.b16 %v616
      %v2256 = vunpack.c.l.b16 %v617
      %v2257 = vunpack.c.h.b16 %v617
      %v2258 = vunpack.c.l.b16 %v618
      %v2259 = vunpack.c.h.b16 %v618
      %v2260 = vunpack.c.l.b16 %v619
      %v2261 = vunpack.c.h.b16 %v619
      %v2262 = vunpack.c.l.b16 %v620
      %v2263 = vunpack.c.h.b16 %v620
      %v2264 = vunpack.c.l.b16 %v621
      %v2265 = vunpack.c.h.b16 %v621
      %v2266 = vunpack.c.l.b16 %v622
      %v2267 = vunpack.c.h.b16 %v622
      %v2268 = vunpack.c.l.b16 %v623
      %v2269 = vunpack.c.h.b16 %v623
      %v2270 = vunpack.c.l.b16 %v624
      %v2271 = vunpack.c.h.b16 %v624
      %v2272 = vunpack.c.l.b16 %v625
      %v2273 = vunpack.c.h.b16 %v625
      %v2274 = vunpack.c.l.b16 %v626
      %v2275 = vunpack.c.h.b16 %v626
      %v2276 = vunpack.c.l.b16 %v627
      %v2277 = vunpack.c.h.b16 %v627
      %v2278 = vunpack.c.l.b16 %v628
      %v2279 = vunpack.c.h.b16 %v628
      %v2280 = vunpack.c.l.b16 %v629
      %v2281 = vunpack.c.h.b16 %v629
      %v2282 = vunpack.c.l.b16 %v630
      %v2283 = vunpack.c.h.b16 %v630
      %v2284 = vunpack.c.l.b16 %v631
      %v2285 = vunpack.c.h.b16 %v631
      %v2286 = vunpack.c.l.b16 %v632
      %v2287 = vunpack.c.h.b16 %v632
      %v2288 = vunpack.c.l.b16 %v633
      %v2289 = vunpack.c.h.b16 %v633
      %v2290 = vunpack.c.l.b16 %v634
      %v2291 = vunpack.c.h.b16 %v634
      %v2292 = vunpack.c.l.b16 %v635
      %v2293 = vunpack.c.h.b16 %v635
      %v2294 = vunpack.c.l.b16 %v636
      %v2295 = vunpack.c.h.b16 %v636
      %v2296 = vunpack.c.l.b16 %v637
      %v2297 = vunpack.c.h.b16 %v637
      %v2298 = vunpack.c.l.b16 %v638
      %v2299 = vunpack.c.h.b16 %v638
      %v2300 = vunpack.c.l.b16 %v639
      %v2301 = vunpack.c.h.b16 %v639
      %v2302 = vunpack.c.l.b16 %v640
      %v2303 = vunpack.c.h.b16 %v640
      %v2304 = vunpack.c.l.b16 %v641
      %v2305 = vunpack.c.h.b16 %v641
      %v2306 = vunpack.c.l.b16 %v642
      %v2307 = vunpack.c.h.b16 %v642
      %v2308 = vunpack.c.l.b16 %v643
      %v2309 = vunpack.c.h.b16 %v643
      %v2310 = vunpack.c.l.b16 %v644
      %v2311 = vunpack.c.h.b16 %v644
      %v2312 = vunpack.c.l.b16 %v645
      %v2313 = vunpack.c.h.b16 %v645
      %v2314 = vunpack.c.l.b16 %v646
      %v2315 = vunpack.c.h.b16 %v646
      %v2316 = vunpack.c.l.b16 %v647
      %v2317 = vunpack.c.h.b16 %v647
      %v2318 = vunpack.c.l.b16 %v648
      %v2319 = vunpack.c.h.b16 %v648
      %v2320 = vunpack.c.l.b16 %v649
      %v2321 = vunpack.c.h.b16 %v649
      %v2322 = vunpack.c.l.b16 %v650
      %v2323 = vunpack.c.h.b16 %v650
      %v2324 = vunpack.c.l.b16 %v651
      %v2325 = vunpack.c.h.b16 %v651
      %v2326 = vunpack.c.l.b16 %v652
      %v2327 = vunpack.c.h.b16 %v652
      %v2328 = vunpack.c.l.b16 %v653
      %v2329 = vunpack.c.h.b16 %v653
      %v2330 = vunpack.c.l.b16 %v654
      %v2331 = vunpack.c.h.b16 %v654
      %v2332 = vunpack.c.l.b16 %v655
      %v2333 = vunpack.c.h.b16 %v655
      %v2334 = vunpack.c.l.b16 %v656
      %v2335 = vunpack.c.h.b16 %v656
      %v2336 = vunpack.c.l.b16 %v657
      %v2337 = vunpack.c.h.b16 %v657
      %v2338 = vunpack.c.l.b16 %v658
      %v2339 = vunpack.c.h.b16 %v658
      %v2340 = vunpack.c.l.b16 %v659
      %v2341 = vunpack.c.h.b16 %v659
      %v2342 = vunpack.c.l.b16 %v660
      %v2343 = vunpack.c.h.b16 %v660
      %v2344 = vunpack.c.l.b16 %v661
      %v2345 = vunpack.c.h.b16 %v661
      %v2346 = vunpack.c.l.b16 %v662
      %v2347 = vunpack.c.h.b16 %v662
      %v2348 = vunpack.c.l.b16 %v663
      %v2349 = vunpack.c.h.b16 %v663
      %v2350 = vunpack.c.l.b16 %v664
      %v2351 = vunpack.c.h.b16 %v664
      %v2352 = vunpack.c.l.b16 %v665
      %v2353 = vunpack.c.h.b16 %v665
      %v2354 = vunpack.c.l.b16 %v666
      %v2355 = vunpack.c.h.b16 %v666
      %v2356 = vunpack.c.l.b16 %v667
      %v2357 = vunpack.c.h.b16 %v667
      %v2358 = vunpack.c.l.b16 %v668
      %v2359 = vunpack.c.h.b16 %v668
      %v2360 = vunpack.c.l.b16 %v669
      %v2361 = vunpack.c.h.b16 %v669
      %v2362 = vunpack.c.l.b16 %v670
      %v2363 = vunpack.c.h.b16 %v670
      %v2364 = vunpack.c.l.b16 %v671
      %v2365 = vunpack.c.h.b16 %v671
      %v2366 = vunpack.c.l.b16 %v672
      %v2367 = vunpack.c.h.b16 %v672
      %v2368 = vunpack.c.l.b16 %v673
      %v2369 = vunpack.c.h.b16 %v673
      %v2370 = vunpack.c.l.b16 %v674
      %v2371 = vunpack.c.h.b16 %v674
      %v2372 = vunpack.c.l.b16 %v675
      %v2373 = vunpack.c.h.b16 %v675
      %v2374 = vunpack.c.l.b16 %v676
      %v2375 = vunpack.c.h.b16 %v676
      %v2376 = vunpack.c.l.b16 %v677
      %v2377 = vunpack.c.h.b16 %v677
      %v2378 = vunpack.c.l.b16 %v678
      %v2379 = vunpack.c.h.b16 %v678
      %v2380 = vunpack.c.l.b16 %v679
      %v2381 = vunpack.c.h.b16 %v679
      %v2382 = vunpack.c.l.b16 %v680
      %v2383 = vunpack.c.h.b16 %v680
      %v2384 = vunpack.c.l.b16 %v681
      %v2385 = vunpack.c.h.b16 %v681
      %v2386 = vunpack.c.l.b16 %v682
      %v2387 = vunpack.c.h.b16 %v682
      %v2388 = vunpack.c.l.b16 %v683
      %v2389 = vunpack.c.h.b16 %v683
      %v2390 = vunpack.c.l.b16 %v684
      %v2391 = vunpack.c.h.b16 %v684
      %v2392 = vunpack.c.l.b16 %v685
      %v2393 = vunpack.c.h.b16 %v685
      %v2394 = vunpack.c.l.b16 %v686
      %v2395 = vunpack.c.h.b16 %v686
      %v2396 = vunpack.c.l.b16 %v687
      %v2397 = vunpack.c.h.b16 %v687
      %v2398 = vunpack.c.l.b16 %v688
      %v2399 = vunpack.c.h.b16 %v688
      %v2400 = vunpack.c.l.b16 %v689
      %v2401 = vunpack.c.h.b16 %v689
      %v2402 = vunpack.c.l.b16 %v690
      %v2403 = vunpack.c.h.b16 %v690
      %v2404 = vunpack.c.l.b16 %v691
      %v2405 = vunpack.c.h.b16 %v691
      %v2406 = vunpack.c.l.b16 %v692
      %v2407 = vunpack.c.h.b16 %v692
      %v2408 = vunpack.c.l.b16 %v693
      %v2409 = vunpack.c.h.b16 %v693
      %v2410 = vunpack.c.l.b16 %v694
      %v2411 = vunpack.c.h.b16 %v694
      %v2412 = vunpack.c.l.b16 %v695
      %v2413 = vunpack.c.h.b16 %v695
      %v2414 = vunpack.c.l.b16 %v696
      %v2415 = vunpack.c.h.b16 %v696
      %v2416 = vunpack.c.l.b16 %v697
      %v2417 = vunpack.c.h.b16 %v697
      %v2418 = vunpack.c.l.b16 %v698
      %v2419 = vunpack.c.h.b16 %v698
      %v2420 = vunpack.c.l.b16 %v699
      %v2421 = vunpack.c.h.b16 %v699
      %v2422 = vunpack.c.l.b16 %v700
      %v2423 = vunpack.c.h.b16 %v700
      %v2424 = vunpack.c.l.b16 %v701
      %v2425 = vunpack.c.h.b16 %v701
      %v2426 = vunpack.c.l.b16 %v702
      %v2427 = vunpack.c.h.b16 %v702
      %v2428 = vunpack.c.l.b16 %v703
      %v2429 = vunpack.c.h.b16 %v703
      %v2430 = vunpack.c.l.b16 %v704
      %v2431 = vunpack.c.h.b16 %v704
      %v2432 = vunpack.c.l.b16 %v705
      %v2433 = vunpack.c.h.b16 %v705
      %v2434 = vunpack.c.l.b16 %v706
      %v2435 = vunpack.c.h.b16 %v706
      %v2436 = vunpack.c.l.b16 %v707
      %v2437 = vunpack.c.h.b16 %v707
      %v2438 = vunpack.c.l.b16 %v708
      %v2439 = vunpack.c.h.b16 %v708
      %v2440 = vunpack.c.l.b16 %v709
      %v2441 = vunpack.c.h.b16 %v709
      %v2442 = vunpack.c.l.b16 %v710
      %v2443 = vunpack.c.h.b16 %v710
      %v2444 = vunpack.c.l.b16 %v711
      %v2445 = vunpack.c.h.b16 %v711
      %v2446 = vunpack.c.l.b16 %v712
      %v2447 = vunpack.c.h.b16 %v712
      %v2448 = vunpack.c.l.b16 %v713
      %v2449 = vunpack.c.h.b16 %v713
      %v2450 = vunpack.c.l.b16 %v714
      %v2451 = vunpack.c.h.b16 %v714
      %v2452 = vunpack.c.l.b16 %v715
      %v2453 = vunpack.c.h.b16 %v715
      %v2454 = vunpack.c.l.b16 %v716
      %v2455 = vunpack.c.h.b16 %v716
      %v2456 = vunpack.c.l.b16 %v717
      %v2457 = vunpack.c.h.b16 %v717
      %v2458 = vunpack.c.l.b16 %v718
      %v2459 = vunpack.c.h.b16 %v718
      %v2460 = vunpack.c.l.b16 %v719
      %v2461 = vunpack.c.h.b16 %v719
      %v2462 = vunpack.c.l.b16 %v720
      %v2463 = vunpack.c.h.b16 %v720
      %v2464 = vunpack.c.l.b16 %v721
      %v2465 = vunpack.c.h.b16 %v721
      %v2466 = vunpack.c.l.b16 %v722
      %v2467 = vunpack.c.h.b16 %v722
      %v2468 = vunpack.c.l.b16 %v723
      %v2469 = vunpack.c.h.b16 %v723
      %v2470 = vunpack.c.l.b16 %v724
      %v2471 = vunpack.c.h.b16 %v724
      %v2472 = vunpack.c.l.b16 %v725
      %v2473 = vunpack.c.h.b16 %v725
      %v2474 = vunpack.c.l.b16 %v726
      %v2475 = vunpack.c.h.b16 %v726
      %v2476 = vunpack.c.l.b16 %v727
      %v2477 = vunpack.c.h.b16 %v727
      %v2478 = vunpack.c.l.b16 %v728
      %v2479 = vunpack.c.h.b16 %v728
      %v2480 = vunpack.c.l.b16 %v729
      %v2481 = vunpack.c.h.b16 %v729
      %v2482 = vpack.c.b16 %v2052, %v2050
      %v2483 = vpack.c.b16 %v2053, %v2051
      %v2484 = vpack.c.b16 %v2056, %v2054
      %v2485 = vpack.c.b16 %v2057, %v2055
      %v2486 = vpack.c.b16 %v2060, %v2058
      %v2487 = vpack.c.b16 %v2061, %v2059
      %v2488 = vpack.c.b16 %v2064, %v2062
      %v2489 = vpack.c.b16 %v2065, %v2063
      %v2490 = vpack.c.b16 %v2068, %v2066
      %v2491 = vpack.c.b16 %v2069, %v2067
      %v2492 = vpack.c.b16 %v2072, %v2070
      %v2493 = vpack.c.b16 %v2073, %v2071
      %v2494 = vpack.c.b16 %v2076, %v2074
      %v2495 = vpack.c.b16 %v2077, %v2075
      %v2496 = vpack.c.b16 %v2080, %v2078
      %v2497 = vpack.c.b16 %v2081, %v2079
      %v2498 = vpack.c.b16 %v2084, %v2082
      %v2499 = vpack.c.b16 %v2085, %v2083
      %v2500 = vpack.c.b16 %v2088, %v2086
      %v2501 = vpack.c.b16 %v2089, %v2087
      %v2502 = vpack.c.b16 %v2092, %v2090
      %v2503 = vpack.c.b16 %v2093, %v2091
      %v2504 = vpack.c.b16 %v2096, %v2094
      %v2505 = vpack.c.b16 %v2097, %v2095
      %v2506 = vpack.c.b16 %v2100, %v2098
      %v2507 = vpack.c.b16 %v2101, %v2099
      %v2508 = vpack.c.b16 %v2104, %v2102
      %v2509 = vpack.c.b16 %v2105, %v2103
      %v2510 = vpack.c.b16 %v2108, %v2106
      %v2511 = vpack.c.b16 %v2109, %v2107
      %v2512 = vpack.c.b16 %v2112, %v2110
      %v2513 = vpack.c.b16 %v2113, %v2111
      %v2514 = vpack.c.b16 %v2116, %v2114
      %v2515 = vpack.c.b16 %v2117, %v2115
      %v2516 = vpack.c.b16 %v2120, %v2118
      %v2517 = vpack.c.b16 %v2121, %v2119
      %v2518 = vpack.c.b16 %v2124, %v2122
      %v2519 = vpack.c.b16 %v2125, %v2123
      %v2520 = vpack.c.b16 %v2128, %v2126
      %v2521 = vpack.c.b16 %v2129, %v2127
      %v2522 = vpack.c.b16 %v2132, %v2130
      %v2523 = vpack.c.b16 %v2133, %v2131
      %v2524 = vpack.c.b16 %v2136, %v2134
      %v2525 = vpack.c.b16 %v2137, %v2135
      %v2526 = vpack.c.b16 %v2140, %v2138
      %v2527 = vpack.c.b16 %v2141, %v2139
      %v2528 = vpack.c.b16 %v2144, %v2142
      %v2529 = vpack.c.b16 %v2145, %v2143
      %v2530 = vpack.c.b16 %v2148, %v2146
      %v2531 = vpack.c.b16 %v2149, %v2147
      %v2532 = vpack.c.b16 %v2152, %v2150
      %v2533 = vpack.c.b16 %v2153, %v2151
      %v2534 = vpack.c.b16 %v2156, %v2154
      %v2535 = vpack.c.b16 %v2157, %v2155
      %v2536 = vpack.c.b16 %v2160, %v2158
      %v2537 = vpack.c.b16 %v2161, %v2159
      %v2538 = vpack.c.b16 %v2164, %v2162
      %v2539 = vpack.c.b16 %v2165, %v2163
      %v2540 = vpack.c.b16 %v2168, %v2166
      %v2541 = vpack.c.b16 %v2169, %v2167
      %v2542 = vpack.c.b16 %v2172, %v2170
      %v2543 = vpack.c.b16 %v2173, %v2171
      %v2544 = vpack.c.b16 %v2176, %v2174
      %v2545 = vpack.c.b16 %v2177, %v2175
      %v2546 = vpack.c.b16 %v2180, %v2178
      %v2547 = vpack.c.b16 %v2181, %v2179
      %v2548 = vpack.c.b16 %v2184, %v2182
      %v2549 = vpack.c.b16 %v2185, %v2183
      %v2550 = vpack.c.b16 %v2188, %v2186
      %v2551 = vpack.c.b16 %v2189, %v2187
      %v2552 = vpack.c.b16 %v2192, %v2190
      %v2553 = vpack.c.b16 %v2193, %v2191
      %v2554 = vpack.c.b16 %v2196, %v2194
      %v2555 = vpack.c.b16 %v2197, %v2195
      %v2556 = vpack.c.b16 %v2200, %v2198
      %v2557 = vpack.c.b16 %v2201, %v2199
      %v2558 = vpack.c.b16 %v2204, %v2202
      %v2559 = vpack.c.b16 %v2205, %v2203
      %v2560 = vpack.c.b16 %v2208, %v2206
      %v2561 = vpack.c.b16 %v2209, %v2207
      %v2562 = vpack.c.b16 %v2212, %v2210
      %v2563 = vpack.c.b16 %v2213, %v2211
      %v2564 = vpack.c.b16 %v2216, %v2214
      %v2565 = vpack.c.b16 %v2217, %v2215
      %v2566 = vpack.c.b16 %v2220, %v2218
      %v2567 = vpack.c.b16 %v2221, %v2219
      %v2568 = vpack.c.b16 %v2224, %v2222
      %v2569 = vpack.c.b16 %v2225, %v2223
      %v2570 = vpack.c.b16 %v2228, %v2226
      %v2571 = vpack.c.b16 %v2229, %v2227
      %v2572 = vpack.c.b16 %v2232, %v2230
      %v2573 = vpack.c.b16 %v2233, %v2231
      %v2574 = vpack.c.b16 %v2236, %v2234
      %v2575 = vpack.c.b16 %v2237, %v2235
      %v2576 = vpack.c.b16 %v2240, %v2238
      %v2577 = vpack.c.b16 %v2241, %v2239
      %v2578 = vpack.c.b16 %v2244, %v2242
      %v2579 = vpack.c.b16 %v2245, %v2243
      %v2580 = vpack.c.b16 %v2248, %v2246
      %v2581 = vpack.c.b16 %v2249, %v2247
      %v2582 = vpack.c.b16 %v2252, %v2250
      %v2583 = vpack.c.b16 %v2253, %v2251
      %v2584 = vpack.c.b16 %v2256, %v2254
      %v2585 = vpack.c.b16 %v2257, %v2255
      %v2586 = vpack.c.b16 %v2260, %v2258
      %v2587 = vpack.c.b16 %v2261, %v2259
      %v2588 = vpack.c.b16 %v2264, %v2262
      %v2589 = vpack.c.b16 %v2265, %v2263
      %v2590 = vpack.c.b16 %v2268, %v2266
      %v2591 = vpack.c.b16 %v2269, %v2267
      %v2592 = vpack.c.b16 %v2272, %v2270
      %v2593 = vpack.c.b16 %v2273, %v2271
      %v2594 = vpack.c.b16 %v2276, %v2274
      %v2595 = vpack.c.b16 %v2277, %v2275
      %v2596 = vpack.c.b16 %v2280, %v2278
      %v2597 = vpack.c.b16 %v2281, %v2279
      %v2598 = vpack.c.b16 %v2284, %v2282
      %v2599 = vpack.c.b16 %v2285, %v2283
      %v2600 = vpack.c.b16 %v2288, %v2286
      %v2601 = vpack.c.b16 %v2289, %v2287
      %v2602 = vpack.c.b16 %v2292, %v2290
      %v2603 = vpack.c.b16 %v2293, %v2291
      %v2604 = vpack.c.b16 %v2296, %v2294
      %v2605 = vpack.c.b16 %v2297, %v2295
      %v2606 = vpack.c.b16 %v2300, %v2298
      %v2607 = vpack.c.b16 %v2301, %v2299
      %v2608 = vpack.c.b16 %v2304, %v2302
      %v2609 = vpack.c.b16 %v2305, %v2303
      %v2610 = vpack.c.b16 %v2308, %v2306
      %v2611 = vpack.c.b16 %v2309, %v2307
      %v2612 = vpack.c.b16 %v2312, %v2310
      %v2613 = vpack.c.b16 %v2313, %v2311
      %v2614 = vpack.c.b16 %v2316, %v2314
      %v2615 = vpack.c.b16 %v2317, %v2315
      %v2616 = vpack.c.b16 %v2320, %v2318
      %v2617 = vpack.c.b16 %v2321, %v2319
      %v2618 = vpack.c.b16 %v2324, %v2322
      %v2619 = vpack.c.b16 %v2325, %v2323
      %v2620 = vpack.c.b16 %v2328, %v2326
      %v2621 = vpack.c.b16 %v2329, %v2327
      %v2622 = vpack.c.b16 %v2332, %v2330
      %v2623 = vpack.c.b16 %v2333, %v2331
      %v2624 = vpack.c.b16 %v2336, %v2334
      %v2625 = vpack.c.b16 %v2337, %v2335
      %v2626 = vpack.c.b16 %v2340, %v2338
      %v2627 = vpack.c.b16 %v2341, %v2339
      %v2628 = vpack.c.b16 %v2344, %v2342
      %v2629 = vpack.c.b16 %v2345, %v2343
      %v2630 = vpack.c.b16 %v2348, %v2346
      %v2631 = vpack.c.b16 %v2349, %v2347
      %v2632 = vpack.c.b16 %v2352, %v2350
      %v2633 = vpack.c.b16 %v2353, %v2351
      %v2634 = vpack.c.b16 %v2356, %v2354
      %v2635 = vpack.c.b16 %v2357, %v2355
      %v2636 = vpack.c.b16 %v2360, %v2358
      %v2637 = vpack.c.b16 %v2361, %v2359
      %v2638 = vpack.c.b16 %v2364, %v2362
      %v2639 = vpack.c.b16 %v2365, %v2363
      %v2640 = vpack.c.b16 %v2368, %v2366
      %v2641 = vpack.c.b16 %v2369, %v2367
      %v2642 = vpack.c.b16 %v2372, %v2370
      %v2643 = vpack.c.b16 %v2373, %v2371
      %v2644 = vpack.c.b16 %v2376, %v2374
      %v2645 = vpack.c.b16 %v2377, %v2375
      %v2646 = vpack.c.b16 %v2380, %v2378
      %v2647 = vpack.c.b16 %v2381, %v2379
      %v2648 = vpack.c.b16 %v2384, %v2382
      %v2649 = vpack.c.b16 %v2385, %v2383
      %v2650 = vpack.c.b16 %v2388, %v2386
      %v2651 = vpack.c.b16 %v2389, %v2387
      %v2652 = vpack.c.b16 %v2392, %v2390
      %v2653 = vpack.c.b16 %v2393, %v2391
      %v2654 = vpack.c.b16 %v2396, %v2394
      %v2655 = vpack.c.b16 %v2397, %v2395
      %v2656 = vpack.c.b16 %v2400, %v2398
      %v2657 = vpack.c.b16 %v2401, %v2399
      %v2658 = vpack.c.b16 %v2404, %v2402
      %v2659 = vpack.c.b16 %v2405, %v2403
      %v2660 = vpack.c.b16 %v2408, %v2406
      %v2661 = vpack.c.b16 %v2409, %v2407
      %v2662 = vpack.c.b16 %v2412, %v2410
      %v2663 = vpack.c.b16 %v2413, %v2411
      %v2664 = vpack.c.b16 %v2416, %v2414
      %v2665 = vpack.c.b16 %v2417, %v2415
      %v2666 = vpack.c.b16 %v2420, %v2418
      %v2667 = vpack.c.b16 %v2421, %v2419
      %v2668 = vpack.c.b16 %v2424, %v2422
      %v2669 = vpack.c.b16 %v2425, %v2423
      %v2670 = vpack.c.b16 %v2428, %v2426
      %v2671 = vpack.c.b16 %v2429, %v2427
      %v2672 = vpack.c.b16 %v2432, %v2430
      %v2673 = vpack.c.b16 %v2433, %v2431
      %v2674 = vpack.c.b16 %v2436, %v2434
      %v2675 = vpack.c.b16 %v2437, %v2435
      %v2676 = vpack.c.b16 %v2440, %v2438
      %v2677 = vpack.c.b16 %v2441, %v2439
      %v2678 = vpack.c.b16 %v2444, %v2442
      %v2679 = vpack.c.b16 %v2445, %v2443
      %v2680 = vpack.c.b16 %v2448, %v2446
      %v2681 = vpack.c.b16 %v2449, %v2447
      %v2682 = vpack.c.b16 %v2452, %v2450
      %v2683 = vpack.c.b16 %v2453, %v2451
      %v2684 = vpack.c.b16 %v2456, %v2454
      %v2685 = vpack.c.b16 %v2457, %v2455
      %v2686 = vpack.c.b16 %v2460, %v2458
      %v2687 = vpack.c.b16 %v2461, %v2459
      %v2688 = vpack.c.b16 %v2464, %v2462
      %v2689 = vpack.c.b16 %v2465, %v2463
      %v2690 = vpack.c.b16 %v2468, %v2466
      %v2691 = vpack.c.b16 %v2469, %v2467
      %v2692 = vpack.c.b16 %v2472, %v2470
      %v2693 = vpack.c.b16 %v2473, %v2471
      %v2694 = vpack.c.b16 %v2476, %v2474
      %v2695 = vpack.c.b16 %v2477, %v2475
      %v2696 = vpack.c.b16 %v2480, %v2478
      %v2697 = vpack.c.b16 %v2481, %v2479
      %vm2914 = vcmask 523264
      %v2916 = vsel %vm2914, %v1415, 0
      %v2919 = vsel %vm2914, %v1429, 0
      %v2922 = vsel %vm2914, %v1443, 0
      %v2925 = vsel %vm2914, %v1457, 0
      %v2928 = vsel %vm2914, %v1471, 0
      %v2931 = vsel %vm2914, %v1485, 0
      %v2934 = vsel %vm2914, %v1499, 0
      %v2937 = vsel %vm2914, %v1513, 0
      %v2940 = vsel %vm2914, %v1527, 0
      %v2943 = vsel %vm2914, %v1541, 0
      %v2946 = vsel %vm2914, %v1555, 0
      %v2949 = vsel %vm2914, %v1569, 0
      %v2952 = vsel %vm2914, %v1583, 0
      %v2955 = vsel %vm2914, %v1597, 0
      %v2958 = vsel %vm2914, %v1611, 0
      %v2961 = vsel %vm2914, %v1625, 0
      %2963 = vmatprep.subr.bf16.mxu0 %v2483
      %2964 = vmatpush1.bf16.msra.mxu0 %v2482
      %2965 = vmatprep.subr.bf16.mxu0 %v2485
      %2966 = vmatpush1.bf16.msra.mxu0 %v2484
      %2967 = vmatprep.subr.bf16.mxu0 %v2487
      %2968 = vmatpush1.bf16.msra.mxu0 %v2486
      %2969 = vmatprep.subr.bf16.mxu0 %v2489
      %2970 = vmatpush1.bf16.msra.mxu0 %v2488
      %2971 = vmatprep.subr.bf16.mxu0 %v2491
      %2972 = vmatpush1.bf16.msra.mxu0 %v2490
      %2973 = vmatprep.subr.bf16.mxu0 %v2493
      %2974 = vmatpush1.bf16.msra.mxu0 %v2492
      %2975 = vmatprep.subr.bf16.mxu0 %v2495
      %2976 = vmatpush1.bf16.msra.mxu0 %v2494
      %2977 = vmatprep.subr.bf16.mxu0 %v2497
      %2978 = vmatpush1.bf16.msra.mxu0 %v2496
      %2979 = vmatprep.subr.bf16.mxu0 %v2499
      %2980 = vmatpush1.bf16.msra.mxu0 %v2498
      %2981 = vmatprep.subr.bf16.mxu0 %v2501
      %2982 = vmatpush1.bf16.msra.mxu0 %v2500
      %2983 = vmatprep.subr.bf16.mxu0 %v2503
      %2984 = vmatpush1.bf16.msra.mxu0 %v2502
      %2985 = vmatprep.subr.bf16.mxu0 %v2505
      %2986 = vmatpush1.bf16.msra.mxu0 %v2504
      %2987 = vmatprep.subr.bf16.mxu0 %v2507
      %2988 = vmatpush1.bf16.msra.mxu0 %v2506
      %2989 = vmatprep.subr.bf16.mxu0 %v2509
      %2990 = vmatpush1.bf16.msra.mxu0 %v2508
      %2991 = vmatprep.subr.bf16.mxu0 %v2511
      %2992 = vmatpush1.bf16.msra.mxu0 %v2510
      %2993 = vmatprep.subr.bf16.mxu0 %v2513
      %2994 = vmatpush1.bf16.msra.mxu0 %v2512
      %2995 = vmatprep.mubr.bf16.mxu0 %v1403
      %2996 = vmatmul.mubr.bf16.gmra.mrb[0].mxu0 %v1402
      %v2997 = vpop.f32.mrb[0].mxu0
      %v2998 = vadd.f32 0.0, %v2997
      %v2999 = vpop.f32.mrb[0].mxu0
      %v3000 = vadd.f32 0.0, %v2999
      %v3001 = vpop.f32.mrb[0].mxu0
      %v3002 = vadd.f32 0.0, %v3001
      %v3003 = vpop.f32.mrb[0].mxu0
      %v3004 = vadd.f32 0.0, %v3003
      %3005 = vmatprep.mubr.bf16.mxu0 %v1417
      %3006 = vmatmul.mubr.bf16.gmra.mrb[0].mxu0 %v1416
      %v3007 = vpop.f32.mrb[0].mxu0
      %v3008 = vadd.f32 0.0, %v3007
      %v3009 = vpop.f32.mrb[0].mxu0
      %v3010 = vadd.f32 0.0, %v3009
      %v3011 = vpop.f32.mrb[0].mxu0
      %v3012 = vadd.f32 0.0, %v3011
      %v3013 = vpop.f32.mrb[0].mxu0
      %v3014 = vadd.f32 0.0, %v3013
      %3015 = vmatprep.mubr.bf16.mxu0 %v1431
      %3016 = vmatmul.mubr.bf16.gmra.mrb[0].mxu0 %v1430
      %v3017 = vpop.f32.mrb[0].mxu0
      %v3018 = vadd.f32 0.0, %v3017
      %v3019 = vpop.f32.mrb[0].mxu0
      %v3020 = vadd.f32 0.0, %v3019
      %v3021 = vpop.f32.mrb[0].mxu0
      %v3022 = vadd.f32 0.0, %v3021
      %v3023 = vpop.f32.mrb[0].mxu0
      %v3024 = vadd.f32 0.0, %v3023
      %3025 = vmatprep.mubr.bf16.mxu0 %v1445
      %3026 = vmatmul.mubr.bf16.gmra.mrb[0].mxu0 %v1444
      %v3027 = vpop.f32.mrb[0].mxu0
      %v3028 = vadd.f32 0.0, %v3027
      %v3029 = vpop.f32.mrb[0].mxu0
      %v3030 = vadd.f32 0.0, %v3029
      %v3031 = vpop.f32.mrb[0].mxu0
      %v3032 = vadd.f32 0.0, %v3031
      %v3033 = vpop.f32.mrb[0].mxu0
      %v3034 = vadd.f32 0.0, %v3033
      %3035 = vmatprep.mubr.bf16.mxu0 %v1459
      %3036 = vmatmul.mubr.bf16.gmra.mrb[0].mxu0 %v1458
      %v3037 = vpop.f32.mrb[0].mxu0
      %v3038 = vadd.f32 0.0, %v3037
      %v3039 = vpop.f32.mrb[0].mxu0
      %v3040 = vadd.f32 0.0, %v3039
      %v3041 = vpop.f32.mrb[0].mxu0
      %v3042 = vadd.f32 0.0, %v3041
      %v3043 = vpop.f32.mrb[0].mxu0
      %v3044 = vadd.f32 0.0, %v3043
      %3045 = vmatprep.mubr.bf16.mxu0 %v1473
      %3046 = vmatmul.mubr.bf16.gmra.mrb[0].mxu0 %v1472
      %v3047 = vpop.f32.mrb[0].mxu0
      %v3048 = vadd.f32 0.0, %v3047
      %v3049 = vpop.f32.mrb[0].mxu0
      %v3050 = vadd.f32 0.0, %v3049
      %v3051 = vpop.f32.mrb[0].mxu0
      %v3052 = vadd.f32 0.0, %v3051
      %v3053 = vpop.f32.mrb[0].mxu0
      %v3054 = vadd.f32 0.0, %v3053
      %3055 = vmatprep.mubr.bf16.mxu0 %v1487
      %3056 = vmatmul.mubr.bf16.gmra.mrb[0].mxu0 %v1486
      %v3057 = vpop.f32.mrb[0].mxu0
      %v3058 = vadd.f32 0.0, %v3057
      %v3059 = vpop.f32.mrb[0].mxu0
      %v3060 = vadd.f32 0.0, %v3059
      %v3061 = vpop.f32.mrb[0].mxu0
      %v3062 = vadd.f32 0.0, %v3061
      %v3063 = vpop.f32.mrb[0].mxu0
      %v3064 = vadd.f32 0.0, %v3063
      %3065 = vmatprep.mubr.bf16.mxu0 %v1501
      %3066 = vmatmul.mubr.bf16.gmra.mrb[0].mxu0 %v1500
      %v3067 = vpop.f32.mrb[0].mxu0
      %v3068 = vadd.f32 0.0, %v3067
      %v3069 = vpop.f32.mrb[0].mxu0
      %v3070 = vadd.f32 0.0, %v3069
      %v3071 = vpop.f32.mrb[0].mxu0
      %v3072 = vadd.f32 0.0, %v3071
      %v3073 = vpop.f32.mrb[0].mxu0
      %v3074 = vadd.f32 0.0, %v3073
      %3075 = vmatprep.mubr.bf16.mxu0 %v1515
      %3076 = vmatmul.mubr.bf16.gmra.mrb[0].mxu0 %v1514
      %v3077 = vpop.f32.mrb[0].mxu0
      %v3078 = vadd.f32 0.0, %v3077
      %v3079 = vpop.f32.mrb[0].mxu0
      %v3080 = vadd.f32 0.0, %v3079
      %v3081 = vpop.f32.mrb[0].mxu0
      %v3082 = vadd.f32 0.0, %v3081
      %v3083 = vpop.f32.mrb[0].mxu0
      %v3084 = vadd.f32 0.0, %v3083
      %3085 = vmatprep.mubr.bf16.mxu0 %v1529
      %3086 = vmatmul.mubr.bf16.gmra.mrb[0].mxu0 %v1528
      %v3087 = vpop.f32.mrb[0].mxu0
      %v3088 = vadd.f32 0.0, %v3087
      %v3089 = vpop.f32.mrb[0].mxu0
      %v3090 = vadd.f32 0.0, %v3089
      %v3091 = vpop.f32.mrb[0].mxu0
      %v3092 = vadd.f32 0.0, %v3091
      %v3093 = vpop.f32.mrb[0].mxu0
      %v3094 = vadd.f32 0.0, %v3093
      %3095 = vmatprep.mubr.bf16.mxu0 %v1543
      %3096 = vmatmul.mubr.bf16.gmra.mrb[0].mxu0 %v1542
      %v3097 = vpop.f32.mrb[0].mxu0
      %v3098 = vadd.f32 0.0, %v3097
      %v3099 = vpop.f32.mrb[0].mxu0
      %v3100 = vadd.f32 0.0, %v3099
      %v3101 = vpop.f32.mrb[0].mxu0
      %v3102 = vadd.f32 0.0, %v3101
      %v3103 = vpop.f32.mrb[0].mxu0
      %v3104 = vadd.f32 0.0, %v3103
      %3105 = vmatprep.mubr.bf16.mxu0 %v1557
      %3106 = vmatmul.mubr.bf16.gmra.mrb[0].mxu0 %v1556
      %v3107 = vpop.f32.mrb[0].mxu0
      %v3108 = vadd.f32 0.0, %v3107
      %v3109 = vpop.f32.mrb[0].mxu0
      %v3110 = vadd.f32 0.0, %v3109
      %v3111 = vpop.f32.mrb[0].mxu0
      %v3112 = vadd.f32 0.0, %v3111
      %v3113 = vpop.f32.mrb[0].mxu0
      %v3114 = vadd.f32 0.0, %v3113
      %3115 = vmatprep.mubr.bf16.mxu0 %v1571
      %3116 = vmatmul.mubr.bf16.gmra.mrb[0].mxu0 %v1570
      %v3117 = vpop.f32.mrb[0].mxu0
      %v3118 = vadd.f32 0.0, %v3117
      %v3119 = vpop.f32.mrb[0].mxu0
      %v3120 = vadd.f32 0.0, %v3119
      %v3121 = vpop.f32.mrb[0].mxu0
      %v3122 = vadd.f32 0.0, %v3121
      %v3123 = vpop.f32.mrb[0].mxu0
      %v3124 = vadd.f32 0.0, %v3123
      %3125 = vmatprep.mubr.bf16.mxu0 %v1585
      %3126 = vmatmul.mubr.bf16.gmra.mrb[0].mxu0 %v1584
      %v3127 = vpop.f32.mrb[0].mxu0
      %v3128 = vadd.f32 0.0, %v3127
      %v3129 = vpop.f32.mrb[0].mxu0
      %v3130 = vadd.f32 0.0, %v3129
      %v3131 = vpop.f32.mrb[0].mxu0
      %v3132 = vadd.f32 0.0, %v3131
      %v3133 = vpop.f32.mrb[0].mxu0
      %v3134 = vadd.f32 0.0, %v3133
      %3135 = vmatprep.mubr.bf16.mxu0 %v1599
      %3136 = vmatmul.mubr.bf16.gmra.mrb[0].mxu0 %v1598
      %v3137 = vpop.f32.mrb[0].mxu0
      %v3138 = vadd.f32 0.0, %v3137
      %v3139 = vpop.f32.mrb[0].mxu0
      %v3140 = vadd.f32 0.0, %v3139
      %v3141 = vpop.f32.mrb[0].mxu0
      %v3142 = vadd.f32 0.0, %v3141
      %v3143 = vpop.f32.mrb[0].mxu0
      %v3144 = vadd.f32 0.0, %v3143
      %3145 = vmatprep.mubr.bf16.mxu0 %v1613
      %3146 = vmatmul.mubr.bf16.gmra.mrb[0].mxu0 %v1612
      %v3147 = vpop.f32.mrb[0].mxu0
      %v3148 = vadd.f32 0.0, %v3147
      %v3149 = vpop.f32.mrb[0].mxu0
      %v3150 = vadd.f32 0.0, %v3149
      %v3151 = vpop.f32.mrb[0].mxu0
      %v3152 = vadd.f32 0.0, %v3151
      %v3153 = vpop.f32.mrb[0].mxu0
      %v3154 = vadd.f32 0.0, %v3153
      %3155 = vdwg.mxu0
      %3156 = vmatprep.subr.bf16.mxu0 %v2515
      %3157 = vmatpush1.bf16.msra.mxu0 %v2514
      %3158 = vmatprep.subr.bf16.mxu0 %v2517
      %3159 = vmatpush1.bf16.msra.mxu0 %v2516
      %3160 = vmatprep.subr.bf16.mxu0 %v2519
      %3161 = vmatpush1.bf16.msra.mxu0 %v2518
      %3162 = vmatprep.subr.bf16.mxu0 %v2521
      %3163 = vmatpush1.bf16.msra.mxu0 %v2520
      %3164 = vmatprep.subr.bf16.mxu0 %v2523
      %3165 = vmatpush1.bf16.msra.mxu0 %v2522
      %3166 = vmatprep.subr.bf16.mxu0 %v2525
      %3167 = vmatpush1.bf16.msra.mxu0 %v2524
      %3168 = vmatprep.subr.bf16.mxu0 %v2527
      %3169 = vmatpush1.bf16.msra.mxu0 %v2526
      %3170 = vmatprep.subr.bf16.mxu0 %v2529
      %3171 = vmatpush1.bf16.msra.mxu0 %v2528
      %3172 = vmatprep.subr.bf16.mxu0 %v2531
      %3173 = vmatpush1.bf16.msra.mxu0 %v2530
      %3174 = vmatprep.subr.bf16.mxu0 %v2533
      %3175 = vmatpush1.bf16.msra.mxu0 %v2532
      %3176 = vmatprep.subr.bf16.mxu0 %v2535
      %3177 = vmatpush1.bf16.msra.mxu0 %v2534
      %3178 = vmatprep.subr.bf16.mxu0 %v2537
      %3179 = vmatpush1.bf16.msra.mxu0 %v2536
      %3180 = vmatprep.subr.bf16.mxu0 %v2539
      %3181 = vmatpush1.bf16.msra.mxu0 %v2538
      %3182 = vmatprep.subr.bf16.mxu0 %v2541
      %3183 = vmatpush1.bf16.msra.mxu0 %v2540
      %3184 = vmatprep.subr.bf16.mxu0 %v2543
      %3185 = vmatpush1.bf16.msra.mxu0 %v2542
      %3186 = vmatprep.subr.bf16.mxu0 %v2545
      %3187 = vmatpush1.bf16.msra.mxu0 %v2544
      %3188 = vmatprep.mubr.bf16.mxu0 %v1405
      %3189 = vmatmul.mubr.bf16.gmra.mrb[0].mxu0 %v1404
      %v3190 = vpop.f32.mrb[0].mxu0
      %v3191 = vadd.f32 %v2998, %v3190
      %v3192 = vpop.f32.mrb[0].mxu0
      %v3193 = vadd.f32 %v3000, %v3192
      %v3194 = vpop.f32.mrb[0].mxu0
      %v3195 = vadd.f32 %v3002, %v3194
      %v3196 = vpop.f32.mrb[0].mxu0
      %v3197 = vadd.f32 %v3004, %v3196
      %3198 = vmatprep.mubr.bf16.mxu0 %v1419
      %3199 = vmatmul.mubr.bf16.gmra.mrb[0].mxu0 %v1418
      %v3200 = vpop.f32.mrb[0].mxu0
      %v3201 = vadd.f32 %v3008, %v3200
      %v3202 = vpop.f32.mrb[0].mxu0
      %v3203 = vadd.f32 %v3010, %v3202
      %v3204 = vpop.f32.mrb[0].mxu0
      %v3205 = vadd.f32 %v3012, %v3204
      %v3206 = vpop.f32.mrb[0].mxu0
      %v3207 = vadd.f32 %v3014, %v3206
      %3208 = vmatprep.mubr.bf16.mxu0 %v1433
      %3209 = vmatmul.mubr.bf16.gmra.mrb[0].mxu0 %v1432
      %v3210 = vpop.f32.mrb[0].mxu0
      %v3211 = vadd.f32 %v3018, %v3210
      %v3212 = vpop.f32.mrb[0].mxu0
      %v3213 = vadd.f32 %v3020, %v3212
      %v3214 = vpop.f32.mrb[0].mxu0
      %v3215 = vadd.f32 %v3022, %v3214
      %v3216 = vpop.f32.mrb[0].mxu0
      %v3217 = vadd.f32 %v3024, %v3216
      %3218 = vmatprep.mubr.bf16.mxu0 %v1447
      %3219 = vmatmul.mubr.bf16.gmra.mrb[0].mxu0 %v1446
      %v3220 = vpop.f32.mrb[0].mxu0
      %v3221 = vadd.f32 %v3028, %v3220
      %v3222 = vpop.f32.mrb[0].mxu0
      %v3223 = vadd.f32 %v3030, %v3222
      %v3224 = vpop.f32.mrb[0].mxu0
      %v3225 = vadd.f32 %v3032, %v3224
      %v3226 = vpop.f32.mrb[0].mxu0
      %v3227 = vadd.f32 %v3034, %v3226
      %3228 = vmatprep.mubr.bf16.mxu0 %v1461
      %3229 = vmatmul.mubr.bf16.gmra.mrb[0].mxu0 %v1460
      %v3230 = vpop.f32.mrb[0].mxu0
      %v3231 = vadd.f32 %v3038, %v3230
      %v3232 = vpop.f32.mrb[0].mxu0
      %v3233 = vadd.f32 %v3040, %v3232
      %v3234 = vpop.f32.mrb[0].mxu0
      %v3235 = vadd.f32 %v3042, %v3234
      %v3236 = vpop.f32.mrb[0].mxu0
      %v3237 = vadd.f32 %v3044, %v3236
      %3238 = vmatprep.mubr.bf16.mxu0 %v1475
      %3239 = vmatmul.mubr.bf16.gmra.mrb[0].mxu0 %v1474
      %v3240 = vpop.f32.mrb[0].mxu0
      %v3241 = vadd.f32 %v3048, %v3240
      %v3242 = vpop.f32.mrb[0].mxu0
      %v3243 = vadd.f32 %v3050, %v3242
      %v3244 = vpop.f32.mrb[0].mxu0
      %v3245 = vadd.f32 %v3052, %v3244
      %v3246 = vpop.f32.mrb[0].mxu0
      %v3247 = vadd.f32 %v3054, %v3246
      %3248 = vmatprep.mubr.bf16.mxu0 %v1489
      %3249 = vmatmul.mubr.bf16.gmra.mrb[0].mxu0 %v1488
      %v3250 = vpop.f32.mrb[0].mxu0
      %v3251 = vadd.f32 %v3058, %v3250
      %v3252 = vpop.f32.mrb[0].mxu0
      %v3253 = vadd.f32 %v3060, %v3252
      %v3254 = vpop.f32.mrb[0].mxu0
      %v3255 = vadd.f32 %v3062, %v3254
      %v3256 = vpop.f32.mrb[0].mxu0
      %v3257 = vadd.f32 %v3064, %v3256
      %3258 = vmatprep.mubr.bf16.mxu0 %v1503
      %3259 = vmatmul.mubr.bf16.gmra.mrb[0].mxu0 %v1502
      %v3260 = vpop.f32.mrb[0].mxu0
      %v3261 = vadd.f32 %v3068, %v3260
      %v3262 = vpop.f32.mrb[0].mxu0
      %v3263 = vadd.f32 %v3070, %v3262
      %v3264 = vpop.f32.mrb[0].mxu0
      %v3265 = vadd.f32 %v3072, %v3264
      %v3266 = vpop.f32.mrb[0].mxu0
      %v3267 = vadd.f32 %v3074, %v3266
      %3268 = vmatprep.mubr.bf16.mxu0 %v1517
      %3269 = vmatmul.mubr.bf16.gmra.mrb[0].mxu0 %v1516
      %v3270 = vpop.f32.mrb[0].mxu0
      %v3271 = vadd.f32 %v3078, %v3270
      %v3272 = vpop.f32.mrb[0].mxu0
      %v3273 = vadd.f32 %v3080, %v3272
      %v3274 = vpop.f32.mrb[0].mxu0
      %v3275 = vadd.f32 %v3082, %v3274
      %v3276 = vpop.f32.mrb[0].mxu0
      %v3277 = vadd.f32 %v3084, %v3276
      %3278 = vmatprep.mubr.bf16.mxu0 %v1531
      %3279 = vmatmul.mubr.bf16.gmra.mrb[0].mxu0 %v1530
      %v3280 = vpop.f32.mrb[0].mxu0
      %v3281 = vadd.f32 %v3088, %v3280
      %v3282 = vpop.f32.mrb[0].mxu0
      %v3283 = vadd.f32 %v3090, %v3282
      %v3284 = vpop.f32.mrb[0].mxu0
      %v3285 = vadd.f32 %v3092, %v3284
      %v3286 = vpop.f32.mrb[0].mxu0
      %v3287 = vadd.f32 %v3094, %v3286
      %3288 = vmatprep.mubr.bf16.mxu0 %v1545
      %3289 = vmatmul.mubr.bf16.gmra.mrb[0].mxu0 %v1544
      %v3290 = vpop.f32.mrb[0].mxu0
      %v3291 = vadd.f32 %v3098, %v3290
      %v3292 = vpop.f32.mrb[0].mxu0
      %v3293 = vadd.f32 %v3100, %v3292
      %v3294 = vpop.f32.mrb[0].mxu0
      %v3295 = vadd.f32 %v3102, %v3294
      %v3296 = vpop.f32.mrb[0].mxu0
      %v3297 = vadd.f32 %v3104, %v3296
      %3298 = vmatprep.mubr.bf16.mxu0 %v1559
      %3299 = vmatmul.mubr.bf16.gmra.mrb[0].mxu0 %v1558
      %v3300 = vpop.f32.mrb[0].mxu0
      %v3301 = vadd.f32 %v3108, %v3300
      %v3302 = vpop.f32.mrb[0].mxu0
      %v3303 = vadd.f32 %v3110, %v3302
      %v3304 = vpop.f32.mrb[0].mxu0
      %v3305 = vadd.f32 %v3112, %v3304
      %v3306 = vpop.f32.mrb[0].mxu0
      %v3307 = vadd.f32 %v3114, %v3306
      %3308 = vmatprep.mubr.bf16.mxu0 %v1573
      %3309 = vmatmul.mubr.bf16.gmra.mrb[0].mxu0 %v1572
      %v3310 = vpop.f32.mrb[0].mxu0
      %v3311 = vadd.f32 %v3118, %v3310
      %v3312 = vpop.f32.mrb[0].mxu0
      %v3313 = vadd.f32 %v3120, %v3312
      %v3314 = vpop.f32.mrb[0].mxu0
      %v3315 = vadd.f32 %v3122, %v3314
      %v3316 = vpop.f32.mrb[0].mxu0
      %v3317 = vadd.f32 %v3124, %v3316
      %3318 = vmatprep.mubr.bf16.mxu0 %v1587
      %3319 = vmatmul.mubr.bf16.gmra.mrb[0].mxu0 %v1586
      %v3320 = vpop.f32.mrb[0].mxu0
      %v3321 = vadd.f32 %v3128, %v3320
      %v3322 = vpop.f32.mrb[0].mxu0
      %v3323 = vadd.f32 %v3130, %v3322
      %v3324 = vpop.f32.mrb[0].mxu0
      %v3325 = vadd.f32 %v3132, %v3324
      %v3326 = vpop.f32.mrb[0].mxu0
      %v3327 = vadd.f32 %v3134, %v3326
      %3328 = vmatprep.mubr.bf16.mxu0 %v1601
      %3329 = vmatmul.mubr.bf16.gmra.mrb[0].mxu0 %v1600
      %v3330 = vpop.f32.mrb[0].mxu0
      %v3331 = vadd.f32 %v3138, %v3330
      %v3332 = vpop.f32.mrb[0].mxu0
      %v3333 = vadd.f32 %v3140, %v3332
      %v3334 = vpop.f32.mrb[0].mxu0
      %v3335 = vadd.f32 %v3142, %v3334
      %v3336 = vpop.f32.mrb[0].mxu0
      %v3337 = vadd.f32 %v3144, %v3336
      %3338 = vmatprep.mubr.bf16.mxu0 %v1615
      %3339 = vmatmul.mubr.bf16.gmra.mrb[0].mxu0 %v1614
      %v3340 = vpop.f32.mrb[0].mxu0
      %v3341 = vadd.f32 %v3148, %v3340
      %v3342 = vpop.f32.mrb[0].mxu0
      %v3343 = vadd.f32 %v3150, %v3342
      %v3344 = vpop.f32.mrb[0].mxu0
      %v3345 = vadd.f32 %v3152, %v3344
      %v3346 = vpop.f32.mrb[0].mxu0
      %v3347 = vadd.f32 %v3154, %v3346
      %3348 = vdwg.mxu0
      %3349 = vmatprep.subr.bf16.mxu0 %v2547
      %3350 = vmatpush1.bf16.msra.mxu0 %v2546
      %3351 = vmatprep.subr.bf16.mxu0 %v2549
      %3352 = vmatpush1.bf16.msra.mxu0 %v2548
      %3353 = vmatprep.subr.bf16.mxu0 %v2551
      %3354 = vmatpush1.bf16.msra.mxu0 %v2550
      %3355 = vmatprep.subr.bf16.mxu0 %v2553
      %3356 = vmatpush1.bf16.msra.mxu0 %v2552
      %3357 = vmatprep.subr.bf16.mxu0 %v2555
      %3358 = vmatpush1.bf16.msra.mxu0 %v2554
      %3359 = vmatprep.subr.bf16.mxu0 %v2557
      %3360 = vmatpush1.bf16.msra.mxu0 %v2556
      %3361 = vmatprep.subr.bf16.mxu0 %v2559
      %3362 = vmatpush1.bf16.msra.mxu0 %v2558
      %3363 = vmatprep.subr.bf16.mxu0 %v2561
      %3364 = vmatpush1.bf16.msra.mxu0 %v2560
      %3365 = vmatprep.subr.bf16.mxu0 %v2563
      %3366 = vmatpush1.bf16.msra.mxu0 %v2562
      %3367 = vmatprep.subr.bf16.mxu0 %v2565
      %3368 = vmatpush1.bf16.msra.mxu0 %v2564
      %3369 = vmatprep.subr.bf16.mxu0 %v2567
      %3370 = vmatpush1.bf16.msra.mxu0 %v2566
      %3371 = vmatprep.subr.bf16.mxu0 %v2569
      %3372 = vmatpush1.bf16.msra.mxu0 %v2568
      %3373 = vmatprep.subr.bf16.mxu0 %v2571
      %3374 = vmatpush1.bf16.msra.mxu0 %v2570
      %3375 = vmatprep.subr.bf16.mxu0 %v2573
      %3376 = vmatpush1.bf16.msra.mxu0 %v2572
      %3377 = vmatprep.subr.bf16.mxu0 %v2575
      %3378 = vmatpush1.bf16.msra.mxu0 %v2574
      %3379 = vmatprep.subr.bf16.mxu0 %v2577
      %3380 = vmatpush1.bf16.msra.mxu0 %v2576
      %3381 = vmatprep.mubr.bf16.mxu0 %v1407
      %3382 = vmatmul.mubr.bf16.gmra.mrb[0].mxu0 %v1406
      %v3383 = vpop.f32.mrb[0].mxu0
      %v3384 = vadd.f32 %v3191, %v3383
      %v3385 = vpop.f32.mrb[0].mxu0
      %v3386 = vadd.f32 %v3193, %v3385
      %v3387 = vpop.f32.mrb[0].mxu0
      %v3388 = vadd.f32 %v3195, %v3387
      %v3389 = vpop.f32.mrb[0].mxu0
      %v3390 = vadd.f32 %v3197, %v3389
      %3391 = vmatprep.mubr.bf16.mxu0 %v1421
      %3392 = vmatmul.mubr.bf16.gmra.mrb[0].mxu0 %v1420
      %v3393 = vpop.f32.mrb[0].mxu0
      %v3394 = vadd.f32 %v3201, %v3393
      %v3395 = vpop.f32.mrb[0].mxu0
      %v3396 = vadd.f32 %v3203, %v3395
      %v3397 = vpop.f32.mrb[0].mxu0
      %v3398 = vadd.f32 %v3205, %v3397
      %v3399 = vpop.f32.mrb[0].mxu0
      %v3400 = vadd.f32 %v3207, %v3399
      %3401 = vmatprep.mubr.bf16.mxu0 %v1435
      %3402 = vmatmul.mubr.bf16.gmra.mrb[0].mxu0 %v1434
      %v3403 = vpop.f32.mrb[0].mxu0
      %v3404 = vadd.f32 %v3211, %v3403
      %v3405 = vpop.f32.mrb[0].mxu0
      %v3406 = vadd.f32 %v3213, %v3405
      %v3407 = vpop.f32.mrb[0].mxu0
      %v3408 = vadd.f32 %v3215, %v3407
      %v3409 = vpop.f32.mrb[0].mxu0
      %v3410 = vadd.f32 %v3217, %v3409
      %3411 = vmatprep.mubr.bf16.mxu0 %v1449
      %3412 = vmatmul.mubr.bf16.gmra.mrb[0].mxu0 %v1448
      %v3413 = vpop.f32.mrb[0].mxu0
      %v3414 = vadd.f32 %v3221, %v3413
      %v3415 = vpop.f32.mrb[0].mxu0
      %v3416 = vadd.f32 %v3223, %v3415
      %v3417 = vpop.f32.mrb[0].mxu0
      %v3418 = vadd.f32 %v3225, %v3417
      %v3419 = vpop.f32.mrb[0].mxu0
      %v3420 = vadd.f32 %v3227, %v3419
      %3421 = vmatprep.mubr.bf16.mxu0 %v1463
      %3422 = vmatmul.mubr.bf16.gmra.mrb[0].mxu0 %v1462
      %v3423 = vpop.f32.mrb[0].mxu0
      %v3424 = vadd.f32 %v3231, %v3423
      %v3425 = vpop.f32.mrb[0].mxu0
      %v3426 = vadd.f32 %v3233, %v3425
      %v3427 = vpop.f32.mrb[0].mxu0
      %v3428 = vadd.f32 %v3235, %v3427
      %v3429 = vpop.f32.mrb[0].mxu0
      %v3430 = vadd.f32 %v3237, %v3429
      %3431 = vmatprep.mubr.bf16.mxu0 %v1477
      %3432 = vmatmul.mubr.bf16.gmra.mrb[0].mxu0 %v1476
      %v3433 = vpop.f32.mrb[0].mxu0
      %v3434 = vadd.f32 %v3241, %v3433
      %v3435 = vpop.f32.mrb[0].mxu0
      %v3436 = vadd.f32 %v3243, %v3435
      %v3437 = vpop.f32.mrb[0].mxu0
      %v3438 = vadd.f32 %v3245, %v3437
      %v3439 = vpop.f32.mrb[0].mxu0
      %v3440 = vadd.f32 %v3247, %v3439
      %3441 = vmatprep.mubr.bf16.mxu0 %v1491
      %3442 = vmatmul.mubr.bf16.gmra.mrb[0].mxu0 %v1490
      %v3443 = vpop.f32.mrb[0].mxu0
      %v3444 = vadd.f32 %v3251, %v3443
      %v3445 = vpop.f32.mrb[0].mxu0
      %v3446 = vadd.f32 %v3253, %v3445
      %v3447 = vpop.f32.mrb[0].mxu0
      %v3448 = vadd.f32 %v3255, %v3447
      %v3449 = vpop.f32.mrb[0].mxu0
      %v3450 = vadd.f32 %v3257, %v3449
      %3451 = vmatprep.mubr.bf16.mxu0 %v1505
      %3452 = vmatmul.mubr.bf16.gmra.mrb[0].mxu0 %v1504
      %v3453 = vpop.f32.mrb[0].mxu0
      %v3454 = vadd.f32 %v3261, %v3453
      %v3455 = vpop.f32.mrb[0].mxu0
      %v3456 = vadd.f32 %v3263, %v3455
      %v3457 = vpop.f32.mrb[0].mxu0
      %v3458 = vadd.f32 %v3265, %v3457
      %v3459 = vpop.f32.mrb[0].mxu0
      %v3460 = vadd.f32 %v3267, %v3459
      %3461 = vmatprep.mubr.bf16.mxu0 %v1519
      %3462 = vmatmul.mubr.bf16.gmra.mrb[0].mxu0 %v1518
      %v3463 = vpop.f32.mrb[0].mxu0
      %v3464 = vadd.f32 %v3271, %v3463
      %v3465 = vpop.f32.mrb[0].mxu0
      %v3466 = vadd.f32 %v3273, %v3465
      %v3467 = vpop.f32.mrb[0].mxu0
      %v3468 = vadd.f32 %v3275, %v3467
      %v3469 = vpop.f32.mrb[0].mxu0
      %v3470 = vadd.f32 %v3277, %v3469
      %3471 = vmatprep.mubr.bf16.mxu0 %v1533
      %3472 = vmatmul.mubr.bf16.gmra.mrb[0].mxu0 %v1532
      %v3473 = vpop.f32.mrb[0].mxu0
      %v3474 = vadd.f32 %v3281, %v3473
      %v3475 = vpop.f32.mrb[0].mxu0
      %v3476 = vadd.f32 %v3283, %v3475
      %v3477 = vpop.f32.mrb[0].mxu0
      %v3478 = vadd.f32 %v3285, %v3477
      %v3479 = vpop.f32.mrb[0].mxu0
      %v3480 = vadd.f32 %v3287, %v3479
      %3481 = vmatprep.mubr.bf16.mxu0 %v1547
      %3482 = vmatmul.mubr.bf16.gmra.mrb[0].mxu0 %v1546
      %v3483 = vpop.f32.mrb[0].mxu0
      %v3484 = vadd.f32 %v3291, %v3483
      %v3485 = vpop.f32.mrb[0].mxu0
      %v3486 = vadd.f32 %v3293, %v3485
      %v3487 = vpop.f32.mrb[0].mxu0
      %v3488 = vadd.f32 %v3295, %v3487
      %v3489 = vpop.f32.mrb[0].mxu0
      %v3490 = vadd.f32 %v3297, %v3489
      %3491 = vmatprep.mubr.bf16.mxu0 %v1561
      %3492 = vmatmul.mubr.bf16.gmra.mrb[0].mxu0 %v1560
      %v3493 = vpop.f32.mrb[0].mxu0
      %v3494 = vadd.f32 %v3301, %v3493
      %v3495 = vpop.f32.mrb[0].mxu0
      %v3496 = vadd.f32 %v3303, %v3495
      %v3497 = vpop.f32.mrb[0].mxu0
      %v3498 = vadd.f32 %v3305, %v3497
      %v3499 = vpop.f32.mrb[0].mxu0
      %v3500 = vadd.f32 %v3307, %v3499
      %3501 = vmatprep.mubr.bf16.mxu0 %v1575
      %3502 = vmatmul.mubr.bf16.gmra.mrb[0].mxu0 %v1574
      %v3503 = vpop.f32.mrb[0].mxu0
      %v3504 = vadd.f32 %v3311, %v3503
      %v3505 = vpop.f32.mrb[0].mxu0
      %v3506 = vadd.f32 %v3313, %v3505
      %v3507 = vpop.f32.mrb[0].mxu0
      %v3508 = vadd.f32 %v3315, %v3507
      %v3509 = vpop.f32.mrb[0].mxu0
      %v3510 = vadd.f32 %v3317, %v3509
      %3511 = vmatprep.mubr.bf16.mxu0 %v1589
      %3512 = vmatmul.mubr.bf16.gmra.mrb[0].mxu0 %v1588
      %v3513 = vpop.f32.mrb[0].mxu0
      %v3514 = vadd.f32 %v3321, %v3513
      %v3515 = vpop.f32.mrb[0].mxu0
      %v3516 = vadd.f32 %v3323, %v3515
      %v3517 = vpop.f32.mrb[0].mxu0
      %v3518 = vadd.f32 %v3325, %v3517
      %v3519 = vpop.f32.mrb[0].mxu0
      %v3520 = vadd.f32 %v3327, %v3519
      %3521 = vmatprep.mubr.bf16.mxu0 %v1603
      %3522 = vmatmul.mubr.bf16.gmra.mrb[0].mxu0 %v1602
      %v3523 = vpop.f32.mrb[0].mxu0
      %v3524 = vadd.f32 %v3331, %v3523
      %v3525 = vpop.f32.mrb[0].mxu0
      %v3526 = vadd.f32 %v3333, %v3525
      %v3527 = vpop.f32.mrb[0].mxu0
      %v3528 = vadd.f32 %v3335, %v3527
      %v3529 = vpop.f32.mrb[0].mxu0
      %v3530 = vadd.f32 %v3337, %v3529
      %3531 = vmatprep.mubr.bf16.mxu0 %v1617
      %3532 = vmatmul.mubr.bf16.gmra.mrb[0].mxu0 %v1616
      %v3533 = vpop.f32.mrb[0].mxu0
      %v3534 = vadd.f32 %v3341, %v3533
      %v3535 = vpop.f32.mrb[0].mxu0
      %v3536 = vadd.f32 %v3343, %v3535
      %v3537 = vpop.f32.mrb[0].mxu0
      %v3538 = vadd.f32 %v3345, %v3537
      %v3539 = vpop.f32.mrb[0].mxu0
      %v3540 = vadd.f32 %v3347, %v3539
      %3541 = vdwg.mxu0
      %3542 = vmatprep.subr.bf16.mxu0 %v2579
      %3543 = vmatpush1.bf16.msra.mxu0 %v2578
      %3544 = vmatprep.subr.bf16.mxu0 %v2581
      %3545 = vmatpush1.bf16.msra.mxu0 %v2580
      %3546 = vmatprep.subr.bf16.mxu0 %v2583
      %3547 = vmatpush1.bf16.msra.mxu0 %v2582
      %3548 = vmatprep.subr.bf16.mxu0 %v2585
      %3549 = vmatpush1.bf16.msra.mxu0 %v2584
      %3550 = vmatprep.subr.bf16.mxu0 %v2587
      %3551 = vmatpush1.bf16.msra.mxu0 %v2586
      %3552 = vmatprep.subr.bf16.mxu0 %v2589
      %3553 = vmatpush1.bf16.msra.mxu0 %v2588
      %3554 = vmatprep.subr.bf16.mxu0 %v2591
      %3555 = vmatpush1.bf16.msra.mxu0 %v2590
      %3556 = vmatprep.subr.bf16.mxu0 %v2593
      %3557 = vmatpush1.bf16.msra.mxu0 %v2592
      %3558 = vmatprep.subr.bf16.mxu0 %v2595
      %3559 = vmatpush1.bf16.msra.mxu0 %v2594
      %3560 = vmatprep.subr.bf16.mxu0 %v2597
      %3561 = vmatpush1.bf16.msra.mxu0 %v2596
      %3562 = vmatprep.subr.bf16.mxu0 %v2599
      %3563 = vmatpush1.bf16.msra.mxu0 %v2598
      %3564 = vmatprep.subr.bf16.mxu0 %v2601
      %3565 = vmatpush1.bf16.msra.mxu0 %v2600
      %3566 = vmatprep.subr.bf16.mxu0 %v2603
      %3567 = vmatpush1.bf16.msra.mxu0 %v2602
      %3568 = vmatprep.subr.bf16.mxu0 %v2605
      %3569 = vmatpush1.bf16.msra.mxu0 %v2604
      %3570 = vmatprep.subr.bf16.mxu0 %v2607
      %3571 = vmatpush1.bf16.msra.mxu0 %v2606
      %3572 = vmatprep.subr.bf16.mxu0 %v2609
      %3573 = vmatpush1.bf16.msra.mxu0 %v2608
      %3574 = vmatprep.mubr.bf16.mxu0 %v1409
      %3575 = vmatmul.mubr.bf16.gmra.mrb[0].mxu0 %v1408
      %v3576 = vpop.f32.mrb[0].mxu0
      %v3577 = vadd.f32 %v3384, %v3576
      %v3578 = vpop.f32.mrb[0].mxu0
      %v3579 = vadd.f32 %v3386, %v3578
      %v3580 = vpop.f32.mrb[0].mxu0
      %v3581 = vadd.f32 %v3388, %v3580
      %v3582 = vpop.f32.mrb[0].mxu0
      %v3583 = vadd.f32 %v3390, %v3582
      %3584 = vmatprep.mubr.bf16.mxu0 %v1423
      %3585 = vmatmul.mubr.bf16.gmra.mrb[0].mxu0 %v1422
      %v3586 = vpop.f32.mrb[0].mxu0
      %v3587 = vadd.f32 %v3394, %v3586
      %v3588 = vpop.f32.mrb[0].mxu0
      %v3589 = vadd.f32 %v3396, %v3588
      %v3590 = vpop.f32.mrb[0].mxu0
      %v3591 = vadd.f32 %v3398, %v3590
      %v3592 = vpop.f32.mrb[0].mxu0
      %v3593 = vadd.f32 %v3400, %v3592
      %3594 = vmatprep.mubr.bf16.mxu0 %v1437
      %3595 = vmatmul.mubr.bf16.gmra.mrb[0].mxu0 %v1436
      %v3596 = vpop.f32.mrb[0].mxu0
      %v3597 = vadd.f32 %v3404, %v3596
      %v3598 = vpop.f32.mrb[0].mxu0
      %v3599 = vadd.f32 %v3406, %v3598
      %v3600 = vpop.f32.mrb[0].mxu0
      %v3601 = vadd.f32 %v3408, %v3600
      %v3602 = vpop.f32.mrb[0].mxu0
      %v3603 = vadd.f32 %v3410, %v3602
      %3604 = vmatprep.mubr.bf16.mxu0 %v1451
      %3605 = vmatmul.mubr.bf16.gmra.mrb[0].mxu0 %v1450
      %v3606 = vpop.f32.mrb[0].mxu0
      %v3607 = vadd.f32 %v3414, %v3606
      %v3608 = vpop.f32.mrb[0].mxu0
      %v3609 = vadd.f32 %v3416, %v3608
      %v3610 = vpop.f32.mrb[0].mxu0
      %v3611 = vadd.f32 %v3418, %v3610
      %v3612 = vpop.f32.mrb[0].mxu0
      %v3613 = vadd.f32 %v3420, %v3612
      %3614 = vmatprep.mubr.bf16.mxu0 %v1465
      %3615 = vmatmul.mubr.bf16.gmra.mrb[0].mxu0 %v1464
      %v3616 = vpop.f32.mrb[0].mxu0
      %v3617 = vadd.f32 %v3424, %v3616
      %v3618 = vpop.f32.mrb[0].mxu0
      %v3619 = vadd.f32 %v3426, %v3618
      %v3620 = vpop.f32.mrb[0].mxu0
      %v3621 = vadd.f32 %v3428, %v3620
      %v3622 = vpop.f32.mrb[0].mxu0
      %v3623 = vadd.f32 %v3430, %v3622
      %3624 = vmatprep.mubr.bf16.mxu0 %v1479
      %3625 = vmatmul.mubr.bf16.gmra.mrb[0].mxu0 %v1478
      %v3626 = vpop.f32.mrb[0].mxu0
      %v3627 = vadd.f32 %v3434, %v3626
      %v3628 = vpop.f32.mrb[0].mxu0
      %v3629 = vadd.f32 %v3436, %v3628
      %v3630 = vpop.f32.mrb[0].mxu0
      %v3631 = vadd.f32 %v3438, %v3630
      %v3632 = vpop.f32.mrb[0].mxu0
      %v3633 = vadd.f32 %v3440, %v3632
      %3634 = vmatprep.mubr.bf16.mxu0 %v1493
      %3635 = vmatmul.mubr.bf16.gmra.mrb[0].mxu0 %v1492
      %v3636 = vpop.f32.mrb[0].mxu0
      %v3637 = vadd.f32 %v3444, %v3636
      %v3638 = vpop.f32.mrb[0].mxu0
      %v3639 = vadd.f32 %v3446, %v3638
      %v3640 = vpop.f32.mrb[0].mxu0
      %v3641 = vadd.f32 %v3448, %v3640
      %v3642 = vpop.f32.mrb[0].mxu0
      %v3643 = vadd.f32 %v3450, %v3642
      %3644 = vmatprep.mubr.bf16.mxu0 %v1507
      %3645 = vmatmul.mubr.bf16.gmra.mrb[0].mxu0 %v1506
      %v3646 = vpop.f32.mrb[0].mxu0
      %v3647 = vadd.f32 %v3454, %v3646
      %v3648 = vpop.f32.mrb[0].mxu0
      %v3649 = vadd.f32 %v3456, %v3648
      %v3650 = vpop.f32.mrb[0].mxu0
      %v3651 = vadd.f32 %v3458, %v3650
      %v3652 = vpop.f32.mrb[0].mxu0
      %v3653 = vadd.f32 %v3460, %v3652
      %3654 = vmatprep.mubr.bf16.mxu0 %v1521
      %3655 = vmatmul.mubr.bf16.gmra.mrb[0].mxu0 %v1520
      %v3656 = vpop.f32.mrb[0].mxu0
      %v3657 = vadd.f32 %v3464, %v3656
      %v3658 = vpop.f32.mrb[0].mxu0
      %v3659 = vadd.f32 %v3466, %v3658
      %v3660 = vpop.f32.mrb[0].mxu0
      %v3661 = vadd.f32 %v3468, %v3660
      %v3662 = vpop.f32.mrb[0].mxu0
      %v3663 = vadd.f32 %v3470, %v3662
      %3664 = vmatprep.mubr.bf16.mxu0 %v1535
      %3665 = vmatmul.mubr.bf16.gmra.mrb[0].mxu0 %v1534
      %v3666 = vpop.f32.mrb[0].mxu0
      %v3667 = vadd.f32 %v3474, %v3666
      %v3668 = vpop.f32.mrb[0].mxu0
      %v3669 = vadd.f32 %v3476, %v3668
      %v3670 = vpop.f32.mrb[0].mxu0
      %v3671 = vadd.f32 %v3478, %v3670
      %v3672 = vpop.f32.mrb[0].mxu0
      %v3673 = vadd.f32 %v3480, %v3672
      %3674 = vmatprep.mubr.bf16.mxu0 %v1549
      %3675 = vmatmul.mubr.bf16.gmra.mrb[0].mxu0 %v1548
      %v3676 = vpop.f32.mrb[0].mxu0
      %v3677 = vadd.f32 %v3484, %v3676
      %v3678 = vpop.f32.mrb[0].mxu0
      %v3679 = vadd.f32 %v3486, %v3678
      %v3680 = vpop.f32.mrb[0].mxu0
      %v3681 = vadd.f32 %v3488, %v3680
      %v3682 = vpop.f32.mrb[0].mxu0
      %v3683 = vadd.f32 %v3490, %v3682
      %3684 = vmatprep.mubr.bf16.mxu0 %v1563
      %3685 = vmatmul.mubr.bf16.gmra.mrb[0].mxu0 %v1562
      %v3686 = vpop.f32.mrb[0].mxu0
      %v3687 = vadd.f32 %v3494, %v3686
      %v3688 = vpop.f32.mrb[0].mxu0
      %v3689 = vadd.f32 %v3496, %v3688
      %v3690 = vpop.f32.mrb[0].mxu0
      %v3691 = vadd.f32 %v3498, %v3690
      %v3692 = vpop.f32.mrb[0].mxu0
      %v3693 = vadd.f32 %v3500, %v3692
      %3694 = vmatprep.mubr.bf16.mxu0 %v1577
      %3695 = vmatmul.mubr.bf16.gmra.mrb[0].mxu0 %v1576
      %v3696 = vpop.f32.mrb[0].mxu0
      %v3697 = vadd.f32 %v3504, %v3696
      %v3698 = vpop.f32.mrb[0].mxu0
      %v3699 = vadd.f32 %v3506, %v3698
      %v3700 = vpop.f32.mrb[0].mxu0
      %v3701 = vadd.f32 %v3508, %v3700
      %v3702 = vpop.f32.mrb[0].mxu0
      %v3703 = vadd.f32 %v3510, %v3702
      %3704 = vmatprep.mubr.bf16.mxu0 %v1591
      %3705 = vmatmul.mubr.bf16.gmra.mrb[0].mxu0 %v1590
      %v3706 = vpop.f32.mrb[0].mxu0
      %v3707 = vadd.f32 %v3514, %v3706
      %v3708 = vpop.f32.mrb[0].mxu0
      %v3709 = vadd.f32 %v3516, %v3708
      %v3710 = vpop.f32.mrb[0].mxu0
      %v3711 = vadd.f32 %v3518, %v3710
      %v3712 = vpop.f32.mrb[0].mxu0
      %v3713 = vadd.f32 %v3520, %v3712
      %3714 = vmatprep.mubr.bf16.mxu0 %v1605
      %3715 = vmatmul.mubr.bf16.gmra.mrb[0].mxu0 %v1604
      %v3716 = vpop.f32.mrb[0].mxu0
      %v3717 = vadd.f32 %v3524, %v3716
      %v3718 = vpop.f32.mrb[0].mxu0
      %v3719 = vadd.f32 %v3526, %v3718
      %v3720 = vpop.f32.mrb[0].mxu0
      %v3721 = vadd.f32 %v3528, %v3720
      %v3722 = vpop.f32.mrb[0].mxu0
      %v3723 = vadd.f32 %v3530, %v3722
      %3724 = vmatprep.mubr.bf16.mxu0 %v1619
      %3725 = vmatmul.mubr.bf16.gmra.mrb[0].mxu0 %v1618
      %v3726 = vpop.f32.mrb[0].mxu0
      %v3727 = vadd.f32 %v3534, %v3726
      %v3728 = vpop.f32.mrb[0].mxu0
      %v3729 = vadd.f32 %v3536, %v3728
      %v3730 = vpop.f32.mrb[0].mxu0
      %v3731 = vadd.f32 %v3538, %v3730
      %v3732 = vpop.f32.mrb[0].mxu0
      %v3733 = vadd.f32 %v3540, %v3732
      %3734 = vdwg.mxu0
      %3735 = vmatprep.subr.bf16.mxu0 %v2611
      %3736 = vmatpush1.bf16.msra.mxu0 %v2610
      %3737 = vmatprep.subr.bf16.mxu0 %v2613
      %3738 = vmatpush1.bf16.msra.mxu0 %v2612
      %3739 = vmatprep.subr.bf16.mxu0 %v2615
      %3740 = vmatpush1.bf16.msra.mxu0 %v2614
      %3741 = vmatprep.subr.bf16.mxu0 %v2617
      %3742 = vmatpush1.bf16.msra.mxu0 %v2616
      %3743 = vmatprep.subr.bf16.mxu0 %v2619
      %3744 = vmatpush1.bf16.msra.mxu0 %v2618
      %3745 = vmatprep.subr.bf16.mxu0 %v2621
      %3746 = vmatpush1.bf16.msra.mxu0 %v2620
      %3747 = vmatprep.subr.bf16.mxu0 %v2623
      %3748 = vmatpush1.bf16.msra.mxu0 %v2622
      %3749 = vmatprep.subr.bf16.mxu0 %v2625
      %3750 = vmatpush1.bf16.msra.mxu0 %v2624
      %3751 = vmatprep.subr.bf16.mxu0 %v2627
      %3752 = vmatpush1.bf16.msra.mxu0 %v2626
      %3753 = vmatprep.subr.bf16.mxu0 %v2629
      %3754 = vmatpush1.bf16.msra.mxu0 %v2628
      %3755 = vmatprep.subr.bf16.mxu0 %v2631
      %3756 = vmatpush1.bf16.msra.mxu0 %v2630
      %3757 = vmatprep.subr.bf16.mxu0 %v2633
      %3758 = vmatpush1.bf16.msra.mxu0 %v2632
      %3759 = vmatprep.subr.bf16.mxu0 %v2635
      %3760 = vmatpush1.bf16.msra.mxu0 %v2634
      %3761 = vmatprep.subr.bf16.mxu0 %v2637
      %3762 = vmatpush1.bf16.msra.mxu0 %v2636
      %3763 = vmatprep.subr.bf16.mxu0 %v2639
      %3764 = vmatpush1.bf16.msra.mxu0 %v2638
      %3765 = vmatprep.subr.bf16.mxu0 %v2641
      %3766 = vmatpush1.bf16.msra.mxu0 %v2640
      %3767 = vmatprep.mubr.bf16.mxu0 %v1411
      %3768 = vmatmul.mubr.bf16.gmra.mrb[0].mxu0 %v1410
      %v3769 = vpop.f32.mrb[0].mxu0
      %v3770 = vadd.f32 %v3577, %v3769
      %v3771 = vpop.f32.mrb[0].mxu0
      %v3772 = vadd.f32 %v3579, %v3771
      %v3773 = vpop.f32.mrb[0].mxu0
      %v3774 = vadd.f32 %v3581, %v3773
      %v3775 = vpop.f32.mrb[0].mxu0
      %v3776 = vadd.f32 %v3583, %v3775
      %3777 = vmatprep.mubr.bf16.mxu0 %v1425
      %3778 = vmatmul.mubr.bf16.gmra.mrb[0].mxu0 %v1424
      %v3779 = vpop.f32.mrb[0].mxu0
      %v3780 = vadd.f32 %v3587, %v3779
      %v3781 = vpop.f32.mrb[0].mxu0
      %v3782 = vadd.f32 %v3589, %v3781
      %v3783 = vpop.f32.mrb[0].mxu0
      %v3784 = vadd.f32 %v3591, %v3783
      %v3785 = vpop.f32.mrb[0].mxu0
      %v3786 = vadd.f32 %v3593, %v3785
      %3787 = vmatprep.mubr.bf16.mxu0 %v1439
      %3788 = vmatmul.mubr.bf16.gmra.mrb[0].mxu0 %v1438
      %v3789 = vpop.f32.mrb[0].mxu0
      %v3790 = vadd.f32 %v3597, %v3789
      %v3791 = vpop.f32.mrb[0].mxu0
      %v3792 = vadd.f32 %v3599, %v3791
      %v3793 = vpop.f32.mrb[0].mxu0
      %v3794 = vadd.f32 %v3601, %v3793
      %v3795 = vpop.f32.mrb[0].mxu0
      %v3796 = vadd.f32 %v3603, %v3795
      %3797 = vmatprep.mubr.bf16.mxu0 %v1453
      %3798 = vmatmul.mubr.bf16.gmra.mrb[0].mxu0 %v1452
      %v3799 = vpop.f32.mrb[0].mxu0
      %v3800 = vadd.f32 %v3607, %v3799
      %v3801 = vpop.f32.mrb[0].mxu0
      %v3802 = vadd.f32 %v3609, %v3801
      %v3803 = vpop.f32.mrb[0].mxu0
      %v3804 = vadd.f32 %v3611, %v3803
      %v3805 = vpop.f32.mrb[0].mxu0
      %v3806 = vadd.f32 %v3613, %v3805
      %3807 = vmatprep.mubr.bf16.mxu0 %v1467
      %3808 = vmatmul.mubr.bf16.gmra.mrb[0].mxu0 %v1466
      %v3809 = vpop.f32.mrb[0].mxu0
      %v3810 = vadd.f32 %v3617, %v3809
      %v3811 = vpop.f32.mrb[0].mxu0
      %v3812 = vadd.f32 %v3619, %v3811
      %v3813 = vpop.f32.mrb[0].mxu0
      %v3814 = vadd.f32 %v3621, %v3813
      %v3815 = vpop.f32.mrb[0].mxu0
      %v3816 = vadd.f32 %v3623, %v3815
      %3817 = vmatprep.mubr.bf16.mxu0 %v1481
      %3818 = vmatmul.mubr.bf16.gmra.mrb[0].mxu0 %v1480
      %v3819 = vpop.f32.mrb[0].mxu0
      %v3820 = vadd.f32 %v3627, %v3819
      %v3821 = vpop.f32.mrb[0].mxu0
      %v3822 = vadd.f32 %v3629, %v3821
      %v3823 = vpop.f32.mrb[0].mxu0
      %v3824 = vadd.f32 %v3631, %v3823
      %v3825 = vpop.f32.mrb[0].mxu0
      %v3826 = vadd.f32 %v3633, %v3825
      %3827 = vmatprep.mubr.bf16.mxu0 %v1495
      %3828 = vmatmul.mubr.bf16.gmra.mrb[0].mxu0 %v1494
      %v3829 = vpop.f32.mrb[0].mxu0
      %v3830 = vadd.f32 %v3637, %v3829
      %v3831 = vpop.f32.mrb[0].mxu0
      %v3832 = vadd.f32 %v3639, %v3831
      %v3833 = vpop.f32.mrb[0].mxu0
      %v3834 = vadd.f32 %v3641, %v3833
      %v3835 = vpop.f32.mrb[0].mxu0
      %v3836 = vadd.f32 %v3643, %v3835
      %3837 = vmatprep.mubr.bf16.mxu0 %v1509
      %3838 = vmatmul.mubr.bf16.gmra.mrb[0].mxu0 %v1508
      %v3839 = vpop.f32.mrb[0].mxu0
      %v3840 = vadd.f32 %v3647, %v3839
      %v3841 = vpop.f32.mrb[0].mxu0
      %v3842 = vadd.f32 %v3649, %v3841
      %v3843 = vpop.f32.mrb[0].mxu0
      %v3844 = vadd.f32 %v3651, %v3843
      %v3845 = vpop.f32.mrb[0].mxu0
      %v3846 = vadd.f32 %v3653, %v3845
      %3847 = vmatprep.mubr.bf16.mxu0 %v1523
      %3848 = vmatmul.mubr.bf16.gmra.mrb[0].mxu0 %v1522
      %v3849 = vpop.f32.mrb[0].mxu0
      %v3850 = vadd.f32 %v3657, %v3849
      %v3851 = vpop.f32.mrb[0].mxu0
      %v3852 = vadd.f32 %v3659, %v3851
      %v3853 = vpop.f32.mrb[0].mxu0
      %v3854 = vadd.f32 %v3661, %v3853
      %v3855 = vpop.f32.mrb[0].mxu0
      %v3856 = vadd.f32 %v3663, %v3855
      %3857 = vmatprep.mubr.bf16.mxu0 %v1537
      %3858 = vmatmul.mubr.bf16.gmra.mrb[0].mxu0 %v1536
      %v3859 = vpop.f32.mrb[0].mxu0
      %v3860 = vadd.f32 %v3667, %v3859
      %v3861 = vpop.f32.mrb[0].mxu0
      %v3862 = vadd.f32 %v3669, %v3861
      %v3863 = vpop.f32.mrb[0].mxu0
      %v3864 = vadd.f32 %v3671, %v3863
      %v3865 = vpop.f32.mrb[0].mxu0
      %v3866 = vadd.f32 %v3673, %v3865
      %3867 = vmatprep.mubr.bf16.mxu0 %v1551
      %3868 = vmatmul.mubr.bf16.gmra.mrb[0].mxu0 %v1550
      %v3869 = vpop.f32.mrb[0].mxu0
      %v3870 = vadd.f32 %v3677, %v3869
      %v3871 = vpop.f32.mrb[0].mxu0
      %v3872 = vadd.f32 %v3679, %v3871
      %v3873 = vpop.f32.mrb[0].mxu0
      %v3874 = vadd.f32 %v3681, %v3873
      %v3875 = vpop.f32.mrb[0].mxu0
      %v3876 = vadd.f32 %v3683, %v3875
      %3877 = vmatprep.mubr.bf16.mxu0 %v1565
      %3878 = vmatmul.mubr.bf16.gmra.mrb[0].mxu0 %v1564
      %v3879 = vpop.f32.mrb[0].mxu0
      %v3880 = vadd.f32 %v3687, %v3879
      %v3881 = vpop.f32.mrb[0].mxu0
      %v3882 = vadd.f32 %v3689, %v3881
      %v3883 = vpop.f32.mrb[0].mxu0
      %v3884 = vadd.f32 %v3691, %v3883
      %v3885 = vpop.f32.mrb[0].mxu0
      %v3886 = vadd.f32 %v3693, %v3885
      %3887 = vmatprep.mubr.bf16.mxu0 %v1579
      %3888 = vmatmul.mubr.bf16.gmra.mrb[0].mxu0 %v1578
      %v3889 = vpop.f32.mrb[0].mxu0
      %v3890 = vadd.f32 %v3697, %v3889
      %v3891 = vpop.f32.mrb[0].mxu0
      %v3892 = vadd.f32 %v3699, %v3891
      %v3893 = vpop.f32.mrb[0].mxu0
      %v3894 = vadd.f32 %v3701, %v3893
      %v3895 = vpop.f32.mrb[0].mxu0
      %v3896 = vadd.f32 %v3703, %v3895
      %3897 = vmatprep.mubr.bf16.mxu0 %v1593
      %3898 = vmatmul.mubr.bf16.gmra.mrb[0].mxu0 %v1592
      %v3899 = vpop.f32.mrb[0].mxu0
      %v3900 = vadd.f32 %v3707, %v3899
      %v3901 = vpop.f32.mrb[0].mxu0
      %v3902 = vadd.f32 %v3709, %v3901
      %v3903 = vpop.f32.mrb[0].mxu0
      %v3904 = vadd.f32 %v3711, %v3903
      %v3905 = vpop.f32.mrb[0].mxu0
      %v3906 = vadd.f32 %v3713, %v3905
      %3907 = vmatprep.mubr.bf16.mxu0 %v1607
      %3908 = vmatmul.mubr.bf16.gmra.mrb[0].mxu0 %v1606
      %v3909 = vpop.f32.mrb[0].mxu0
      %v3910 = vadd.f32 %v3717, %v3909
      %v3911 = vpop.f32.mrb[0].mxu0
      %v3912 = vadd.f32 %v3719, %v3911
      %v3913 = vpop.f32.mrb[0].mxu0
      %v3914 = vadd.f32 %v3721, %v3913
      %v3915 = vpop.f32.mrb[0].mxu0
      %v3916 = vadd.f32 %v3723, %v3915
      %3917 = vmatprep.mubr.bf16.mxu0 %v1621
      %3918 = vmatmul.mubr.bf16.gmra.mrb[0].mxu0 %v1620
      %v3919 = vpop.f32.mrb[0].mxu0
      %v3920 = vadd.f32 %v3727, %v3919
      %v3921 = vpop.f32.mrb[0].mxu0
      %v3922 = vadd.f32 %v3729, %v3921
      %v3923 = vpop.f32.mrb[0].mxu0
      %v3924 = vadd.f32 %v3731, %v3923
      %v3925 = vpop.f32.mrb[0].mxu0
      %v3926 = vadd.f32 %v3733, %v3925
      %3927 = vdwg.mxu0
      %3928 = vmatprep.subr.bf16.mxu0 %v2643
      %3929 = vmatpush1.bf16.msra.mxu0 %v2642
      %3930 = vmatprep.subr.bf16.mxu0 %v2645
      %3931 = vmatpush1.bf16.msra.mxu0 %v2644
      %3932 = vmatprep.subr.bf16.mxu0 %v2647
      %3933 = vmatpush1.bf16.msra.mxu0 %v2646
      %3934 = vmatprep.subr.bf16.mxu0 %v2649
      %3935 = vmatpush1.bf16.msra.mxu0 %v2648
      %3936 = vmatprep.subr.bf16.mxu0 %v2651
      %3937 = vmatpush1.bf16.msra.mxu0 %v2650
      %3938 = vmatprep.subr.bf16.mxu0 %v2653
      %3939 = vmatpush1.bf16.msra.mxu0 %v2652
      %3940 = vmatprep.subr.bf16.mxu0 %v2655
      %3941 = vmatpush1.bf16.msra.mxu0 %v2654
      %3942 = vmatprep.subr.bf16.mxu0 %v2657
      %3943 = vmatpush1.bf16.msra.mxu0 %v2656
      %3944 = vmatprep.subr.bf16.mxu0 %v2659
      %3945 = vmatpush1.bf16.msra.mxu0 %v2658
      %3946 = vmatprep.subr.bf16.mxu0 %v2661
      %3947 = vmatpush1.bf16.msra.mxu0 %v2660
      %3948 = vmatprep.subr.bf16.mxu0 %v2663
      %3949 = vmatpush1.bf16.msra.mxu0 %v2662
      %3950 = vmatprep.subr.bf16.mxu0 %v2665
      %3951 = vmatpush1.bf16.msra.mxu0 %v2664
      %3952 = vmatprep.subr.bf16.mxu0 %v2667
      %3953 = vmatpush1.bf16.msra.mxu0 %v2666
      %3954 = vmatprep.subr.bf16.mxu0 %v2669
      %3955 = vmatpush1.bf16.msra.mxu0 %v2668
      %3956 = vmatprep.subr.bf16.mxu0 %v2671
      %3957 = vmatpush1.bf16.msra.mxu0 %v2670
      %3958 = vmatprep.subr.bf16.mxu0 %v2673
      %3959 = vmatpush1.bf16.msra.mxu0 %v2672
      %3960 = vmatprep.mubr.bf16.mxu0 %v1413
      %3961 = vmatmul.mubr.bf16.gmra.mrb[0].mxu0 %v1412
      %v3962 = vpop.f32.mrb[0].mxu0
      %v3963 = vadd.f32 %v3770, %v3962
      %v3964 = vpop.f32.mrb[0].mxu0
      %v3965 = vadd.f32 %v3772, %v3964
      %v3966 = vpop.f32.mrb[0].mxu0
      %v3967 = vadd.f32 %v3774, %v3966
      %v3968 = vpop.f32.mrb[0].mxu0
      %v3969 = vadd.f32 %v3776, %v3968
      %3970 = vmatprep.mubr.bf16.mxu0 %v1427
      %3971 = vmatmul.mubr.bf16.gmra.mrb[0].mxu0 %v1426
      %v3972 = vpop.f32.mrb[0].mxu0
      %v3973 = vadd.f32 %v3780, %v3972
      %v3974 = vpop.f32.mrb[0].mxu0
      %v3975 = vadd.f32 %v3782, %v3974
      %v3976 = vpop.f32.mrb[0].mxu0
      %v3977 = vadd.f32 %v3784, %v3976
      %v3978 = vpop.f32.mrb[0].mxu0
      %v3979 = vadd.f32 %v3786, %v3978
      %3980 = vmatprep.mubr.bf16.mxu0 %v1441
      %3981 = vmatmul.mubr.bf16.gmra.mrb[0].mxu0 %v1440
      %v3982 = vpop.f32.mrb[0].mxu0
      %v3983 = vadd.f32 %v3790, %v3982
      %v3984 = vpop.f32.mrb[0].mxu0
      %v3985 = vadd.f32 %v3792, %v3984
      %v3986 = vpop.f32.mrb[0].mxu0
      %v3987 = vadd.f32 %v3794, %v3986
      %v3988 = vpop.f32.mrb[0].mxu0
      %v3989 = vadd.f32 %v3796, %v3988
      %3990 = vmatprep.mubr.bf16.mxu0 %v1455
      %3991 = vmatmul.mubr.bf16.gmra.mrb[0].mxu0 %v1454
      %v3992 = vpop.f32.mrb[0].mxu0
      %v3993 = vadd.f32 %v3800, %v3992
      %v3994 = vpop.f32.mrb[0].mxu0
      %v3995 = vadd.f32 %v3802, %v3994
      %v3996 = vpop.f32.mrb[0].mxu0
      %v3997 = vadd.f32 %v3804, %v3996
      %v3998 = vpop.f32.mrb[0].mxu0
      %v3999 = vadd.f32 %v3806, %v3998
      %4000 = vmatprep.mubr.bf16.mxu0 %v1469
      %4001 = vmatmul.mubr.bf16.gmra.mrb[0].mxu0 %v1468
      %v4002 = vpop.f32.mrb[0].mxu0
      %v4003 = vadd.f32 %v3810, %v4002
      %v4004 = vpop.f32.mrb[0].mxu0
      %v4005 = vadd.f32 %v3812, %v4004
      %v4006 = vpop.f32.mrb[0].mxu0
      %v4007 = vadd.f32 %v3814, %v4006
      %v4008 = vpop.f32.mrb[0].mxu0
      %v4009 = vadd.f32 %v3816, %v4008
      %4010 = vmatprep.mubr.bf16.mxu0 %v1483
      %4011 = vmatmul.mubr.bf16.gmra.mrb[0].mxu0 %v1482
      %v4012 = vpop.f32.mrb[0].mxu0
      %v4013 = vadd.f32 %v3820, %v4012
      %v4014 = vpop.f32.mrb[0].mxu0
      %v4015 = vadd.f32 %v3822, %v4014
      %v4016 = vpop.f32.mrb[0].mxu0
      %v4017 = vadd.f32 %v3824, %v4016
      %v4018 = vpop.f32.mrb[0].mxu0
      %v4019 = vadd.f32 %v3826, %v4018
      %4020 = vmatprep.mubr.bf16.mxu0 %v1497
      %4021 = vmatmul.mubr.bf16.gmra.mrb[0].mxu0 %v1496
      %v4022 = vpop.f32.mrb[0].mxu0
      %v4023 = vadd.f32 %v3830, %v4022
      %v4024 = vpop.f32.mrb[0].mxu0
      %v4025 = vadd.f32 %v3832, %v4024
      %v4026 = vpop.f32.mrb[0].mxu0
      %v4027 = vadd.f32 %v3834, %v4026
      %v4028 = vpop.f32.mrb[0].mxu0
      %v4029 = vadd.f32 %v3836, %v4028
      %4030 = vmatprep.mubr.bf16.mxu0 %v1511
      %4031 = vmatmul.mubr.bf16.gmra.mrb[0].mxu0 %v1510
      %v4032 = vpop.f32.mrb[0].mxu0
      %v4033 = vadd.f32 %v3840, %v4032
      %v4034 = vpop.f32.mrb[0].mxu0
      %v4035 = vadd.f32 %v3842, %v4034
      %v4036 = vpop.f32.mrb[0].mxu0
      %v4037 = vadd.f32 %v3844, %v4036
      %v4038 = vpop.f32.mrb[0].mxu0
      %v4039 = vadd.f32 %v3846, %v4038
      %4040 = vmatprep.mubr.bf16.mxu0 %v1525
      %4041 = vmatmul.mubr.bf16.gmra.mrb[0].mxu0 %v1524
      %v4042 = vpop.f32.mrb[0].mxu0
      %v4043 = vadd.f32 %v3850, %v4042
      %v4044 = vpop.f32.mrb[0].mxu0
      %v4045 = vadd.f32 %v3852, %v4044
      %v4046 = vpop.f32.mrb[0].mxu0
      %v4047 = vadd.f32 %v3854, %v4046
      %v4048 = vpop.f32.mrb[0].mxu0
      %v4049 = vadd.f32 %v3856, %v4048
      %4050 = vmatprep.mubr.bf16.mxu0 %v1539
      %4051 = vmatmul.mubr.bf16.gmra.mrb[0].mxu0 %v1538
      %v4052 = vpop.f32.mrb[0].mxu0
      %v4053 = vadd.f32 %v3860, %v4052
      %v4054 = vpop.f32.mrb[0].mxu0
      %v4055 = vadd.f32 %v3862, %v4054
      %v4056 = vpop.f32.mrb[0].mxu0
      %v4057 = vadd.f32 %v3864, %v4056
      %v4058 = vpop.f32.mrb[0].mxu0
      %v4059 = vadd.f32 %v3866, %v4058
      %4060 = vmatprep.mubr.bf16.mxu0 %v1553
      %4061 = vmatmul.mubr.bf16.gmra.mrb[0].mxu0 %v1552
      %v4062 = vpop.f32.mrb[0].mxu0
      %v4063 = vadd.f32 %v3870, %v4062
      %v4064 = vpop.f32.mrb[0].mxu0
      %v4065 = vadd.f32 %v3872, %v4064
      %v4066 = vpop.f32.mrb[0].mxu0
      %v4067 = vadd.f32 %v3874, %v4066
      %v4068 = vpop.f32.mrb[0].mxu0
      %v4069 = vadd.f32 %v3876, %v4068
      %4070 = vmatprep.mubr.bf16.mxu0 %v1567
      %4071 = vmatmul.mubr.bf16.gmra.mrb[0].mxu0 %v1566
      %v4072 = vpop.f32.mrb[0].mxu0
      %v4073 = vadd.f32 %v3880, %v4072
      %v4074 = vpop.f32.mrb[0].mxu0
      %v4075 = vadd.f32 %v3882, %v4074
      %v4076 = vpop.f32.mrb[0].mxu0
      %v4077 = vadd.f32 %v3884, %v4076
      %v4078 = vpop.f32.mrb[0].mxu0
      %v4079 = vadd.f32 %v3886, %v4078
      %4080 = vmatprep.mubr.bf16.mxu0 %v1581
      %4081 = vmatmul.mubr.bf16.gmra.mrb[0].mxu0 %v1580
      %v4082 = vpop.f32.mrb[0].mxu0
      %v4083 = vadd.f32 %v3890, %v4082
      %v4084 = vpop.f32.mrb[0].mxu0
      %v4085 = vadd.f32 %v3892, %v4084
      %v4086 = vpop.f32.mrb[0].mxu0
      %v4087 = vadd.f32 %v3894, %v4086
      %v4088 = vpop.f32.mrb[0].mxu0
      %v4089 = vadd.f32 %v3896, %v4088
      %4090 = vmatprep.mubr.bf16.mxu0 %v1595
      %4091 = vmatmul.mubr.bf16.gmra.mrb[0].mxu0 %v1594
      %v4092 = vpop.f32.mrb[0].mxu0
      %v4093 = vadd.f32 %v3900, %v4092
      %v4094 = vpop.f32.mrb[0].mxu0
      %v4095 = vadd.f32 %v3902, %v4094
      %v4096 = vpop.f32.mrb[0].mxu0
      %v4097 = vadd.f32 %v3904, %v4096
      %v4098 = vpop.f32.mrb[0].mxu0
      %v4099 = vadd.f32 %v3906, %v4098
      %4100 = vmatprep.mubr.bf16.mxu0 %v1609
      %4101 = vmatmul.mubr.bf16.gmra.mrb[0].mxu0 %v1608
      %v4102 = vpop.f32.mrb[0].mxu0
      %v4103 = vadd.f32 %v3910, %v4102
      %v4104 = vpop.f32.mrb[0].mxu0
      %v4105 = vadd.f32 %v3912, %v4104
      %v4106 = vpop.f32.mrb[0].mxu0
      %v4107 = vadd.f32 %v3914, %v4106
      %v4108 = vpop.f32.mrb[0].mxu0
      %v4109 = vadd.f32 %v3916, %v4108
      %4110 = vmatprep.mubr.bf16.mxu0 %v1623
      %4111 = vmatmul.mubr.bf16.gmra.mrb[0].mxu0 %v1622
      %v4112 = vpop.f32.mrb[0].mxu0
      %v4113 = vadd.f32 %v3920, %v4112
      %v4114 = vpop.f32.mrb[0].mxu0
      %v4115 = vadd.f32 %v3922, %v4114
      %v4116 = vpop.f32.mrb[0].mxu0
      %v4117 = vadd.f32 %v3924, %v4116
      %v4118 = vpop.f32.mrb[0].mxu0
      %v4119 = vadd.f32 %v3926, %v4118
      %4120 = vdwg.mxu0
      %4121 = vmatprep.subr.bf16.mxu0 %v2675
      %4122 = vmatpush1.bf16.msra.mxu0 %v2674
      %4123 = vmatprep.subr.bf16.mxu0 %v2677
      %4124 = vmatpush1.bf16.msra.mxu0 %v2676
      %4125 = vmatprep.subr.bf16.mxu0 %v2679
      %4126 = vmatpush1.bf16.msra.mxu0 %v2678
      %4127 = vmatprep.subr.bf16.mxu0 %v2681
      %4128 = vmatpush1.bf16.msra.mxu0 %v2680
      %4129 = vmatprep.subr.bf16.mxu0 %v2683
      %4130 = vmatpush1.bf16.msra.mxu0 %v2682
      %4131 = vmatprep.subr.bf16.mxu0 %v2685
      %4132 = vmatpush1.bf16.msra.mxu0 %v2684
      %4133 = vmatprep.subr.bf16.mxu0 %v2687
      %4134 = vmatpush1.bf16.msra.mxu0 %v2686
      %4135 = vmatprep.subr.bf16.mxu0 %v2689
      %4136 = vmatpush1.bf16.msra.mxu0 %v2688
      %4137 = vmatprep.subr.bf16.mxu0 %v2691
      %4138 = vmatpush1.bf16.msra.mxu0 %v2690
      %4139 = vmatprep.subr.bf16.mxu0 %v2693
      %4140 = vmatpush1.bf16.msra.mxu0 %v2692
      %4141 = vmatprep.subr.bf16.mxu0 %v2695
      %4142 = vmatpush1.bf16.msra.mxu0 %v2694
      %4143 = vmatprep.subr.bf16.mxu0 %v2697
      %4144 = vmatpush1.bf16.msra.mxu0 %v2696
      %4145 = vmatprep.subr.bf16.mxu0 0
      %4146 = vmatpush1.bf16.msra.mxu0 0
      %4147 = vmatprep.subr.bf16.mxu0 0
      %4148 = vmatpush1.bf16.msra.mxu0 0
      %4149 = vmatprep.subr.bf16.mxu0 0
      %4150 = vmatpush1.bf16.msra.mxu0 0
      %4151 = vmatprep.subr.bf16.mxu0 0
      %4152 = vmatpush1.bf16.msra.mxu0 0
      %4153 = vmatprep.mubr.bf16.mxu0 %v2916
      %4154 = vmatmul.mubr.bf16.gmra.mrb[0].mxu0 %v1414
      %v4155 = vpop.f32.mrb[0].mxu0
      %v4156 = vadd.f32 %v3963, %v4155
      %v4157 = vpop.f32.mrb[0].mxu0
      %v4158 = vadd.f32 %v3965, %v4157
      %v4159 = vpop.f32.mrb[0].mxu0
      %v4160 = vadd.f32 %v3967, %v4159
      %v4161 = vpop.f32.mrb[0].mxu0
      %v4162 = vadd.f32 %v3969, %v4161
      %4163 = vmatprep.mubr.bf16.mxu0 %v2919
      %4164 = vmatmul.mubr.bf16.gmra.mrb[0].mxu0 %v1428
      %v4165 = vpop.f32.mrb[0].mxu0
      %v4166 = vadd.f32 %v3973, %v4165
      %v4167 = vpop.f32.mrb[0].mxu0
      %v4168 = vadd.f32 %v3975, %v4167
      %v4169 = vpop.f32.mrb[0].mxu0
      %v4170 = vadd.f32 %v3977, %v4169
      %v4171 = vpop.f32.mrb[0].mxu0
      %v4172 = vadd.f32 %v3979, %v4171
      %4173 = vmatprep.mubr.bf16.mxu0 %v2922
      %4174 = vmatmul.mubr.bf16.gmra.mrb[0].mxu0 %v1442
      %v4175 = vpop.f32.mrb[0].mxu0
      %v4176 = vadd.f32 %v3983, %v4175
      %v4177 = vpop.f32.mrb[0].mxu0
      %v4178 = vadd.f32 %v3985, %v4177
      %v4179 = vpop.f32.mrb[0].mxu0
      %v4180 = vadd.f32 %v3987, %v4179
      %v4181 = vpop.f32.mrb[0].mxu0
      %v4182 = vadd.f32 %v3989, %v4181
      %4183 = vmatprep.mubr.bf16.mxu0 %v2925
      %4184 = vmatmul.mubr.bf16.gmra.mrb[0].mxu0 %v1456
      %v4185 = vpop.f32.mrb[0].mxu0
      %v4186 = vadd.f32 %v3993, %v4185
      %v4187 = vpop.f32.mrb[0].mxu0
      %v4188 = vadd.f32 %v3995, %v4187
      %v4189 = vpop.f32.mrb[0].mxu0
      %v4190 = vadd.f32 %v3997, %v4189
      %v4191 = vpop.f32.mrb[0].mxu0
      %v4192 = vadd.f32 %v3999, %v4191
      %4193 = vmatprep.mubr.bf16.mxu0 %v2928
      %4194 = vmatmul.mubr.bf16.gmra.mrb[0].mxu0 %v1470
      %v4195 = vpop.f32.mrb[0].mxu0
      %v4196 = vadd.f32 %v4003, %v4195
      %v4197 = vpop.f32.mrb[0].mxu0
      %v4198 = vadd.f32 %v4005, %v4197
      %v4199 = vpop.f32.mrb[0].mxu0
      %v4200 = vadd.f32 %v4007, %v4199
      %v4201 = vpop.f32.mrb[0].mxu0
      %v4202 = vadd.f32 %v4009, %v4201
      %4203 = vmatprep.mubr.bf16.mxu0 %v2931
      %4204 = vmatmul.mubr.bf16.gmra.mrb[0].mxu0 %v1484
      %v4205 = vpop.f32.mrb[0].mxu0
      %v4206 = vadd.f32 %v4013, %v4205
      %v4207 = vpop.f32.mrb[0].mxu0
      %v4208 = vadd.f32 %v4015, %v4207
      %v4209 = vpop.f32.mrb[0].mxu0
      %v4210 = vadd.f32 %v4017, %v4209
      %v4211 = vpop.f32.mrb[0].mxu0
      %v4212 = vadd.f32 %v4019, %v4211
      %4213 = vmatprep.mubr.bf16.mxu0 %v2934
      %4214 = vmatmul.mubr.bf16.gmra.mrb[0].mxu0 %v1498
      %v4215 = vpop.f32.mrb[0].mxu0
      %v4216 = vadd.f32 %v4023, %v4215
      %v4217 = vpop.f32.mrb[0].mxu0
      %v4218 = vadd.f32 %v4025, %v4217
      %v4219 = vpop.f32.mrb[0].mxu0
      %v4220 = vadd.f32 %v4027, %v4219
      %v4221 = vpop.f32.mrb[0].mxu0
      %v4222 = vadd.f32 %v4029, %v4221
      %4223 = vmatprep.mubr.bf16.mxu0 %v2937
      %4224 = vmatmul.mubr.bf16.gmra.mrb[0].mxu0 %v1512
      %v4225 = vpop.f32.mrb[0].mxu0
      %v4226 = vadd.f32 %v4033, %v4225
      %v4227 = vpop.f32.mrb[0].mxu0
      %v4228 = vadd.f32 %v4035, %v4227
      %v4229 = vpop.f32.mrb[0].mxu0
      %v4230 = vadd.f32 %v4037, %v4229
      %v4231 = vpop.f32.mrb[0].mxu0
      %v4232 = vadd.f32 %v4039, %v4231
      %4233 = vmatprep.mubr.bf16.mxu0 %v2940
      %4234 = vmatmul.mubr.bf16.gmra.mrb[0].mxu0 %v1526
      %v4235 = vpop.f32.mrb[0].mxu0
      %v4236 = vadd.f32 %v4043, %v4235
      %v4237 = vpop.f32.mrb[0].mxu0
      %v4238 = vadd.f32 %v4045, %v4237
      %v4239 = vpop.f32.mrb[0].mxu0
      %v4240 = vadd.f32 %v4047, %v4239
      %v4241 = vpop.f32.mrb[0].mxu0
      %v4242 = vadd.f32 %v4049, %v4241
      %4243 = vmatprep.mubr.bf16.mxu0 %v2943
      %4244 = vmatmul.mubr.bf16.gmra.mrb[0].mxu0 %v1540
      %v4245 = vpop.f32.mrb[0].mxu0
      %v4246 = vadd.f32 %v4053, %v4245
      %v4247 = vpop.f32.mrb[0].mxu0
      %v4248 = vadd.f32 %v4055, %v4247
      %v4249 = vpop.f32.mrb[0].mxu0
      %v4250 = vadd.f32 %v4057, %v4249
      %v4251 = vpop.f32.mrb[0].mxu0
      %v4252 = vadd.f32 %v4059, %v4251
      %4253 = vmatprep.mubr.bf16.mxu0 %v2946
      %4254 = vmatmul.mubr.bf16.gmra.mrb[0].mxu0 %v1554
      %v4255 = vpop.f32.mrb[0].mxu0
      %v4256 = vadd.f32 %v4063, %v4255
      %v4257 = vpop.f32.mrb[0].mxu0
      %v4258 = vadd.f32 %v4065, %v4257
      %v4259 = vpop.f32.mrb[0].mxu0
      %v4260 = vadd.f32 %v4067, %v4259
      %v4261 = vpop.f32.mrb[0].mxu0
      %v4262 = vadd.f32 %v4069, %v4261
      %4263 = vmatprep.mubr.bf16.mxu0 %v2949
      %4264 = vmatmul.mubr.bf16.gmra.mrb[0].mxu0 %v1568
      %v4265 = vpop.f32.mrb[0].mxu0
      %v4266 = vadd.f32 %v4073, %v4265
      %v4267 = vpop.f32.mrb[0].mxu0
      %v4268 = vadd.f32 %v4075, %v4267
      %v4269 = vpop.f32.mrb[0].mxu0
      %v4270 = vadd.f32 %v4077, %v4269
      %v4271 = vpop.f32.mrb[0].mxu0
      %v4272 = vadd.f32 %v4079, %v4271
      %4273 = vmatprep.mubr.bf16.mxu0 %v2952
      %4274 = vmatmul.mubr.bf16.gmra.mrb[0].mxu0 %v1582
      %v4275 = vpop.f32.mrb[0].mxu0
      %v4276 = vadd.f32 %v4083, %v4275
      %v4277 = vpop.f32.mrb[0].mxu0
      %v4278 = vadd.f32 %v4085, %v4277
      %v4279 = vpop.f32.mrb[0].mxu0
      %v4280 = vadd.f32 %v4087, %v4279
      %v4281 = vpop.f32.mrb[0].mxu0
      %v4282 = vadd.f32 %v4089, %v4281
      %4283 = vmatprep.mubr.bf16.mxu0 %v2955
      %4284 = vmatmul.mubr.bf16.gmra.mrb[0].mxu0 %v1596
      %v4285 = vpop.f32.mrb[0].mxu0
      %v4286 = vadd.f32 %v4093, %v4285
      %v4287 = vpop.f32.mrb[0].mxu0
      %v4288 = vadd.f32 %v4095, %v4287
      %v4289 = vpop.f32.mrb[0].mxu0
      %v4290 = vadd.f32 %v4097, %v4289
      %v4291 = vpop.f32.mrb[0].mxu0
      %v4292 = vadd.f32 %v4099, %v4291
      %4293 = vmatprep.mubr.bf16.mxu0 %v2958
      %4294 = vmatmul.mubr.bf16.gmra.mrb[0].mxu0 %v1610
      %v4295 = vpop.f32.mrb[0].mxu0
      %v4296 = vadd.f32 %v4103, %v4295
      %v4297 = vpop.f32.mrb[0].mxu0
      %v4298 = vadd.f32 %v4105, %v4297
      %v4299 = vpop.f32.mrb[0].mxu0
      %v4300 = vadd.f32 %v4107, %v4299
      %v4301 = vpop.f32.mrb[0].mxu0
      %v4302 = vadd.f32 %v4109, %v4301
      %4303 = vmatprep.mubr.bf16.mxu0 %v2961
      %4304 = vmatmul.mubr.bf16.gmra.mrb[0].mxu0 %v1624
      %v4305 = vpop.f32.mrb[0].mxu0
      %v4306 = vadd.f32 %v4113, %v4305
      %v4307 = vpop.f32.mrb[0].mxu0
      %v4308 = vadd.f32 %v4115, %v4307
      %v4309 = vpop.f32.mrb[0].mxu0
      %v4310 = vadd.f32 %v4117, %v4309
      %v4311 = vpop.f32.mrb[0].mxu0
      %v4312 = vadd.f32 %v4119, %v4311
      %4313 = vdwg.mxu0
      %v4314 = vld [vmem:[%s270] sm:$0x3]
      %v4316 = vlaneseq
      %v4317 = vshrl.u32 %v4316, 7
      %v4318 = vsub.s32 0, %v4317
      %v4319 = vrot.slane %v4314, %v4318
      %v4320 = vlaneseq
      %v4321 = vshrl.u32 %v4320, 7
      %v4322 = vsub.s32 1, %v4321
      %v4323 = vrot.slane %v4314, %v4322
      %v4326 = vmul.f32 %v4156, %v4319
      %v4327 = vmul.f32 %v4158, %v4323
      %v4328 = vmul.f32 %v4160, %v4319
      %v4329 = vmul.f32 %v4162, %v4323
      %v4330 = vmul.f32 %v4166, %v4319
      %v4331 = vmul.f32 %v4168, %v4323
      %v4332 = vmul.f32 %v4170, %v4319
      %v4333 = vmul.f32 %v4172, %v4323
      %v4334 = vmul.f32 %v4176, %v4319
      %v4335 = vmul.f32 %v4178, %v4323
      %v4336 = vmul.f32 %v4180, %v4319
      %v4337 = vmul.f32 %v4182, %v4323
      %v4338 = vmul.f32 %v4186, %v4319
      %v4339 = vmul.f32 %v4188, %v4323
      %v4340 = vmul.f32 %v4190, %v4319
      %v4341 = vmul.f32 %v4192, %v4323
      %v4342 = vmul.f32 %v4196, %v4319
      %v4343 = vmul.f32 %v4198, %v4323
      %v4344 = vmul.f32 %v4200, %v4319
      %v4345 = vmul.f32 %v4202, %v4323
      %v4346 = vmul.f32 %v4206, %v4319
      %v4347 = vmul.f32 %v4208, %v4323
      %v4348 = vmul.f32 %v4210, %v4319
      %v4349 = vmul.f32 %v4212, %v4323
      %v4350 = vmul.f32 %v4216, %v4319
      %v4351 = vmul.f32 %v4218, %v4323
      %v4352 = vmul.f32 %v4220, %v4319
      %v4353 = vmul.f32 %v4222, %v4323
      %v4354 = vmul.f32 %v4226, %v4319
      %v4355 = vmul.f32 %v4228, %v4323
      %v4356 = vmul.f32 %v4230, %v4319
      %v4357 = vmul.f32 %v4232, %v4323
      %v4358 = vmul.f32 %v4236, %v4319
      %v4359 = vmul.f32 %v4238, %v4323
      %v4360 = vmul.f32 %v4240, %v4319
      %v4361 = vmul.f32 %v4242, %v4323
      %v4362 = vmul.f32 %v4246, %v4319
      %v4363 = vmul.f32 %v4248, %v4323
      %v4364 = vmul.f32 %v4250, %v4319
      %v4365 = vmul.f32 %v4252, %v4323
      %v4366 = vmul.f32 %v4256, %v4319
      %v4367 = vmul.f32 %v4258, %v4323
      %v4368 = vmul.f32 %v4260, %v4319
      %v4369 = vmul.f32 %v4262, %v4323
      %v4370 = vmul.f32 %v4266, %v4319
      %v4371 = vmul.f32 %v4268, %v4323
      %v4372 = vmul.f32 %v4270, %v4319
      %v4373 = vmul.f32 %v4272, %v4323
      %v4374 = vmul.f32 %v4276, %v4319
      %v4375 = vmul.f32 %v4278, %v4323
      %v4376 = vmul.f32 %v4280, %v4319
      %v4377 = vmul.f32 %v4282, %v4323
      %v4378 = vmul.f32 %v4286, %v4319
      %v4379 = vmul.f32 %v4288, %v4323
      %v4380 = vmul.f32 %v4290, %v4319
      %v4381 = vmul.f32 %v4292, %v4323
      %v4382 = vmul.f32 %v4296, %v4319
      %v4383 = vmul.f32 %v4298, %v4323
      %v4384 = vmul.f32 %v4300, %v4319
      %v4385 = vmul.f32 %v4302, %v4323
      %v4386 = vmul.f32 %v4306, %v4319
      %v4387 = vmul.f32 %v4308, %v4323
      %v4388 = vmul.f32 %v4310, %v4319
      %v4389 = vmul.f32 %v4312, %v4323
      %v4390 = vld [vmem:[%s275] sm:$0x3]
      %v4392 = vlaneseq
      %v4393 = vshrl.u32 %v4392, 7
      %v4394 = vsub.s32 0, %v4393
      %v4395 = vrot.slane %v4390, %v4394
      %v4396 = vlaneseq
      %v4397 = vshrl.u32 %v4396, 7
      %v4398 = vsub.s32 1, %v4397
      %v4399 = vrot.slane %v4390, %v4398
      %v4402 = vadd.f32 %v4326, %v4395
      %v4403 = vadd.f32 %v4327, %v4399
      %v4404 = vadd.f32 %v4328, %v4395
      %v4405 = vadd.f32 %v4329, %v4399
      %v4406 = vadd.f32 %v4330, %v4395
      %v4407 = vadd.f32 %v4331, %v4399
      %v4408 = vadd.f32 %v4332, %v4395
      %v4409 = vadd.f32 %v4333, %v4399
      %v4410 = vadd.f32 %v4334, %v4395
      %v4411 = vadd.f32 %v4335, %v4399
      %v4412 = vadd.f32 %v4336, %v4395
      %v4413 = vadd.f32 %v4337, %v4399
      %v4414 = vadd.f32 %v4338, %v4395
      %v4415 = vadd.f32 %v4339, %v4399
      %v4416 = vadd.f32 %v4340, %v4395
      %v4417 = vadd.f32 %v4341, %v4399
      %v4418 = vadd.f32 %v4342, %v4395
      %v4419 = vadd.f32 %v4343, %v4399
      %v4420 = vadd.f32 %v4344, %v4395
      %v4421 = vadd.f32 %v4345, %v4399
      %v4422 = vadd.f32 %v4346, %v4395
      %v4423 = vadd.f32 %v4347, %v4399
      %v4424 = vadd.f32 %v4348, %v4395
      %v4425 = vadd.f32 %v4349, %v4399
      %v4426 = vadd.f32 %v4350, %v4395
      %v4427 = vadd.f32 %v4351, %v4399
      %v4428 = vadd.f32 %v4352, %v4395
      %v4429 = vadd.f32 %v4353, %v4399
      %v4430 = vadd.f32 %v4354, %v4395
      %v4431 = vadd.f32 %v4355, %v4399
      %v4432 = vadd.f32 %v4356, %v4395
      %v4433 = vadd.f32 %v4357, %v4399
      %v4434 = vadd.f32 %v4358, %v4395
      %v4435 = vadd.f32 %v4359, %v4399
      %v4436 = vadd.f32 %v4360, %v4395
      %v4437 = vadd.f32 %v4361, %v4399
      %v4438 = vadd.f32 %v4362, %v4395
      %v4439 = vadd.f32 %v4363, %v4399
      %v4440 = vadd.f32 %v4364, %v4395
      %v4441 = vadd.f32 %v4365, %v4399
      %v4442 = vadd.f32 %v4366, %v4395
      %v4443 = vadd.f32 %v4367, %v4399
      %v4444 = vadd.f32 %v4368, %v4395
      %v4445 = vadd.f32 %v4369, %v4399
      %v4446 = vadd.f32 %v4370, %v4395
      %v4447 = vadd.f32 %v4371, %v4399
      %v4448 = vadd.f32 %v4372, %v4395
      %v4449 = vadd.f32 %v4373, %v4399
      %v4450 = vadd.f32 %v4374, %v4395
      %v4451 = vadd.f32 %v4375, %v4399
      %v4452 = vadd.f32 %v4376, %v4395
      %v4453 = vadd.f32 %v4377, %v4399
      %v4454 = vadd.f32 %v4378, %v4395
      %v4455 = vadd.f32 %v4379, %v4399
      %v4456 = vadd.f32 %v4380, %v4395
      %v4457 = vadd.f32 %v4381, %v4399
      %v4458 = vadd.f32 %v4382, %v4395
      %v4459 = vadd.f32 %v4383, %v4399
      %v4460 = vadd.f32 %v4384, %v4395
      %v4461 = vadd.f32 %v4385, %v4399
      %v4462 = vadd.f32 %v4386, %v4395
      %v4463 = vadd.f32 %v4387, %v4399
      %v4464 = vadd.f32 %v4388, %v4395
      %v4465 = vadd.f32 %v4389, %v4399
      %v4466 = vmax.f32 %v4402, 0.0
      %v4467 = vmax.f32 %v4403, 0.0
      %v4468 = vmax.f32 %v4404, 0.0
      %v4469 = vmax.f32 %v4405, 0.0
      %v4470 = vmax.f32 %v4406, 0.0
      %v4471 = vmax.f32 %v4407, 0.0
      %v4472 = vmax.f32 %v4408, 0.0
      %v4473 = vmax.f32 %v4409, 0.0
      %v4474 = vmax.f32 %v4410, 0.0
      %v4475 = vmax.f32 %v4411, 0.0
      %v4476 = vmax.f32 %v4412, 0.0
      %v4477 = vmax.f32 %v4413, 0.0
      %v4478 = vmax.f32 %v4414, 0.0
      %v4479 = vmax.f32 %v4415, 0.0
      %v4480 = vmax.f32 %v4416, 0.0
      %v4481 = vmax.f32 %v4417, 0.0
      %v4482 = vmax.f32 %v4418, 0.0
      %v4483 = vmax.f32 %v4419, 0.0
      %v4484 = vmax.f32 %v4420, 0.0
      %v4485 = vmax.f32 %v4421, 0.0
      %v4486 = vmax.f32 %v4422, 0.0
      %v4487 = vmax.f32 %v4423, 0.0
      %v4488 = vmax.f32 %v4424, 0.0
      %v4489 = vmax.f32 %v4425, 0.0
      %v4490 = vmax.f32 %v4426, 0.0
      %v4491 = vmax.f32 %v4427, 0.0
      %v4492 = vmax.f32 %v4428, 0.0
      %v4493 = vmax.f32 %v4429, 0.0
      %v4494 = vmax.f32 %v4430, 0.0
      %v4495 = vmax.f32 %v4431, 0.0
      %v4496 = vmax.f32 %v4432, 0.0
      %v4497 = vmax.f32 %v4433, 0.0
      %v4498 = vmax.f32 %v4434, 0.0
      %v4499 = vmax.f32 %v4435, 0.0
      %v4500 = vmax.f32 %v4436, 0.0
      %v4501 = vmax.f32 %v4437, 0.0
      %v4502 = vmax.f32 %v4438, 0.0
      %v4503 = vmax.f32 %v4439, 0.0
      %v4504 = vmax.f32 %v4440, 0.0
      %v4505 = vmax.f32 %v4441, 0.0
      %v4506 = vmax.f32 %v4442, 0.0
      %v4507 = vmax.f32 %v4443, 0.0
      %v4508 = vmax.f32 %v4444, 0.0
      %v4509 = vmax.f32 %v4445, 0.0
      %v4510 = vmax.f32 %v4446, 0.0
      %v4511 = vmax.f32 %v4447, 0.0
      %v4512 = vmax.f32 %v4448, 0.0
      %v4513 = vmax.f32 %v4449, 0.0
      %v4514 = vmax.f32 %v4450, 0.0
      %v4515 = vmax.f32 %v4451, 0.0
      %v4516 = vmax.f32 %v4452, 0.0
      %v4517 = vmax.f32 %v4453, 0.0
      %v4518 = vmax.f32 %v4454, 0.0
      %v4519 = vmax.f32 %v4455, 0.0
      %v4520 = vmax.f32 %v4456, 0.0
      %v4521 = vmax.f32 %v4457, 0.0
      %v4522 = vmax.f32 %v4458, 0.0
      %v4523 = vmax.f32 %v4459, 0.0
      %v4524 = vmax.f32 %v4460, 0.0
      %v4525 = vmax.f32 %v4461, 0.0
      %v4526 = vmax.f32 %v4462, 0.0
      %v4527 = vmax.f32 %v4463, 0.0
      %v4528 = vmax.f32 %v4464, 0.0
      %v4529 = vmax.f32 %v4465, 0.0
      %v4530 = vpack.c.bf16 %v4468, %v4466
      %v4531 = vpack.c.bf16 %v4469, %v4467
      %v4532 = vpack.c.bf16 %v4472, %v4470
      %v4533 = vpack.c.bf16 %v4473, %v4471
      %v4534 = vpack.c.bf16 %v4476, %v4474
      %v4535 = vpack.c.bf16 %v4477, %v4475
      %v4536 = vpack.c.bf16 %v4480, %v4478
      %v4537 = vpack.c.bf16 %v4481, %v4479
      %v4538 = vpack.c.bf16 %v4484, %v4482
      %v4539 = vpack.c.bf16 %v4485, %v4483
      %v4540 = vpack.c.bf16 %v4488, %v4486
      %v4541 = vpack.c.bf16 %v4489, %v4487
      %v4542 = vpack.c.bf16 %v4492, %v4490
      %v4543 = vpack.c.bf16 %v4493, %v4491
      %v4544 = vpack.c.bf16 %v4496, %v4494
      %v4545 = vpack.c.bf16 %v4497, %v4495
      %v4546 = vpack.c.bf16 %v4500, %v4498
      %v4547 = vpack.c.bf16 %v4501, %v4499
      %v4548 = vpack.c.bf16 %v4504, %v4502
      %v4549 = vpack.c.bf16 %v4505, %v4503
      %v4550 = vpack.c.bf16 %v4508, %v4506
      %v4551 = vpack.c.bf16 %v4509, %v4507
      %v4552 = vpack.c.bf16 %v4512, %v4510
      %v4553 = vpack.c.bf16 %v4513, %v4511
      %v4554 = vpack.c.bf16 %v4516, %v4514
      %v4555 = vpack.c.bf16 %v4517, %v4515
      %v4556 = vpack.c.bf16 %v4520, %v4518
      %v4557 = vpack.c.bf16 %v4521, %v4519
      %v4558 = vpack.c.bf16 %v4524, %v4522
      %v4559 = vpack.c.bf16 %v4525, %v4523
      %v4560 = vpack.c.bf16 %v4528, %v4526
      %v4561 = vpack.c.bf16 %v4529, %v4527
      %v4594 = vunpack.c.l.b16 %v4530
      %v4595 = vunpack.c.l.b16 %v4531
      %v4596 = vunpack.c.h.b16 %v4530
      %v4597 = vunpack.c.h.b16 %v4531
      %v4598 = vunpack.c.l.b16 %v4532
      %v4599 = vunpack.c.l.b16 %v4533
      %v4600 = vunpack.c.h.b16 %v4532
      %v4601 = vunpack.c.h.b16 %v4533
      %v4602 = vunpack.c.l.b16 %v4534
      %v4603 = vunpack.c.l.b16 %v4535
      %v4604 = vunpack.c.h.b16 %v4534
      %v4605 = vunpack.c.h.b16 %v4535
      %v4606 = vunpack.c.l.b16 %v4536
      %v4607 = vunpack.c.l.b16 %v4537
      %v4608 = vunpack.c.h.b16 %v4536
      %v4609 = vunpack.c.h.b16 %v4537
      %v4610 = vunpack.c.l.b16 %v4538
      %v4611 = vunpack.c.l.b16 %v4539
      %v4612 = vunpack.c.h.b16 %v4538
      %v4613 = vunpack.c.h.b16 %v4539
      %v4614 = vunpack.c.l.b16 %v4540
      %v4615 = vunpack.c.l.b16 %v4541
      %v4616 = vunpack.c.h.b16 %v4540
      %v4617 = vunpack.c.h.b16 %v4541
      %v4618 = vunpack.c.l.b16 %v4542
      %v4619 = vunpack.c.l.b16 %v4543
      %v4620 = vunpack.c.h.b16 %v4542
      %v4621 = vunpack.c.h.b16 %v4543
      %v4622 = vunpack.c.l.b16 %v4544
      %v4623 = vunpack.c.l.b16 %v4545
      %v4624 = vunpack.c.h.b16 %v4544
      %v4625 = vunpack.c.h.b16 %v4545
      %v4626 = vunpack.c.l.b16 %v4546
      %v4627 = vunpack.c.l.b16 %v4547
      %v4628 = vunpack.c.h.b16 %v4546
      %v4629 = vunpack.c.h.b16 %v4547
      %v4630 = vunpack.c.l.b16 %v4548
      %v4631 = vunpack.c.l.b16 %v4549
      %v4632 = vunpack.c.h.b16 %v4548
      %v4633 = vunpack.c.h.b16 %v4549
      %v4634 = vunpack.c.l.b16 %v4550
      %v4635 = vunpack.c.l.b16 %v4551
      %v4636 = vunpack.c.h.b16 %v4550
      %v4637 = vunpack.c.h.b16 %v4551
      %v4638 = vunpack.c.l.b16 %v4552
      %v4639 = vunpack.c.l.b16 %v4553
      %v4640 = vunpack.c.h.b16 %v4552
      %v4641 = vunpack.c.h.b16 %v4553
      %v4642 = vunpack.c.l.b16 %v4554
      %v4643 = vunpack.c.l.b16 %v4555
      %v4644 = vunpack.c.h.b16 %v4554
      %v4645 = vunpack.c.h.b16 %v4555
      %v4646 = vunpack.c.l.b16 %v4556
      %v4647 = vunpack.c.l.b16 %v4557
      %v4648 = vunpack.c.h.b16 %v4556
      %v4649 = vunpack.c.h.b16 %v4557
      %v4650 = vunpack.c.l.b16 %v4558
      %v4651 = vunpack.c.l.b16 %v4559
      %v4652 = vunpack.c.h.b16 %v4558
      %v4653 = vunpack.c.h.b16 %v4559
      %v4654 = vunpack.c.l.b16 %v4560
      %v4655 = vunpack.c.l.b16 %v4561
      %v4656 = vunpack.c.h.b16 %v4560
      %v4657 = vunpack.c.h.b16 %v4561
      %v4658 = vpack.c.b16 %v4595, %v4594
      %v4659 = vpack.c.b16 %v4597, %v4596
      %v4660 = vpack.c.b16 %v4599, %v4598
      %v4661 = vpack.c.b16 %v4601, %v4600
      %v4662 = vpack.c.b16 %v4603, %v4602
      %v4663 = vpack.c.b16 %v4605, %v4604
      %v4664 = vpack.c.b16 %v4607, %v4606
      %v4665 = vpack.c.b16 %v4609, %v4608
      %v4666 = vpack.c.b16 %v4611, %v4610
      %v4667 = vpack.c.b16 %v4613, %v4612
      %v4668 = vpack.c.b16 %v4615, %v4614
      %v4669 = vpack.c.b16 %v4617, %v4616
      %v4670 = vpack.c.b16 %v4619, %v4618
      %v4671 = vpack.c.b16 %v4621, %v4620
      %v4672 = vpack.c.b16 %v4623, %v4622
      %v4673 = vpack.c.b16 %v4625, %v4624
      %v4674 = vpack.c.b16 %v4627, %v4626
      %v4675 = vpack.c.b16 %v4629, %v4628
      %v4676 = vpack.c.b16 %v4631, %v4630
      %v4677 = vpack.c.b16 %v4633, %v4632
      %v4678 = vpack.c.b16 %v4635, %v4634
      %v4679 = vpack.c.b16 %v4637, %v4636
      %v4680 = vpack.c.b16 %v4639, %v4638
      %v4681 = vpack.c.b16 %v4641, %v4640
      %v4682 = vpack.c.b16 %v4643, %v4642
      %v4683 = vpack.c.b16 %v4645, %v4644
      %v4684 = vpack.c.b16 %v4647, %v4646
      %v4685 = vpack.c.b16 %v4649, %v4648
      %v4686 = vpack.c.b16 %v4651, %v4650
      %v4687 = vpack.c.b16 %v4653, %v4652
      %v4688 = vpack.c.b16 %v4655, %v4654
      %v4689 = vpack.c.b16 %v4657, %v4656
      %4722 = vst [vmem:[%s286] sm:$0xff] %v4658
      %4723 = vst [vmem:[%s286 + $0x8] sm:$0xff] %v4659
      %4724 = vst [vmem:[%s286 + $0x10] sm:$0xff] %v4660
      %4725 = vst [vmem:[%s286 + $0x18] sm:$0xff] %v4661
      %4726 = vst [vmem:[%s286 + $0x20] sm:$0xff] %v4662
      %4727 = vst [vmem:[%s286 + $0x28] sm:$0xff] %v4663
      %4728 = vst [vmem:[%s286 + $0x30] sm:$0xff] %v4664
      %4729 = vst [vmem:[%s286 + $0x38] sm:$0xff] %v4665
      %4730 = vst [vmem:[%s286 + $0x40] sm:$0xff] %v4666
      %4731 = vst [vmem:[%s286 + $0x48] sm:$0xff] %v4667
      %4732 = vst [vmem:[%s286 + $0x50] sm:$0xff] %v4668
      %4733 = vst [vmem:[%s286 + $0x58] sm:$0xff] %v4669
      %4734 = vst [vmem:[%s286 + $0x60] sm:$0xff] %v4670
      %4735 = vst [vmem:[%s286 + $0x68] sm:$0xff] %v4671
      %4736 = vst [vmem:[%s286 + $0x70] sm:$0xff] %v4672
      %4737 = vst [vmem:[%s286 + $0x78] sm:$0xff] %v4673
      %4738 = vst [vmem:[%s286 + $0x80] sm:$0xff] %v4674
      %4739 = vst [vmem:[%s286 + $0x88] sm:$0xff] %v4675
      %4740 = vst [vmem:[%s286 + $0x90] sm:$0xff] %v4676
      %4741 = vst [vmem:[%s286 + $0x98] sm:$0xff] %v4677
      %4742 = vst [vmem:[%s286 + $0xa0] sm:$0xff] %v4678
      %4743 = vst [vmem:[%s286 + $0xa8] sm:$0xff] %v4679
      %4744 = vst [vmem:[%s286 + $0xb0] sm:$0xff] %v4680
      %4745 = vst [vmem:[%s286 + $0xb8] sm:$0xff] %v4681
      %4746 = vst [vmem:[%s286 + $0xc0] sm:$0xff] %v4682
      %4747 = vst [vmem:[%s286 + $0xc8] sm:$0xff] %v4683
      %4748 = vst [vmem:[%s286 + $0xd0] sm:$0xff] %v4684
      %4749 = vst [vmem:[%s286 + $0xd8] sm:$0xff] %v4685
      %4750 = vst [vmem:[%s286 + $0xe0] sm:$0xff] %v4686
      %4751 = vst [vmem:[%s286 + $0xe8] sm:$0xff] %v4687
      %4752 = vst [vmem:[%s286 + $0xf0] sm:$0xff] %v4688
      %4753 = vst [vmem:[%s286 + $0xf8] sm:$0xff] %v4689
      %s4754 = smul.u32 32, %s19
      %s4755 = smul.u32 2, %s20
      %p4756 = scmp.lt.s32.totalorder %s4754, 63
      %s4757 = scalar_select %p4756, %s4754, 63
      %p4758 = scmp.lt.s32.totalorder %s4755, 1
      %s4759 = scalar_select %p4758, %s4755, 1
      %s4760 = smul.addr %s4757, 2
      %s4761 = sadd.s32 %s4759, %s4760
      %s4762 = smul.addr %s4761, 4
      %s4763 = scalar_lea.vmem %s4, %s4762
      // Predicated region
      $region37: #{reduction_a_forward.7} parent=35 // pred_check
        %p4764 = pneg %p151
      $region38: #{reduction_a_forward.7} parent=35 // pred_check_branch
        %4766 = sbr.rel (%p4764) target = $region40
      $region39: #{reduction_a_forward.7} parent=35 // pred_region
        %s4767 = smul.u32 32, %s19
        %s4768 = smul.u32 2, %s20
      $region40: #{reduction_a_forward.7} parent=35 // pred_fallthru
        _
    $region36: #{reduction_a_forward.7} parent=5 // pred_fallthru
      _
    %p4769 = scmp.le.s32.totalorder 2, %s10
    // Predicated region
    $region41: #{reduction_a_forward.7} parent=5 // pred_check
      %p4770 = pneg %p4769
    $region42: #{reduction_a_forward.7} parent=5 // pred_check_branch
      %4772 = sbr.rel (%p4770) target = $region44
    $region43: #{reduction_a_forward.7} parent=5 // pred_region
      %s4773 = ssub.s32 %s10, 2
      // Predicated region
      $region45: #{reduction_a_forward.7} parent=43 // pred_check
        %p4774 = pneg %p157
      $region46: #{reduction_a_forward.7} parent=43 // pred_check_branch
        %4776 = sbr.rel (%p4774) target = $region48
      $region47: #{reduction_a_forward.7} parent=43 // pred_region
        %s4777 = smul.u32 32, %s21
        %s4778 = smul.u32 2, %s22
        %p4779 = scmp.lt.s32.totalorder %s4777, 63
        %s4780 = scalar_select %p4779, %s4777, 63
        %p4781 = scmp.lt.s32.totalorder %s4778, 1
        %s4782 = scalar_select %p4781, %s4778, 1
        %s4783 = smul.addr %s4780, 2
        %s4784 = sadd.s32 %s4782, %s4783
        %s4785 = smul.addr %s4784, 4
        %s4786 = scalar_lea.vmem %s4, %s4785
      $region48: #{reduction_a_forward.7} parent=43 // pred_fallthru
        _
    $region44: #{reduction_a_forward.7} parent=5 // pred_fallthru
      _
  $region6: #{reduction_a_forward.7} parent=0 // loop_footer
    %s14 = sadd.s32 1, %s10
  $region7: #{reduction_a_forward.7} parent=0 // loop_footer_branch
    %9 = sbr.rel target = $region3
  $region8: #{reduction_a_forward.7} parent=0 // loop_exit
    _

// kernel: reduction_a_forward.8
$region0: #{reduction_a_forward.8}
  #allocation0 [shape = 'u32[]', space=smem, size = 0x4, offset = 0x4, fixed_abs, tag = 'smem constant byte address 0x4 - core index']
  #allocation1 [shape = 'u32[144,128]{1,0:T(1,128)}', space=vmem, size = 0x12000, scoped, tag = 'internal scratch']
  %s0 = inlined_call_operand.vmem [shape: bf16[98,2016], index: 0, kind: input, shape index: {}]
  %s1 = inlined_call_operand.vmem [shape: bf16[2016,256], index: 1, kind: input, shape index: {}]
  %s2 = inlined_call_operand.vmem [shape: f32[1,256], index: 2, kind: input, shape index: {}]
  %s3 = inlined_call_operand.vmem [shape: f32[1,256], index: 3, kind: input, shape index: {}]
  %s4 = inlined_call_operand.vmem [shape: f32[98,256], index: 4, kind: output, shape index: {}]
  %s5 = sld [smem:[#allocation0]]
  $region124: #{reduction_a_forward.8} parent=0
    _
  %s7 = ssub.s32 1, %s5
  %s8 = scalar_select 0, %s7, %s5
  $region1: #{reduction_a_forward.8} parent=0
    #allocation2 [shape = 'u8[1032192]{0}', space=vmem, size = 0xfc000, scoped, tag = 'input window, operand 1']
    #allocation3 [shape = 'u8[106496]{0}', space=vmem, size = 0x1a000, scoped, tag = 'output window, operand 0']
    loop: start=0, step=1, limit=4
    $region2: #{reduction_a_forward.8} parent=1 // loop_pre_header
      _
    $region3: #{reduction_a_forward.8} parent=1 // loop_header
      %s10 = sphi 0, %s14
      %p11 = scmp.ge.s32.totalorder %s10, 4
      %s17 = sphi 0, %s29
      %s18 = sphi 0, %s25
      %s19 = sphi 0, %s17
      %s20 = sphi 0, %s18
      %s21 = sphi 0, %s19
      %s22 = sphi 0, %s20
      %s32 = sphi 0, %s34
      %s35 = sphi 0, %s32
      %s36 = sphi 0, %s35
      %s52 = sphi 0, %s36
      %s58 = sphi 0, %s60
      %s61 = sphi 0, %s58
      %s62 = sphi 0, %s61
      %s78 = sphi 0, %s62
      %s84 = sphi 0, %s86
      %s87 = sphi 0, %s84
      %s88 = sphi 0, %s87
      %s104 = sphi 0, %s88
      %s110 = sphi 0, %s112
      %s113 = sphi 0, %s110
      %s114 = sphi 0, %s113
      %s130 = sphi 0, %s114
      %s138 = sphi 0, %s140
      %s141 = sphi 0, %s138
      %s142 = sphi 0, %s141
      %s158 = sphi 0, %s142
    $region4: #{reduction_a_forward.8} parent=1 // loop_header_branch
      %13 = sbr.rel (%p11) target = $region8
    $region5: #{reduction_a_forward.8} parent=1 // loop_body
      %s15 = ssub.s32 %s10, 1
      %s16 = ssub.s32 %s10, 2
      %s23 = sadd.s32 1, %s18
      %p24 = scmp.ge.s32.totalorder %s23, 2
      %s25 = scalar_select %p24, 0, %s23
      %s26 = sadd.s32 1, %s17
      %s27 = scalar_select %p24, %s26, %s17
      %p28 = scmp.ge.s32.totalorder %s27, 1
      %s29 = scalar_select %p28, 0, %s27
      %s30 = ssub.s32 %s17, %s29
      %p31 = scmp.eq.s32.totalorder %s30, 0
      %s33 = sadd.s32 %s32, 1
      %s34 = scalar_select %p31, %s32, %s33
      %p37 = pneg %p31
      %p38 = scmp.eq.s32.totalorder %s10, 1
      %p39 = por %p37, %p38
      %p40 = scmp.ne.s32.totalorder %s32, %s35
      %p41 = scmp.eq.s32.totalorder %s10, 0
      %p42 = por %p40, %p41
      %p43 = scmp.ne.s32.totalorder %s32, %s35
      %p44 = scmp.eq.s32.totalorder %s15, 1
      %p45 = por %p43, %p44
      %p46 = scmp.ne.s32.totalorder %s35, %s36
      %p47 = scmp.eq.s32.totalorder %s15, 0
      %p48 = por %p46, %p47
      %p49 = scmp.ne.s32.totalorder %s35, %s36
      %p50 = scmp.eq.s32.totalorder %s16, 1
      %p51 = por %p49, %p50
      %p53 = scmp.ne.s32.totalorder %s36, %s52
      %p54 = scmp.eq.s32.totalorder %s16, 0
      %p55 = por %p53, %p54
      %s56 = ssub.s32 %s18, %s25
      %p57 = scmp.eq.s32.totalorder %s56, 0
      %s59 = sadd.s32 %s58, 1
      %s60 = scalar_select %p57, %s58, %s59
      %p63 = pneg %p57
      %p64 = scmp.eq.s32.totalorder %s10, 1
      %p65 = por %p63, %p64
      %p66 = scmp.ne.s32.totalorder %s58, %s61
      %p67 = scmp.eq.s32.totalorder %s10, 0
      %p68 = por %p66, %p67
      %p69 = scmp.ne.s32.totalorder %s58, %s61
      %p70 = scmp.eq.s32.totalorder %s15, 1
      %p71 = por %p69, %p70
      %p72 = scmp.ne.s32.totalorder %s61, %s62
      %p73 = scmp.eq.s32.totalorder %s15, 0
      %p74 = por %p72, %p73
      %p75 = scmp.ne.s32.totalorder %s61, %s62
      %p76 = scmp.eq.s32.totalorder %s16, 1
      %p77 = por %p75, %p76
      %p79 = scmp.ne.s32.totalorder %s62, %s78
      %p80 = scmp.eq.s32.totalorder %s16, 0
      %p81 = por %p79, %p80
      %s82 = ssub.s32 %s18, %s25
      %p83 = scmp.eq.s32.totalorder %s82, 0
      %s85 = sadd.s32 %s84, 1
      %s86 = scalar_select %p83, %s84, %s85
      %p89 = pneg %p83
      %p90 = scmp.eq.s32.totalorder %s10, 1
      %p91 = por %p89, %p90
      %p92 = scmp.ne.s32.totalorder %s84, %s87
      %p93 = scmp.eq.s32.totalorder %s10, 0
      %p94 = por %p92, %p93
      %p95 = scmp.ne.s32.totalorder %s84, %s87
      %p96 = scmp.eq.s32.totalorder %s15, 1
      %p97 = por %p95, %p96
      %p98 = scmp.ne.s32.totalorder %s87, %s88
      %p99 = scmp.eq.s32.totalorder %s15, 0
      %p100 = por %p98, %p99
      %p101 = scmp.ne.s32.totalorder %s87, %s88
      %p102 = scmp.eq.s32.totalorder %s16, 1
      %p103 = por %p101, %p102
      %p105 = scmp.ne.s32.totalorder %s88, %s104
      %p106 = scmp.eq.s32.totalorder %s16, 0
      %p107 = por %p105, %p106
      %s108 = ssub.s32 %s18, %s25
      %p109 = scmp.eq.s32.totalorder %s108, 0
      %s111 = sadd.s32 %s110, 1
      %s112 = scalar_select %p109, %s110, %s111
      %p115 = pneg %p109
      %p116 = scmp.eq.s32.totalorder %s10, 1
      %p117 = por %p115, %p116
      %p118 = scmp.ne.s32.totalorder %s110, %s113
      %p119 = scmp.eq.s32.totalorder %s10, 0
      %p120 = por %p118, %p119
      %p121 = scmp.ne.s32.totalorder %s110, %s113
      %p122 = scmp.eq.s32.totalorder %s15, 1
      %p123 = por %p121, %p122
      %p124 = scmp.ne.s32.totalorder %s113, %s114
      %p125 = scmp.eq.s32.totalorder %s15, 0
      %p126 = por %p124, %p125
      %p127 = scmp.ne.s32.totalorder %s113, %s114
      %p128 = scmp.eq.s32.totalorder %s16, 1
      %p129 = por %p127, %p128
      %p131 = scmp.ne.s32.totalorder %s114, %s130
      %p132 = scmp.eq.s32.totalorder %s16, 0
      %p133 = por %p131, %p132
      %s134 = ssub.s32 %s17, %s29
      %s135 = ssub.s32 %s18, %s25
      %s136 = sor.u32 %s134, %s135
      %p137 = scmp.eq.s32.totalorder %s136, 0
      %s139 = sadd.s32 %s138, 1
      %s140 = scalar_select %p137, %s138, %s139
      %p143 = pneg %p137
      %p144 = scmp.eq.s32.totalorder %s10, 1
      %p145 = por %p143, %p144
      %p146 = scmp.ne.s32.totalorder %s138, %s141
      %p147 = scmp.eq.s32.totalorder %s10, 0
      %p148 = por %p146, %p147
      %p149 = scmp.ne.s32.totalorder %s138, %s141
      %p150 = scmp.eq.s32.totalorder %s15, 1
      %p151 = por %p149, %p150
      %p152 = scmp.ne.s32.totalorder %s141, %s142
      %p153 = scmp.eq.s32.totalorder %s15, 0
      %p154 = por %p152, %p153
      %p155 = scmp.ne.s32.totalorder %s141, %s142
      %p156 = scmp.eq.s32.totalorder %s16, 1
      %p157 = por %p155, %p156
      %p159 = scmp.ne.s32.totalorder %s142, %s158
      %p160 = scmp.eq.s32.totalorder %s16, 0
      %p161 = por %p159, %p160
      %p162 = scmp.le.s32.totalorder 1, %s10
      %p163 = scmp.lt.s32.totalorder %s10, 3
      %p164 = pnand %p162, %p163
      %p165 = pneg %p164
      // Predicated region
      $region9: #{reduction_a_forward.8} parent=5 // pred_check
        _
      $region10: #{reduction_a_forward.8} parent=5 // pred_check_branch
        %167 = sbr.rel (%p164) target = $region12
      $region11: #{reduction_a_forward.8} parent=5 // pred_region
        %s168 = ssub.s32 %s10, 1
        // Predicated region
        $region13: #{reduction_a_forward.8} parent=11 // pred_check
          %p169 = pneg %p48
        $region14: #{reduction_a_forward.8} parent=11 // pred_check_branch
          %171 = sbr.rel (%p169) target = $region16
        $region15: #{reduction_a_forward.8} parent=11 // pred_region
          %s172 = smul.u32 13, %s19
          %p173 = scmp.lt.s32.totalorder %s172, 12
          %s174 = scalar_select %p173, %s172, 12
          %s175 = smul.addr %s174, 16
          %s176 = smul.addr %s175, 4
          %s177 = scalar_lea.vmem %s0, %s176
          %s178 = smul.u32 13, %s19
        $region16: #{reduction_a_forward.8} parent=11 // pred_fallthru
          _
      $region12: #{reduction_a_forward.8} parent=5 // pred_fallthru
        _
      %p179 = scmp.lt.s32.totalorder %s10, 2
      // Predicated region
      $region17: #{reduction_a_forward.8} parent=5 // pred_check
        %p180 = pneg %p179
      $region18: #{reduction_a_forward.8} parent=5 // pred_check_branch
        %182 = sbr.rel (%p180) target = $region20
      $region19: #{reduction_a_forward.8} parent=5 // pred_region
        // Predicated region
        $region21: #{reduction_a_forward.8} parent=19 // pred_check
          %p183 = pneg %p68
        $region22: #{reduction_a_forward.8} parent=19 // pred_check_branch
          %185 = sbr.rel (%p183) target = $region24
        $region23: #{reduction_a_forward.8} parent=19 // pred_region
          %s186 = sand.u32 %s58, 1
          %s187 = sand.u32 %s58, 1
          %s188 = smul.addr %s187, 1008
          %s189 = scalar_lea.vmem [#allocation2], %s188
          %s190 = smul.addr %s18, 4
          %s191 = scalar_lea.vmem %s1, %s190
          // Predicated region
          $region25: #{reduction_a_forward.8} parent=23 // pred_check
            _
          $region26: #{reduction_a_forward.8} parent=23 // pred_check_branch
            %193 = sbr.rel (0) target = $region28
          $region27: #{reduction_a_forward.8} parent=23 // pred_region
            // Predicated region
            $region29: #{reduction_a_forward.8} parent=27 // pred_check
              _
            $region30: #{reduction_a_forward.8} parent=27 // pred_check_branch
              %195 = sbr.rel target = $region32
            $region31: #{reduction_a_forward.8} parent=27 // pred_region
              // Predicated region
              $region44: #{reduction_a_forward.8} parent=31 // pred_check
                _
              $region45: #{reduction_a_forward.8} parent=31 // pred_check_branch
                %712 = sbr.rel (0) target = $region47
              $region46: #{reduction_a_forward.8} parent=31 // pred_region
                loop: start=0, step=1, limit=1
                $region48: #{reduction_a_forward.8} parent=46 // loop_pre_header
                  _
                $region49: #{reduction_a_forward.8} parent=46 // loop_header
                  %s714 = sphi 0, %s718
                  %p715 = scmp.ge.s32.totalorder %s714, 1
                  %s719 = sphi %s191, %s191
                  %s720 = sphi %s189, %s189
                $region50: #{reduction_a_forward.8} parent=46 // loop_header_branch
                  %717 = sbr.rel (%p715) target = $region54
                $region51: #{reduction_a_forward.8} parent=46 // loop_body
                  _
                $region52: #{reduction_a_forward.8} parent=46 // loop_footer
                  %s718 = sadd.s32 1, %s714
                $region53: #{reduction_a_forward.8} parent=46 // loop_footer_branch
                  %713 = sbr.rel target = $region49
                $region54: #{reduction_a_forward.8} parent=46 // loop_exit
                  _
                loop: start=0, step=1, limit=1
                $region55: #{reduction_a_forward.8} parent=46 // loop_pre_header
                  _
                $region56: #{reduction_a_forward.8} parent=46 // loop_header
                  %s723 = sphi 0, %s727
                  %p724 = scmp.ge.s32.totalorder %s723, 1
                  %s728 = sphi %s191, %s191
                  %s729 = sphi %s189, %s189
                $region57: #{reduction_a_forward.8} parent=46 // loop_header_branch
                  %726 = sbr.rel (%p724) target = $region61
                $region58: #{reduction_a_forward.8} parent=46 // loop_body
                  %v730 = vld [vmem:[%s728] sm:$0xf]
                  %731 = vst [vmem:[%s729] sm:$0xf] %v730
                  %v732 = vld [vmem:[%s728 + $0x8] sm:$0xf]
                  %733 = vst [vmem:[%s729 + $0x4] sm:$0xf] %v732
                  %v734 = vld [vmem:[%s728 + $0x10] sm:$0xf]
                  %735 = vst [vmem:[%s729 + $0x8] sm:$0xf] %v734
                  %v736 = vld [vmem:[%s728 + $0x18] sm:$0xf]
                  %737 = vst [vmem:[%s729 + $0xc] sm:$0xf] %v736
                  %v738 = vld [vmem:[%s728 + $0x20] sm:$0xf]
                  %739 = vst [vmem:[%s729 + $0x10] sm:$0xf] %v738
                  %v740 = vld [vmem:[%s728 + $0x28] sm:$0xf]
                  %741 = vst [vmem:[%s729 + $0x14] sm:$0xf] %v740
                  %v742 = vld [vmem:[%s728 + $0x30] sm:$0xf]
                  %743 = vst [vmem:[%s729 + $0x18] sm:$0xf] %v742
                  %v744 = vld [vmem:[%s728 + $0x38] sm:$0xf]
                  %745 = vst [vmem:[%s729 + $0x1c] sm:$0xf] %v744
                  %v746 = vld [vmem:[%s728 + $0x40] sm:$0xf]
                  %747 = vst [vmem:[%s729 + $0x20] sm:$0xf] %v746
                  %v748 = vld [vmem:[%s728 + $0x48] sm:$0xf]
                  %749 = vst [vmem:[%s729 + $0x24] sm:$0xf] %v748
                  %v750 = vld [vmem:[%s728 + $0x50] sm:$0xf]
                  %751 = vst [vmem:[%s729 + $0x28] sm:$0xf] %v750
                  %v752 = vld [vmem:[%s728 + $0x58] sm:$0xf]
                  %753 = vst [vmem:[%s729 + $0x2c] sm:$0xf] %v752
                  %v754 = vld [vmem:[%s728 + $0x60] sm:$0xf]
                  %755 = vst [vmem:[%s729 + $0x30] sm:$0xf] %v754
                  %v756 = vld [vmem:[%s728 + $0x68] sm:$0xf]
                  %757 = vst [vmem:[%s729 + $0x34] sm:$0xf] %v756
                  %v758 = vld [vmem:[%s728 + $0x70] sm:$0xf]
                  %759 = vst [vmem:[%s729 + $0x38] sm:$0xf] %v758
                  %v760 = vld [vmem:[%s728 + $0x78] sm:$0xf]
                  %761 = vst [vmem:[%s729 + $0x3c] sm:$0xf] %v760
                  %v762 = vld [vmem:[%s728 + $0x80] sm:$0xf]
                  %763 = vst [vmem:[%s729 + $0x40] sm:$0xf] %v762
                  %v764 = vld [vmem:[%s728 + $0x88] sm:$0xf]
                  %765 = vst [vmem:[%s729 + $0x44] sm:$0xf] %v764
                  %v766 = vld [vmem:[%s728 + $0x90] sm:$0xf]
                  %767 = vst [vmem:[%s729 + $0x48] sm:$0xf] %v766
                  %v768 = vld [vmem:[%s728 + $0x98] sm:$0xf]
                  %769 = vst [vmem:[%s729 + $0x4c] sm:$0xf] %v768
                  %v770 = vld [vmem:[%s728 + $0xa0] sm:$0xf]
                  %771 = vst [vmem:[%s729 + $0x50] sm:$0xf] %v770
                  %v772 = vld [vmem:[%s728 + $0xa8] sm:$0xf]
                  %773 = vst [vmem:[%s729 + $0x54] sm:$0xf] %v772
                  %v774 = vld [vmem:[%s728 + $0xb0] sm:$0xf]
                  %775 = vst [vmem:[%s729 + $0x58] sm:$0xf] %v774
                  %v776 = vld [vmem:[%s728 + $0xb8] sm:$0xf]
                  %777 = vst [vmem:[%s729 + $0x5c] sm:$0xf] %v776
                  %v778 = vld [vmem:[%s728 + $0xc0] sm:$0xf]
                  %779 = vst [vmem:[%s729 + $0x60] sm:$0xf] %v778
                  %v780 = vld [vmem:[%s728 + $0xc8] sm:$0xf]
                  %781 = vst [vmem:[%s729 + $0x64] sm:$0xf] %v780
                  %v782 = vld [vmem:[%s728 + $0xd0] sm:$0xf]
                  %783 = vst [vmem:[%s729 + $0x68] sm:$0xf] %v782
                  %v784 = vld [vmem:[%s728 + $0xd8] sm:$0xf]
                  %785 = vst [vmem:[%s729 + $0x6c] sm:$0xf] %v784
                  %v786 = vld [vmem:[%s728 + $0xe0] sm:$0xf]
                  %787 = vst [vmem:[%s729 + $0x70] sm:$0xf] %v786
                  %v788 = vld [vmem:[%s728 + $0xe8] sm:$0xf]
                  %789 = vst [vmem:[%s729 + $0x74] sm:$0xf] %v788
                  %v790 = vld [vmem:[%s728 + $0xf0] sm:$0xf]
                  %791 = vst [vmem:[%s729 + $0x78] sm:$0xf] %v790
                  %v792 = vld [vmem:[%s728 + $0xf8] sm:$0xf]
                  %793 = vst [vmem:[%s729 + $0x7c] sm:$0xf] %v792
                  %v794 = vld [vmem:[%s728 + $0x100] sm:$0xf]
                  %795 = vst [vmem:[%s729 + $0x80] sm:$0xf] %v794
                  %v796 = vld [vmem:[%s728 + $0x108] sm:$0xf]
                  %797 = vst [vmem:[%s729 + $0x84] sm:$0xf] %v796
                  %v798 = vld [vmem:[%s728 + $0x110] sm:$0xf]
                  %799 = vst [vmem:[%s729 + $0x88] sm:$0xf] %v798
                  %v800 = vld [vmem:[%s728 + $0x118] sm:$0xf]
                  %801 = vst [vmem:[%s729 + $0x8c] sm:$0xf] %v800
                  %v802 = vld [vmem:[%s728 + $0x120] sm:$0xf]
                  %803 = vst [vmem:[%s729 + $0x90] sm:$0xf] %v802
                  %v804 = vld [vmem:[%s728 + $0x128] sm:$0xf]
                  %805 = vst [vmem:[%s729 + $0x94] sm:$0xf] %v804
                  %v806 = vld [vmem:[%s728 + $0x130] sm:$0xf]
                  %807 = vst [vmem:[%s729 + $0x98] sm:$0xf] %v806
                  %v808 = vld [vmem:[%s728 + $0x138] sm:$0xf]
                  %809 = vst [vmem:[%s729 + $0x9c] sm:$0xf] %v808
                  %v810 = vld [vmem:[%s728 + $0x140] sm:$0xf]
                  %811 = vst [vmem:[%s729 + $0xa0] sm:$0xf] %v810
                  %v812 = vld [vmem:[%s728 + $0x148] sm:$0xf]
                  %813 = vst [vmem:[%s729 + $0xa4] sm:$0xf] %v812
                  %v814 = vld [vmem:[%s728 + $0x150] sm:$0xf]
                  %815 = vst [vmem:[%s729 + $0xa8] sm:$0xf] %v814
                  %v816 = vld [vmem:[%s728 + $0x158] sm:$0xf]
                  %817 = vst [vmem:[%s729 + $0xac] sm:$0xf] %v816
                  %v818 = vld [vmem:[%s728 + $0x160] sm:$0xf]
                  %819 = vst [vmem:[%s729 + $0xb0] sm:$0xf] %v818
                  %v820 = vld [vmem:[%s728 + $0x168] sm:$0xf]
                  %821 = vst [vmem:[%s729 + $0xb4] sm:$0xf] %v820
                  %v822 = vld [vmem:[%s728 + $0x170] sm:$0xf]
                  %823 = vst [vmem:[%s729 + $0xb8] sm:$0xf] %v822
                  %v824 = vld [vmem:[%s728 + $0x178] sm:$0xf]
                  %825 = vst [vmem:[%s729 + $0xbc] sm:$0xf] %v824
                  %v826 = vld [vmem:[%s728 + $0x180] sm:$0xf]
                  %827 = vst [vmem:[%s729 + $0xc0] sm:$0xf] %v826
                  %v828 = vld [vmem:[%s728 + $0x188] sm:$0xf]
                  %829 = vst [vmem:[%s729 + $0xc4] sm:$0xf] %v828
                  %v830 = vld [vmem:[%s728 + $0x190] sm:$0xf]
                  %831 = vst [vmem:[%s729 + $0xc8] sm:$0xf] %v830
                  %v832 = vld [vmem:[%s728 + $0x198] sm:$0xf]
                  %833 = vst [vmem:[%s729 + $0xcc] sm:$0xf] %v832
                  %v834 = vld [vmem:[%s728 + $0x1a0] sm:$0xf]
                  %835 = vst [vmem:[%s729 + $0xd0] sm:$0xf] %v834
                  %v836 = vld [vmem:[%s728 + $0x1a8] sm:$0xf]
                  %837 = vst [vmem:[%s729 + $0xd4] sm:$0xf] %v836
                  %v838 = vld [vmem:[%s728 + $0x1b0] sm:$0xf]
                  %839 = vst [vmem:[%s729 + $0xd8] sm:$0xf] %v838
                  %v840 = vld [vmem:[%s728 + $0x1b8] sm:$0xf]
                  %841 = vst [vmem:[%s729 + $0xdc] sm:$0xf] %v840
                  %v842 = vld [vmem:[%s728 + $0x1c0] sm:$0xf]
                  %843 = vst [vmem:[%s729 + $0xe0] sm:$0xf] %v842
                  %v844 = vld [vmem:[%s728 + $0x1c8] sm:$0xf]
                  %845 = vst [vmem:[%s729 + $0xe4] sm:$0xf] %v844
                  %v846 = vld [vmem:[%s728 + $0x1d0] sm:$0xf]
                  %847 = vst [vmem:[%s729 + $0xe8] sm:$0xf] %v846
                  %v848 = vld [vmem:[%s728 + $0x1d8] sm:$0xf]
                  %849 = vst [vmem:[%s729 + $0xec] sm:$0xf] %v848
                  %v850 = vld [vmem:[%s728 + $0x1e0] sm:$0xf]
                  %851 = vst [vmem:[%s729 + $0xf0] sm:$0xf] %v850
                  %v852 = vld [vmem:[%s728 + $0x1e8] sm:$0xf]
                  %853 = vst [vmem:[%s729 + $0xf4] sm:$0xf] %v852
                  %v854 = vld [vmem:[%s728 + $0x1f0] sm:$0xf]
                  %855 = vst [vmem:[%s729 + $0xf8] sm:$0xf] %v854
                  %v856 = vld [vmem:[%s728 + $0x1f8] sm:$0xf]
                  %857 = vst [vmem:[%s729 + $0xfc] sm:$0xf] %v856
                  %v858 = vld [vmem:[%s728 + $0x200] sm:$0xf]
                  %859 = vst [vmem:[%s729 + $0x100] sm:$0xf] %v858
                  %v860 = vld [vmem:[%s728 + $0x208] sm:$0xf]
                  %861 = vst [vmem:[%s729 + $0x104] sm:$0xf] %v860
                  %v862 = vld [vmem:[%s728 + $0x210] sm:$0xf]
                  %863 = vst [vmem:[%s729 + $0x108] sm:$0xf] %v862
                  %v864 = vld [vmem:[%s728 + $0x218] sm:$0xf]
                  %865 = vst [vmem:[%s729 + $0x10c] sm:$0xf] %v864
                  %v866 = vld [vmem:[%s728 + $0x220] sm:$0xf]
                  %867 = vst [vmem:[%s729 + $0x110] sm:$0xf] %v866
                  %v868 = vld [vmem:[%s728 + $0x228] sm:$0xf]
                  %869 = vst [vmem:[%s729 + $0x114] sm:$0xf] %v868
                  %v870 = vld [vmem:[%s728 + $0x230] sm:$0xf]
                  %871 = vst [vmem:[%s729 + $0x118] sm:$0xf] %v870
                  %v872 = vld [vmem:[%s728 + $0x238] sm:$0xf]
                  %873 = vst [vmem:[%s729 + $0x11c] sm:$0xf] %v872
                  %v874 = vld [vmem:[%s728 + $0x240] sm:$0xf]
                  %875 = vst [vmem:[%s729 + $0x120] sm:$0xf] %v874
                  %v876 = vld [vmem:[%s728 + $0x248] sm:$0xf]
                  %877 = vst [vmem:[%s729 + $0x124] sm:$0xf] %v876
                  %v878 = vld [vmem:[%s728 + $0x250] sm:$0xf]
                  %879 = vst [vmem:[%s729 + $0x128] sm:$0xf] %v878
                  %v880 = vld [vmem:[%s728 + $0x258] sm:$0xf]
                  %881 = vst [vmem:[%s729 + $0x12c] sm:$0xf] %v880
                  %v882 = vld [vmem:[%s728 + $0x260] sm:$0xf]
                  %883 = vst [vmem:[%s729 + $0x130] sm:$0xf] %v882
                  %v884 = vld [vmem:[%s728 + $0x268] sm:$0xf]
                  %885 = vst [vmem:[%s729 + $0x134] sm:$0xf] %v884
                  %v886 = vld [vmem:[%s728 + $0x270] sm:$0xf]
                  %887 = vst [vmem:[%s729 + $0x138] sm:$0xf] %v886
                  %v888 = vld [vmem:[%s728 + $0x278] sm:$0xf]
                  %889 = vst [vmem:[%s729 + $0x13c] sm:$0xf] %v888
                  %v890 = vld [vmem:[%s728 + $0x280] sm:$0xf]
                  %891 = vst [vmem:[%s729 + $0x140] sm:$0xf] %v890
                  %v892 = vld [vmem:[%s728 + $0x288] sm:$0xf]
                  %893 = vst [vmem:[%s729 + $0x144] sm:$0xf] %v892
                  %v894 = vld [vmem:[%s728 + $0x290] sm:$0xf]
                  %895 = vst [vmem:[%s729 + $0x148] sm:$0xf] %v894
                  %v896 = vld [vmem:[%s728 + $0x298] sm:$0xf]
                  %897 = vst [vmem:[%s729 + $0x14c] sm:$0xf] %v896
                  %v898 = vld [vmem:[%s728 + $0x2a0] sm:$0xf]
                  %899 = vst [vmem:[%s729 + $0x150] sm:$0xf] %v898
                  %v900 = vld [vmem:[%s728 + $0x2a8] sm:$0xf]
                  %901 = vst [vmem:[%s729 + $0x154] sm:$0xf] %v900
                  %v902 = vld [vmem:[%s728 + $0x2b0] sm:$0xf]
                  %903 = vst [vmem:[%s729 + $0x158] sm:$0xf] %v902
                  %v904 = vld [vmem:[%s728 + $0x2b8] sm:$0xf]
                  %905 = vst [vmem:[%s729 + $0x15c] sm:$0xf] %v904
                  %v906 = vld [vmem:[%s728 + $0x2c0] sm:$0xf]
                  %907 = vst [vmem:[%s729 + $0x160] sm:$0xf] %v906
                  %v908 = vld [vmem:[%s728 + $0x2c8] sm:$0xf]
                  %909 = vst [vmem:[%s729 + $0x164] sm:$0xf] %v908
                  %v910 = vld [vmem:[%s728 + $0x2d0] sm:$0xf]
                  %911 = vst [vmem:[%s729 + $0x168] sm:$0xf] %v910
                  %v912 = vld [vmem:[%s728 + $0x2d8] sm:$0xf]
                  %913 = vst [vmem:[%s729 + $0x16c] sm:$0xf] %v912
                  %v914 = vld [vmem:[%s728 + $0x2e0] sm:$0xf]
                  %915 = vst [vmem:[%s729 + $0x170] sm:$0xf] %v914
                  %v916 = vld [vmem:[%s728 + $0x2e8] sm:$0xf]
                  %917 = vst [vmem:[%s729 + $0x174] sm:$0xf] %v916
                  %v918 = vld [vmem:[%s728 + $0x2f0] sm:$0xf]
                  %919 = vst [vmem:[%s729 + $0x178] sm:$0xf] %v918
                  %v920 = vld [vmem:[%s728 + $0x2f8] sm:$0xf]
                  %921 = vst [vmem:[%s729 + $0x17c] sm:$0xf] %v920
                  %v922 = vld [vmem:[%s728 + $0x300] sm:$0xf]
                  %923 = vst [vmem:[%s729 + $0x180] sm:$0xf] %v922
                  %v924 = vld [vmem:[%s728 + $0x308] sm:$0xf]
                  %925 = vst [vmem:[%s729 + $0x184] sm:$0xf] %v924
                  %v926 = vld [vmem:[%s728 + $0x310] sm:$0xf]
                  %927 = vst [vmem:[%s729 + $0x188] sm:$0xf] %v926
                  %v928 = vld [vmem:[%s728 + $0x318] sm:$0xf]
                  %929 = vst [vmem:[%s729 + $0x18c] sm:$0xf] %v928
                  %v930 = vld [vmem:[%s728 + $0x320] sm:$0xf]
                  %931 = vst [vmem:[%s729 + $0x190] sm:$0xf] %v930
                  %v932 = vld [vmem:[%s728 + $0x328] sm:$0xf]
                  %933 = vst [vmem:[%s729 + $0x194] sm:$0xf] %v932
                  %v934 = vld [vmem:[%s728 + $0x330] sm:$0xf]
                  %935 = vst [vmem:[%s729 + $0x198] sm:$0xf] %v934
                  %v936 = vld [vmem:[%s728 + $0x338] sm:$0xf]
                  %937 = vst [vmem:[%s729 + $0x19c] sm:$0xf] %v936
                  %v938 = vld [vmem:[%s728 + $0x340] sm:$0xf]
                  %939 = vst [vmem:[%s729 + $0x1a0] sm:$0xf] %v938
                  %v940 = vld [vmem:[%s728 + $0x348] sm:$0xf]
                  %941 = vst [vmem:[%s729 + $0x1a4] sm:$0xf] %v940
                  %v942 = vld [vmem:[%s728 + $0x350] sm:$0xf]
                  %943 = vst [vmem:[%s729 + $0x1a8] sm:$0xf] %v942
                  %v944 = vld [vmem:[%s728 + $0x358] sm:$0xf]
                  %945 = vst [vmem:[%s729 + $0x1ac] sm:$0xf] %v944
                  %v946 = vld [vmem:[%s728 + $0x360] sm:$0xf]
                  %947 = vst [vmem:[%s729 + $0x1b0] sm:$0xf] %v946
                  %v948 = vld [vmem:[%s728 + $0x368] sm:$0xf]
                  %949 = vst [vmem:[%s729 + $0x1b4] sm:$0xf] %v948
                  %v950 = vld [vmem:[%s728 + $0x370] sm:$0xf]
                  %951 = vst [vmem:[%s729 + $0x1b8] sm:$0xf] %v950
                  %v952 = vld [vmem:[%s728 + $0x378] sm:$0xf]
                  %953 = vst [vmem:[%s729 + $0x1bc] sm:$0xf] %v952
                  %v954 = vld [vmem:[%s728 + $0x380] sm:$0xf]
                  %955 = vst [vmem:[%s729 + $0x1c0] sm:$0xf] %v954
                  %v956 = vld [vmem:[%s728 + $0x388] sm:$0xf]
                  %957 = vst [vmem:[%s729 + $0x1c4] sm:$0xf] %v956
                  %v958 = vld [vmem:[%s728 + $0x390] sm:$0xf]
                  %959 = vst [vmem:[%s729 + $0x1c8] sm:$0xf] %v958
                  %v960 = vld [vmem:[%s728 + $0x398] sm:$0xf]
                  %961 = vst [vmem:[%s729 + $0x1cc] sm:$0xf] %v960
                  %v962 = vld [vmem:[%s728 + $0x3a0] sm:$0xf]
                  %963 = vst [vmem:[%s729 + $0x1d0] sm:$0xf] %v962
                  %v964 = vld [vmem:[%s728 + $0x3a8] sm:$0xf]
                  %965 = vst [vmem:[%s729 + $0x1d4] sm:$0xf] %v964
                  %v966 = vld [vmem:[%s728 + $0x3b0] sm:$0xf]
                  %967 = vst [vmem:[%s729 + $0x1d8] sm:$0xf] %v966
                  %v968 = vld [vmem:[%s728 + $0x3b8] sm:$0xf]
                  %969 = vst [vmem:[%s729 + $0x1dc] sm:$0xf] %v968
                  %v970 = vld [vmem:[%s728 + $0x3c0] sm:$0xf]
                  %971 = vst [vmem:[%s729 + $0x1e0] sm:$0xf] %v970
                  %v972 = vld [vmem:[%s728 + $0x3c8] sm:$0xf]
                  %973 = vst [vmem:[%s729 + $0x1e4] sm:$0xf] %v972
                  %v974 = vld [vmem:[%s728 + $0x3d0] sm:$0xf]
                  %975 = vst [vmem:[%s729 + $0x1e8] sm:$0xf] %v974
                  %v976 = vld [vmem:[%s728 + $0x3d8] sm:$0xf]
                  %977 = vst [vmem:[%s729 + $0x1ec] sm:$0xf] %v976
                  %v978 = vld [vmem:[%s728 + $0x3e0] sm:$0xf]
                  %979 = vst [vmem:[%s729 + $0x1f0] sm:$0xf] %v978
                  %v980 = vld [vmem:[%s728 + $0x3e8] sm:$0xf]
                  %981 = vst [vmem:[%s729 + $0x1f4] sm:$0xf] %v980
                  %v982 = vld [vmem:[%s728 + $0x3f0] sm:$0xf]
                  %983 = vst [vmem:[%s729 + $0x1f8] sm:$0xf] %v982
                  %v984 = vld [vmem:[%s728 + $0x3f8] sm:$0xf]
                  %985 = vst [vmem:[%s729 + $0x1fc] sm:$0xf] %v984
                  %v986 = vld [vmem:[%s728 + $0x400] sm:$0xf]
                  %987 = vst [vmem:[%s729 + $0x200] sm:$0xf] %v986
                  %v988 = vld [vmem:[%s728 + $0x408] sm:$0xf]
                  %989 = vst [vmem:[%s729 + $0x204] sm:$0xf] %v988
                  %v990 = vld [vmem:[%s728 + $0x410] sm:$0xf]
                  %991 = vst [vmem:[%s729 + $0x208] sm:$0xf] %v990
                  %v992 = vld [vmem:[%s728 + $0x418] sm:$0xf]
                  %993 = vst [vmem:[%s729 + $0x20c] sm:$0xf] %v992
                  %v994 = vld [vmem:[%s728 + $0x420] sm:$0xf]
                  %995 = vst [vmem:[%s729 + $0x210] sm:$0xf] %v994
                  %v996 = vld [vmem:[%s728 + $0x428] sm:$0xf]
                  %997 = vst [vmem:[%s729 + $0x214] sm:$0xf] %v996
                  %v998 = vld [vmem:[%s728 + $0x430] sm:$0xf]
                  %999 = vst [vmem:[%s729 + $0x218] sm:$0xf] %v998
                  %v1000 = vld [vmem:[%s728 + $0x438] sm:$0xf]
                  %1001 = vst [vmem:[%s729 + $0x21c] sm:$0xf] %v1000
                  %v1002 = vld [vmem:[%s728 + $0x440] sm:$0xf]
                  %1003 = vst [vmem:[%s729 + $0x220] sm:$0xf] %v1002
                  %v1004 = vld [vmem:[%s728 + $0x448] sm:$0xf]
                  %1005 = vst [vmem:[%s729 + $0x224] sm:$0xf] %v1004
                  %v1006 = vld [vmem:[%s728 + $0x450] sm:$0xf]
                  %1007 = vst [vmem:[%s729 + $0x228] sm:$0xf] %v1006
                  %v1008 = vld [vmem:[%s728 + $0x458] sm:$0xf]
                  %1009 = vst [vmem:[%s729 + $0x22c] sm:$0xf] %v1008
                  %v1010 = vld [vmem:[%s728 + $0x460] sm:$0xf]
                  %1011 = vst [vmem:[%s729 + $0x230] sm:$0xf] %v1010
                  %v1012 = vld [vmem:[%s728 + $0x468] sm:$0xf]
                  %1013 = vst [vmem:[%s729 + $0x234] sm:$0xf] %v1012
                  %v1014 = vld [vmem:[%s728 + $0x470] sm:$0xf]
                  %1015 = vst [vmem:[%s729 + $0x238] sm:$0xf] %v1014
                  %v1016 = vld [vmem:[%s728 + $0x478] sm:$0xf]
                  %1017 = vst [vmem:[%s729 + $0x23c] sm:$0xf] %v1016
                  %v1018 = vld [vmem:[%s728 + $0x480] sm:$0xf]
                  %1019 = vst [vmem:[%s729 + $0x240] sm:$0xf] %v1018
                  %v1020 = vld [vmem:[%s728 + $0x488] sm:$0xf]
                  %1021 = vst [vmem:[%s729 + $0x244] sm:$0xf] %v1020
                  %v1022 = vld [vmem:[%s728 + $0x490] sm:$0xf]
                  %1023 = vst [vmem:[%s729 + $0x248] sm:$0xf] %v1022
                  %v1024 = vld [vmem:[%s728 + $0x498] sm:$0xf]
                  %1025 = vst [vmem:[%s729 + $0x24c] sm:$0xf] %v1024
                  %v1026 = vld [vmem:[%s728 + $0x4a0] sm:$0xf]
                  %1027 = vst [vmem:[%s729 + $0x250] sm:$0xf] %v1026
                  %v1028 = vld [vmem:[%s728 + $0x4a8] sm:$0xf]
                  %1029 = vst [vmem:[%s729 + $0x254] sm:$0xf] %v1028
                  %v1030 = vld [vmem:[%s728 + $0x4b0] sm:$0xf]
                  %1031 = vst [vmem:[%s729 + $0x258] sm:$0xf] %v1030
                  %v1032 = vld [vmem:[%s728 + $0x4b8] sm:$0xf]
                  %1033 = vst [vmem:[%s729 + $0x25c] sm:$0xf] %v1032
                  %v1034 = vld [vmem:[%s728 + $0x4c0] sm:$0xf]
                  %1035 = vst [vmem:[%s729 + $0x260] sm:$0xf] %v1034
                  %v1036 = vld [vmem:[%s728 + $0x4c8] sm:$0xf]
                  %1037 = vst [vmem:[%s729 + $0x264] sm:$0xf] %v1036
                  %v1038 = vld [vmem:[%s728 + $0x4d0] sm:$0xf]
                  %1039 = vst [vmem:[%s729 + $0x268] sm:$0xf] %v1038
                  %v1040 = vld [vmem:[%s728 + $0x4d8] sm:$0xf]
                  %1041 = vst [vmem:[%s729 + $0x26c] sm:$0xf] %v1040
                  %v1042 = vld [vmem:[%s728 + $0x4e0] sm:$0xf]
                  %1043 = vst [vmem:[%s729 + $0x270] sm:$0xf] %v1042
                  %v1044 = vld [vmem:[%s728 + $0x4e8] sm:$0xf]
                  %1045 = vst [vmem:[%s729 + $0x274] sm:$0xf] %v1044
                  %v1046 = vld [vmem:[%s728 + $0x4f0] sm:$0xf]
                  %1047 = vst [vmem:[%s729 + $0x278] sm:$0xf] %v1046
                  %v1048 = vld [vmem:[%s728 + $0x4f8] sm:$0xf]
                  %1049 = vst [vmem:[%s729 + $0x27c] sm:$0xf] %v1048
                  %v1050 = vld [vmem:[%s728 + $0x500] sm:$0xf]
                  %1051 = vst [vmem:[%s729 + $0x280] sm:$0xf] %v1050
                  %v1052 = vld [vmem:[%s728 + $0x508] sm:$0xf]
                  %1053 = vst [vmem:[%s729 + $0x284] sm:$0xf] %v1052
                  %v1054 = vld [vmem:[%s728 + $0x510] sm:$0xf]
                  %1055 = vst [vmem:[%s729 + $0x288] sm:$0xf] %v1054
                  %v1056 = vld [vmem:[%s728 + $0x518] sm:$0xf]
                  %1057 = vst [vmem:[%s729 + $0x28c] sm:$0xf] %v1056
                  %v1058 = vld [vmem:[%s728 + $0x520] sm:$0xf]
                  %1059 = vst [vmem:[%s729 + $0x290] sm:$0xf] %v1058
                  %v1060 = vld [vmem:[%s728 + $0x528] sm:$0xf]
                  %1061 = vst [vmem:[%s729 + $0x294] sm:$0xf] %v1060
                  %v1062 = vld [vmem:[%s728 + $0x530] sm:$0xf]
                  %1063 = vst [vmem:[%s729 + $0x298] sm:$0xf] %v1062
                  %v1064 = vld [vmem:[%s728 + $0x538] sm:$0xf]
                  %1065 = vst [vmem:[%s729 + $0x29c] sm:$0xf] %v1064
                  %v1066 = vld [vmem:[%s728 + $0x540] sm:$0xf]
                  %1067 = vst [vmem:[%s729 + $0x2a0] sm:$0xf] %v1066
                  %v1068 = vld [vmem:[%s728 + $0x548] sm:$0xf]
                  %1069 = vst [vmem:[%s729 + $0x2a4] sm:$0xf] %v1068
                  %v1070 = vld [vmem:[%s728 + $0x550] sm:$0xf]
                  %1071 = vst [vmem:[%s729 + $0x2a8] sm:$0xf] %v1070
                  %v1072 = vld [vmem:[%s728 + $0x558] sm:$0xf]
                  %1073 = vst [vmem:[%s729 + $0x2ac] sm:$0xf] %v1072
                  %v1074 = vld [vmem:[%s728 + $0x560] sm:$0xf]
                  %1075 = vst [vmem:[%s729 + $0x2b0] sm:$0xf] %v1074
                  %v1076 = vld [vmem:[%s728 + $0x568] sm:$0xf]
                  %1077 = vst [vmem:[%s729 + $0x2b4] sm:$0xf] %v1076
                  %v1078 = vld [vmem:[%s728 + $0x570] sm:$0xf]
                  %1079 = vst [vmem:[%s729 + $0x2b8] sm:$0xf] %v1078
                  %v1080 = vld [vmem:[%s728 + $0x578] sm:$0xf]
                  %1081 = vst [vmem:[%s729 + $0x2bc] sm:$0xf] %v1080
                  %v1082 = vld [vmem:[%s728 + $0x580] sm:$0xf]
                  %1083 = vst [vmem:[%s729 + $0x2c0] sm:$0xf] %v1082
                  %v1084 = vld [vmem:[%s728 + $0x588] sm:$0xf]
                  %1085 = vst [vmem:[%s729 + $0x2c4] sm:$0xf] %v1084
                  %v1086 = vld [vmem:[%s728 + $0x590] sm:$0xf]
                  %1087 = vst [vmem:[%s729 + $0x2c8] sm:$0xf] %v1086
                  %v1088 = vld [vmem:[%s728 + $0x598] sm:$0xf]
                  %1089 = vst [vmem:[%s729 + $0x2cc] sm:$0xf] %v1088
                  %v1090 = vld [vmem:[%s728 + $0x5a0] sm:$0xf]
                  %1091 = vst [vmem:[%s729 + $0x2d0] sm:$0xf] %v1090
                  %v1092 = vld [vmem:[%s728 + $0x5a8] sm:$0xf]
                  %1093 = vst [vmem:[%s729 + $0x2d4] sm:$0xf] %v1092
                  %v1094 = vld [vmem:[%s728 + $0x5b0] sm:$0xf]
                  %1095 = vst [vmem:[%s729 + $0x2d8] sm:$0xf] %v1094
                  %v1096 = vld [vmem:[%s728 + $0x5b8] sm:$0xf]
                  %1097 = vst [vmem:[%s729 + $0x2dc] sm:$0xf] %v1096
                  %v1098 = vld [vmem:[%s728 + $0x5c0] sm:$0xf]
                  %1099 = vst [vmem:[%s729 + $0x2e0] sm:$0xf] %v1098
                  %v1100 = vld [vmem:[%s728 + $0x5c8] sm:$0xf]
                  %1101 = vst [vmem:[%s729 + $0x2e4] sm:$0xf] %v1100
                  %v1102 = vld [vmem:[%s728 + $0x5d0] sm:$0xf]
                  %1103 = vst [vmem:[%s729 + $0x2e8] sm:$0xf] %v1102
                  %v1104 = vld [vmem:[%s728 + $0x5d8] sm:$0xf]
                  %1105 = vst [vmem:[%s729 + $0x2ec] sm:$0xf] %v1104
                  %v1106 = vld [vmem:[%s728 + $0x5e0] sm:$0xf]
                  %1107 = vst [vmem:[%s729 + $0x2f0] sm:$0xf] %v1106
                  %v1108 = vld [vmem:[%s728 + $0x5e8] sm:$0xf]
                  %1109 = vst [vmem:[%s729 + $0x2f4] sm:$0xf] %v1108
                  %v1110 = vld [vmem:[%s728 + $0x5f0] sm:$0xf]
                  %1111 = vst [vmem:[%s729 + $0x2f8] sm:$0xf] %v1110
                  %v1112 = vld [vmem:[%s728 + $0x5f8] sm:$0xf]
                  %1113 = vst [vmem:[%s729 + $0x2fc] sm:$0xf] %v1112
                  %v1114 = vld [vmem:[%s728 + $0x600] sm:$0xf]
                  %1115 = vst [vmem:[%s729 + $0x300] sm:$0xf] %v1114
                  %v1116 = vld [vmem:[%s728 + $0x608] sm:$0xf]
                  %1117 = vst [vmem:[%s729 + $0x304] sm:$0xf] %v1116
                  %v1118 = vld [vmem:[%s728 + $0x610] sm:$0xf]
                  %1119 = vst [vmem:[%s729 + $0x308] sm:$0xf] %v1118
                  %v1120 = vld [vmem:[%s728 + $0x618] sm:$0xf]
                  %1121 = vst [vmem:[%s729 + $0x30c] sm:$0xf] %v1120
                  %v1122 = vld [vmem:[%s728 + $0x620] sm:$0xf]
                  %1123 = vst [vmem:[%s729 + $0x310] sm:$0xf] %v1122
                  %v1124 = vld [vmem:[%s728 + $0x628] sm:$0xf]
                  %1125 = vst [vmem:[%s729 + $0x314] sm:$0xf] %v1124
                  %v1126 = vld [vmem:[%s728 + $0x630] sm:$0xf]
                  %1127 = vst [vmem:[%s729 + $0x318] sm:$0xf] %v1126
                  %v1128 = vld [vmem:[%s728 + $0x638] sm:$0xf]
                  %1129 = vst [vmem:[%s729 + $0x31c] sm:$0xf] %v1128
                  %v1130 = vld [vmem:[%s728 + $0x640] sm:$0xf]
                  %1131 = vst [vmem:[%s729 + $0x320] sm:$0xf] %v1130
                  %v1132 = vld [vmem:[%s728 + $0x648] sm:$0xf]
                  %1133 = vst [vmem:[%s729 + $0x324] sm:$0xf] %v1132
                  %v1134 = vld [vmem:[%s728 + $0x650] sm:$0xf]
                  %1135 = vst [vmem:[%s729 + $0x328] sm:$0xf] %v1134
                  %v1136 = vld [vmem:[%s728 + $0x658] sm:$0xf]
                  %1137 = vst [vmem:[%s729 + $0x32c] sm:$0xf] %v1136
                  %v1138 = vld [vmem:[%s728 + $0x660] sm:$0xf]
                  %1139 = vst [vmem:[%s729 + $0x330] sm:$0xf] %v1138
                  %v1140 = vld [vmem:[%s728 + $0x668] sm:$0xf]
                  %1141 = vst [vmem:[%s729 + $0x334] sm:$0xf] %v1140
                  %v1142 = vld [vmem:[%s728 + $0x670] sm:$0xf]
                  %1143 = vst [vmem:[%s729 + $0x338] sm:$0xf] %v1142
                  %v1144 = vld [vmem:[%s728 + $0x678] sm:$0xf]
                  %1145 = vst [vmem:[%s729 + $0x33c] sm:$0xf] %v1144
                  %v1146 = vld [vmem:[%s728 + $0x680] sm:$0xf]
                  %1147 = vst [vmem:[%s729 + $0x340] sm:$0xf] %v1146
                  %v1148 = vld [vmem:[%s728 + $0x688] sm:$0xf]
                  %1149 = vst [vmem:[%s729 + $0x344] sm:$0xf] %v1148
                  %v1150 = vld [vmem:[%s728 + $0x690] sm:$0xf]
                  %1151 = vst [vmem:[%s729 + $0x348] sm:$0xf] %v1150
                  %v1152 = vld [vmem:[%s728 + $0x698] sm:$0xf]
                  %1153 = vst [vmem:[%s729 + $0x34c] sm:$0xf] %v1152
                  %v1154 = vld [vmem:[%s728 + $0x6a0] sm:$0xf]
                  %1155 = vst [vmem:[%s729 + $0x350] sm:$0xf] %v1154
                  %v1156 = vld [vmem:[%s728 + $0x6a8] sm:$0xf]
                  %1157 = vst [vmem:[%s729 + $0x354] sm:$0xf] %v1156
                  %v1158 = vld [vmem:[%s728 + $0x6b0] sm:$0xf]
                  %1159 = vst [vmem:[%s729 + $0x358] sm:$0xf] %v1158
                  %v1160 = vld [vmem:[%s728 + $0x6b8] sm:$0xf]
                  %1161 = vst [vmem:[%s729 + $0x35c] sm:$0xf] %v1160
                  %v1162 = vld [vmem:[%s728 + $0x6c0] sm:$0xf]
                  %1163 = vst [vmem:[%s729 + $0x360] sm:$0xf] %v1162
                  %v1164 = vld [vmem:[%s728 + $0x6c8] sm:$0xf]
                  %1165 = vst [vmem:[%s729 + $0x364] sm:$0xf] %v1164
                  %v1166 = vld [vmem:[%s728 + $0x6d0] sm:$0xf]
                  %1167 = vst [vmem:[%s729 + $0x368] sm:$0xf] %v1166
                  %v1168 = vld [vmem:[%s728 + $0x6d8] sm:$0xf]
                  %1169 = vst [vmem:[%s729 + $0x36c] sm:$0xf] %v1168
                  %v1170 = vld [vmem:[%s728 + $0x6e0] sm:$0xf]
                  %1171 = vst [vmem:[%s729 + $0x370] sm:$0xf] %v1170
                  %v1172 = vld [vmem:[%s728 + $0x6e8] sm:$0xf]
                  %1173 = vst [vmem:[%s729 + $0x374] sm:$0xf] %v1172
                  %v1174 = vld [vmem:[%s728 + $0x6f0] sm:$0xf]
                  %1175 = vst [vmem:[%s729 + $0x378] sm:$0xf] %v1174
                  %v1176 = vld [vmem:[%s728 + $0x6f8] sm:$0xf]
                  %1177 = vst [vmem:[%s729 + $0x37c] sm:$0xf] %v1176
                  %v1178 = vld [vmem:[%s728 + $0x700] sm:$0xf]
                  %1179 = vst [vmem:[%s729 + $0x380] sm:$0xf] %v1178
                  %v1180 = vld [vmem:[%s728 + $0x708] sm:$0xf]
                  %1181 = vst [vmem:[%s729 + $0x384] sm:$0xf] %v1180
                  %v1182 = vld [vmem:[%s728 + $0x710] sm:$0xf]
                  %1183 = vst [vmem:[%s729 + $0x388] sm:$0xf] %v1182
                  %v1184 = vld [vmem:[%s728 + $0x718] sm:$0xf]
                  %1185 = vst [vmem:[%s729 + $0x38c] sm:$0xf] %v1184
                  %v1186 = vld [vmem:[%s728 + $0x720] sm:$0xf]
                  %1187 = vst [vmem:[%s729 + $0x390] sm:$0xf] %v1186
                  %v1188 = vld [vmem:[%s728 + $0x728] sm:$0xf]
                  %1189 = vst [vmem:[%s729 + $0x394] sm:$0xf] %v1188
                  %v1190 = vld [vmem:[%s728 + $0x730] sm:$0xf]
                  %1191 = vst [vmem:[%s729 + $0x398] sm:$0xf] %v1190
                  %v1192 = vld [vmem:[%s728 + $0x738] sm:$0xf]
                  %1193 = vst [vmem:[%s729 + $0x39c] sm:$0xf] %v1192
                  %v1194 = vld [vmem:[%s728 + $0x740] sm:$0xf]
                  %1195 = vst [vmem:[%s729 + $0x3a0] sm:$0xf] %v1194
                  %v1196 = vld [vmem:[%s728 + $0x748] sm:$0xf]
                  %1197 = vst [vmem:[%s729 + $0x3a4] sm:$0xf] %v1196
                  %v1198 = vld [vmem:[%s728 + $0x750] sm:$0xf]
                  %1199 = vst [vmem:[%s729 + $0x3a8] sm:$0xf] %v1198
                  %v1200 = vld [vmem:[%s728 + $0x758] sm:$0xf]
                  %1201 = vst [vmem:[%s729 + $0x3ac] sm:$0xf] %v1200
                  %v1202 = vld [vmem:[%s728 + $0x760] sm:$0xf]
                  %1203 = vst [vmem:[%s729 + $0x3b0] sm:$0xf] %v1202
                  %v1204 = vld [vmem:[%s728 + $0x768] sm:$0xf]
                  %1205 = vst [vmem:[%s729 + $0x3b4] sm:$0xf] %v1204
                  %v1206 = vld [vmem:[%s728 + $0x770] sm:$0xf]
                  %1207 = vst [vmem:[%s729 + $0x3b8] sm:$0xf] %v1206
                  %v1208 = vld [vmem:[%s728 + $0x778] sm:$0xf]
                  %1209 = vst [vmem:[%s729 + $0x3bc] sm:$0xf] %v1208
                  %v1210 = vld [vmem:[%s728 + $0x780] sm:$0xf]
                  %1211 = vst [vmem:[%s729 + $0x3c0] sm:$0xf] %v1210
                  %v1212 = vld [vmem:[%s728 + $0x788] sm:$0xf]
                  %1213 = vst [vmem:[%s729 + $0x3c4] sm:$0xf] %v1212
                  %v1214 = vld [vmem:[%s728 + $0x790] sm:$0xf]
                  %1215 = vst [vmem:[%s729 + $0x3c8] sm:$0xf] %v1214
                  %v1216 = vld [vmem:[%s728 + $0x798] sm:$0xf]
                  %1217 = vst [vmem:[%s729 + $0x3cc] sm:$0xf] %v1216
                  %v1218 = vld [vmem:[%s728 + $0x7a0] sm:$0xf]
                  %1219 = vst [vmem:[%s729 + $0x3d0] sm:$0xf] %v1218
                  %v1220 = vld [vmem:[%s728 + $0x7a8] sm:$0xf]
                  %1221 = vst [vmem:[%s729 + $0x3d4] sm:$0xf] %v1220
                  %v1222 = vld [vmem:[%s728 + $0x7b0] sm:$0xf]
                  %1223 = vst [vmem:[%s729 + $0x3d8] sm:$0xf] %v1222
                  %v1224 = vld [vmem:[%s728 + $0x7b8] sm:$0xf]
                  %1225 = vst [vmem:[%s729 + $0x3dc] sm:$0xf] %v1224
                  %v1226 = vld [vmem:[%s728 + $0x7c0] sm:$0xf]
                  %1227 = vst [vmem:[%s729 + $0x3e0] sm:$0xf] %v1226
                  %v1228 = vld [vmem:[%s728 + $0x7c8] sm:$0xf]
                  %1229 = vst [vmem:[%s729 + $0x3e4] sm:$0xf] %v1228
                  %v1230 = vld [vmem:[%s728 + $0x7d0] sm:$0xf]
                  %1231 = vst [vmem:[%s729 + $0x3e8] sm:$0xf] %v1230
                  %v1232 = vld [vmem:[%s728 + $0x7d8] sm:$0xf]
                  %1233 = vst [vmem:[%s729 + $0x3ec] sm:$0xf] %v1232
                $region59: #{reduction_a_forward.8} parent=46 // loop_footer
                  %s727 = sadd.s32 1, %s723
                $region60: #{reduction_a_forward.8} parent=46 // loop_footer_branch
                  %722 = sbr.rel target = $region56
                $region61: #{reduction_a_forward.8} parent=46 // loop_exit
                  _
              $region47: #{reduction_a_forward.8} parent=31 // pred_fallthru
                _
            $region32: #{reduction_a_forward.8} parent=27 // pred_fallthru
              _
            // Predicated region
            $region33: #{reduction_a_forward.8} parent=27 // pred_check
              _
            $region34: #{reduction_a_forward.8} parent=27 // pred_check_branch
              %197 = sbr.rel (0) target = $region36
            $region35: #{reduction_a_forward.8} parent=27 // pred_region
              loop: start=0, step=1, limit=1
              $region37: #{reduction_a_forward.8} parent=35 // loop_pre_header
                _
              $region38: #{reduction_a_forward.8} parent=35 // loop_header
                %s200 = sphi 0, %s204
                %p201 = scmp.ge.s32.totalorder %s200, 1
                %s205 = sphi %s191, %s191
                %s206 = sphi %s189, %s189
              $region39: #{reduction_a_forward.8} parent=35 // loop_header_branch
                %203 = sbr.rel (%p201) target = $region43
              $region40: #{reduction_a_forward.8} parent=35 // loop_body
                %v207 = vld [vmem:[%s205] sm:$0xf]
                %208 = vst [vmem:[%s206] sm:$0xf] %v207
                %v209 = vld [vmem:[%s205 + $0x8] sm:$0xf]
                %210 = vst [vmem:[%s206 + $0x4] sm:$0xf] %v209
                %v211 = vld [vmem:[%s205 + $0x10] sm:$0xf]
                %212 = vst [vmem:[%s206 + $0x8] sm:$0xf] %v211
                %v213 = vld [vmem:[%s205 + $0x18] sm:$0xf]
                %214 = vst [vmem:[%s206 + $0xc] sm:$0xf] %v213
                %v215 = vld [vmem:[%s205 + $0x20] sm:$0xf]
                %216 = vst [vmem:[%s206 + $0x10] sm:$0xf] %v215
                %v217 = vld [vmem:[%s205 + $0x28] sm:$0xf]
                %218 = vst [vmem:[%s206 + $0x14] sm:$0xf] %v217
                %v219 = vld [vmem:[%s205 + $0x30] sm:$0xf]
                %220 = vst [vmem:[%s206 + $0x18] sm:$0xf] %v219
                %v221 = vld [vmem:[%s205 + $0x38] sm:$0xf]
                %222 = vst [vmem:[%s206 + $0x1c] sm:$0xf] %v221
                %v223 = vld [vmem:[%s205 + $0x40] sm:$0xf]
                %224 = vst [vmem:[%s206 + $0x20] sm:$0xf] %v223
                %v225 = vld [vmem:[%s205 + $0x48] sm:$0xf]
                %226 = vst [vmem:[%s206 + $0x24] sm:$0xf] %v225
                %v227 = vld [vmem:[%s205 + $0x50] sm:$0xf]
                %228 = vst [vmem:[%s206 + $0x28] sm:$0xf] %v227
                %v229 = vld [vmem:[%s205 + $0x58] sm:$0xf]
                %230 = vst [vmem:[%s206 + $0x2c] sm:$0xf] %v229
                %v231 = vld [vmem:[%s205 + $0x60] sm:$0xf]
                %232 = vst [vmem:[%s206 + $0x30] sm:$0xf] %v231
                %v233 = vld [vmem:[%s205 + $0x68] sm:$0xf]
                %234 = vst [vmem:[%s206 + $0x34] sm:$0xf] %v233
                %v235 = vld [vmem:[%s205 + $0x70] sm:$0xf]
                %236 = vst [vmem:[%s206 + $0x38] sm:$0xf] %v235
                %v237 = vld [vmem:[%s205 + $0x78] sm:$0xf]
                %238 = vst [vmem:[%s206 + $0x3c] sm:$0xf] %v237
                %v239 = vld [vmem:[%s205 + $0x80] sm:$0xf]
                %240 = vst [vmem:[%s206 + $0x40] sm:$0xf] %v239
                %v241 = vld [vmem:[%s205 + $0x88] sm:$0xf]
                %242 = vst [vmem:[%s206 + $0x44] sm:$0xf] %v241
                %v243 = vld [vmem:[%s205 + $0x90] sm:$0xf]
                %244 = vst [vmem:[%s206 + $0x48] sm:$0xf] %v243
                %v245 = vld [vmem:[%s205 + $0x98] sm:$0xf]
                %246 = vst [vmem:[%s206 + $0x4c] sm:$0xf] %v245
                %v247 = vld [vmem:[%s205 + $0xa0] sm:$0xf]
                %248 = vst [vmem:[%s206 + $0x50] sm:$0xf] %v247
                %v249 = vld [vmem:[%s205 + $0xa8] sm:$0xf]
                %250 = vst [vmem:[%s206 + $0x54] sm:$0xf] %v249
                %v251 = vld [vmem:[%s205 + $0xb0] sm:$0xf]
                %252 = vst [vmem:[%s206 + $0x58] sm:$0xf] %v251
                %v253 = vld [vmem:[%s205 + $0xb8] sm:$0xf]
                %254 = vst [vmem:[%s206 + $0x5c] sm:$0xf] %v253
                %v255 = vld [vmem:[%s205 + $0xc0] sm:$0xf]
                %256 = vst [vmem:[%s206 + $0x60] sm:$0xf] %v255
                %v257 = vld [vmem:[%s205 + $0xc8] sm:$0xf]
                %258 = vst [vmem:[%s206 + $0x64] sm:$0xf] %v257
                %v259 = vld [vmem:[%s205 + $0xd0] sm:$0xf]
                %260 = vst [vmem:[%s206 + $0x68] sm:$0xf] %v259
                %v261 = vld [vmem:[%s205 + $0xd8] sm:$0xf]
                %262 = vst [vmem:[%s206 + $0x6c] sm:$0xf] %v261
                %v263 = vld [vmem:[%s205 + $0xe0] sm:$0xf]
                %264 = vst [vmem:[%s206 + $0x70] sm:$0xf] %v263
                %v265 = vld [vmem:[%s205 + $0xe8] sm:$0xf]
                %266 = vst [vmem:[%s206 + $0x74] sm:$0xf] %v265
                %v267 = vld [vmem:[%s205 + $0xf0] sm:$0xf]
                %268 = vst [vmem:[%s206 + $0x78] sm:$0xf] %v267
                %v269 = vld [vmem:[%s205 + $0xf8] sm:$0xf]
                %270 = vst [vmem:[%s206 + $0x7c] sm:$0xf] %v269
                %v271 = vld [vmem:[%s205 + $0x100] sm:$0xf]
                %272 = vst [vmem:[%s206 + $0x80] sm:$0xf] %v271
                %v273 = vld [vmem:[%s205 + $0x108] sm:$0xf]
                %274 = vst [vmem:[%s206 + $0x84] sm:$0xf] %v273
                %v275 = vld [vmem:[%s205 + $0x110] sm:$0xf]
                %276 = vst [vmem:[%s206 + $0x88] sm:$0xf] %v275
                %v277 = vld [vmem:[%s205 + $0x118] sm:$0xf]
                %278 = vst [vmem:[%s206 + $0x8c] sm:$0xf] %v277
                %v279 = vld [vmem:[%s205 + $0x120] sm:$0xf]
                %280 = vst [vmem:[%s206 + $0x90] sm:$0xf] %v279
                %v281 = vld [vmem:[%s205 + $0x128] sm:$0xf]
                %282 = vst [vmem:[%s206 + $0x94] sm:$0xf] %v281
                %v283 = vld [vmem:[%s205 + $0x130] sm:$0xf]
                %284 = vst [vmem:[%s206 + $0x98] sm:$0xf] %v283
                %v285 = vld [vmem:[%s205 + $0x138] sm:$0xf]
                %286 = vst [vmem:[%s206 + $0x9c] sm:$0xf] %v285
                %v287 = vld [vmem:[%s205 + $0x140] sm:$0xf]
                %288 = vst [vmem:[%s206 + $0xa0] sm:$0xf] %v287
                %v289 = vld [vmem:[%s205 + $0x148] sm:$0xf]
                %290 = vst [vmem:[%s206 + $0xa4] sm:$0xf] %v289
                %v291 = vld [vmem:[%s205 + $0x150] sm:$0xf]
                %292 = vst [vmem:[%s206 + $0xa8] sm:$0xf] %v291
                %v293 = vld [vmem:[%s205 + $0x158] sm:$0xf]
                %294 = vst [vmem:[%s206 + $0xac] sm:$0xf] %v293
                %v295 = vld [vmem:[%s205 + $0x160] sm:$0xf]
                %296 = vst [vmem:[%s206 + $0xb0] sm:$0xf] %v295
                %v297 = vld [vmem:[%s205 + $0x168] sm:$0xf]
                %298 = vst [vmem:[%s206 + $0xb4] sm:$0xf] %v297
                %v299 = vld [vmem:[%s205 + $0x170] sm:$0xf]
                %300 = vst [vmem:[%s206 + $0xb8] sm:$0xf] %v299
                %v301 = vld [vmem:[%s205 + $0x178] sm:$0xf]
                %302 = vst [vmem:[%s206 + $0xbc] sm:$0xf] %v301
                %v303 = vld [vmem:[%s205 + $0x180] sm:$0xf]
                %304 = vst [vmem:[%s206 + $0xc0] sm:$0xf] %v303
                %v305 = vld [vmem:[%s205 + $0x188] sm:$0xf]
                %306 = vst [vmem:[%s206 + $0xc4] sm:$0xf] %v305
                %v307 = vld [vmem:[%s205 + $0x190] sm:$0xf]
                %308 = vst [vmem:[%s206 + $0xc8] sm:$0xf] %v307
                %v309 = vld [vmem:[%s205 + $0x198] sm:$0xf]
                %310 = vst [vmem:[%s206 + $0xcc] sm:$0xf] %v309
                %v311 = vld [vmem:[%s205 + $0x1a0] sm:$0xf]
                %312 = vst [vmem:[%s206 + $0xd0] sm:$0xf] %v311
                %v313 = vld [vmem:[%s205 + $0x1a8] sm:$0xf]
                %314 = vst [vmem:[%s206 + $0xd4] sm:$0xf] %v313
                %v315 = vld [vmem:[%s205 + $0x1b0] sm:$0xf]
                %316 = vst [vmem:[%s206 + $0xd8] sm:$0xf] %v315
                %v317 = vld [vmem:[%s205 + $0x1b8] sm:$0xf]
                %318 = vst [vmem:[%s206 + $0xdc] sm:$0xf] %v317
                %v319 = vld [vmem:[%s205 + $0x1c0] sm:$0xf]
                %320 = vst [vmem:[%s206 + $0xe0] sm:$0xf] %v319
                %v321 = vld [vmem:[%s205 + $0x1c8] sm:$0xf]
                %322 = vst [vmem:[%s206 + $0xe4] sm:$0xf] %v321
                %v323 = vld [vmem:[%s205 + $0x1d0] sm:$0xf]
                %324 = vst [vmem:[%s206 + $0xe8] sm:$0xf] %v323
                %v325 = vld [vmem:[%s205 + $0x1d8] sm:$0xf]
                %326 = vst [vmem:[%s206 + $0xec] sm:$0xf] %v325
                %v327 = vld [vmem:[%s205 + $0x1e0] sm:$0xf]
                %328 = vst [vmem:[%s206 + $0xf0] sm:$0xf] %v327
                %v329 = vld [vmem:[%s205 + $0x1e8] sm:$0xf]
                %330 = vst [vmem:[%s206 + $0xf4] sm:$0xf] %v329
                %v331 = vld [vmem:[%s205 + $0x1f0] sm:$0xf]
                %332 = vst [vmem:[%s206 + $0xf8] sm:$0xf] %v331
                %v333 = vld [vmem:[%s205 + $0x1f8] sm:$0xf]
                %334 = vst [vmem:[%s206 + $0xfc] sm:$0xf] %v333
                %v335 = vld [vmem:[%s205 + $0x200] sm:$0xf]
                %336 = vst [vmem:[%s206 + $0x100] sm:$0xf] %v335
                %v337 = vld [vmem:[%s205 + $0x208] sm:$0xf]
                %338 = vst [vmem:[%s206 + $0x104] sm:$0xf] %v337
                %v339 = vld [vmem:[%s205 + $0x210] sm:$0xf]
                %340 = vst [vmem:[%s206 + $0x108] sm:$0xf] %v339
                %v341 = vld [vmem:[%s205 + $0x218] sm:$0xf]
                %342 = vst [vmem:[%s206 + $0x10c] sm:$0xf] %v341
                %v343 = vld [vmem:[%s205 + $0x220] sm:$0xf]
                %344 = vst [vmem:[%s206 + $0x110] sm:$0xf] %v343
                %v345 = vld [vmem:[%s205 + $0x228] sm:$0xf]
                %346 = vst [vmem:[%s206 + $0x114] sm:$0xf] %v345
                %v347 = vld [vmem:[%s205 + $0x230] sm:$0xf]
                %348 = vst [vmem:[%s206 + $0x118] sm:$0xf] %v347
                %v349 = vld [vmem:[%s205 + $0x238] sm:$0xf]
                %350 = vst [vmem:[%s206 + $0x11c] sm:$0xf] %v349
                %v351 = vld [vmem:[%s205 + $0x240] sm:$0xf]
                %352 = vst [vmem:[%s206 + $0x120] sm:$0xf] %v351
                %v353 = vld [vmem:[%s205 + $0x248] sm:$0xf]
                %354 = vst [vmem:[%s206 + $0x124] sm:$0xf] %v353
                %v355 = vld [vmem:[%s205 + $0x250] sm:$0xf]
                %356 = vst [vmem:[%s206 + $0x128] sm:$0xf] %v355
                %v357 = vld [vmem:[%s205 + $0x258] sm:$0xf]
                %358 = vst [vmem:[%s206 + $0x12c] sm:$0xf] %v357
                %v359 = vld [vmem:[%s205 + $0x260] sm:$0xf]
                %360 = vst [vmem:[%s206 + $0x130] sm:$0xf] %v359
                %v361 = vld [vmem:[%s205 + $0x268] sm:$0xf]
                %362 = vst [vmem:[%s206 + $0x134] sm:$0xf] %v361
                %v363 = vld [vmem:[%s205 + $0x270] sm:$0xf]
                %364 = vst [vmem:[%s206 + $0x138] sm:$0xf] %v363
                %v365 = vld [vmem:[%s205 + $0x278] sm:$0xf]
                %366 = vst [vmem:[%s206 + $0x13c] sm:$0xf] %v365
                %v367 = vld [vmem:[%s205 + $0x280] sm:$0xf]
                %368 = vst [vmem:[%s206 + $0x140] sm:$0xf] %v367
                %v369 = vld [vmem:[%s205 + $0x288] sm:$0xf]
                %370 = vst [vmem:[%s206 + $0x144] sm:$0xf] %v369
                %v371 = vld [vmem:[%s205 + $0x290] sm:$0xf]
                %372 = vst [vmem:[%s206 + $0x148] sm:$0xf] %v371
                %v373 = vld [vmem:[%s205 + $0x298] sm:$0xf]
                %374 = vst [vmem:[%s206 + $0x14c] sm:$0xf] %v373
                %v375 = vld [vmem:[%s205 + $0x2a0] sm:$0xf]
                %376 = vst [vmem:[%s206 + $0x150] sm:$0xf] %v375
                %v377 = vld [vmem:[%s205 + $0x2a8] sm:$0xf]
                %378 = vst [vmem:[%s206 + $0x154] sm:$0xf] %v377
                %v379 = vld [vmem:[%s205 + $0x2b0] sm:$0xf]
                %380 = vst [vmem:[%s206 + $0x158] sm:$0xf] %v379
                %v381 = vld [vmem:[%s205 + $0x2b8] sm:$0xf]
                %382 = vst [vmem:[%s206 + $0x15c] sm:$0xf] %v381
                %v383 = vld [vmem:[%s205 + $0x2c0] sm:$0xf]
                %384 = vst [vmem:[%s206 + $0x160] sm:$0xf] %v383
                %v385 = vld [vmem:[%s205 + $0x2c8] sm:$0xf]
                %386 = vst [vmem:[%s206 + $0x164] sm:$0xf] %v385
                %v387 = vld [vmem:[%s205 + $0x2d0] sm:$0xf]
                %388 = vst [vmem:[%s206 + $0x168] sm:$0xf] %v387
                %v389 = vld [vmem:[%s205 + $0x2d8] sm:$0xf]
                %390 = vst [vmem:[%s206 + $0x16c] sm:$0xf] %v389
                %v391 = vld [vmem:[%s205 + $0x2e0] sm:$0xf]
                %392 = vst [vmem:[%s206 + $0x170] sm:$0xf] %v391
                %v393 = vld [vmem:[%s205 + $0x2e8] sm:$0xf]
                %394 = vst [vmem:[%s206 + $0x174] sm:$0xf] %v393
                %v395 = vld [vmem:[%s205 + $0x2f0] sm:$0xf]
                %396 = vst [vmem:[%s206 + $0x178] sm:$0xf] %v395
                %v397 = vld [vmem:[%s205 + $0x2f8] sm:$0xf]
                %398 = vst [vmem:[%s206 + $0x17c] sm:$0xf] %v397
                %v399 = vld [vmem:[%s205 + $0x300] sm:$0xf]
                %400 = vst [vmem:[%s206 + $0x180] sm:$0xf] %v399
                %v401 = vld [vmem:[%s205 + $0x308] sm:$0xf]
                %402 = vst [vmem:[%s206 + $0x184] sm:$0xf] %v401
                %v403 = vld [vmem:[%s205 + $0x310] sm:$0xf]
                %404 = vst [vmem:[%s206 + $0x188] sm:$0xf] %v403
                %v405 = vld [vmem:[%s205 + $0x318] sm:$0xf]
                %406 = vst [vmem:[%s206 + $0x18c] sm:$0xf] %v405
                %v407 = vld [vmem:[%s205 + $0x320] sm:$0xf]
                %408 = vst [vmem:[%s206 + $0x190] sm:$0xf] %v407
                %v409 = vld [vmem:[%s205 + $0x328] sm:$0xf]
                %410 = vst [vmem:[%s206 + $0x194] sm:$0xf] %v409
                %v411 = vld [vmem:[%s205 + $0x330] sm:$0xf]
                %412 = vst [vmem:[%s206 + $0x198] sm:$0xf] %v411
                %v413 = vld [vmem:[%s205 + $0x338] sm:$0xf]
                %414 = vst [vmem:[%s206 + $0x19c] sm:$0xf] %v413
                %v415 = vld [vmem:[%s205 + $0x340] sm:$0xf]
                %416 = vst [vmem:[%s206 + $0x1a0] sm:$0xf] %v415
                %v417 = vld [vmem:[%s205 + $0x348] sm:$0xf]
                %418 = vst [vmem:[%s206 + $0x1a4] sm:$0xf] %v417
                %v419 = vld [vmem:[%s205 + $0x350] sm:$0xf]
                %420 = vst [vmem:[%s206 + $0x1a8] sm:$0xf] %v419
                %v421 = vld [vmem:[%s205 + $0x358] sm:$0xf]
                %422 = vst [vmem:[%s206 + $0x1ac] sm:$0xf] %v421
                %v423 = vld [vmem:[%s205 + $0x360] sm:$0xf]
                %424 = vst [vmem:[%s206 + $0x1b0] sm:$0xf] %v423
                %v425 = vld [vmem:[%s205 + $0x368] sm:$0xf]
                %426 = vst [vmem:[%s206 + $0x1b4] sm:$0xf] %v425
                %v427 = vld [vmem:[%s205 + $0x370] sm:$0xf]
                %428 = vst [vmem:[%s206 + $0x1b8] sm:$0xf] %v427
                %v429 = vld [vmem:[%s205 + $0x378] sm:$0xf]
                %430 = vst [vmem:[%s206 + $0x1bc] sm:$0xf] %v429
                %v431 = vld [vmem:[%s205 + $0x380] sm:$0xf]
                %432 = vst [vmem:[%s206 + $0x1c0] sm:$0xf] %v431
                %v433 = vld [vmem:[%s205 + $0x388] sm:$0xf]
                %434 = vst [vmem:[%s206 + $0x1c4] sm:$0xf] %v433
                %v435 = vld [vmem:[%s205 + $0x390] sm:$0xf]
                %436 = vst [vmem:[%s206 + $0x1c8] sm:$0xf] %v435
                %v437 = vld [vmem:[%s205 + $0x398] sm:$0xf]
                %438 = vst [vmem:[%s206 + $0x1cc] sm:$0xf] %v437
                %v439 = vld [vmem:[%s205 + $0x3a0] sm:$0xf]
                %440 = vst [vmem:[%s206 + $0x1d0] sm:$0xf] %v439
                %v441 = vld [vmem:[%s205 + $0x3a8] sm:$0xf]
                %442 = vst [vmem:[%s206 + $0x1d4] sm:$0xf] %v441
                %v443 = vld [vmem:[%s205 + $0x3b0] sm:$0xf]
                %444 = vst [vmem:[%s206 + $0x1d8] sm:$0xf] %v443
                %v445 = vld [vmem:[%s205 + $0x3b8] sm:$0xf]
                %446 = vst [vmem:[%s206 + $0x1dc] sm:$0xf] %v445
                %v447 = vld [vmem:[%s205 + $0x3c0] sm:$0xf]
                %448 = vst [vmem:[%s206 + $0x1e0] sm:$0xf] %v447
                %v449 = vld [vmem:[%s205 + $0x3c8] sm:$0xf]
                %450 = vst [vmem:[%s206 + $0x1e4] sm:$0xf] %v449
                %v451 = vld [vmem:[%s205 + $0x3d0] sm:$0xf]
                %452 = vst [vmem:[%s206 + $0x1e8] sm:$0xf] %v451
                %v453 = vld [vmem:[%s205 + $0x3d8] sm:$0xf]
                %454 = vst [vmem:[%s206 + $0x1ec] sm:$0xf] %v453
                %v455 = vld [vmem:[%s205 + $0x3e0] sm:$0xf]
                %456 = vst [vmem:[%s206 + $0x1f0] sm:$0xf] %v455
                %v457 = vld [vmem:[%s205 + $0x3e8] sm:$0xf]
                %458 = vst [vmem:[%s206 + $0x1f4] sm:$0xf] %v457
                %v459 = vld [vmem:[%s205 + $0x3f0] sm:$0xf]
                %460 = vst [vmem:[%s206 + $0x1f8] sm:$0xf] %v459
                %v461 = vld [vmem:[%s205 + $0x3f8] sm:$0xf]
                %462 = vst [vmem:[%s206 + $0x1fc] sm:$0xf] %v461
                %v463 = vld [vmem:[%s205 + $0x400] sm:$0xf]
                %464 = vst [vmem:[%s206 + $0x200] sm:$0xf] %v463
                %v465 = vld [vmem:[%s205 + $0x408] sm:$0xf]
                %466 = vst [vmem:[%s206 + $0x204] sm:$0xf] %v465
                %v467 = vld [vmem:[%s205 + $0x410] sm:$0xf]
                %468 = vst [vmem:[%s206 + $0x208] sm:$0xf] %v467
                %v469 = vld [vmem:[%s205 + $0x418] sm:$0xf]
                %470 = vst [vmem:[%s206 + $0x20c] sm:$0xf] %v469
                %v471 = vld [vmem:[%s205 + $0x420] sm:$0xf]
                %472 = vst [vmem:[%s206 + $0x210] sm:$0xf] %v471
                %v473 = vld [vmem:[%s205 + $0x428] sm:$0xf]
                %474 = vst [vmem:[%s206 + $0x214] sm:$0xf] %v473
                %v475 = vld [vmem:[%s205 + $0x430] sm:$0xf]
                %476 = vst [vmem:[%s206 + $0x218] sm:$0xf] %v475
                %v477 = vld [vmem:[%s205 + $0x438] sm:$0xf]
                %478 = vst [vmem:[%s206 + $0x21c] sm:$0xf] %v477
                %v479 = vld [vmem:[%s205 + $0x440] sm:$0xf]
                %480 = vst [vmem:[%s206 + $0x220] sm:$0xf] %v479
                %v481 = vld [vmem:[%s205 + $0x448] sm:$0xf]
                %482 = vst [vmem:[%s206 + $0x224] sm:$0xf] %v481
                %v483 = vld [vmem:[%s205 + $0x450] sm:$0xf]
                %484 = vst [vmem:[%s206 + $0x228] sm:$0xf] %v483
                %v485 = vld [vmem:[%s205 + $0x458] sm:$0xf]
                %486 = vst [vmem:[%s206 + $0x22c] sm:$0xf] %v485
                %v487 = vld [vmem:[%s205 + $0x460] sm:$0xf]
                %488 = vst [vmem:[%s206 + $0x230] sm:$0xf] %v487
                %v489 = vld [vmem:[%s205 + $0x468] sm:$0xf]
                %490 = vst [vmem:[%s206 + $0x234] sm:$0xf] %v489
                %v491 = vld [vmem:[%s205 + $0x470] sm:$0xf]
                %492 = vst [vmem:[%s206 + $0x238] sm:$0xf] %v491
                %v493 = vld [vmem:[%s205 + $0x478] sm:$0xf]
                %494 = vst [vmem:[%s206 + $0x23c] sm:$0xf] %v493
                %v495 = vld [vmem:[%s205 + $0x480] sm:$0xf]
                %496 = vst [vmem:[%s206 + $0x240] sm:$0xf] %v495
                %v497 = vld [vmem:[%s205 + $0x488] sm:$0xf]
                %498 = vst [vmem:[%s206 + $0x244] sm:$0xf] %v497
                %v499 = vld [vmem:[%s205 + $0x490] sm:$0xf]
                %500 = vst [vmem:[%s206 + $0x248] sm:$0xf] %v499
                %v501 = vld [vmem:[%s205 + $0x498] sm:$0xf]
                %502 = vst [vmem:[%s206 + $0x24c] sm:$0xf] %v501
                %v503 = vld [vmem:[%s205 + $0x4a0] sm:$0xf]
                %504 = vst [vmem:[%s206 + $0x250] sm:$0xf] %v503
                %v505 = vld [vmem:[%s205 + $0x4a8] sm:$0xf]
                %506 = vst [vmem:[%s206 + $0x254] sm:$0xf] %v505
                %v507 = vld [vmem:[%s205 + $0x4b0] sm:$0xf]
                %508 = vst [vmem:[%s206 + $0x258] sm:$0xf] %v507
                %v509 = vld [vmem:[%s205 + $0x4b8] sm:$0xf]
                %510 = vst [vmem:[%s206 + $0x25c] sm:$0xf] %v509
                %v511 = vld [vmem:[%s205 + $0x4c0] sm:$0xf]
                %512 = vst [vmem:[%s206 + $0x260] sm:$0xf] %v511
                %v513 = vld [vmem:[%s205 + $0x4c8] sm:$0xf]
                %514 = vst [vmem:[%s206 + $0x264] sm:$0xf] %v513
                %v515 = vld [vmem:[%s205 + $0x4d0] sm:$0xf]
                %516 = vst [vmem:[%s206 + $0x268] sm:$0xf] %v515
                %v517 = vld [vmem:[%s205 + $0x4d8] sm:$0xf]
                %518 = vst [vmem:[%s206 + $0x26c] sm:$0xf] %v517
                %v519 = vld [vmem:[%s205 + $0x4e0] sm:$0xf]
                %520 = vst [vmem:[%s206 + $0x270] sm:$0xf] %v519
                %v521 = vld [vmem:[%s205 + $0x4e8] sm:$0xf]
                %522 = vst [vmem:[%s206 + $0x274] sm:$0xf] %v521
                %v523 = vld [vmem:[%s205 + $0x4f0] sm:$0xf]
                %524 = vst [vmem:[%s206 + $0x278] sm:$0xf] %v523
                %v525 = vld [vmem:[%s205 + $0x4f8] sm:$0xf]
                %526 = vst [vmem:[%s206 + $0x27c] sm:$0xf] %v525
                %v527 = vld [vmem:[%s205 + $0x500] sm:$0xf]
                %528 = vst [vmem:[%s206 + $0x280] sm:$0xf] %v527
                %v529 = vld [vmem:[%s205 + $0x508] sm:$0xf]
                %530 = vst [vmem:[%s206 + $0x284] sm:$0xf] %v529
                %v531 = vld [vmem:[%s205 + $0x510] sm:$0xf]
                %532 = vst [vmem:[%s206 + $0x288] sm:$0xf] %v531
                %v533 = vld [vmem:[%s205 + $0x518] sm:$0xf]
                %534 = vst [vmem:[%s206 + $0x28c] sm:$0xf] %v533
                %v535 = vld [vmem:[%s205 + $0x520] sm:$0xf]
                %536 = vst [vmem:[%s206 + $0x290] sm:$0xf] %v535
                %v537 = vld [vmem:[%s205 + $0x528] sm:$0xf]
                %538 = vst [vmem:[%s206 + $0x294] sm:$0xf] %v537
                %v539 = vld [vmem:[%s205 + $0x530] sm:$0xf]
                %540 = vst [vmem:[%s206 + $0x298] sm:$0xf] %v539
                %v541 = vld [vmem:[%s205 + $0x538] sm:$0xf]
                %542 = vst [vmem:[%s206 + $0x29c] sm:$0xf] %v541
                %v543 = vld [vmem:[%s205 + $0x540] sm:$0xf]
                %544 = vst [vmem:[%s206 + $0x2a0] sm:$0xf] %v543
                %v545 = vld [vmem:[%s205 + $0x548] sm:$0xf]
                %546 = vst [vmem:[%s206 + $0x2a4] sm:$0xf] %v545
                %v547 = vld [vmem:[%s205 + $0x550] sm:$0xf]
                %548 = vst [vmem:[%s206 + $0x2a8] sm:$0xf] %v547
                %v549 = vld [vmem:[%s205 + $0x558] sm:$0xf]
                %550 = vst [vmem:[%s206 + $0x2ac] sm:$0xf] %v549
                %v551 = vld [vmem:[%s205 + $0x560] sm:$0xf]
                %552 = vst [vmem:[%s206 + $0x2b0] sm:$0xf] %v551
                %v553 = vld [vmem:[%s205 + $0x568] sm:$0xf]
                %554 = vst [vmem:[%s206 + $0x2b4] sm:$0xf] %v553
                %v555 = vld [vmem:[%s205 + $0x570] sm:$0xf]
                %556 = vst [vmem:[%s206 + $0x2b8] sm:$0xf] %v555
                %v557 = vld [vmem:[%s205 + $0x578] sm:$0xf]
                %558 = vst [vmem:[%s206 + $0x2bc] sm:$0xf] %v557
                %v559 = vld [vmem:[%s205 + $0x580] sm:$0xf]
                %560 = vst [vmem:[%s206 + $0x2c0] sm:$0xf] %v559
                %v561 = vld [vmem:[%s205 + $0x588] sm:$0xf]
                %562 = vst [vmem:[%s206 + $0x2c4] sm:$0xf] %v561
                %v563 = vld [vmem:[%s205 + $0x590] sm:$0xf]
                %564 = vst [vmem:[%s206 + $0x2c8] sm:$0xf] %v563
                %v565 = vld [vmem:[%s205 + $0x598] sm:$0xf]
                %566 = vst [vmem:[%s206 + $0x2cc] sm:$0xf] %v565
                %v567 = vld [vmem:[%s205 + $0x5a0] sm:$0xf]
                %568 = vst [vmem:[%s206 + $0x2d0] sm:$0xf] %v567
                %v569 = vld [vmem:[%s205 + $0x5a8] sm:$0xf]
                %570 = vst [vmem:[%s206 + $0x2d4] sm:$0xf] %v569
                %v571 = vld [vmem:[%s205 + $0x5b0] sm:$0xf]
                %572 = vst [vmem:[%s206 + $0x2d8] sm:$0xf] %v571
                %v573 = vld [vmem:[%s205 + $0x5b8] sm:$0xf]
                %574 = vst [vmem:[%s206 + $0x2dc] sm:$0xf] %v573
                %v575 = vld [vmem:[%s205 + $0x5c0] sm:$0xf]
                %576 = vst [vmem:[%s206 + $0x2e0] sm:$0xf] %v575
                %v577 = vld [vmem:[%s205 + $0x5c8] sm:$0xf]
                %578 = vst [vmem:[%s206 + $0x2e4] sm:$0xf] %v577
                %v579 = vld [vmem:[%s205 + $0x5d0] sm:$0xf]
                %580 = vst [vmem:[%s206 + $0x2e8] sm:$0xf] %v579
                %v581 = vld [vmem:[%s205 + $0x5d8] sm:$0xf]
                %582 = vst [vmem:[%s206 + $0x2ec] sm:$0xf] %v581
                %v583 = vld [vmem:[%s205 + $0x5e0] sm:$0xf]
                %584 = vst [vmem:[%s206 + $0x2f0] sm:$0xf] %v583
                %v585 = vld [vmem:[%s205 + $0x5e8] sm:$0xf]
                %586 = vst [vmem:[%s206 + $0x2f4] sm:$0xf] %v585
                %v587 = vld [vmem:[%s205 + $0x5f0] sm:$0xf]
                %588 = vst [vmem:[%s206 + $0x2f8] sm:$0xf] %v587
                %v589 = vld [vmem:[%s205 + $0x5f8] sm:$0xf]
                %590 = vst [vmem:[%s206 + $0x2fc] sm:$0xf] %v589
                %v591 = vld [vmem:[%s205 + $0x600] sm:$0xf]
                %592 = vst [vmem:[%s206 + $0x300] sm:$0xf] %v591
                %v593 = vld [vmem:[%s205 + $0x608] sm:$0xf]
                %594 = vst [vmem:[%s206 + $0x304] sm:$0xf] %v593
                %v595 = vld [vmem:[%s205 + $0x610] sm:$0xf]
                %596 = vst [vmem:[%s206 + $0x308] sm:$0xf] %v595
                %v597 = vld [vmem:[%s205 + $0x618] sm:$0xf]
                %598 = vst [vmem:[%s206 + $0x30c] sm:$0xf] %v597
                %v599 = vld [vmem:[%s205 + $0x620] sm:$0xf]
                %600 = vst [vmem:[%s206 + $0x310] sm:$0xf] %v599
                %v601 = vld [vmem:[%s205 + $0x628] sm:$0xf]
                %602 = vst [vmem:[%s206 + $0x314] sm:$0xf] %v601
                %v603 = vld [vmem:[%s205 + $0x630] sm:$0xf]
                %604 = vst [vmem:[%s206 + $0x318] sm:$0xf] %v603
                %v605 = vld [vmem:[%s205 + $0x638] sm:$0xf]
                %606 = vst [vmem:[%s206 + $0x31c] sm:$0xf] %v605
                %v607 = vld [vmem:[%s205 + $0x640] sm:$0xf]
                %608 = vst [vmem:[%s206 + $0x320] sm:$0xf] %v607
                %v609 = vld [vmem:[%s205 + $0x648] sm:$0xf]
                %610 = vst [vmem:[%s206 + $0x324] sm:$0xf] %v609
                %v611 = vld [vmem:[%s205 + $0x650] sm:$0xf]
                %612 = vst [vmem:[%s206 + $0x328] sm:$0xf] %v611
                %v613 = vld [vmem:[%s205 + $0x658] sm:$0xf]
                %614 = vst [vmem:[%s206 + $0x32c] sm:$0xf] %v613
                %v615 = vld [vmem:[%s205 + $0x660] sm:$0xf]
                %616 = vst [vmem:[%s206 + $0x330] sm:$0xf] %v615
                %v617 = vld [vmem:[%s205 + $0x668] sm:$0xf]
                %618 = vst [vmem:[%s206 + $0x334] sm:$0xf] %v617
                %v619 = vld [vmem:[%s205 + $0x670] sm:$0xf]
                %620 = vst [vmem:[%s206 + $0x338] sm:$0xf] %v619
                %v621 = vld [vmem:[%s205 + $0x678] sm:$0xf]
                %622 = vst [vmem:[%s206 + $0x33c] sm:$0xf] %v621
                %v623 = vld [vmem:[%s205 + $0x680] sm:$0xf]
                %624 = vst [vmem:[%s206 + $0x340] sm:$0xf] %v623
                %v625 = vld [vmem:[%s205 + $0x688] sm:$0xf]
                %626 = vst [vmem:[%s206 + $0x344] sm:$0xf] %v625
                %v627 = vld [vmem:[%s205 + $0x690] sm:$0xf]
                %628 = vst [vmem:[%s206 + $0x348] sm:$0xf] %v627
                %v629 = vld [vmem:[%s205 + $0x698] sm:$0xf]
                %630 = vst [vmem:[%s206 + $0x34c] sm:$0xf] %v629
                %v631 = vld [vmem:[%s205 + $0x6a0] sm:$0xf]
                %632 = vst [vmem:[%s206 + $0x350] sm:$0xf] %v631
                %v633 = vld [vmem:[%s205 + $0x6a8] sm:$0xf]
                %634 = vst [vmem:[%s206 + $0x354] sm:$0xf] %v633
                %v635 = vld [vmem:[%s205 + $0x6b0] sm:$0xf]
                %636 = vst [vmem:[%s206 + $0x358] sm:$0xf] %v635
                %v637 = vld [vmem:[%s205 + $0x6b8] sm:$0xf]
                %638 = vst [vmem:[%s206 + $0x35c] sm:$0xf] %v637
                %v639 = vld [vmem:[%s205 + $0x6c0] sm:$0xf]
                %640 = vst [vmem:[%s206 + $0x360] sm:$0xf] %v639
                %v641 = vld [vmem:[%s205 + $0x6c8] sm:$0xf]
                %642 = vst [vmem:[%s206 + $0x364] sm:$0xf] %v641
                %v643 = vld [vmem:[%s205 + $0x6d0] sm:$0xf]
                %644 = vst [vmem:[%s206 + $0x368] sm:$0xf] %v643
                %v645 = vld [vmem:[%s205 + $0x6d8] sm:$0xf]
                %646 = vst [vmem:[%s206 + $0x36c] sm:$0xf] %v645
                %v647 = vld [vmem:[%s205 + $0x6e0] sm:$0xf]
                %648 = vst [vmem:[%s206 + $0x370] sm:$0xf] %v647
                %v649 = vld [vmem:[%s205 + $0x6e8] sm:$0xf]
                %650 = vst [vmem:[%s206 + $0x374] sm:$0xf] %v649
                %v651 = vld [vmem:[%s205 + $0x6f0] sm:$0xf]
                %652 = vst [vmem:[%s206 + $0x378] sm:$0xf] %v651
                %v653 = vld [vmem:[%s205 + $0x6f8] sm:$0xf]
                %654 = vst [vmem:[%s206 + $0x37c] sm:$0xf] %v653
                %v655 = vld [vmem:[%s205 + $0x700] sm:$0xf]
                %656 = vst [vmem:[%s206 + $0x380] sm:$0xf] %v655
                %v657 = vld [vmem:[%s205 + $0x708] sm:$0xf]
                %658 = vst [vmem:[%s206 + $0x384] sm:$0xf] %v657
                %v659 = vld [vmem:[%s205 + $0x710] sm:$0xf]
                %660 = vst [vmem:[%s206 + $0x388] sm:$0xf] %v659
                %v661 = vld [vmem:[%s205 + $0x718] sm:$0xf]
                %662 = vst [vmem:[%s206 + $0x38c] sm:$0xf] %v661
                %v663 = vld [vmem:[%s205 + $0x720] sm:$0xf]
                %664 = vst [vmem:[%s206 + $0x390] sm:$0xf] %v663
                %v665 = vld [vmem:[%s205 + $0x728] sm:$0xf]
                %666 = vst [vmem:[%s206 + $0x394] sm:$0xf] %v665
                %v667 = vld [vmem:[%s205 + $0x730] sm:$0xf]
                %668 = vst [vmem:[%s206 + $0x398] sm:$0xf] %v667
                %v669 = vld [vmem:[%s205 + $0x738] sm:$0xf]
                %670 = vst [vmem:[%s206 + $0x39c] sm:$0xf] %v669
                %v671 = vld [vmem:[%s205 + $0x740] sm:$0xf]
                %672 = vst [vmem:[%s206 + $0x3a0] sm:$0xf] %v671
                %v673 = vld [vmem:[%s205 + $0x748] sm:$0xf]
                %674 = vst [vmem:[%s206 + $0x3a4] sm:$0xf] %v673
                %v675 = vld [vmem:[%s205 + $0x750] sm:$0xf]
                %676 = vst [vmem:[%s206 + $0x3a8] sm:$0xf] %v675
                %v677 = vld [vmem:[%s205 + $0x758] sm:$0xf]
                %678 = vst [vmem:[%s206 + $0x3ac] sm:$0xf] %v677
                %v679 = vld [vmem:[%s205 + $0x760] sm:$0xf]
                %680 = vst [vmem:[%s206 + $0x3b0] sm:$0xf] %v679
                %v681 = vld [vmem:[%s205 + $0x768] sm:$0xf]
                %682 = vst [vmem:[%s206 + $0x3b4] sm:$0xf] %v681
                %v683 = vld [vmem:[%s205 + $0x770] sm:$0xf]
                %684 = vst [vmem:[%s206 + $0x3b8] sm:$0xf] %v683
                %v685 = vld [vmem:[%s205 + $0x778] sm:$0xf]
                %686 = vst [vmem:[%s206 + $0x3bc] sm:$0xf] %v685
                %v687 = vld [vmem:[%s205 + $0x780] sm:$0xf]
                %688 = vst [vmem:[%s206 + $0x3c0] sm:$0xf] %v687
                %v689 = vld [vmem:[%s205 + $0x788] sm:$0xf]
                %690 = vst [vmem:[%s206 + $0x3c4] sm:$0xf] %v689
                %v691 = vld [vmem:[%s205 + $0x790] sm:$0xf]
                %692 = vst [vmem:[%s206 + $0x3c8] sm:$0xf] %v691
                %v693 = vld [vmem:[%s205 + $0x798] sm:$0xf]
                %694 = vst [vmem:[%s206 + $0x3cc] sm:$0xf] %v693
                %v695 = vld [vmem:[%s205 + $0x7a0] sm:$0xf]
                %696 = vst [vmem:[%s206 + $0x3d0] sm:$0xf] %v695
                %v697 = vld [vmem:[%s205 + $0x7a8] sm:$0xf]
                %698 = vst [vmem:[%s206 + $0x3d4] sm:$0xf] %v697
                %v699 = vld [vmem:[%s205 + $0x7b0] sm:$0xf]
                %700 = vst [vmem:[%s206 + $0x3d8] sm:$0xf] %v699
                %v701 = vld [vmem:[%s205 + $0x7b8] sm:$0xf]
                %702 = vst [vmem:[%s206 + $0x3dc] sm:$0xf] %v701
                %v703 = vld [vmem:[%s205 + $0x7c0] sm:$0xf]
                %704 = vst [vmem:[%s206 + $0x3e0] sm:$0xf] %v703
                %v705 = vld [vmem:[%s205 + $0x7c8] sm:$0xf]
                %706 = vst [vmem:[%s206 + $0x3e4] sm:$0xf] %v705
                %v707 = vld [vmem:[%s205 + $0x7d0] sm:$0xf]
                %708 = vst [vmem:[%s206 + $0x3e8] sm:$0xf] %v707
                %v709 = vld [vmem:[%s205 + $0x7d8] sm:$0xf]
                %710 = vst [vmem:[%s206 + $0x3ec] sm:$0xf] %v709
              $region41: #{reduction_a_forward.8} parent=35 // loop_footer
                %s204 = sadd.s32 1, %s200
              $region42: #{reduction_a_forward.8} parent=35 // loop_footer_branch
                %199 = sbr.rel target = $region38
              $region43: #{reduction_a_forward.8} parent=35 // loop_exit
                _
            $region36: #{reduction_a_forward.8} parent=27 // pred_fallthru
              _
          $region28: #{reduction_a_forward.8} parent=23 // pred_fallthru
            _
          %1234 = vnop
        $region24: #{reduction_a_forward.8} parent=19 // pred_fallthru
          _
        // Predicated region
        $region62: #{reduction_a_forward.8} parent=19 // pred_check
          %p1235 = pneg %p94
        $region63: #{reduction_a_forward.8} parent=19 // pred_check_branch
          %1237 = sbr.rel (%p1235) target = $region65
        $region64: #{reduction_a_forward.8} parent=19 // pred_region
          %p1238 = scmp.lt.s32.totalorder %s18, 1
          %s1239 = scalar_select %p1238, %s18, 1
          %s1240 = scalar_lea.vmem %s2, %s1239
        $region65: #{reduction_a_forward.8} parent=19 // pred_fallthru
          _
        // Predicated region
        $region66: #{reduction_a_forward.8} parent=19 // pred_check
          %p1241 = pneg %p120
        $region67: #{reduction_a_forward.8} parent=19 // pred_check_branch
          %1243 = sbr.rel (%p1241) target = $region69
        $region68: #{reduction_a_forward.8} parent=19 // pred_region
          %p1244 = scmp.lt.s32.totalorder %s18, 1
          %s1245 = scalar_select %p1244, %s18, 1
          %s1246 = scalar_lea.vmem %s3, %s1245
        $region69: #{reduction_a_forward.8} parent=19 // pred_fallthru
          _
      $region20: #{reduction_a_forward.8} parent=5 // pred_fallthru
        _
      %p1247 = scmp.le.s32.totalorder 1, %s10
      %p1248 = scmp.lt.s32.totalorder %s10, 3
      %p1249 = pnand %p1247, %p1248
      %p1250 = pneg %p1249
      // Predicated region
      $region70: #{reduction_a_forward.8} parent=5 // pred_check
        _
      $region71: #{reduction_a_forward.8} parent=5 // pred_check_branch
        %1252 = sbr.rel (%p1249) target = $region73
      $region72: #{reduction_a_forward.8} parent=5 // pred_region
        %s1253 = ssub.s32 %s10, 1
        %s1254 = sand.u32 %s61, 1
        %s1255 = sand.u32 %s61, 1
        %s1256 = smul.addr %s1255, 1008
        %s1257 = scalar_lea.vmem [#allocation2], %s1256
        // Predicated region
        $region74: #{reduction_a_forward.8} parent=72 // pred_check
          %p1258 = pneg %p74
        $region75: #{reduction_a_forward.8} parent=72 // pred_check_branch
          %1260 = sbr.rel (%p1258) target = $region77
        $region76: #{reduction_a_forward.8} parent=72 // pred_region
          _
        $region77: #{reduction_a_forward.8} parent=72 // pred_fallthru
          _
        %s1261 = smul.u32 13, %s19
        %p1262 = scmp.lt.s32.totalorder %s1261, 12
        %s1263 = scalar_select %p1262, %s1261, 12
        %s1264 = smul.addr %s1263, 16
        %s1265 = smul.addr %s1264, 4
        %s1266 = scalar_lea.vmem %s0, %s1265
        %p1267 = pneg %p48
        %p1268 = pneg %p45
        %s1269 = sand.u32 %s61, 1
        %s1270 = sand.u32 %s61, 1
        %s1271 = smul.addr %s1270, 1008
        %s1272 = scalar_lea.vmem [#allocation2], %s1271
        %p1273 = pneg %p74
        %p1274 = pneg %p71
        %p1275 = scmp.lt.s32.totalorder %s20, 1
        %s1276 = scalar_select %p1275, %s20, 1
        %s1277 = scalar_lea.vmem %s2, %s1276
        %p1278 = pneg %p100
        %p1279 = pneg %p97
        %p1280 = scmp.lt.s32.totalorder %s20, 1
        %s1281 = scalar_select %p1280, %s20, 1
        %s1282 = scalar_lea.vmem %s3, %s1281
        %p1283 = pneg %p126
        %p1284 = pneg %p123
        %p1285 = pneg %p154
        %p1286 = pneg %p151
        %s1287 = sand.u32 %s141, 1
        %s1288 = sand.u32 %s141, 1
        %s1289 = smul.addr %s1288, 104
        %s1290 = scalar_lea.vmem [#allocation3], %s1289
        %s1291 = smul.u32 13, %s19
        %p1292 = scmp.lt.s32.totalorder %s1291, 12
        %s1293 = scalar_select %p1292, %s1291, 12
        %s1294 = smul.addr %s1293, 16
        %s1295 = smul.addr %s1294, 4
        %s1296 = scalar_lea.vmem %s0, %s1295
        %s1297 = smul.u32 13, %s19
        %p1298 = scmp.lt.s32.totalorder %s20, 1
        %s1299 = scalar_select %p1298, %s20, 1
        %s1300 = scalar_lea.vmem %s2, %s1299
        %p1301 = scmp.lt.s32.totalorder %s20, 1
        %s1302 = scalar_select %p1301, %s20, 1
        %s1303 = scalar_lea.vmem %s3, %s1302
        %s1304 = smul.u32 13, %s19
        %v1306 = vld [vmem:[%s1296] sm:$0xff]
        %v1307 = vld [vmem:[%s1296 + $0x8] sm:$0xff]
        %v1308 = vld [vmem:[%s1296 + $0x10] sm:$0xff]
        %v1309 = vld [vmem:[%s1296 + $0x18] sm:$0xff]
        %v1310 = vld [vmem:[%s1296 + $0x20] sm:$0xff]
        %v1311 = vld [vmem:[%s1296 + $0x28] sm:$0xff]
        %v1312 = vld [vmem:[%s1296 + $0x30] sm:$0xff]
        %v1313 = vld [vmem:[%s1296 + $0x38] sm:$0xff]
        %v1314 = vld [vmem:[%s1296 + $0x40] sm:$0xff]
        %v1315 = vld [vmem:[%s1296 + $0x48] sm:$0xff]
        %v1316 = vld [vmem:[%s1296 + $0x50] sm:$0xff]
        %v1317 = vld [vmem:[%s1296 + $0x58] sm:$0xff]
        %v1318 = vld [vmem:[%s1296 + $0x60] sm:$0xff]
        %v1319 = vld [vmem:[%s1296 + $0x68] sm:$0xff]
        %v1320 = vld [vmem:[%s1296 + $0x70] sm:$0xff]
        %v1321 = vld [vmem:[%s1296 + $0x78] sm:$0xff]
        %v1322 = vld [vmem:[%s1296 + $0x80] sm:$0xff]
        %v1323 = vld [vmem:[%s1296 + $0x88] sm:$0xff]
        %v1324 = vld [vmem:[%s1296 + $0x90] sm:$0xff]
        %v1325 = vld [vmem:[%s1296 + $0x98] sm:$0xff]
        %v1326 = vld [vmem:[%s1296 + $0xa0] sm:$0xff]
        %v1327 = vld [vmem:[%s1296 + $0xa8] sm:$0xff]
        %v1328 = vld [vmem:[%s1296 + $0xb0] sm:$0xff]
        %v1329 = vld [vmem:[%s1296 + $0xb8] sm:$0xff]
        %v1330 = vld [vmem:[%s1296 + $0xc0] sm:$0xff]
        %v1331 = vld [vmem:[%s1296 + $0xc8] sm:$0xff]
        %v1332 = vld [vmem:[%s1296 + $0xd0] sm:$0xff]
        %v1333 = vld [vmem:[%s1296 + $0xd8] sm:$0xff]
        %v1334 = vld [vmem:[%s1296 + $0xe0] sm:$0xff]
        %v1335 = vld [vmem:[%s1296 + $0xe8] sm:$0xff]
        %v1336 = vld [vmem:[%s1296 + $0xf0] sm:$0xff]
        %v1337 = vld [vmem:[%s1296 + $0xf8] sm:$0xff]
        %v1338 = vld [vmem:[%s1296 + $0x100] sm:$0xff]
        %v1339 = vld [vmem:[%s1296 + $0x108] sm:$0xff]
        %v1340 = vld [vmem:[%s1296 + $0x110] sm:$0xff]
        %v1341 = vld [vmem:[%s1296 + $0x118] sm:$0xff]
        %v1342 = vld [vmem:[%s1296 + $0x120] sm:$0xff]
        %v1343 = vld [vmem:[%s1296 + $0x128] sm:$0xff]
        %v1344 = vld [vmem:[%s1296 + $0x130] sm:$0xff]
        %v1345 = vld [vmem:[%s1296 + $0x138] sm:$0xff]
        %v1346 = vld [vmem:[%s1296 + $0x140] sm:$0xff]
        %v1347 = vld [vmem:[%s1296 + $0x148] sm:$0xff]
        %v1348 = vld [vmem:[%s1296 + $0x150] sm:$0xff]
        %v1349 = vld [vmem:[%s1296 + $0x158] sm:$0xff]
        %v1350 = vld [vmem:[%s1296 + $0x160] sm:$0xff]
        %v1351 = vld [vmem:[%s1296 + $0x168] sm:$0xff]
        %v1352 = vld [vmem:[%s1296 + $0x170] sm:$0xff]
        %v1353 = vld [vmem:[%s1296 + $0x178] sm:$0xff]
        %v1354 = vld [vmem:[%s1296 + $0x180] sm:$0xff]
        %v1355 = vld [vmem:[%s1296 + $0x188] sm:$0xff]
        %v1356 = vld [vmem:[%s1296 + $0x190] sm:$0xff]
        %v1357 = vld [vmem:[%s1296 + $0x198] sm:$0xff]
        %v1358 = vld [vmem:[%s1296 + $0x1a0] sm:$0xff]
        %v1359 = vld [vmem:[%s1296 + $0x1a8] sm:$0xff]
        %v1360 = vld [vmem:[%s1296 + $0x1b0] sm:$0xff]
        %v1361 = vld [vmem:[%s1296 + $0x1b8] sm:$0xff]
        %v1362 = vld [vmem:[%s1296 + $0x1c0] sm:$0xff]
        %v1363 = vld [vmem:[%s1296 + $0x1c8] sm:$0xff]
        %v1364 = vld [vmem:[%s1296 + $0x1d0] sm:$0xff]
        %v1365 = vld [vmem:[%s1296 + $0x1d8] sm:$0xff]
        %v1366 = vld [vmem:[%s1296 + $0x1e0] sm:$0xff]
        %v1367 = vld [vmem:[%s1296 + $0x1e8] sm:$0xff]
        %v1368 = vld [vmem:[%s1296 + $0x1f0] sm:$0xff]
        %v1369 = vld [vmem:[%s1296 + $0x1f8] sm:$0xff]
        %v1370 = vld [vmem:[%s1296 + $0x200] sm:$0xff]
        %v1371 = vld [vmem:[%s1296 + $0x208] sm:$0xff]
        %v1372 = vld [vmem:[%s1296 + $0x210] sm:$0xff]
        %v1373 = vld [vmem:[%s1296 + $0x218] sm:$0xff]
        %v1374 = vld [vmem:[%s1296 + $0x220] sm:$0xff]
        %v1375 = vld [vmem:[%s1296 + $0x228] sm:$0xff]
        %v1376 = vld [vmem:[%s1296 + $0x230] sm:$0xff]
        %v1377 = vld [vmem:[%s1296 + $0x238] sm:$0xff]
        %v1378 = vld [vmem:[%s1296 + $0x240] sm:$0xff]
        %v1379 = vld [vmem:[%s1296 + $0x248] sm:$0xff]
        %v1380 = vld [vmem:[%s1296 + $0x250] sm:$0xff]
        %v1381 = vld [vmem:[%s1296 + $0x258] sm:$0xff]
        %v1382 = vld [vmem:[%s1296 + $0x260] sm:$0xff]
        %v1383 = vld [vmem:[%s1296 + $0x268] sm:$0xff]
        %v1384 = vld [vmem:[%s1296 + $0x270] sm:$0xff]
        %v1385 = vld [vmem:[%s1296 + $0x278] sm:$0xff]
        %v1386 = vld [vmem:[%s1296 + $0x280] sm:$0xff]
        %v1387 = vld [vmem:[%s1296 + $0x288] sm:$0xff]
        %v1388 = vld [vmem:[%s1296 + $0x290] sm:$0xff]
        %v1389 = vld [vmem:[%s1296 + $0x298] sm:$0xff]
        %v1390 = vld [vmem:[%s1296 + $0x2a0] sm:$0xff]
        %v1391 = vld [vmem:[%s1296 + $0x2a8] sm:$0xff]
        %v1392 = vld [vmem:[%s1296 + $0x2b0] sm:$0xff]
        %v1393 = vld [vmem:[%s1296 + $0x2b8] sm:$0xff]
        %v1394 = vld [vmem:[%s1296 + $0x2c0] sm:$0xff]
        %v1395 = vld [vmem:[%s1296 + $0x2c8] sm:$0xff]
        %v1396 = vld [vmem:[%s1296 + $0x2d0] sm:$0xff]
        %v1397 = vld [vmem:[%s1296 + $0x2d8] sm:$0xff]
        %v1398 = vld [vmem:[%s1296 + $0x2e0] sm:$0xff]
        %v1399 = vld [vmem:[%s1296 + $0x2e8] sm:$0xff]
        %v1400 = vld [vmem:[%s1296 + $0x2f0] sm:$0xff]
        %v1401 = vld [vmem:[%s1296 + $0x2f8] sm:$0xff]
        %v1402 = vld [vmem:[%s1296 + $0x300] sm:$0x11]
        %v1403 = vld [vmem:[%s1296 + $0x308] sm:$0x11]
        %v1404 = vld [vmem:[%s1296 + $0x310] sm:$0x11]
        %v1405 = vld [vmem:[%s1296 + $0x318] sm:$0x11]
        %v1406 = vld [vmem:[%s1296 + $0x320] sm:$0x11]
        %v1407 = vld [vmem:[%s1296 + $0x328] sm:$0x11]
        %v1408 = vld [vmem:[%s1296 + $0x330] sm:$0x11]
        %v1409 = vld [vmem:[%s1296 + $0x338] sm:$0x11]
        %v1410 = vld [vmem:[%s1257] sm:$0xf]
        %v1411 = vld [vmem:[%s1257 + $0x4] sm:$0xf]
        %v1412 = vld [vmem:[%s1257 + $0x8] sm:$0xf]
        %v1413 = vld [vmem:[%s1257 + $0xc] sm:$0xf]
        %v1414 = vld [vmem:[%s1257 + $0x10] sm:$0xf]
        %v1415 = vld [vmem:[%s1257 + $0x14] sm:$0xf]
        %v1416 = vld [vmem:[%s1257 + $0x18] sm:$0xf]
        %v1417 = vld [vmem:[%s1257 + $0x1c] sm:$0xf]
        %v1418 = vld [vmem:[%s1257 + $0x20] sm:$0xf]
        %v1419 = vld [vmem:[%s1257 + $0x24] sm:$0xf]
        %v1420 = vld [vmem:[%s1257 + $0x28] sm:$0xf]
        %v1421 = vld [vmem:[%s1257 + $0x2c] sm:$0xf]
        %v1422 = vld [vmem:[%s1257 + $0x30] sm:$0xf]
        %v1423 = vld [vmem:[%s1257 + $0x34] sm:$0xf]
        %v1424 = vld [vmem:[%s1257 + $0x38] sm:$0xf]
        %v1425 = vld [vmem:[%s1257 + $0x3c] sm:$0xf]
        %v1426 = vld [vmem:[%s1257 + $0x40] sm:$0xf]
        %v1427 = vld [vmem:[%s1257 + $0x44] sm:$0xf]
        %v1428 = vld [vmem:[%s1257 + $0x48] sm:$0xf]
        %v1429 = vld [vmem:[%s1257 + $0x4c] sm:$0xf]
        %v1430 = vld [vmem:[%s1257 + $0x50] sm:$0xf]
        %v1431 = vld [vmem:[%s1257 + $0x54] sm:$0xf]
        %v1432 = vld [vmem:[%s1257 + $0x58] sm:$0xf]
        %v1433 = vld [vmem:[%s1257 + $0x5c] sm:$0xf]
        %v1434 = vld [vmem:[%s1257 + $0x60] sm:$0xf]
        %v1435 = vld [vmem:[%s1257 + $0x64] sm:$0xf]
        %v1436 = vld [vmem:[%s1257 + $0x68] sm:$0xf]
        %v1437 = vld [vmem:[%s1257 + $0x6c] sm:$0xf]
        %v1438 = vld [vmem:[%s1257 + $0x70] sm:$0xf]
        %v1439 = vld [vmem:[%s1257 + $0x74] sm:$0xf]
        %v1440 = vld [vmem:[%s1257 + $0x78] sm:$0xf]
        %v1441 = vld [vmem:[%s1257 + $0x7c] sm:$0xf]
        %v1442 = vld [vmem:[%s1257 + $0x80] sm:$0xf]
        %v1443 = vld [vmem:[%s1257 + $0x84] sm:$0xf]
        %v1444 = vld [vmem:[%s1257 + $0x88] sm:$0xf]
        %v1445 = vld [vmem:[%s1257 + $0x8c] sm:$0xf]
        %v1446 = vld [vmem:[%s1257 + $0x90] sm:$0xf]
        %v1447 = vld [vmem:[%s1257 + $0x94] sm:$0xf]
        %v1448 = vld [vmem:[%s1257 + $0x98] sm:$0xf]
        %v1449 = vld [vmem:[%s1257 + $0x9c] sm:$0xf]
        %v1450 = vld [vmem:[%s1257 + $0xa0] sm:$0xf]
        %v1451 = vld [vmem:[%s1257 + $0xa4] sm:$0xf]
        %v1452 = vld [vmem:[%s1257 + $0xa8] sm:$0xf]
        %v1453 = vld [vmem:[%s1257 + $0xac] sm:$0xf]
        %v1454 = vld [vmem:[%s1257 + $0xb0] sm:$0xf]
        %v1455 = vld [vmem:[%s1257 + $0xb4] sm:$0xf]
        %v1456 = vld [vmem:[%s1257 + $0xb8] sm:$0xf]
        %v1457 = vld [vmem:[%s1257 + $0xbc] sm:$0xf]
        %v1458 = vld [vmem:[%s1257 + $0xc0] sm:$0xf]
        %v1459 = vld [vmem:[%s1257 + $0xc4] sm:$0xf]
        %v1460 = vld [vmem:[%s1257 + $0xc8] sm:$0xf]
        %v1461 = vld [vmem:[%s1257 + $0xcc] sm:$0xf]
        %v1462 = vld [vmem:[%s1257 + $0xd0] sm:$0xf]
        %v1463 = vld [vmem:[%s1257 + $0xd4] sm:$0xf]
        %v1464 = vld [vmem:[%s1257 + $0xd8] sm:$0xf]
        %v1465 = vld [vmem:[%s1257 + $0xdc] sm:$0xf]
        %v1466 = vld [vmem:[%s1257 + $0xe0] sm:$0xf]
        %v1467 = vld [vmem:[%s1257 + $0xe4] sm:$0xf]
        %v1468 = vld [vmem:[%s1257 + $0xe8] sm:$0xf]
        %v1469 = vld [vmem:[%s1257 + $0xec] sm:$0xf]
        %v1470 = vld [vmem:[%s1257 + $0xf0] sm:$0xf]
        %v1471 = vld [vmem:[%s1257 + $0xf4] sm:$0xf]
        %v1472 = vld [vmem:[%s1257 + $0xf8] sm:$0xf]
        %v1473 = vld [vmem:[%s1257 + $0xfc] sm:$0xf]
        %v1474 = vld [vmem:[%s1257 + $0x100] sm:$0xf]
        %v1475 = vld [vmem:[%s1257 + $0x104] sm:$0xf]
        %v1476 = vld [vmem:[%s1257 + $0x108] sm:$0xf]
        %v1477 = vld [vmem:[%s1257 + $0x10c] sm:$0xf]
        %v1478 = vld [vmem:[%s1257 + $0x110] sm:$0xf]
        %v1479 = vld [vmem:[%s1257 + $0x114] sm:$0xf]
        %v1480 = vld [vmem:[%s1257 + $0x118] sm:$0xf]
        %v1481 = vld [vmem:[%s1257 + $0x11c] sm:$0xf]
        %v1482 = vld [vmem:[%s1257 + $0x120] sm:$0xf]
        %v1483 = vld [vmem:[%s1257 + $0x124] sm:$0xf]
        %v1484 = vld [vmem:[%s1257 + $0x128] sm:$0xf]
        %v1485 = vld [vmem:[%s1257 + $0x12c] sm:$0xf]
        %v1486 = vld [vmem:[%s1257 + $0x130] sm:$0xf]
        %v1487 = vld [vmem:[%s1257 + $0x134] sm:$0xf]
        %v1488 = vld [vmem:[%s1257 + $0x138] sm:$0xf]
        %v1489 = vld [vmem:[%s1257 + $0x13c] sm:$0xf]
        %v1490 = vld [vmem:[%s1257 + $0x140] sm:$0xf]
        %v1491 = vld [vmem:[%s1257 + $0x144] sm:$0xf]
        %v1492 = vld [vmem:[%s1257 + $0x148] sm:$0xf]
        %v1493 = vld [vmem:[%s1257 + $0x14c] sm:$0xf]
        %v1494 = vld [vmem:[%s1257 + $0x150] sm:$0xf]
        %v1495 = vld [vmem:[%s1257 + $0x154] sm:$0xf]
        %v1496 = vld [vmem:[%s1257 + $0x158] sm:$0xf]
        %v1497 = vld [vmem:[%s1257 + $0x15c] sm:$0xf]
        %v1498 = vld [vmem:[%s1257 + $0x160] sm:$0xf]
        %v1499 = vld [vmem:[%s1257 + $0x164] sm:$0xf]
        %v1500 = vld [vmem:[%s1257 + $0x168] sm:$0xf]
        %v1501 = vld [vmem:[%s1257 + $0x16c] sm:$0xf]
        %v1502 = vld [vmem:[%s1257 + $0x170] sm:$0xf]
        %v1503 = vld [vmem:[%s1257 + $0x174] sm:$0xf]
        %v1504 = vld [vmem:[%s1257 + $0x178] sm:$0xf]
        %v1505 = vld [vmem:[%s1257 + $0x17c] sm:$0xf]
        %v1506 = vld [vmem:[%s1257 + $0x180] sm:$0xf]
        %v1507 = vld [vmem:[%s1257 + $0x184] sm:$0xf]
        %v1508 = vld [vmem:[%s1257 + $0x188] sm:$0xf]
        %v1509 = vld [vmem:[%s1257 + $0x18c] sm:$0xf]
        %v1510 = vld [vmem:[%s1257 + $0x190] sm:$0xf]
        %v1511 = vld [vmem:[%s1257 + $0x194] sm:$0xf]
        %v1512 = vld [vmem:[%s1257 + $0x198] sm:$0xf]
        %v1513 = vld [vmem:[%s1257 + $0x19c] sm:$0xf]
        %v1514 = vld [vmem:[%s1257 + $0x1a0] sm:$0xf]
        %v1515 = vld [vmem:[%s1257 + $0x1a4] sm:$0xf]
        %v1516 = vld [vmem:[%s1257 + $0x1a8] sm:$0xf]
        %v1517 = vld [vmem:[%s1257 + $0x1ac] sm:$0xf]
        %v1518 = vld [vmem:[%s1257 + $0x1b0] sm:$0xf]
        %v1519 = vld [vmem:[%s1257 + $0x1b4] sm:$0xf]
        %v1520 = vld [vmem:[%s1257 + $0x1b8] sm:$0xf]
        %v1521 = vld [vmem:[%s1257 + $0x1bc] sm:$0xf]
        %v1522 = vld [vmem:[%s1257 + $0x1c0] sm:$0xf]
        %v1523 = vld [vmem:[%s1257 + $0x1c4] sm:$0xf]
        %v1524 = vld [vmem:[%s1257 + $0x1c8] sm:$0xf]
        %v1525 = vld [vmem:[%s1257 + $0x1cc] sm:$0xf]
        %v1526 = vld [vmem:[%s1257 + $0x1d0] sm:$0xf]
        %v1527 = vld [vmem:[%s1257 + $0x1d4] sm:$0xf]
        %v1528 = vld [vmem:[%s1257 + $0x1d8] sm:$0xf]
        %v1529 = vld [vmem:[%s1257 + $0x1dc] sm:$0xf]
        %v1530 = vld [vmem:[%s1257 + $0x1e0] sm:$0xf]
        %v1531 = vld [vmem:[%s1257 + $0x1e4] sm:$0xf]
        %v1532 = vld [vmem:[%s1257 + $0x1e8] sm:$0xf]
        %v1533 = vld [vmem:[%s1257 + $0x1ec] sm:$0xf]
        %v1534 = vld [vmem:[%s1257 + $0x1f0] sm:$0xf]
        %v1535 = vld [vmem:[%s1257 + $0x1f4] sm:$0xf]
        %v1536 = vld [vmem:[%s1257 + $0x1f8] sm:$0xf]
        %v1537 = vld [vmem:[%s1257 + $0x1fc] sm:$0xf]
        %v1538 = vld [vmem:[%s1257 + $0x200] sm:$0xf]
        %v1539 = vld [vmem:[%s1257 + $0x204] sm:$0xf]
        %v1540 = vld [vmem:[%s1257 + $0x208] sm:$0xf]
        %v1541 = vld [vmem:[%s1257 + $0x20c] sm:$0xf]
        %v1542 = vld [vmem:[%s1257 + $0x210] sm:$0xf]
        %v1543 = vld [vmem:[%s1257 + $0x214] sm:$0xf]
        %v1544 = vld [vmem:[%s1257 + $0x218] sm:$0xf]
        %v1545 = vld [vmem:[%s1257 + $0x21c] sm:$0xf]
        %v1546 = vld [vmem:[%s1257 + $0x220] sm:$0xf]
        %v1547 = vld [vmem:[%s1257 + $0x224] sm:$0xf]
        %v1548 = vld [vmem:[%s1257 + $0x228] sm:$0xf]
        %v1549 = vld [vmem:[%s1257 + $0x22c] sm:$0xf]
        %v1550 = vld [vmem:[%s1257 + $0x230] sm:$0xf]
        %v1551 = vld [vmem:[%s1257 + $0x234] sm:$0xf]
        %v1552 = vld [vmem:[%s1257 + $0x238] sm:$0xf]
        %v1553 = vld [vmem:[%s1257 + $0x23c] sm:$0xf]
        %v1554 = vld [vmem:[%s1257 + $0x240] sm:$0xf]
        %v1555 = vld [vmem:[%s1257 + $0x244] sm:$0xf]
        %v1556 = vld [vmem:[%s1257 + $0x248] sm:$0xf]
        %v1557 = vld [vmem:[%s1257 + $0x24c] sm:$0xf]
        %v1558 = vld [vmem:[%s1257 + $0x250] sm:$0xf]
        %v1559 = vld [vmem:[%s1257 + $0x254] sm:$0xf]
        %v1560 = vld [vmem:[%s1257 + $0x258] sm:$0xf]
        %v1561 = vld [vmem:[%s1257 + $0x25c] sm:$0xf]
        %v1562 = vld [vmem:[%s1257 + $0x260] sm:$0xf]
        %v1563 = vld [vmem:[%s1257 + $0x264] sm:$0xf]
        %v1564 = vld [vmem:[%s1257 + $0x268] sm:$0xf]
        %v1565 = vld [vmem:[%s1257 + $0x26c] sm:$0xf]
        %v1566 = vld [vmem:[%s1257 + $0x270] sm:$0xf]
        %v1567 = vld [vmem:[%s1257 + $0x274] sm:$0xf]
        %v1568 = vld [vmem:[%s1257 + $0x278] sm:$0xf]
        %v1569 = vld [vmem:[%s1257 + $0x27c] sm:$0xf]
        %v1570 = vld [vmem:[%s1257 + $0x280] sm:$0xf]
        %v1571 = vld [vmem:[%s1257 + $0x284] sm:$0xf]
        %v1572 = vld [vmem:[%s1257 + $0x288] sm:$0xf]
        %v1573 = vld [vmem:[%s1257 + $0x28c] sm:$0xf]
        %v1574 = vld [vmem:[%s1257 + $0x290] sm:$0xf]
        %v1575 = vld [vmem:[%s1257 + $0x294] sm:$0xf]
        %v1576 = vld [vmem:[%s1257 + $0x298] sm:$0xf]
        %v1577 = vld [vmem:[%s1257 + $0x29c] sm:$0xf]
        %v1578 = vld [vmem:[%s1257 + $0x2a0] sm:$0xf]
        %v1579 = vld [vmem:[%s1257 + $0x2a4] sm:$0xf]
        %v1580 = vld [vmem:[%s1257 + $0x2a8] sm:$0xf]
        %v1581 = vld [vmem:[%s1257 + $0x2ac] sm:$0xf]
        %v1582 = vld [vmem:[%s1257 + $0x2b0] sm:$0xf]
        %v1583 = vld [vmem:[%s1257 + $0x2b4] sm:$0xf]
        %v1584 = vld [vmem:[%s1257 + $0x2b8] sm:$0xf]
        %v1585 = vld [vmem:[%s1257 + $0x2bc] sm:$0xf]
        %v1586 = vld [vmem:[%s1257 + $0x2c0] sm:$0xf]
        %v1587 = vld [vmem:[%s1257 + $0x2c4] sm:$0xf]
        %v1588 = vld [vmem:[%s1257 + $0x2c8] sm:$0xf]
        %v1589 = vld [vmem:[%s1257 + $0x2cc] sm:$0xf]
        %v1590 = vld [vmem:[%s1257 + $0x2d0] sm:$0xf]
        %v1591 = vld [vmem:[%s1257 + $0x2d4] sm:$0xf]
        %v1592 = vld [vmem:[%s1257 + $0x2d8] sm:$0xf]
        %v1593 = vld [vmem:[%s1257 + $0x2dc] sm:$0xf]
        %v1594 = vld [vmem:[%s1257 + $0x2e0] sm:$0xf]
        %v1595 = vld [vmem:[%s1257 + $0x2e4] sm:$0xf]
        %v1596 = vld [vmem:[%s1257 + $0x2e8] sm:$0xf]
        %v1597 = vld [vmem:[%s1257 + $0x2ec] sm:$0xf]
        %v1598 = vld [vmem:[%s1257 + $0x2f0] sm:$0xf]
        %v1599 = vld [vmem:[%s1257 + $0x2f4] sm:$0xf]
        %v1600 = vld [vmem:[%s1257 + $0x2f8] sm:$0xf]
        %v1601 = vld [vmem:[%s1257 + $0x2fc] sm:$0xf]
        %v1602 = vld [vmem:[%s1257 + $0x300] sm:$0xf]
        %v1603 = vld [vmem:[%s1257 + $0x304] sm:$0xf]
        %v1604 = vld [vmem:[%s1257 + $0x308] sm:$0xf]
        %v1605 = vld [vmem:[%s1257 + $0x30c] sm:$0xf]
        %v1606 = vld [vmem:[%s1257 + $0x310] sm:$0xf]
        %v1607 = vld [vmem:[%s1257 + $0x314] sm:$0xf]
        %v1608 = vld [vmem:[%s1257 + $0x318] sm:$0xf]
        %v1609 = vld [vmem:[%s1257 + $0x31c] sm:$0xf]
        %v1610 = vld [vmem:[%s1257 + $0x320] sm:$0xf]
        %v1611 = vld [vmem:[%s1257 + $0x324] sm:$0xf]
        %v1612 = vld [vmem:[%s1257 + $0x328] sm:$0xf]
        %v1613 = vld [vmem:[%s1257 + $0x32c] sm:$0xf]
        %v1614 = vld [vmem:[%s1257 + $0x330] sm:$0xf]
        %v1615 = vld [vmem:[%s1257 + $0x334] sm:$0xf]
        %v1616 = vld [vmem:[%s1257 + $0x338] sm:$0xf]
        %v1617 = vld [vmem:[%s1257 + $0x33c] sm:$0xf]
        %v1618 = vld [vmem:[%s1257 + $0x340] sm:$0xf]
        %v1619 = vld [vmem:[%s1257 + $0x344] sm:$0xf]
        %v1620 = vld [vmem:[%s1257 + $0x348] sm:$0xf]
        %v1621 = vld [vmem:[%s1257 + $0x34c] sm:$0xf]
        %v1622 = vld [vmem:[%s1257 + $0x350] sm:$0xf]
        %v1623 = vld [vmem:[%s1257 + $0x354] sm:$0xf]
        %v1624 = vld [vmem:[%s1257 + $0x358] sm:$0xf]
        %v1625 = vld [vmem:[%s1257 + $0x35c] sm:$0xf]
        %v1626 = vld [vmem:[%s1257 + $0x360] sm:$0xf]
        %v1627 = vld [vmem:[%s1257 + $0x364] sm:$0xf]
        %v1628 = vld [vmem:[%s1257 + $0x368] sm:$0xf]
        %v1629 = vld [vmem:[%s1257 + $0x36c] sm:$0xf]
        %v1630 = vld [vmem:[%s1257 + $0x370] sm:$0xf]
        %v1631 = vld [vmem:[%s1257 + $0x374] sm:$0xf]
        %v1632 = vld [vmem:[%s1257 + $0x378] sm:$0xf]
        %v1633 = vld [vmem:[%s1257 + $0x37c] sm:$0xf]
        %v1634 = vld [vmem:[%s1257 + $0x380] sm:$0xf]
        %v1635 = vld [vmem:[%s1257 + $0x384] sm:$0xf]
        %v1636 = vld [vmem:[%s1257 + $0x388] sm:$0xf]
        %v1637 = vld [vmem:[%s1257 + $0x38c] sm:$0xf]
        %v1638 = vld [vmem:[%s1257 + $0x390] sm:$0xf]
        %v1639 = vld [vmem:[%s1257 + $0x394] sm:$0xf]
        %v1640 = vld [vmem:[%s1257 + $0x398] sm:$0xf]
        %v1641 = vld [vmem:[%s1257 + $0x39c] sm:$0xf]
        %v1642 = vld [vmem:[%s1257 + $0x3a0] sm:$0xf]
        %v1643 = vld [vmem:[%s1257 + $0x3a4] sm:$0xf]
        %v1644 = vld [vmem:[%s1257 + $0x3a8] sm:$0xf]
        %v1645 = vld [vmem:[%s1257 + $0x3ac] sm:$0xf]
        %v1646 = vld [vmem:[%s1257 + $0x3b0] sm:$0xf]
        %v1647 = vld [vmem:[%s1257 + $0x3b4] sm:$0xf]
        %v1648 = vld [vmem:[%s1257 + $0x3b8] sm:$0xf]
        %v1649 = vld [vmem:[%s1257 + $0x3bc] sm:$0xf]
        %v1650 = vld [vmem:[%s1257 + $0x3c0] sm:$0xf]
        %v1651 = vld [vmem:[%s1257 + $0x3c4] sm:$0xf]
        %v1652 = vld [vmem:[%s1257 + $0x3c8] sm:$0xf]
        %v1653 = vld [vmem:[%s1257 + $0x3cc] sm:$0xf]
        %v1654 = vld [vmem:[%s1257 + $0x3d0] sm:$0xf]
        %v1655 = vld [vmem:[%s1257 + $0x3d4] sm:$0xf]
        %v1656 = vld [vmem:[%s1257 + $0x3d8] sm:$0xf]
        %v1657 = vld [vmem:[%s1257 + $0x3dc] sm:$0xf]
        %v1658 = vld [vmem:[%s1257 + $0x3e0] sm:$0xf]
        %v1659 = vld [vmem:[%s1257 + $0x3e4] sm:$0xf]
        %v1660 = vld [vmem:[%s1257 + $0x3e8] sm:$0xf]
        %v1661 = vld [vmem:[%s1257 + $0x3ec] sm:$0xf]
        %v1766 = vunpack.c.l.b16 %v1306
        %v1767 = vunpack.c.h.b16 %v1306
        %v1768 = vunpack.c.l.b16 %v1307
        %v1769 = vunpack.c.h.b16 %v1307
        %v1770 = vunpack.c.l.b16 %v1308
        %v1771 = vunpack.c.h.b16 %v1308
        %v1772 = vunpack.c.l.b16 %v1309
        %v1773 = vunpack.c.h.b16 %v1309
        %v1774 = vunpack.c.l.b16 %v1310
        %v1775 = vunpack.c.h.b16 %v1310
        %v1776 = vunpack.c.l.b16 %v1311
        %v1777 = vunpack.c.h.b16 %v1311
        %v1778 = vunpack.c.l.b16 %v1312
        %v1779 = vunpack.c.h.b16 %v1312
        %v1780 = vunpack.c.l.b16 %v1313
        %v1781 = vunpack.c.h.b16 %v1313
        %v1782 = vunpack.c.l.b16 %v1314
        %v1783 = vunpack.c.h.b16 %v1314
        %v1784 = vunpack.c.l.b16 %v1315
        %v1785 = vunpack.c.h.b16 %v1315
        %v1786 = vunpack.c.l.b16 %v1316
        %v1787 = vunpack.c.h.b16 %v1316
        %v1788 = vunpack.c.l.b16 %v1317
        %v1789 = vunpack.c.h.b16 %v1317
        %v1790 = vunpack.c.l.b16 %v1318
        %v1791 = vunpack.c.h.b16 %v1318
        %v1792 = vunpack.c.l.b16 %v1319
        %v1793 = vunpack.c.h.b16 %v1319
        %v1794 = vunpack.c.l.b16 %v1320
        %v1795 = vunpack.c.h.b16 %v1320
        %v1796 = vunpack.c.l.b16 %v1321
        %v1797 = vunpack.c.h.b16 %v1321
        %v1798 = vunpack.c.l.b16 %v1322
        %v1799 = vunpack.c.h.b16 %v1322
        %v1800 = vunpack.c.l.b16 %v1323
        %v1801 = vunpack.c.h.b16 %v1323
        %v1802 = vunpack.c.l.b16 %v1324
        %v1803 = vunpack.c.h.b16 %v1324
        %v1804 = vunpack.c.l.b16 %v1325
        %v1805 = vunpack.c.h.b16 %v1325
        %v1806 = vunpack.c.l.b16 %v1326
        %v1807 = vunpack.c.h.b16 %v1326
        %v1808 = vunpack.c.l.b16 %v1327
        %v1809 = vunpack.c.h.b16 %v1327
        %v1810 = vunpack.c.l.b16 %v1328
        %v1811 = vunpack.c.h.b16 %v1328
        %v1812 = vunpack.c.l.b16 %v1329
        %v1813 = vunpack.c.h.b16 %v1329
        %v1814 = vunpack.c.l.b16 %v1330
        %v1815 = vunpack.c.h.b16 %v1330
        %v1816 = vunpack.c.l.b16 %v1331
        %v1817 = vunpack.c.h.b16 %v1331
        %v1818 = vunpack.c.l.b16 %v1332
        %v1819 = vunpack.c.h.b16 %v1332
        %v1820 = vunpack.c.l.b16 %v1333
        %v1821 = vunpack.c.h.b16 %v1333
        %v1822 = vunpack.c.l.b16 %v1334
        %v1823 = vunpack.c.h.b16 %v1334
        %v1824 = vunpack.c.l.b16 %v1335
        %v1825 = vunpack.c.h.b16 %v1335
        %v1826 = vunpack.c.l.b16 %v1336
        %v1827 = vunpack.c.h.b16 %v1336
        %v1828 = vunpack.c.l.b16 %v1337
        %v1829 = vunpack.c.h.b16 %v1337
        %v1830 = vunpack.c.l.b16 %v1338
        %v1831 = vunpack.c.h.b16 %v1338
        %v1832 = vunpack.c.l.b16 %v1339
        %v1833 = vunpack.c.h.b16 %v1339
        %v1834 = vunpack.c.l.b16 %v1340
        %v1835 = vunpack.c.h.b16 %v1340
        %v1836 = vunpack.c.l.b16 %v1341
        %v1837 = vunpack.c.h.b16 %v1341
        %v1838 = vunpack.c.l.b16 %v1342
        %v1839 = vunpack.c.h.b16 %v1342
        %v1840 = vunpack.c.l.b16 %v1343
        %v1841 = vunpack.c.h.b16 %v1343
        %v1842 = vunpack.c.l.b16 %v1344
        %v1843 = vunpack.c.h.b16 %v1344
        %v1844 = vunpack.c.l.b16 %v1345
        %v1845 = vunpack.c.h.b16 %v1345
        %v1846 = vunpack.c.l.b16 %v1346
        %v1847 = vunpack.c.h.b16 %v1346
        %v1848 = vunpack.c.l.b16 %v1347
        %v1849 = vunpack.c.h.b16 %v1347
        %v1850 = vunpack.c.l.b16 %v1348
        %v1851 = vunpack.c.h.b16 %v1348
        %v1852 = vunpack.c.l.b16 %v1349
        %v1853 = vunpack.c.h.b16 %v1349
        %v1854 = vunpack.c.l.b16 %v1350
        %v1855 = vunpack.c.h.b16 %v1350
        %v1856 = vunpack.c.l.b16 %v1351
        %v1857 = vunpack.c.h.b16 %v1351
        %v1858 = vunpack.c.l.b16 %v1352
        %v1859 = vunpack.c.h.b16 %v1352
        %v1860 = vunpack.c.l.b16 %v1353
        %v1861 = vunpack.c.h.b16 %v1353
        %v1862 = vunpack.c.l.b16 %v1354
        %v1863 = vunpack.c.h.b16 %v1354
        %v1864 = vunpack.c.l.b16 %v1355
        %v1865 = vunpack.c.h.b16 %v1355
        %v1866 = vunpack.c.l.b16 %v1356
        %v1867 = vunpack.c.h.b16 %v1356
        %v1868 = vunpack.c.l.b16 %v1357
        %v1869 = vunpack.c.h.b16 %v1357
        %v1870 = vunpack.c.l.b16 %v1358
        %v1871 = vunpack.c.h.b16 %v1358
        %v1872 = vunpack.c.l.b16 %v1359
        %v1873 = vunpack.c.h.b16 %v1359
        %v1874 = vunpack.c.l.b16 %v1360
        %v1875 = vunpack.c.h.b16 %v1360
        %v1876 = vunpack.c.l.b16 %v1361
        %v1877 = vunpack.c.h.b16 %v1361
        %v1878 = vunpack.c.l.b16 %v1362
        %v1879 = vunpack.c.h.b16 %v1362
        %v1880 = vunpack.c.l.b16 %v1363
        %v1881 = vunpack.c.h.b16 %v1363
        %v1882 = vunpack.c.l.b16 %v1364
        %v1883 = vunpack.c.h.b16 %v1364
        %v1884 = vunpack.c.l.b16 %v1365
        %v1885 = vunpack.c.h.b16 %v1365
        %v1886 = vunpack.c.l.b16 %v1366
        %v1887 = vunpack.c.h.b16 %v1366
        %v1888 = vunpack.c.l.b16 %v1367
        %v1889 = vunpack.c.h.b16 %v1367
        %v1890 = vunpack.c.l.b16 %v1368
        %v1891 = vunpack.c.h.b16 %v1368
        %v1892 = vunpack.c.l.b16 %v1369
        %v1893 = vunpack.c.h.b16 %v1369
        %v1894 = vunpack.c.l.b16 %v1370
        %v1895 = vunpack.c.h.b16 %v1370
        %v1896 = vunpack.c.l.b16 %v1371
        %v1897 = vunpack.c.h.b16 %v1371
        %v1898 = vunpack.c.l.b16 %v1372
        %v1899 = vunpack.c.h.b16 %v1372
        %v1900 = vunpack.c.l.b16 %v1373
        %v1901 = vunpack.c.h.b16 %v1373
        %v1902 = vunpack.c.l.b16 %v1374
        %v1903 = vunpack.c.h.b16 %v1374
        %v1904 = vunpack.c.l.b16 %v1375
        %v1905 = vunpack.c.h.b16 %v1375
        %v1906 = vunpack.c.l.b16 %v1376
        %v1907 = vunpack.c.h.b16 %v1376
        %v1908 = vunpack.c.l.b16 %v1377
        %v1909 = vunpack.c.h.b16 %v1377
        %v1910 = vunpack.c.l.b16 %v1378
        %v1911 = vunpack.c.h.b16 %v1378
        %v1912 = vunpack.c.l.b16 %v1379
        %v1913 = vunpack.c.h.b16 %v1379
        %v1914 = vunpack.c.l.b16 %v1380
        %v1915 = vunpack.c.h.b16 %v1380
        %v1916 = vunpack.c.l.b16 %v1381
        %v1917 = vunpack.c.h.b16 %v1381
        %v1918 = vunpack.c.l.b16 %v1382
        %v1919 = vunpack.c.h.b16 %v1382
        %v1920 = vunpack.c.l.b16 %v1383
        %v1921 = vunpack.c.h.b16 %v1383
        %v1922 = vunpack.c.l.b16 %v1384
        %v1923 = vunpack.c.h.b16 %v1384
        %v1924 = vunpack.c.l.b16 %v1385
        %v1925 = vunpack.c.h.b16 %v1385
        %v1926 = vunpack.c.l.b16 %v1386
        %v1927 = vunpack.c.h.b16 %v1386
        %v1928 = vunpack.c.l.b16 %v1387
        %v1929 = vunpack.c.h.b16 %v1387
        %v1930 = vunpack.c.l.b16 %v1388
        %v1931 = vunpack.c.h.b16 %v1388
        %v1932 = vunpack.c.l.b16 %v1389
        %v1933 = vunpack.c.h.b16 %v1389
        %v1934 = vunpack.c.l.b16 %v1390
        %v1935 = vunpack.c.h.b16 %v1390
        %v1936 = vunpack.c.l.b16 %v1391
        %v1937 = vunpack.c.h.b16 %v1391
        %v1938 = vunpack.c.l.b16 %v1392
        %v1939 = vunpack.c.h.b16 %v1392
        %v1940 = vunpack.c.l.b16 %v1393
        %v1941 = vunpack.c.h.b16 %v1393
        %v1942 = vunpack.c.l.b16 %v1394
        %v1943 = vunpack.c.h.b16 %v1394
        %v1944 = vunpack.c.l.b16 %v1395
        %v1945 = vunpack.c.h.b16 %v1395
        %v1946 = vunpack.c.l.b16 %v1396
        %v1947 = vunpack.c.h.b16 %v1396
        %v1948 = vunpack.c.l.b16 %v1397
        %v1949 = vunpack.c.h.b16 %v1397
        %v1950 = vunpack.c.l.b16 %v1398
        %v1951 = vunpack.c.h.b16 %v1398
        %v1952 = vunpack.c.l.b16 %v1399
        %v1953 = vunpack.c.h.b16 %v1399
        %v1954 = vunpack.c.l.b16 %v1400
        %v1955 = vunpack.c.h.b16 %v1400
        %v1956 = vunpack.c.l.b16 %v1401
        %v1957 = vunpack.c.h.b16 %v1401
        %v1958 = vunpack.c.l.b16 %v1402
        %v1959 = vunpack.c.h.b16 %v1402
        %v1960 = vunpack.c.l.b16 %v1403
        %v1961 = vunpack.c.h.b16 %v1403
        %v1962 = vunpack.c.l.b16 %v1404
        %v1963 = vunpack.c.h.b16 %v1404
        %v1964 = vunpack.c.l.b16 %v1405
        %v1965 = vunpack.c.h.b16 %v1405
        %v1966 = vunpack.c.l.b16 %v1406
        %v1967 = vunpack.c.h.b16 %v1406
        %v1968 = vunpack.c.l.b16 %v1407
        %v1969 = vunpack.c.h.b16 %v1407
        %v1970 = vunpack.c.l.b16 %v1408
        %v1971 = vunpack.c.h.b16 %v1408
        %v1972 = vunpack.c.l.b16 %v1409
        %v1973 = vunpack.c.h.b16 %v1409
        %v1974 = vpack.c.b16 %v1782, %v1766
        %v1975 = vpack.c.b16 %v1783, %v1767
        %v1976 = vpack.c.b16 %v1784, %v1768
        %v1977 = vpack.c.b16 %v1785, %v1769
        %v1978 = vpack.c.b16 %v1786, %v1770
        %v1979 = vpack.c.b16 %v1787, %v1771
        %v1980 = vpack.c.b16 %v1788, %v1772
        %v1981 = vpack.c.b16 %v1789, %v1773
        %v1982 = vpack.c.b16 %v1790, %v1774
        %v1983 = vpack.c.b16 %v1791, %v1775
        %v1984 = vpack.c.b16 %v1792, %v1776
        %v1985 = vpack.c.b16 %v1793, %v1777
        %v1986 = vpack.c.b16 %v1794, %v1778
        %v1987 = vpack.c.b16 %v1795, %v1779
        %v1988 = vpack.c.b16 %v1796, %v1780
        %v1989 = vpack.c.b16 %v1797, %v1781
        %v1990 = vpack.c.b16 %v1814, %v1798
        %v1991 = vpack.c.b16 %v1815, %v1799
        %v1992 = vpack.c.b16 %v1816, %v1800
        %v1993 = vpack.c.b16 %v1817, %v1801
        %v1994 = vpack.c.b16 %v1818, %v1802
        %v1995 = vpack.c.b16 %v1819, %v1803
        %v1996 = vpack.c.b16 %v1820, %v1804
        %v1997 = vpack.c.b16 %v1821, %v1805
        %v1998 = vpack.c.b16 %v1822, %v1806
        %v1999 = vpack.c.b16 %v1823, %v1807
        %v2000 = vpack.c.b16 %v1824, %v1808
        %v2001 = vpack.c.b16 %v1825, %v1809
        %v2002 = vpack.c.b16 %v1826, %v1810
        %v2003 = vpack.c.b16 %v1827, %v1811
        %v2004 = vpack.c.b16 %v1828, %v1812
        %v2005 = vpack.c.b16 %v1829, %v1813
        %v2006 = vpack.c.b16 %v1846, %v1830
        %v2007 = vpack.c.b16 %v1847, %v1831
        %v2008 = vpack.c.b16 %v1848, %v1832
        %v2009 = vpack.c.b16 %v1849, %v1833
        %v2010 = vpack.c.b16 %v1850, %v1834
        %v2011 = vpack.c.b16 %v1851, %v1835
        %v2012 = vpack.c.b16 %v1852, %v1836
        %v2013 = vpack.c.b16 %v1853, %v1837
        %v2014 = vpack.c.b16 %v1854, %v1838
        %v2015 = vpack.c.b16 %v1855, %v1839
        %v2016 = vpack.c.b16 %v1856, %v1840
        %v2017 = vpack.c.b16 %v1857, %v1841
        %v2018 = vpack.c.b16 %v1858, %v1842
        %v2019 = vpack.c.b16 %v1859, %v1843
        %v2020 = vpack.c.b16 %v1860, %v1844
        %v2021 = vpack.c.b16 %v1861, %v1845
        %v2022 = vpack.c.b16 %v1878, %v1862
        %v2023 = vpack.c.b16 %v1879, %v1863
        %v2024 = vpack.c.b16 %v1880, %v1864
        %v2025 = vpack.c.b16 %v1881, %v1865
        %v2026 = vpack.c.b16 %v1882, %v1866
        %v2027 = vpack.c.b16 %v1883, %v1867
        %v2028 = vpack.c.b16 %v1884, %v1868
        %v2029 = vpack.c.b16 %v1885, %v1869
        %v2030 = vpack.c.b16 %v1886, %v1870
        %v2031 = vpack.c.b16 %v1887, %v1871
        %v2032 = vpack.c.b16 %v1888, %v1872
        %v2033 = vpack.c.b16 %v1889, %v1873
        %v2034 = vpack.c.b16 %v1890, %v1874
        %v2035 = vpack.c.b16 %v1891, %v1875
        %v2036 = vpack.c.b16 %v1892, %v1876
        %v2037 = vpack.c.b16 %v1893, %v1877
        %v2038 = vpack.c.b16 %v1910, %v1894
        %v2039 = vpack.c.b16 %v1911, %v1895
        %v2040 = vpack.c.b16 %v1912, %v1896
        %v2041 = vpack.c.b16 %v1913, %v1897
        %v2042 = vpack.c.b16 %v1914, %v1898
        %v2043 = vpack.c.b16 %v1915, %v1899
        %v2044 = vpack.c.b16 %v1916, %v1900
        %v2045 = vpack.c.b16 %v1917, %v1901
        %v2046 = vpack.c.b16 %v1918, %v1902
        %v2047 = vpack.c.b16 %v1919, %v1903
        %v2048 = vpack.c.b16 %v1920, %v1904
        %v2049 = vpack.c.b16 %v1921, %v1905
        %v2050 = vpack.c.b16 %v1922, %v1906
        %v2051 = vpack.c.b16 %v1923, %v1907
        %v2052 = vpack.c.b16 %v1924, %v1908
        %v2053 = vpack.c.b16 %v1925, %v1909
        %v2054 = vpack.c.b16 %v1942, %v1926
        %v2055 = vpack.c.b16 %v1943, %v1927
        %v2056 = vpack.c.b16 %v1944, %v1928
        %v2057 = vpack.c.b16 %v1945, %v1929
        %v2058 = vpack.c.b16 %v1946, %v1930
        %v2059 = vpack.c.b16 %v1947, %v1931
        %v2060 = vpack.c.b16 %v1948, %v1932
        %v2061 = vpack.c.b16 %v1949, %v1933
        %v2062 = vpack.c.b16 %v1950, %v1934
        %v2063 = vpack.c.b16 %v1951, %v1935
        %v2064 = vpack.c.b16 %v1952, %v1936
        %v2065 = vpack.c.b16 %v1953, %v1937
        %v2066 = vpack.c.b16 %v1954, %v1938
        %v2067 = vpack.c.b16 %v1955, %v1939
        %v2068 = vpack.c.b16 %v1956, %v1940
        %v2069 = vpack.c.b16 %v1957, %v1941
        %v2070 = vpack.c.b16 %v1958, %v1958
        %v2071 = vpack.c.b16 %v1959, %v1959
        %v2072 = vpack.c.b16 %v1960, %v1960
        %v2073 = vpack.c.b16 %v1961, %v1961
        %v2074 = vpack.c.b16 %v1962, %v1962
        %v2075 = vpack.c.b16 %v1963, %v1963
        %v2076 = vpack.c.b16 %v1964, %v1964
        %v2077 = vpack.c.b16 %v1965, %v1965
        %v2078 = vpack.c.b16 %v1966, %v1966
        %v2079 = vpack.c.b16 %v1967, %v1967
        %v2080 = vpack.c.b16 %v1968, %v1968
        %v2081 = vpack.c.b16 %v1969, %v1969
        %v2082 = vpack.c.b16 %v1970, %v1970
        %v2083 = vpack.c.b16 %v1971, %v1971
        %v2084 = vpack.c.b16 %v1972, %v1972
        %v2085 = vpack.c.b16 %v1973, %v1973
        %v2443 = vunpack.c.l.b16 %v1410
        %v2444 = vunpack.c.l.b16 %v1411
        %v2445 = vunpack.c.l.b16 %v1412
        %v2446 = vunpack.c.l.b16 %v1413
        %v2447 = vunpack.c.l.b16 %v1414
        %v2448 = vunpack.c.l.b16 %v1415
        %v2449 = vunpack.c.l.b16 %v1416
        %v2450 = vunpack.c.l.b16 %v1417
        %v2451 = vunpack.c.l.b16 %v1418
        %v2452 = vunpack.c.l.b16 %v1419
        %v2453 = vunpack.c.l.b16 %v1420
        %v2454 = vunpack.c.l.b16 %v1421
        %v2455 = vunpack.c.l.b16 %v1422
        %v2456 = vunpack.c.l.b16 %v1423
        %v2457 = vunpack.c.l.b16 %v1424
        %v2458 = vunpack.c.l.b16 %v1425
        %v2459 = vunpack.c.l.b16 %v1426
        %v2460 = vunpack.c.l.b16 %v1427
        %v2461 = vunpack.c.l.b16 %v1428
        %v2462 = vunpack.c.l.b16 %v1429
        %v2463 = vunpack.c.l.b16 %v1430
        %v2464 = vunpack.c.l.b16 %v1431
        %v2465 = vunpack.c.l.b16 %v1432
        %v2466 = vunpack.c.l.b16 %v1433
        %v2467 = vunpack.c.l.b16 %v1434
        %v2468 = vunpack.c.l.b16 %v1435
        %v2469 = vunpack.c.l.b16 %v1436
        %v2470 = vunpack.c.l.b16 %v1437
        %v2471 = vunpack.c.l.b16 %v1438
        %v2472 = vunpack.c.l.b16 %v1439
        %v2473 = vunpack.c.l.b16 %v1440
        %v2474 = vunpack.c.l.b16 %v1441
        %v2475 = vunpack.c.l.b16 %v1442
        %v2476 = vunpack.c.l.b16 %v1443
        %v2477 = vunpack.c.l.b16 %v1444
        %v2478 = vunpack.c.l.b16 %v1445
        %v2479 = vunpack.c.l.b16 %v1446
        %v2480 = vunpack.c.l.b16 %v1447
        %v2481 = vunpack.c.l.b16 %v1448
        %v2482 = vunpack.c.l.b16 %v1449
        %v2483 = vunpack.c.l.b16 %v1450
        %v2484 = vunpack.c.l.b16 %v1451
        %v2485 = vunpack.c.l.b16 %v1452
        %v2486 = vunpack.c.l.b16 %v1453
        %v2487 = vunpack.c.l.b16 %v1454
        %v2488 = vunpack.c.l.b16 %v1455
        %v2489 = vunpack.c.l.b16 %v1456
        %v2490 = vunpack.c.l.b16 %v1457
        %v2491 = vunpack.c.l.b16 %v1458
        %v2492 = vunpack.c.l.b16 %v1459
        %v2493 = vunpack.c.l.b16 %v1460
        %v2494 = vunpack.c.l.b16 %v1461
        %v2495 = vunpack.c.l.b16 %v1462
        %v2496 = vunpack.c.l.b16 %v1463
        %v2497 = vunpack.c.l.b16 %v1464
        %v2498 = vunpack.c.l.b16 %v1465
        %v2499 = vunpack.c.l.b16 %v1466
        %v2500 = vunpack.c.l.b16 %v1467
        %v2501 = vunpack.c.l.b16 %v1468
        %v2502 = vunpack.c.l.b16 %v1469
        %v2503 = vunpack.c.l.b16 %v1470
        %v2504 = vunpack.c.l.b16 %v1471
        %v2505 = vunpack.c.l.b16 %v1472
        %v2506 = vunpack.c.l.b16 %v1473
        %v2507 = vunpack.c.l.b16 %v1474
        %v2508 = vunpack.c.l.b16 %v1475
        %v2509 = vunpack.c.l.b16 %v1476
        %v2510 = vunpack.c.l.b16 %v1477
        %v2511 = vunpack.c.l.b16 %v1478
        %v2512 = vunpack.c.l.b16 %v1479
        %v2513 = vunpack.c.l.b16 %v1480
        %v2514 = vunpack.c.l.b16 %v1481
        %v2515 = vunpack.c.l.b16 %v1482
        %v2516 = vunpack.c.l.b16 %v1483
        %v2517 = vunpack.c.l.b16 %v1484
        %v2518 = vunpack.c.l.b16 %v1485
        %v2519 = vunpack.c.l.b16 %v1486
        %v2520 = vunpack.c.l.b16 %v1487
        %v2521 = vunpack.c.l.b16 %v1488
        %v2522 = vunpack.c.l.b16 %v1489
        %v2523 = vunpack.c.l.b16 %v1490
        %v2524 = vunpack.c.l.b16 %v1491
        %v2525 = vunpack.c.l.b16 %v1492
        %v2526 = vunpack.c.l.b16 %v1493
        %v2527 = vunpack.c.l.b16 %v1494
        %v2528 = vunpack.c.l.b16 %v1495
        %v2529 = vunpack.c.l.b16 %v1496
        %v2530 = vunpack.c.l.b16 %v1497
        %v2531 = vunpack.c.l.b16 %v1498
        %v2532 = vunpack.c.l.b16 %v1499
        %v2533 = vunpack.c.l.b16 %v1500
        %v2534 = vunpack.c.l.b16 %v1501
        %v2535 = vunpack.c.l.b16 %v1502
        %v2536 = vunpack.c.l.b16 %v1503
        %v2537 = vunpack.c.l.b16 %v1504
        %v2538 = vunpack.c.l.b16 %v1505
        %v2539 = vunpack.c.l.b16 %v1506
        %v2540 = vunpack.c.l.b16 %v1507
        %v2541 = vunpack.c.l.b16 %v1508
        %v2542 = vunpack.c.l.b16 %v1509
        %v2543 = vunpack.c.l.b16 %v1510
        %v2544 = vunpack.c.l.b16 %v1511
        %v2545 = vunpack.c.l.b16 %v1512
        %v2546 = vunpack.c.l.b16 %v1513
        %v2547 = vunpack.c.l.b16 %v1514
        %v2548 = vunpack.c.l.b16 %v1515
        %v2549 = vunpack.c.l.b16 %v1516
        %v2550 = vunpack.c.l.b16 %v1517
        %v2551 = vunpack.c.l.b16 %v1518
        %v2552 = vunpack.c.l.b16 %v1519
        %v2553 = vunpack.c.l.b16 %v1520
        %v2554 = vunpack.c.l.b16 %v1521
        %v2555 = vunpack.c.l.b16 %v1522
        %v2556 = vunpack.c.l.b16 %v1523
        %v2557 = vunpack.c.l.b16 %v1524
        %v2558 = vunpack.c.l.b16 %v1525
        %v2559 = vunpack.c.l.b16 %v1526
        %v2560 = vunpack.c.l.b16 %v1527
        %v2561 = vunpack.c.l.b16 %v1528
        %v2562 = vunpack.c.l.b16 %v1529
        %v2563 = vunpack.c.l.b16 %v1530
        %v2564 = vunpack.c.l.b16 %v1531
        %v2565 = vunpack.c.l.b16 %v1532
        %v2566 = vunpack.c.l.b16 %v1533
        %v2567 = vunpack.c.l.b16 %v1534
        %v2568 = vunpack.c.l.b16 %v1535
        %v2569 = vunpack.c.l.b16 %v1536
        %v2570 = vunpack.c.l.b16 %v1537
        %v2571 = vunpack.c.l.b16 %v1538
        %v2572 = vunpack.c.l.b16 %v1539
        %v2573 = vunpack.c.l.b16 %v1540
        %v2574 = vunpack.c.l.b16 %v1541
        %v2575 = vunpack.c.l.b16 %v1542
        %v2576 = vunpack.c.l.b16 %v1543
        %v2577 = vunpack.c.l.b16 %v1544
        %v2578 = vunpack.c.l.b16 %v1545
        %v2579 = vunpack.c.l.b16 %v1546
        %v2580 = vunpack.c.l.b16 %v1547
        %v2581 = vunpack.c.l.b16 %v1548
        %v2582 = vunpack.c.l.b16 %v1549
        %v2583 = vunpack.c.l.b16 %v1550
        %v2584 = vunpack.c.l.b16 %v1551
        %v2585 = vunpack.c.l.b16 %v1552
        %v2586 = vunpack.c.l.b16 %v1553
        %v2587 = vunpack.c.l.b16 %v1554
        %v2588 = vunpack.c.l.b16 %v1555
        %v2589 = vunpack.c.l.b16 %v1556
        %v2590 = vunpack.c.l.b16 %v1557
        %v2591 = vunpack.c.l.b16 %v1558
        %v2592 = vunpack.c.l.b16 %v1559
        %v2593 = vunpack.c.l.b16 %v1560
        %v2594 = vunpack.c.l.b16 %v1561
        %v2595 = vunpack.c.l.b16 %v1562
        %v2596 = vunpack.c.l.b16 %v1563
        %v2597 = vunpack.c.l.b16 %v1564
        %v2598 = vunpack.c.l.b16 %v1565
        %v2599 = vunpack.c.l.b16 %v1566
        %v2600 = vunpack.c.l.b16 %v1567
        %v2601 = vunpack.c.l.b16 %v1568
        %v2602 = vunpack.c.l.b16 %v1569
        %v2603 = vunpack.c.l.b16 %v1570
        %v2604 = vunpack.c.l.b16 %v1571
        %v2605 = vunpack.c.l.b16 %v1572
        %v2606 = vunpack.c.l.b16 %v1573
        %v2607 = vunpack.c.l.b16 %v1574
        %v2608 = vunpack.c.l.b16 %v1575
        %v2609 = vunpack.c.l.b16 %v1576
        %v2610 = vunpack.c.l.b16 %v1577
        %v2611 = vunpack.c.l.b16 %v1578
        %v2612 = vunpack.c.l.b16 %v1579
        %v2613 = vunpack.c.l.b16 %v1580
        %v2614 = vunpack.c.l.b16 %v1581
        %v2615 = vunpack.c.l.b16 %v1582
        %v2616 = vunpack.c.l.b16 %v1583
        %v2617 = vunpack.c.l.b16 %v1584
        %v2618 = vunpack.c.l.b16 %v1585
        %v2619 = vunpack.c.l.b16 %v1586
        %v2620 = vunpack.c.l.b16 %v1587
        %v2621 = vunpack.c.l.b16 %v1588
        %v2622 = vunpack.c.l.b16 %v1589
        %v2623 = vunpack.c.l.b16 %v1590
        %v2624 = vunpack.c.l.b16 %v1591
        %v2625 = vunpack.c.l.b16 %v1592
        %v2626 = vunpack.c.l.b16 %v1593
        %v2627 = vunpack.c.l.b16 %v1594
        %v2628 = vunpack.c.l.b16 %v1595
        %v2629 = vunpack.c.l.b16 %v1596
        %v2630 = vunpack.c.l.b16 %v1597
        %v2631 = vunpack.c.l.b16 %v1598
        %v2632 = vunpack.c.l.b16 %v1599
        %v2633 = vunpack.c.l.b16 %v1600
        %v2634 = vunpack.c.l.b16 %v1601
        %v2635 = vunpack.c.l.b16 %v1602
        %v2636 = vunpack.c.l.b16 %v1603
        %v2637 = vunpack.c.l.b16 %v1604
        %v2638 = vunpack.c.l.b16 %v1605
        %v2639 = vunpack.c.l.b16 %v1606
        %v2640 = vunpack.c.l.b16 %v1607
        %v2641 = vunpack.c.l.b16 %v1608
        %v2642 = vunpack.c.l.b16 %v1609
        %v2643 = vunpack.c.l.b16 %v1610
        %v2644 = vunpack.c.l.b16 %v1611
        %v2645 = vunpack.c.l.b16 %v1612
        %v2646 = vunpack.c.l.b16 %v1613
        %v2647 = vunpack.c.l.b16 %v1614
        %v2648 = vunpack.c.l.b16 %v1615
        %v2649 = vunpack.c.l.b16 %v1616
        %v2650 = vunpack.c.l.b16 %v1617
        %v2651 = vunpack.c.l.b16 %v1618
        %v2652 = vunpack.c.l.b16 %v1619
        %v2653 = vunpack.c.l.b16 %v1620
        %v2654 = vunpack.c.l.b16 %v1621
        %v2655 = vunpack.c.l.b16 %v1622
        %v2656 = vunpack.c.l.b16 %v1623
        %v2657 = vunpack.c.l.b16 %v1624
        %v2658 = vunpack.c.l.b16 %v1625
        %v2659 = vunpack.c.l.b16 %v1626
        %v2660 = vunpack.c.l.b16 %v1627
        %v2661 = vunpack.c.l.b16 %v1628
        %v2662 = vunpack.c.l.b16 %v1629
        %v2663 = vunpack.c.l.b16 %v1630
        %v2664 = vunpack.c.l.b16 %v1631
        %v2665 = vunpack.c.l.b16 %v1632
        %v2666 = vunpack.c.l.b16 %v1633
        %v2667 = vunpack.c.l.b16 %v1634
        %v2668 = vunpack.c.l.b16 %v1635
        %v2669 = vunpack.c.l.b16 %v1636
        %v2670 = vunpack.c.l.b16 %v1637
        %v2671 = vunpack.c.l.b16 %v1638
        %v2672 = vunpack.c.l.b16 %v1639
        %v2673 = vunpack.c.l.b16 %v1640
        %v2674 = vunpack.c.l.b16 %v1641
        %v2675 = vunpack.c.l.b16 %v1642
        %v2676 = vunpack.c.l.b16 %v1643
        %v2677 = vunpack.c.l.b16 %v1644
        %v2678 = vunpack.c.l.b16 %v1645
        %v2679 = vunpack.c.l.b16 %v1646
        %v2680 = vunpack.c.l.b16 %v1647
        %v2681 = vunpack.c.l.b16 %v1648
        %v2682 = vunpack.c.l.b16 %v1649
        %v2683 = vunpack.c.l.b16 %v1650
        %v2684 = vunpack.c.l.b16 %v1651
        %v2685 = vunpack.c.l.b16 %v1652
        %v2686 = vunpack.c.l.b16 %v1653
        %v2687 = vunpack.c.l.b16 %v1654
        %v2688 = vunpack.c.l.b16 %v1655
        %v2689 = vunpack.c.l.b16 %v1656
        %v2690 = vunpack.c.l.b16 %v1657
        %v2691 = vunpack.c.l.b16 %v1658
        %v2692 = vunpack.c.l.b16 %v1659
        %v2693 = vunpack.c.l.b16 %v1660
        %v2694 = vunpack.c.l.b16 %v1661
        %v2695 = vpack.c.b16 %v2444, %v2443
        %v2696 = vpack.c.b16 %v2446, %v2445
        %v2697 = vpack.c.b16 %v2448, %v2447
        %v2698 = vpack.c.b16 %v2450, %v2449
        %v2699 = vpack.c.b16 %v2452, %v2451
        %v2700 = vpack.c.b16 %v2454, %v2453
        %v2701 = vpack.c.b16 %v2456, %v2455
        %v2702 = vpack.c.b16 %v2458, %v2457
        %v2703 = vpack.c.b16 %v2460, %v2459
        %v2704 = vpack.c.b16 %v2462, %v2461
        %v2705 = vpack.c.b16 %v2464, %v2463
        %v2706 = vpack.c.b16 %v2466, %v2465
        %v2707 = vpack.c.b16 %v2468, %v2467
        %v2708 = vpack.c.b16 %v2470, %v2469
        %v2709 = vpack.c.b16 %v2472, %v2471
        %v2710 = vpack.c.b16 %v2474, %v2473
        %v2711 = vpack.c.b16 %v2476, %v2475
        %v2712 = vpack.c.b16 %v2478, %v2477
        %v2713 = vpack.c.b16 %v2480, %v2479
        %v2714 = vpack.c.b16 %v2482, %v2481
        %v2715 = vpack.c.b16 %v2484, %v2483
        %v2716 = vpack.c.b16 %v2486, %v2485
        %v2717 = vpack.c.b16 %v2488, %v2487
        %v2718 = vpack.c.b16 %v2490, %v2489
        %v2719 = vpack.c.b16 %v2492, %v2491
        %v2720 = vpack.c.b16 %v2494, %v2493
        %v2721 = vpack.c.b16 %v2496, %v2495
        %v2722 = vpack.c.b16 %v2498, %v2497
        %v2723 = vpack.c.b16 %v2500, %v2499
        %v2724 = vpack.c.b16 %v2502, %v2501
        %v2725 = vpack.c.b16 %v2504, %v2503
        %v2726 = vpack.c.b16 %v2506, %v2505
        %v2727 = vpack.c.b16 %v2508, %v2507
        %v2728 = vpack.c.b16 %v2510, %v2509
        %v2729 = vpack.c.b16 %v2512, %v2511
        %v2730 = vpack.c.b16 %v2514, %v2513
        %v2731 = vpack.c.b16 %v2516, %v2515
        %v2732 = vpack.c.b16 %v2518, %v2517
        %v2733 = vpack.c.b16 %v2520, %v2519
        %v2734 = vpack.c.b16 %v2522, %v2521
        %v2735 = vpack.c.b16 %v2524, %v2523
        %v2736 = vpack.c.b16 %v2526, %v2525
        %v2737 = vpack.c.b16 %v2528, %v2527
        %v2738 = vpack.c.b16 %v2530, %v2529
        %v2739 = vpack.c.b16 %v2532, %v2531
        %v2740 = vpack.c.b16 %v2534, %v2533
        %v2741 = vpack.c.b16 %v2536, %v2535
        %v2742 = vpack.c.b16 %v2538, %v2537
        %v2743 = vpack.c.b16 %v2540, %v2539
        %v2744 = vpack.c.b16 %v2542, %v2541
        %v2745 = vpack.c.b16 %v2544, %v2543
        %v2746 = vpack.c.b16 %v2546, %v2545
        %v2747 = vpack.c.b16 %v2548, %v2547
        %v2748 = vpack.c.b16 %v2550, %v2549
        %v2749 = vpack.c.b16 %v2552, %v2551
        %v2750 = vpack.c.b16 %v2554, %v2553
        %v2751 = vpack.c.b16 %v2556, %v2555
        %v2752 = vpack.c.b16 %v2558, %v2557
        %v2753 = vpack.c.b16 %v2560, %v2559
        %v2754 = vpack.c.b16 %v2562, %v2561
        %v2755 = vpack.c.b16 %v2564, %v2563
        %v2756 = vpack.c.b16 %v2566, %v2565
        %v2757 = vpack.c.b16 %v2568, %v2567
        %v2758 = vpack.c.b16 %v2570, %v2569
        %v2759 = vpack.c.b16 %v2572, %v2571
        %v2760 = vpack.c.b16 %v2574, %v2573
        %v2761 = vpack.c.b16 %v2576, %v2575
        %v2762 = vpack.c.b16 %v2578, %v2577
        %v2763 = vpack.c.b16 %v2580, %v2579
        %v2764 = vpack.c.b16 %v2582, %v2581
        %v2765 = vpack.c.b16 %v2584, %v2583
        %v2766 = vpack.c.b16 %v2586, %v2585
        %v2767 = vpack.c.b16 %v2588, %v2587
        %v2768 = vpack.c.b16 %v2590, %v2589
        %v2769 = vpack.c.b16 %v2592, %v2591
        %v2770 = vpack.c.b16 %v2594, %v2593
        %v2771 = vpack.c.b16 %v2596, %v2595
        %v2772 = vpack.c.b16 %v2598, %v2597
        %v2773 = vpack.c.b16 %v2600, %v2599
        %v2774 = vpack.c.b16 %v2602, %v2601
        %v2775 = vpack.c.b16 %v2604, %v2603
        %v2776 = vpack.c.b16 %v2606, %v2605
        %v2777 = vpack.c.b16 %v2608, %v2607
        %v2778 = vpack.c.b16 %v2610, %v2609
        %v2779 = vpack.c.b16 %v2612, %v2611
        %v2780 = vpack.c.b16 %v2614, %v2613
        %v2781 = vpack.c.b16 %v2616, %v2615
        %v2782 = vpack.c.b16 %v2618, %v2617
        %v2783 = vpack.c.b16 %v2620, %v2619
        %v2784 = vpack.c.b16 %v2622, %v2621
        %v2785 = vpack.c.b16 %v2624, %v2623
        %v2786 = vpack.c.b16 %v2626, %v2625
        %v2787 = vpack.c.b16 %v2628, %v2627
        %v2788 = vpack.c.b16 %v2630, %v2629
        %v2789 = vpack.c.b16 %v2632, %v2631
        %v2790 = vpack.c.b16 %v2634, %v2633
        %v2791 = vpack.c.b16 %v2636, %v2635
        %v2792 = vpack.c.b16 %v2638, %v2637
        %v2793 = vpack.c.b16 %v2640, %v2639
        %v2794 = vpack.c.b16 %v2642, %v2641
        %v2795 = vpack.c.b16 %v2644, %v2643
        %v2796 = vpack.c.b16 %v2646, %v2645
        %v2797 = vpack.c.b16 %v2648, %v2647
        %v2798 = vpack.c.b16 %v2650, %v2649
        %v2799 = vpack.c.b16 %v2652, %v2651
        %v2800 = vpack.c.b16 %v2654, %v2653
        %v2801 = vpack.c.b16 %v2656, %v2655
        %v2802 = vpack.c.b16 %v2658, %v2657
        %v2803 = vpack.c.b16 %v2660, %v2659
        %v2804 = vpack.c.b16 %v2662, %v2661
        %v2805 = vpack.c.b16 %v2664, %v2663
        %v2806 = vpack.c.b16 %v2666, %v2665
        %v2807 = vpack.c.b16 %v2668, %v2667
        %v2808 = vpack.c.b16 %v2670, %v2669
        %v2809 = vpack.c.b16 %v2672, %v2671
        %v2810 = vpack.c.b16 %v2674, %v2673
        %v2811 = vpack.c.b16 %v2676, %v2675
        %v2812 = vpack.c.b16 %v2678, %v2677
        %v2813 = vpack.c.b16 %v2680, %v2679
        %v2814 = vpack.c.b16 %v2682, %v2681
        %v2815 = vpack.c.b16 %v2684, %v2683
        %v2816 = vpack.c.b16 %v2686, %v2685
        %v2817 = vpack.c.b16 %v2688, %v2687
        %v2818 = vpack.c.b16 %v2690, %v2689
        %v2819 = vpack.c.b16 %v2692, %v2691
        %v2820 = vpack.c.b16 %v2694, %v2693
        %vm2947 = vcmask 785408
        %v2949 = vsel %vm2947, %v1989, 0
        %v2952 = vsel %vm2947, %v2005, 0
        %v2955 = vsel %vm2947, %v2021, 0
        %v2958 = vsel %vm2947, %v2037, 0
        %v2961 = vsel %vm2947, %v2053, 0
        %v2964 = vsel %vm2947, %v2069, 0
        %v2967 = vsel %vm2947, %v2085, 0
        %2969 = vmatprep.subr.bf16.mxu0 0
        %2970 = vmatpush1.bf16.msra.mxu0 %v2695
        %2971 = vmatprep.subr.bf16.mxu0 0
        %2972 = vmatpush1.bf16.msra.mxu0 %v2696
        %2973 = vmatprep.subr.bf16.mxu0 0
        %2974 = vmatpush1.bf16.msra.mxu0 %v2697
        %2975 = vmatprep.subr.bf16.mxu0 0
        %2976 = vmatpush1.bf16.msra.mxu0 %v2698
        %2977 = vmatprep.subr.bf16.mxu0 0
        %2978 = vmatpush1.bf16.msra.mxu0 %v2699
        %2979 = vmatprep.subr.bf16.mxu0 0
        %2980 = vmatpush1.bf16.msra.mxu0 %v2700
        %2981 = vmatprep.subr.bf16.mxu0 0
        %2982 = vmatpush1.bf16.msra.mxu0 %v2701
        %2983 = vmatprep.subr.bf16.mxu0 0
        %2984 = vmatpush1.bf16.msra.mxu0 %v2702
        %2985 = vmatprep.subr.bf16.mxu0 0
        %2986 = vmatpush1.bf16.msra.mxu0 %v2703
        %2987 = vmatprep.subr.bf16.mxu0 0
        %2988 = vmatpush1.bf16.msra.mxu0 %v2704
        %2989 = vmatprep.subr.bf16.mxu0 0
        %2990 = vmatpush1.bf16.msra.mxu0 %v2705
        %2991 = vmatprep.subr.bf16.mxu0 0
        %2992 = vmatpush1.bf16.msra.mxu0 %v2706
        %2993 = vmatprep.subr.bf16.mxu0 0
        %2994 = vmatpush1.bf16.msra.mxu0 %v2707
        %2995 = vmatprep.subr.bf16.mxu0 0
        %2996 = vmatpush1.bf16.msra.mxu0 %v2708
        %2997 = vmatprep.subr.bf16.mxu0 0
        %2998 = vmatpush1.bf16.msra.mxu0 %v2709
        %2999 = vmatprep.subr.bf16.mxu0 0
        %3000 = vmatpush1.bf16.msra.mxu0 %v2710
        %3001 = vmatprep.mubr.bf16.mxu0 %v1975
        %3002 = vmatmul.mubr.bf16.gmra.mrb[0].mxu0 %v1974
        %v3003 = vpop.f32.mrb[0].mxu0
        %v3004 = vadd.f32 0.0, %v3003
        %v3005 = vpop.f32.mrb[0].mxu0
        %v3006 = vpop.f32.mrb[0].mxu0
        %v3007 = vadd.f32 0.0, %v3006
        %v3008 = vpop.f32.mrb[0].mxu0
        %3009 = vmatprep.mubr.bf16.mxu0 %v1991
        %3010 = vmatmul.mubr.bf16.gmra.mrb[0].mxu0 %v1990
        %v3011 = vpop.f32.mrb[0].mxu0
        %v3012 = vadd.f32 0.0, %v3011
        %v3013 = vpop.f32.mrb[0].mxu0
        %v3014 = vpop.f32.mrb[0].mxu0
        %v3015 = vadd.f32 0.0, %v3014
        %v3016 = vpop.f32.mrb[0].mxu0
        %3017 = vmatprep.mubr.bf16.mxu0 %v2007
        %3018 = vmatmul.mubr.bf16.gmra.mrb[0].mxu0 %v2006
        %v3019 = vpop.f32.mrb[0].mxu0
        %v3020 = vadd.f32 0.0, %v3019
        %v3021 = vpop.f32.mrb[0].mxu0
        %v3022 = vpop.f32.mrb[0].mxu0
        %v3023 = vadd.f32 0.0, %v3022
        %v3024 = vpop.f32.mrb[0].mxu0
        %3025 = vmatprep.mubr.bf16.mxu0 %v2023
        %3026 = vmatmul.mubr.bf16.gmra.mrb[0].mxu0 %v2022
        %v3027 = vpop.f32.mrb[0].mxu0
        %v3028 = vadd.f32 0.0, %v3027
        %v3029 = vpop.f32.mrb[0].mxu0
        %v3030 = vpop.f32.mrb[0].mxu0
        %v3031 = vadd.f32 0.0, %v3030
        %v3032 = vpop.f32.mrb[0].mxu0
        %3033 = vmatprep.mubr.bf16.mxu0 %v2039
        %3034 = vmatmul.mubr.bf16.gmra.mrb[0].mxu0 %v2038
        %v3035 = vpop.f32.mrb[0].mxu0
        %v3036 = vadd.f32 0.0, %v3035
        %v3037 = vpop.f32.mrb[0].mxu0
        %v3038 = vpop.f32.mrb[0].mxu0
        %v3039 = vadd.f32 0.0, %v3038
        %v3040 = vpop.f32.mrb[0].mxu0
        %3041 = vmatprep.mubr.bf16.mxu0 %v2055
        %3042 = vmatmul.mubr.bf16.gmra.mrb[0].mxu0 %v2054
        %v3043 = vpop.f32.mrb[0].mxu0
        %v3044 = vadd.f32 0.0, %v3043
        %v3045 = vpop.f32.mrb[0].mxu0
        %v3046 = vpop.f32.mrb[0].mxu0
        %v3047 = vadd.f32 0.0, %v3046
        %v3048 = vpop.f32.mrb[0].mxu0
        %3049 = vmatprep.mubr.bf16.mxu0 %v2071
        %3050 = vmatmul.mubr.bf16.gmra.mrb[0].mxu0 %v2070
        %v3051 = vpop.f32.mrb[0].mxu0
        %v3052 = vadd.f32 0.0, %v3051
        %v3053 = vpop.f32.mrb[0].mxu0
        %v3054 = vpop.f32.mrb[0].mxu0
        %v3055 = vpop.f32.mrb[0].mxu0
        %3056 = vdwg.mxu0
        %3057 = vmatprep.subr.bf16.mxu0 0
        %3058 = vmatpush1.bf16.msra.mxu0 %v2711
        %3059 = vmatprep.subr.bf16.mxu0 0
        %3060 = vmatpush1.bf16.msra.mxu0 %v2712
        %3061 = vmatprep.subr.bf16.mxu0 0
        %3062 = vmatpush1.bf16.msra.mxu0 %v2713
        %3063 = vmatprep.subr.bf16.mxu0 0
        %3064 = vmatpush1.bf16.msra.mxu0 %v2714
        %3065 = vmatprep.subr.bf16.mxu0 0
        %3066 = vmatpush1.bf16.msra.mxu0 %v2715
        %3067 = vmatprep.subr.bf16.mxu0 0
        %3068 = vmatpush1.bf16.msra.mxu0 %v2716
        %3069 = vmatprep.subr.bf16.mxu0 0
        %3070 = vmatpush1.bf16.msra.mxu0 %v2717
        %3071 = vmatprep.subr.bf16.mxu0 0
        %3072 = vmatpush1.bf16.msra.mxu0 %v2718
        %3073 = vmatprep.subr.bf16.mxu0 0
        %3074 = vmatpush1.bf16.msra.mxu0 %v2719
        %3075 = vmatprep.subr.bf16.mxu0 0
        %3076 = vmatpush1.bf16.msra.mxu0 %v2720
        %3077 = vmatprep.subr.bf16.mxu0 0
        %3078 = vmatpush1.bf16.msra.mxu0 %v2721
        %3079 = vmatprep.subr.bf16.mxu0 0
        %3080 = vmatpush1.bf16.msra.mxu0 %v2722
        %3081 = vmatprep.subr.bf16.mxu0 0
        %3082 = vmatpush1.bf16.msra.mxu0 %v2723
        %3083 = vmatprep.subr.bf16.mxu0 0
        %3084 = vmatpush1.bf16.msra.mxu0 %v2724
        %3085 = vmatprep.subr.bf16.mxu0 0
        %3086 = vmatpush1.bf16.msra.mxu0 %v2725
        %3087 = vmatprep.subr.bf16.mxu0 0
        %3088 = vmatpush1.bf16.msra.mxu0 %v2726
        %3089 = vmatprep.mubr.bf16.mxu0 %v1977
        %3090 = vmatmul.mubr.bf16.gmra.mrb[0].mxu0 %v1976
        %v3091 = vpop.f32.mrb[0].mxu0
        %v3092 = vadd.f32 %v3004, %v3091
        %v3093 = vpop.f32.mrb[0].mxu0
        %v3094 = vpop.f32.mrb[0].mxu0
        %v3095 = vadd.f32 %v3007, %v3094
        %v3096 = vpop.f32.mrb[0].mxu0
        %3097 = vmatprep.mubr.bf16.mxu0 %v1993
        %3098 = vmatmul.mubr.bf16.gmra.mrb[0].mxu0 %v1992
        %v3099 = vpop.f32.mrb[0].mxu0
        %v3100 = vadd.f32 %v3012, %v3099
        %v3101 = vpop.f32.mrb[0].mxu0
        %v3102 = vpop.f32.mrb[0].mxu0
        %v3103 = vadd.f32 %v3015, %v3102
        %v3104 = vpop.f32.mrb[0].mxu0
        %3105 = vmatprep.mubr.bf16.mxu0 %v2009
        %3106 = vmatmul.mubr.bf16.gmra.mrb[0].mxu0 %v2008
        %v3107 = vpop.f32.mrb[0].mxu0
        %v3108 = vadd.f32 %v3020, %v3107
        %v3109 = vpop.f32.mrb[0].mxu0
        %v3110 = vpop.f32.mrb[0].mxu0
        %v3111 = vadd.f32 %v3023, %v3110
        %v3112 = vpop.f32.mrb[0].mxu0
        %3113 = vmatprep.mubr.bf16.mxu0 %v2025
        %3114 = vmatmul.mubr.bf16.gmra.mrb[0].mxu0 %v2024
        %v3115 = vpop.f32.mrb[0].mxu0
        %v3116 = vadd.f32 %v3028, %v3115
        %v3117 = vpop.f32.mrb[0].mxu0
        %v3118 = vpop.f32.mrb[0].mxu0
        %v3119 = vadd.f32 %v3031, %v3118
        %v3120 = vpop.f32.mrb[0].mxu0
        %3121 = vmatprep.mubr.bf16.mxu0 %v2041
        %3122 = vmatmul.mubr.bf16.gmra.mrb[0].mxu0 %v2040
        %v3123 = vpop.f32.mrb[0].mxu0
        %v3124 = vadd.f32 %v3036, %v3123
        %v3125 = vpop.f32.mrb[0].mxu0
        %v3126 = vpop.f32.mrb[0].mxu0
        %v3127 = vadd.f32 %v3039, %v3126
        %v3128 = vpop.f32.mrb[0].mxu0
        %3129 = vmatprep.mubr.bf16.mxu0 %v2057
        %3130 = vmatmul.mubr.bf16.gmra.mrb[0].mxu0 %v2056
        %v3131 = vpop.f32.mrb[0].mxu0
        %v3132 = vadd.f32 %v3044, %v3131
        %v3133 = vpop.f32.mrb[0].mxu0
        %v3134 = vpop.f32.mrb[0].mxu0
        %v3135 = vadd.f32 %v3047, %v3134
        %v3136 = vpop.f32.mrb[0].mxu0
        %3137 = vmatprep.mubr.bf16.mxu0 %v2073
        %3138 = vmatmul.mubr.bf16.gmra.mrb[0].mxu0 %v2072
        %v3139 = vpop.f32.mrb[0].mxu0
        %v3140 = vadd.f32 %v3052, %v3139
        %v3141 = vpop.f32.mrb[0].mxu0
        %v3142 = vpop.f32.mrb[0].mxu0
        %v3143 = vpop.f32.mrb[0].mxu0
        %3144 = vdwg.mxu0
        %3145 = vmatprep.subr.bf16.mxu0 0
        %3146 = vmatpush1.bf16.msra.mxu0 %v2727
        %3147 = vmatprep.subr.bf16.mxu0 0
        %3148 = vmatpush1.bf16.msra.mxu0 %v2728
        %3149 = vmatprep.subr.bf16.mxu0 0
        %3150 = vmatpush1.bf16.msra.mxu0 %v2729
        %3151 = vmatprep.subr.bf16.mxu0 0
        %3152 = vmatpush1.bf16.msra.mxu0 %v2730
        %3153 = vmatprep.subr.bf16.mxu0 0
        %3154 = vmatpush1.bf16.msra.mxu0 %v2731
        %3155 = vmatprep.subr.bf16.mxu0 0
        %3156 = vmatpush1.bf16.msra.mxu0 %v2732
        %3157 = vmatprep.subr.bf16.mxu0 0
        %3158 = vmatpush1.bf16.msra.mxu0 %v2733
        %3159 = vmatprep.subr.bf16.mxu0 0
        %3160 = vmatpush1.bf16.msra.mxu0 %v2734
        %3161 = vmatprep.subr.bf16.mxu0 0
        %3162 = vmatpush1.bf16.msra.mxu0 %v2735
        %3163 = vmatprep.subr.bf16.mxu0 0
        %3164 = vmatpush1.bf16.msra.mxu0 %v2736
        %3165 = vmatprep.subr.bf16.mxu0 0
        %3166 = vmatpush1.bf16.msra.mxu0 %v2737
        %3167 = vmatprep.subr.bf16.mxu0 0
        %3168 = vmatpush1.bf16.msra.mxu0 %v2738
        %3169 = vmatprep.subr.bf16.mxu0 0
        %3170 = vmatpush1.bf16.msra.mxu0 %v2739
        %3171 = vmatprep.subr.bf16.mxu0 0
        %3172 = vmatpush1.bf16.msra.mxu0 %v2740
        %3173 = vmatprep.subr.bf16.mxu0 0
        %3174 = vmatpush1.bf16.msra.mxu0 %v2741
        %3175 = vmatprep.subr.bf16.mxu0 0
        %3176 = vmatpush1.bf16.msra.mxu0 %v2742
        %3177 = vmatprep.mubr.bf16.mxu0 %v1979
        %3178 = vmatmul.mubr.bf16.gmra.mrb[0].mxu0 %v1978
        %v3179 = vpop.f32.mrb[0].mxu0
        %v3180 = vadd.f32 %v3092, %v3179
        %v3181 = vpop.f32.mrb[0].mxu0
        %v3182 = vpop.f32.mrb[0].mxu0
        %v3183 = vadd.f32 %v3095, %v3182
        %v3184 = vpop.f32.mrb[0].mxu0
        %3185 = vmatprep.mubr.bf16.mxu0 %v1995
        %3186 = vmatmul.mubr.bf16.gmra.mrb[0].mxu0 %v1994
        %v3187 = vpop.f32.mrb[0].mxu0
        %v3188 = vadd.f32 %v3100, %v3187
        %v3189 = vpop.f32.mrb[0].mxu0
        %v3190 = vpop.f32.mrb[0].mxu0
        %v3191 = vadd.f32 %v3103, %v3190
        %v3192 = vpop.f32.mrb[0].mxu0
        %3193 = vmatprep.mubr.bf16.mxu0 %v2011
        %3194 = vmatmul.mubr.bf16.gmra.mrb[0].mxu0 %v2010
        %v3195 = vpop.f32.mrb[0].mxu0
        %v3196 = vadd.f32 %v3108, %v3195
        %v3197 = vpop.f32.mrb[0].mxu0
        %v3198 = vpop.f32.mrb[0].mxu0
        %v3199 = vadd.f32 %v3111, %v3198
        %v3200 = vpop.f32.mrb[0].mxu0
        %3201 = vmatprep.mubr.bf16.mxu0 %v2027
        %3202 = vmatmul.mubr.bf16.gmra.mrb[0].mxu0 %v2026
        %v3203 = vpop.f32.mrb[0].mxu0
        %v3204 = vadd.f32 %v3116, %v3203
        %v3205 = vpop.f32.mrb[0].mxu0
        %v3206 = vpop.f32.mrb[0].mxu0
        %v3207 = vadd.f32 %v3119, %v3206
        %v3208 = vpop.f32.mrb[0].mxu0
        %3209 = vmatprep.mubr.bf16.mxu0 %v2043
        %3210 = vmatmul.mubr.bf16.gmra.mrb[0].mxu0 %v2042
        %v3211 = vpop.f32.mrb[0].mxu0
        %v3212 = vadd.f32 %v3124, %v3211
        %v3213 = vpop.f32.mrb[0].mxu0
        %v3214 = vpop.f32.mrb[0].mxu0
        %v3215 = vadd.f32 %v3127, %v3214
        %v3216 = vpop.f32.mrb[0].mxu0
        %3217 = vmatprep.mubr.bf16.mxu0 %v2059
        %3218 = vmatmul.mubr.bf16.gmra.mrb[0].mxu0 %v2058
        %v3219 = vpop.f32.mrb[0].mxu0
        %v3220 = vadd.f32 %v3132, %v3219
        %v3221 = vpop.f32.mrb[0].mxu0
        %v3222 = vpop.f32.mrb[0].mxu0
        %v3223 = vadd.f32 %v3135, %v3222
        %v3224 = vpop.f32.mrb[0].mxu0
        %3225 = vmatprep.mubr.bf16.mxu0 %v2075
        %3226 = vmatmul.mubr.bf16.gmra.mrb[0].mxu0 %v2074
        %v3227 = vpop.f32.mrb[0].mxu0
        %v3228 = vadd.f32 %v3140, %v3227
        %v3229 = vpop.f32.mrb[0].mxu0
        %v3230 = vpop.f32.mrb[0].mxu0
        %v3231 = vpop.f32.mrb[0].mxu0
        %3232 = vdwg.mxu0
        %3233 = vmatprep.subr.bf16.mxu0 0
        %3234 = vmatpush1.bf16.msra.mxu0 %v2743
        %3235 = vmatprep.subr.bf16.mxu0 0
        %3236 = vmatpush1.bf16.msra.mxu0 %v2744
        %3237 = vmatprep.subr.bf16.mxu0 0
        %3238 = vmatpush1.bf16.msra.mxu0 %v2745
        %3239 = vmatprep.subr.bf16.mxu0 0
        %3240 = vmatpush1.bf16.msra.mxu0 %v2746
        %3241 = vmatprep.subr.bf16.mxu0 0
        %3242 = vmatpush1.bf16.msra.mxu0 %v2747
        %3243 = vmatprep.subr.bf16.mxu0 0
        %3244 = vmatpush1.bf16.msra.mxu0 %v2748
        %3245 = vmatprep.subr.bf16.mxu0 0
        %3246 = vmatpush1.bf16.msra.mxu0 %v2749
        %3247 = vmatprep.subr.bf16.mxu0 0
        %3248 = vmatpush1.bf16.msra.mxu0 %v2750
        %3249 = vmatprep.subr.bf16.mxu0 0
        %3250 = vmatpush1.bf16.msra.mxu0 %v2751
        %3251 = vmatprep.subr.bf16.mxu0 0
        %3252 = vmatpush1.bf16.msra.mxu0 %v2752
        %3253 = vmatprep.subr.bf16.mxu0 0
        %3254 = vmatpush1.bf16.msra.mxu0 %v2753
        %3255 = vmatprep.subr.bf16.mxu0 0
        %3256 = vmatpush1.bf16.msra.mxu0 %v2754
        %3257 = vmatprep.subr.bf16.mxu0 0
        %3258 = vmatpush1.bf16.msra.mxu0 %v2755
        %3259 = vmatprep.subr.bf16.mxu0 0
        %3260 = vmatpush1.bf16.msra.mxu0 %v2756
        %3261 = vmatprep.subr.bf16.mxu0 0
        %3262 = vmatpush1.bf16.msra.mxu0 %v2757
        %3263 = vmatprep.subr.bf16.mxu0 0
        %3264 = vmatpush1.bf16.msra.mxu0 %v2758
        %3265 = vmatprep.mubr.bf16.mxu0 %v1981
        %3266 = vmatmul.mubr.bf16.gmra.mrb[0].mxu0 %v1980
        %v3267 = vpop.f32.mrb[0].mxu0
        %v3268 = vadd.f32 %v3180, %v3267
        %v3269 = vpop.f32.mrb[0].mxu0
        %v3270 = vpop.f32.mrb[0].mxu0
        %v3271 = vadd.f32 %v3183, %v3270
        %v3272 = vpop.f32.mrb[0].mxu0
        %3273 = vmatprep.mubr.bf16.mxu0 %v1997
        %3274 = vmatmul.mubr.bf16.gmra.mrb[0].mxu0 %v1996
        %v3275 = vpop.f32.mrb[0].mxu0
        %v3276 = vadd.f32 %v3188, %v3275
        %v3277 = vpop.f32.mrb[0].mxu0
        %v3278 = vpop.f32.mrb[0].mxu0
        %v3279 = vadd.f32 %v3191, %v3278
        %v3280 = vpop.f32.mrb[0].mxu0
        %3281 = vmatprep.mubr.bf16.mxu0 %v2013
        %3282 = vmatmul.mubr.bf16.gmra.mrb[0].mxu0 %v2012
        %v3283 = vpop.f32.mrb[0].mxu0
        %v3284 = vadd.f32 %v3196, %v3283
        %v3285 = vpop.f32.mrb[0].mxu0
        %v3286 = vpop.f32.mrb[0].mxu0
        %v3287 = vadd.f32 %v3199, %v3286
        %v3288 = vpop.f32.mrb[0].mxu0
        %3289 = vmatprep.mubr.bf16.mxu0 %v2029
        %3290 = vmatmul.mubr.bf16.gmra.mrb[0].mxu0 %v2028
        %v3291 = vpop.f32.mrb[0].mxu0
        %v3292 = vadd.f32 %v3204, %v3291
        %v3293 = vpop.f32.mrb[0].mxu0
        %v3294 = vpop.f32.mrb[0].mxu0
        %v3295 = vadd.f32 %v3207, %v3294
        %v3296 = vpop.f32.mrb[0].mxu0
        %3297 = vmatprep.mubr.bf16.mxu0 %v2045
        %3298 = vmatmul.mubr.bf16.gmra.mrb[0].mxu0 %v2044
        %v3299 = vpop.f32.mrb[0].mxu0
        %v3300 = vadd.f32 %v3212, %v3299
        %v3301 = vpop.f32.mrb[0].mxu0
        %v3302 = vpop.f32.mrb[0].mxu0
        %v3303 = vadd.f32 %v3215, %v3302
        %v3304 = vpop.f32.mrb[0].mxu0
        %3305 = vmatprep.mubr.bf16.mxu0 %v2061
        %3306 = vmatmul.mubr.bf16.gmra.mrb[0].mxu0 %v2060
        %v3307 = vpop.f32.mrb[0].mxu0
        %v3308 = vadd.f32 %v3220, %v3307
        %v3309 = vpop.f32.mrb[0].mxu0
        %v3310 = vpop.f32.mrb[0].mxu0
        %v3311 = vadd.f32 %v3223, %v3310
        %v3312 = vpop.f32.mrb[0].mxu0
        %3313 = vmatprep.mubr.bf16.mxu0 %v2077
        %3314 = vmatmul.mubr.bf16.gmra.mrb[0].mxu0 %v2076
        %v3315 = vpop.f32.mrb[0].mxu0
        %v3316 = vadd.f32 %v3228, %v3315
        %v3317 = vpop.f32.mrb[0].mxu0
        %v3318 = vpop.f32.mrb[0].mxu0
        %v3319 = vpop.f32.mrb[0].mxu0
        %3320 = vdwg.mxu0
        %3321 = vmatprep.subr.bf16.mxu0 0
        %3322 = vmatpush1.bf16.msra.mxu0 %v2759
        %3323 = vmatprep.subr.bf16.mxu0 0
        %3324 = vmatpush1.bf16.msra.mxu0 %v2760
        %3325 = vmatprep.subr.bf16.mxu0 0
        %3326 = vmatpush1.bf16.msra.mxu0 %v2761
        %3327 = vmatprep.subr.bf16.mxu0 0
        %3328 = vmatpush1.bf16.msra.mxu0 %v2762
        %3329 = vmatprep.subr.bf16.mxu0 0
        %3330 = vmatpush1.bf16.msra.mxu0 %v2763
        %3331 = vmatprep.subr.bf16.mxu0 0
        %3332 = vmatpush1.bf16.msra.mxu0 %v2764
        %3333 = vmatprep.subr.bf16.mxu0 0
        %3334 = vmatpush1.bf16.msra.mxu0 %v2765
        %3335 = vmatprep.subr.bf16.mxu0 0
        %3336 = vmatpush1.bf16.msra.mxu0 %v2766
        %3337 = vmatprep.subr.bf16.mxu0 0
        %3338 = vmatpush1.bf16.msra.mxu0 %v2767
        %3339 = vmatprep.subr.bf16.mxu0 0
        %3340 = vmatpush1.bf16.msra.mxu0 %v2768
        %3341 = vmatprep.subr.bf16.mxu0 0
        %3342 = vmatpush1.bf16.msra.mxu0 %v2769
        %3343 = vmatprep.subr.bf16.mxu0 0
        %3344 = vmatpush1.bf16.msra.mxu0 %v2770
        %3345 = vmatprep.subr.bf16.mxu0 0
        %3346 = vmatpush1.bf16.msra.mxu0 %v2771
        %3347 = vmatprep.subr.bf16.mxu0 0
        %3348 = vmatpush1.bf16.msra.mxu0 %v2772
        %3349 = vmatprep.subr.bf16.mxu0 0
        %3350 = vmatpush1.bf16.msra.mxu0 %v2773
        %3351 = vmatprep.subr.bf16.mxu0 0
        %3352 = vmatpush1.bf16.msra.mxu0 %v2774
        %3353 = vmatprep.mubr.bf16.mxu0 %v1983
        %3354 = vmatmul.mubr.bf16.gmra.mrb[0].mxu0 %v1982
        %v3355 = vpop.f32.mrb[0].mxu0
        %v3356 = vadd.f32 %v3268, %v3355
        %v3357 = vpop.f32.mrb[0].mxu0
        %v3358 = vpop.f32.mrb[0].mxu0
        %v3359 = vadd.f32 %v3271, %v3358
        %v3360 = vpop.f32.mrb[0].mxu0
        %3361 = vmatprep.mubr.bf16.mxu0 %v1999
        %3362 = vmatmul.mubr.bf16.gmra.mrb[0].mxu0 %v1998
        %v3363 = vpop.f32.mrb[0].mxu0
        %v3364 = vadd.f32 %v3276, %v3363
        %v3365 = vpop.f32.mrb[0].mxu0
        %v3366 = vpop.f32.mrb[0].mxu0
        %v3367 = vadd.f32 %v3279, %v3366
        %v3368 = vpop.f32.mrb[0].mxu0
        %3369 = vmatprep.mubr.bf16.mxu0 %v2015
        %3370 = vmatmul.mubr.bf16.gmra.mrb[0].mxu0 %v2014
        %v3371 = vpop.f32.mrb[0].mxu0
        %v3372 = vadd.f32 %v3284, %v3371
        %v3373 = vpop.f32.mrb[0].mxu0
        %v3374 = vpop.f32.mrb[0].mxu0
        %v3375 = vadd.f32 %v3287, %v3374
        %v3376 = vpop.f32.mrb[0].mxu0
        %3377 = vmatprep.mubr.bf16.mxu0 %v2031
        %3378 = vmatmul.mubr.bf16.gmra.mrb[0].mxu0 %v2030
        %v3379 = vpop.f32.mrb[0].mxu0
        %v3380 = vadd.f32 %v3292, %v3379
        %v3381 = vpop.f32.mrb[0].mxu0
        %v3382 = vpop.f32.mrb[0].mxu0
        %v3383 = vadd.f32 %v3295, %v3382
        %v3384 = vpop.f32.mrb[0].mxu0
        %3385 = vmatprep.mubr.bf16.mxu0 %v2047
        %3386 = vmatmul.mubr.bf16.gmra.mrb[0].mxu0 %v2046
        %v3387 = vpop.f32.mrb[0].mxu0
        %v3388 = vadd.f32 %v3300, %v3387
        %v3389 = vpop.f32.mrb[0].mxu0
        %v3390 = vpop.f32.mrb[0].mxu0
        %v3391 = vadd.f32 %v3303, %v3390
        %v3392 = vpop.f32.mrb[0].mxu0
        %3393 = vmatprep.mubr.bf16.mxu0 %v2063
        %3394 = vmatmul.mubr.bf16.gmra.mrb[0].mxu0 %v2062
        %v3395 = vpop.f32.mrb[0].mxu0
        %v3396 = vadd.f32 %v3308, %v3395
        %v3397 = vpop.f32.mrb[0].mxu0
        %v3398 = vpop.f32.mrb[0].mxu0
        %v3399 = vadd.f32 %v3311, %v3398
        %v3400 = vpop.f32.mrb[0].mxu0
        %3401 = vmatprep.mubr.bf16.mxu0 %v2079
        %3402 = vmatmul.mubr.bf16.gmra.mrb[0].mxu0 %v2078
        %v3403 = vpop.f32.mrb[0].mxu0
        %v3404 = vadd.f32 %v3316, %v3403
        %v3405 = vpop.f32.mrb[0].mxu0
        %v3406 = vpop.f32.mrb[0].mxu0
        %v3407 = vpop.f32.mrb[0].mxu0
        %3408 = vdwg.mxu0
        %3409 = vmatprep.subr.bf16.mxu0 0
        %3410 = vmatpush1.bf16.msra.mxu0 %v2775
        %3411 = vmatprep.subr.bf16.mxu0 0
        %3412 = vmatpush1.bf16.msra.mxu0 %v2776
        %3413 = vmatprep.subr.bf16.mxu0 0
        %3414 = vmatpush1.bf16.msra.mxu0 %v2777
        %3415 = vmatprep.subr.bf16.mxu0 0
        %3416 = vmatpush1.bf16.msra.mxu0 %v2778
        %3417 = vmatprep.subr.bf16.mxu0 0
        %3418 = vmatpush1.bf16.msra.mxu0 %v2779
        %3419 = vmatprep.subr.bf16.mxu0 0
        %3420 = vmatpush1.bf16.msra.mxu0 %v2780
        %3421 = vmatprep.subr.bf16.mxu0 0
        %3422 = vmatpush1.bf16.msra.mxu0 %v2781
        %3423 = vmatprep.subr.bf16.mxu0 0
        %3424 = vmatpush1.bf16.msra.mxu0 %v2782
        %3425 = vmatprep.subr.bf16.mxu0 0
        %3426 = vmatpush1.bf16.msra.mxu0 %v2783
        %3427 = vmatprep.subr.bf16.mxu0 0
        %3428 = vmatpush1.bf16.msra.mxu0 %v2784
        %3429 = vmatprep.subr.bf16.mxu0 0
        %3430 = vmatpush1.bf16.msra.mxu0 %v2785
        %3431 = vmatprep.subr.bf16.mxu0 0
        %3432 = vmatpush1.bf16.msra.mxu0 %v2786
        %3433 = vmatprep.subr.bf16.mxu0 0
        %3434 = vmatpush1.bf16.msra.mxu0 %v2787
        %3435 = vmatprep.subr.bf16.mxu0 0
        %3436 = vmatpush1.bf16.msra.mxu0 %v2788
        %3437 = vmatprep.subr.bf16.mxu0 0
        %3438 = vmatpush1.bf16.msra.mxu0 %v2789
        %3439 = vmatprep.subr.bf16.mxu0 0
        %3440 = vmatpush1.bf16.msra.mxu0 %v2790
        %3441 = vmatprep.mubr.bf16.mxu0 %v1985
        %3442 = vmatmul.mubr.bf16.gmra.mrb[0].mxu0 %v1984
        %v3443 = vpop.f32.mrb[0].mxu0
        %v3444 = vadd.f32 %v3356, %v3443
        %v3445 = vpop.f32.mrb[0].mxu0
        %v3446 = vpop.f32.mrb[0].mxu0
        %v3447 = vadd.f32 %v3359, %v3446
        %v3448 = vpop.f32.mrb[0].mxu0
        %3449 = vmatprep.mubr.bf16.mxu0 %v2001
        %3450 = vmatmul.mubr.bf16.gmra.mrb[0].mxu0 %v2000
        %v3451 = vpop.f32.mrb[0].mxu0
        %v3452 = vadd.f32 %v3364, %v3451
        %v3453 = vpop.f32.mrb[0].mxu0
        %v3454 = vpop.f32.mrb[0].mxu0
        %v3455 = vadd.f32 %v3367, %v3454
        %v3456 = vpop.f32.mrb[0].mxu0
        %3457 = vmatprep.mubr.bf16.mxu0 %v2017
        %3458 = vmatmul.mubr.bf16.gmra.mrb[0].mxu0 %v2016
        %v3459 = vpop.f32.mrb[0].mxu0
        %v3460 = vadd.f32 %v3372, %v3459
        %v3461 = vpop.f32.mrb[0].mxu0
        %v3462 = vpop.f32.mrb[0].mxu0
        %v3463 = vadd.f32 %v3375, %v3462
        %v3464 = vpop.f32.mrb[0].mxu0
        %3465 = vmatprep.mubr.bf16.mxu0 %v2033
        %3466 = vmatmul.mubr.bf16.gmra.mrb[0].mxu0 %v2032
        %v3467 = vpop.f32.mrb[0].mxu0
        %v3468 = vadd.f32 %v3380, %v3467
        %v3469 = vpop.f32.mrb[0].mxu0
        %v3470 = vpop.f32.mrb[0].mxu0
        %v3471 = vadd.f32 %v3383, %v3470
        %v3472 = vpop.f32.mrb[0].mxu0
        %3473 = vmatprep.mubr.bf16.mxu0 %v2049
        %3474 = vmatmul.mubr.bf16.gmra.mrb[0].mxu0 %v2048
        %v3475 = vpop.f32.mrb[0].mxu0
        %v3476 = vadd.f32 %v3388, %v3475
        %v3477 = vpop.f32.mrb[0].mxu0
        %v3478 = vpop.f32.mrb[0].mxu0
        %v3479 = vadd.f32 %v3391, %v3478
        %v3480 = vpop.f32.mrb[0].mxu0
        %3481 = vmatprep.mubr.bf16.mxu0 %v2065
        %3482 = vmatmul.mubr.bf16.gmra.mrb[0].mxu0 %v2064
        %v3483 = vpop.f32.mrb[0].mxu0
        %v3484 = vadd.f32 %v3396, %v3483
        %v3485 = vpop.f32.mrb[0].mxu0
        %v3486 = vpop.f32.mrb[0].mxu0
        %v3487 = vadd.f32 %v3399, %v3486
        %v3488 = vpop.f32.mrb[0].mxu0
        %3489 = vmatprep.mubr.bf16.mxu0 %v2081
        %3490 = vmatmul.mubr.bf16.gmra.mrb[0].mxu0 %v2080
        %v3491 = vpop.f32.mrb[0].mxu0
        %v3492 = vadd.f32 %v3404, %v3491
        %v3493 = vpop.f32.mrb[0].mxu0
        %v3494 = vpop.f32.mrb[0].mxu0
        %v3495 = vpop.f32.mrb[0].mxu0
        %3496 = vdwg.mxu0
        %3497 = vmatprep.subr.bf16.mxu0 0
        %3498 = vmatpush1.bf16.msra.mxu0 %v2791
        %3499 = vmatprep.subr.bf16.mxu0 0
        %3500 = vmatpush1.bf16.msra.mxu0 %v2792
        %3501 = vmatprep.subr.bf16.mxu0 0
        %3502 = vmatpush1.bf16.msra.mxu0 %v2793
        %3503 = vmatprep.subr.bf16.mxu0 0
        %3504 = vmatpush1.bf16.msra.mxu0 %v2794
        %3505 = vmatprep.subr.bf16.mxu0 0
        %3506 = vmatpush1.bf16.msra.mxu0 %v2795
        %3507 = vmatprep.subr.bf16.mxu0 0
        %3508 = vmatpush1.bf16.msra.mxu0 %v2796
        %3509 = vmatprep.subr.bf16.mxu0 0
        %3510 = vmatpush1.bf16.msra.mxu0 %v2797
        %3511 = vmatprep.subr.bf16.mxu0 0
        %3512 = vmatpush1.bf16.msra.mxu0 %v2798
        %3513 = vmatprep.subr.bf16.mxu0 0
        %3514 = vmatpush1.bf16.msra.mxu0 %v2799
        %3515 = vmatprep.subr.bf16.mxu0 0
        %3516 = vmatpush1.bf16.msra.mxu0 %v2800
        %3517 = vmatprep.subr.bf16.mxu0 0
        %3518 = vmatpush1.bf16.msra.mxu0 %v2801
        %3519 = vmatprep.subr.bf16.mxu0 0
        %3520 = vmatpush1.bf16.msra.mxu0 %v2802
        %3521 = vmatprep.subr.bf16.mxu0 0
        %3522 = vmatpush1.bf16.msra.mxu0 %v2803
        %3523 = vmatprep.subr.bf16.mxu0 0
        %3524 = vmatpush1.bf16.msra.mxu0 %v2804
        %3525 = vmatprep.subr.bf16.mxu0 0
        %3526 = vmatpush1.bf16.msra.mxu0 %v2805
        %3527 = vmatprep.subr.bf16.mxu0 0
        %3528 = vmatpush1.bf16.msra.mxu0 %v2806
        %3529 = vmatprep.mubr.bf16.mxu0 %v1987
        %3530 = vmatmul.mubr.bf16.gmra.mrb[0].mxu0 %v1986
        %v3531 = vpop.f32.mrb[0].mxu0
        %v3532 = vadd.f32 %v3444, %v3531
        %v3533 = vpop.f32.mrb[0].mxu0
        %v3534 = vpop.f32.mrb[0].mxu0
        %v3535 = vadd.f32 %v3447, %v3534
        %v3536 = vpop.f32.mrb[0].mxu0
        %3537 = vmatprep.mubr.bf16.mxu0 %v2003
        %3538 = vmatmul.mubr.bf16.gmra.mrb[0].mxu0 %v2002
        %v3539 = vpop.f32.mrb[0].mxu0
        %v3540 = vadd.f32 %v3452, %v3539
        %v3541 = vpop.f32.mrb[0].mxu0
        %v3542 = vpop.f32.mrb[0].mxu0
        %v3543 = vadd.f32 %v3455, %v3542
        %v3544 = vpop.f32.mrb[0].mxu0
        %3545 = vmatprep.mubr.bf16.mxu0 %v2019
        %3546 = vmatmul.mubr.bf16.gmra.mrb[0].mxu0 %v2018
        %v3547 = vpop.f32.mrb[0].mxu0
        %v3548 = vadd.f32 %v3460, %v3547
        %v3549 = vpop.f32.mrb[0].mxu0
        %v3550 = vpop.f32.mrb[0].mxu0
        %v3551 = vadd.f32 %v3463, %v3550
        %v3552 = vpop.f32.mrb[0].mxu0
        %3553 = vmatprep.mubr.bf16.mxu0 %v2035
        %3554 = vmatmul.mubr.bf16.gmra.mrb[0].mxu0 %v2034
        %v3555 = vpop.f32.mrb[0].mxu0
        %v3556 = vadd.f32 %v3468, %v3555
        %v3557 = vpop.f32.mrb[0].mxu0
        %v3558 = vpop.f32.mrb[0].mxu0
        %v3559 = vadd.f32 %v3471, %v3558
        %v3560 = vpop.f32.mrb[0].mxu0
        %3561 = vmatprep.mubr.bf16.mxu0 %v2051
        %3562 = vmatmul.mubr.bf16.gmra.mrb[0].mxu0 %v2050
        %v3563 = vpop.f32.mrb[0].mxu0
        %v3564 = vadd.f32 %v3476, %v3563
        %v3565 = vpop.f32.mrb[0].mxu0
        %v3566 = vpop.f32.mrb[0].mxu0
        %v3567 = vadd.f32 %v3479, %v3566
        %v3568 = vpop.f32.mrb[0].mxu0
        %3569 = vmatprep.mubr.bf16.mxu0 %v2067
        %3570 = vmatmul.mubr.bf16.gmra.mrb[0].mxu0 %v2066
        %v3571 = vpop.f32.mrb[0].mxu0
        %v3572 = vadd.f32 %v3484, %v3571
        %v3573 = vpop.f32.mrb[0].mxu0
        %v3574 = vpop.f32.mrb[0].mxu0
        %v3575 = vadd.f32 %v3487, %v3574
        %v3576 = vpop.f32.mrb[0].mxu0
        %3577 = vmatprep.mubr.bf16.mxu0 %v2083
        %3578 = vmatmul.mubr.bf16.gmra.mrb[0].mxu0 %v2082
        %v3579 = vpop.f32.mrb[0].mxu0
        %v3580 = vadd.f32 %v3492, %v3579
        %v3581 = vpop.f32.mrb[0].mxu0
        %v3582 = vpop.f32.mrb[0].mxu0
        %v3583 = vpop.f32.mrb[0].mxu0
        %3584 = vdwg.mxu0
        %3585 = vmatprep.subr.bf16.mxu0 0
        %3586 = vmatpush1.bf16.msra.mxu0 %v2807
        %3587 = vmatprep.subr.bf16.mxu0 0
        %3588 = vmatpush1.bf16.msra.mxu0 %v2808
        %3589 = vmatprep.subr.bf16.mxu0 0
        %3590 = vmatpush1.bf16.msra.mxu0 %v2809
        %3591 = vmatprep.subr.bf16.mxu0 0
        %3592 = vmatpush1.bf16.msra.mxu0 %v2810
        %3593 = vmatprep.subr.bf16.mxu0 0
        %3594 = vmatpush1.bf16.msra.mxu0 %v2811
        %3595 = vmatprep.subr.bf16.mxu0 0
        %3596 = vmatpush1.bf16.msra.mxu0 %v2812
        %3597 = vmatprep.subr.bf16.mxu0 0
        %3598 = vmatpush1.bf16.msra.mxu0 %v2813
        %3599 = vmatprep.subr.bf16.mxu0 0
        %3600 = vmatpush1.bf16.msra.mxu0 %v2814
        %3601 = vmatprep.subr.bf16.mxu0 0
        %3602 = vmatpush1.bf16.msra.mxu0 %v2815
        %3603 = vmatprep.subr.bf16.mxu0 0
        %3604 = vmatpush1.bf16.msra.mxu0 %v2816
        %3605 = vmatprep.subr.bf16.mxu0 0
        %3606 = vmatpush1.bf16.msra.mxu0 %v2817
        %3607 = vmatprep.subr.bf16.mxu0 0
        %3608 = vmatpush1.bf16.msra.mxu0 %v2818
        %3609 = vmatprep.subr.bf16.mxu0 0
        %3610 = vmatpush1.bf16.msra.mxu0 %v2819
        %3611 = vmatprep.subr.bf16.mxu0 0
        %3612 = vmatpush1.bf16.msra.mxu0 %v2820
        %3613 = vmatprep.subr.bf16.mxu0 0
        %3614 = vmatpush1.bf16.msra.mxu0 0
        %3615 = vmatprep.subr.bf16.mxu0 0
        %3616 = vmatpush1.bf16.msra.mxu0 0
        %3617 = vmatprep.mubr.bf16.mxu0 %v2949
        %3618 = vmatmul.mubr.bf16.gmra.mrb[0].mxu0 %v1988
        %v3619 = vpop.f32.mrb[0].mxu0
        %v3620 = vadd.f32 %v3532, %v3619
        %v3621 = vpop.f32.mrb[0].mxu0
        %v3622 = vpop.f32.mrb[0].mxu0
        %v3623 = vadd.f32 %v3535, %v3622
        %v3624 = vpop.f32.mrb[0].mxu0
        %3625 = vmatprep.mubr.bf16.mxu0 %v2952
        %3626 = vmatmul.mubr.bf16.gmra.mrb[0].mxu0 %v2004
        %v3627 = vpop.f32.mrb[0].mxu0
        %v3628 = vadd.f32 %v3540, %v3627
        %v3629 = vpop.f32.mrb[0].mxu0
        %v3630 = vpop.f32.mrb[0].mxu0
        %v3631 = vadd.f32 %v3543, %v3630
        %v3632 = vpop.f32.mrb[0].mxu0
        %3633 = vmatprep.mubr.bf16.mxu0 %v2955
        %3634 = vmatmul.mubr.bf16.gmra.mrb[0].mxu0 %v2020
        %v3635 = vpop.f32.mrb[0].mxu0
        %v3636 = vadd.f32 %v3548, %v3635
        %v3637 = vpop.f32.mrb[0].mxu0
        %v3638 = vpop.f32.mrb[0].mxu0
        %v3639 = vadd.f32 %v3551, %v3638
        %v3640 = vpop.f32.mrb[0].mxu0
        %3641 = vmatprep.mubr.bf16.mxu0 %v2958
        %3642 = vmatmul.mubr.bf16.gmra.mrb[0].mxu0 %v2036
        %v3643 = vpop.f32.mrb[0].mxu0
        %v3644 = vadd.f32 %v3556, %v3643
        %v3645 = vpop.f32.mrb[0].mxu0
        %v3646 = vpop.f32.mrb[0].mxu0
        %v3647 = vadd.f32 %v3559, %v3646
        %v3648 = vpop.f32.mrb[0].mxu0
        %3649 = vmatprep.mubr.bf16.mxu0 %v2961
        %3650 = vmatmul.mubr.bf16.gmra.mrb[0].mxu0 %v2052
        %v3651 = vpop.f32.mrb[0].mxu0
        %v3652 = vadd.f32 %v3564, %v3651
        %v3653 = vpop.f32.mrb[0].mxu0
        %v3654 = vpop.f32.mrb[0].mxu0
        %v3655 = vadd.f32 %v3567, %v3654
        %v3656 = vpop.f32.mrb[0].mxu0
        %3657 = vmatprep.mubr.bf16.mxu0 %v2964
        %3658 = vmatmul.mubr.bf16.gmra.mrb[0].mxu0 %v2068
        %v3659 = vpop.f32.mrb[0].mxu0
        %v3660 = vadd.f32 %v3572, %v3659
        %v3661 = vpop.f32.mrb[0].mxu0
        %v3662 = vpop.f32.mrb[0].mxu0
        %v3663 = vadd.f32 %v3575, %v3662
        %v3664 = vpop.f32.mrb[0].mxu0
        %3665 = vmatprep.mubr.bf16.mxu0 %v2967
        %3666 = vmatmul.mubr.bf16.gmra.mrb[0].mxu0 %v2084
        %v3667 = vpop.f32.mrb[0].mxu0
        %v3668 = vadd.f32 %v3580, %v3667
        %v3669 = vpop.f32.mrb[0].mxu0
        %v3670 = vpop.f32.mrb[0].mxu0
        %v3671 = vpop.f32.mrb[0].mxu0
        %3672 = vdwg.mxu0
        %v3673 = vld [vmem:[%s1300] sm:$0x1]
        %v3675 = vlaneseq
        %v3676 = vshrl.u32 %v3675, 7
        %v3677 = vsub.s32 0, %v3676
        %v3678 = vrot.slane %v3673, %v3677
        %v3680 = vmul.f32 %v3620, %v3678
        %v3681 = vmul.f32 %v3623, %v3678
        %v3682 = vmul.f32 %v3628, %v3678
        %v3683 = vmul.f32 %v3631, %v3678
        %v3684 = vmul.f32 %v3636, %v3678
        %v3685 = vmul.f32 %v3639, %v3678
        %v3686 = vmul.f32 %v3644, %v3678
        %v3687 = vmul.f32 %v3647, %v3678
        %v3688 = vmul.f32 %v3652, %v3678
        %v3689 = vmul.f32 %v3655, %v3678
        %v3690 = vmul.f32 %v3660, %v3678
        %v3691 = vmul.f32 %v3663, %v3678
        %v3692 = vmul.f32 %v3668, %v3678
        %v3693 = vld [vmem:[%s1303] sm:$0x1]
        %v3695 = vlaneseq
        %v3696 = vshrl.u32 %v3695, 7
        %v3697 = vsub.s32 0, %v3696
        %v3698 = vrot.slane %v3693, %v3697
        %v3700 = vadd.f32 %v3680, %v3698
        %v3701 = vadd.f32 %v3681, %v3698
        %v3702 = vadd.f32 %v3682, %v3698
        %v3703 = vadd.f32 %v3683, %v3698
        %v3704 = vadd.f32 %v3684, %v3698
        %v3705 = vadd.f32 %v3685, %v3698
        %v3706 = vadd.f32 %v3686, %v3698
        %v3707 = vadd.f32 %v3687, %v3698
        %v3708 = vadd.f32 %v3688, %v3698
        %v3709 = vadd.f32 %v3689, %v3698
        %v3710 = vadd.f32 %v3690, %v3698
        %v3711 = vadd.f32 %v3691, %v3698
        %v3712 = vadd.f32 %v3692, %v3698
        %v3713 = vmax.f32 %v3700, 0.0
        %v3714 = vmax.f32 %v3701, 0.0
        %v3715 = vmax.f32 %v3702, 0.0
        %v3716 = vmax.f32 %v3703, 0.0
        %v3717 = vmax.f32 %v3704, 0.0
        %v3718 = vmax.f32 %v3705, 0.0
        %v3719 = vmax.f32 %v3706, 0.0
        %v3720 = vmax.f32 %v3707, 0.0
        %v3721 = vmax.f32 %v3708, 0.0
        %v3722 = vmax.f32 %v3709, 0.0
        %v3723 = vmax.f32 %v3710, 0.0
        %v3724 = vmax.f32 %v3711, 0.0
        %v3725 = vmax.f32 %v3712, 0.0
        %3726 = vst [vmem:[%s1290] sm:$0xff] %v3713
        %3727 = vst [vmem:[%s1290 + $0x8] sm:$0xff] %v3714
        %3728 = vst [vmem:[%s1290 + $0x10] sm:$0xff] %v3715
        %3729 = vst [vmem:[%s1290 + $0x18] sm:$0xff] %v3716
        %3730 = vst [vmem:[%s1290 + $0x20] sm:$0xff] %v3717
        %3731 = vst [vmem:[%s1290 + $0x28] sm:$0xff] %v3718
        %3732 = vst [vmem:[%s1290 + $0x30] sm:$0xff] %v3719
        %3733 = vst [vmem:[%s1290 + $0x38] sm:$0xff] %v3720
        %3734 = vst [vmem:[%s1290 + $0x40] sm:$0xff] %v3721
        %3735 = vst [vmem:[%s1290 + $0x48] sm:$0xff] %v3722
        %3736 = vst [vmem:[%s1290 + $0x50] sm:$0xff] %v3723
        %3737 = vst [vmem:[%s1290 + $0x58] sm:$0xff] %v3724
        %3738 = vst [vmem:[%s1290 + $0x60] sm:$0x3] %v3725
        %s3739 = sand.u32 %s141, 1
        %s3740 = sand.u32 %s141, 1
        %s3741 = smul.addr %s3740, 104
        %s3742 = scalar_lea.vmem [#allocation3], %s3741
        // Predicated region
        $region78: #{reduction_a_forward.8} parent=72 // pred_check
          %p3743 = pneg %p151
        $region79: #{reduction_a_forward.8} parent=72 // pred_check_branch
          %3745 = sbr.rel (%p3743) target = $region81
        $region80: #{reduction_a_forward.8} parent=72 // pred_region
          %s3746 = smul.u32 13, %s19
          %s3747 = smul.addr %s3746, 2
          %s3748 = sadd.s32 %s20, %s3747
          %s3749 = smul.addr %s3748, 8
          %s3750 = scalar_lea.vmem %s4, %s3749
          // Predicated region
          $region82: #{reduction_a_forward.8} parent=80 // pred_check
            _
          $region83: #{reduction_a_forward.8} parent=80 // pred_check_branch
            %3752 = sbr.rel (0) target = $region85
          $region84: #{reduction_a_forward.8} parent=80 // pred_region
            // Predicated region
            $region86: #{reduction_a_forward.8} parent=84 // pred_check
              _
            $region87: #{reduction_a_forward.8} parent=84 // pred_check_branch
              %3754 = sbr.rel (0) target = $region89
            $region88: #{reduction_a_forward.8} parent=84 // pred_region
              // Predicated region
              $region101: #{reduction_a_forward.8} parent=88 // pred_check
                _
              $region102: #{reduction_a_forward.8} parent=88 // pred_check_branch
                %3793 = sbr.rel (0) target = $region104
              $region103: #{reduction_a_forward.8} parent=88 // pred_region
                loop: start=0, step=1, limit=1
                $region105: #{reduction_a_forward.8} parent=103 // loop_pre_header
                  _
                $region106: #{reduction_a_forward.8} parent=103 // loop_header
                  %s3795 = sphi 0, %s3799
                  %p3796 = scmp.ge.s32.totalorder %s3795, 1
                  %s3800 = sphi %s3742, %s3742
                  %s3801 = sphi %s3750, %s3750
                $region107: #{reduction_a_forward.8} parent=103 // loop_header_branch
                  %3798 = sbr.rel (%p3796) target = $region111
                $region108: #{reduction_a_forward.8} parent=103 // loop_body
                  %v3802 = vld [vmem:[%s3800] sm:$0xff]
                  %3803 = vst [vmem:[%s3801] sm:$0xff] %v3802
                  %v3804 = vld [vmem:[%s3800 + $0x8] sm:$0xff]
                  %3805 = vst [vmem:[%s3801 + $0x10] sm:$0xff] %v3804
                  %v3806 = vld [vmem:[%s3800 + $0x10] sm:$0xff]
                  %3807 = vst [vmem:[%s3801 + $0x20] sm:$0xff] %v3806
                  %v3808 = vld [vmem:[%s3800 + $0x18] sm:$0xff]
                  %3809 = vst [vmem:[%s3801 + $0x30] sm:$0xff] %v3808
                  %v3810 = vld [vmem:[%s3800 + $0x20] sm:$0xff]
                  %3811 = vst [vmem:[%s3801 + $0x40] sm:$0xff] %v3810
                  %v3812 = vld [vmem:[%s3800 + $0x28] sm:$0xff]
                  %3813 = vst [vmem:[%s3801 + $0x50] sm:$0xff] %v3812
                  %v3814 = vld [vmem:[%s3800 + $0x30] sm:$0xff]
                  %3815 = vst [vmem:[%s3801 + $0x60] sm:$0xff] %v3814
                  %v3816 = vld [vmem:[%s3800 + $0x38] sm:$0xff]
                  %3817 = vst [vmem:[%s3801 + $0x70] sm:$0xff] %v3816
                  %v3818 = vld [vmem:[%s3800 + $0x40] sm:$0xff]
                  %3819 = vst [vmem:[%s3801 + $0x80] sm:$0xff] %v3818
                  %v3820 = vld [vmem:[%s3800 + $0x48] sm:$0xff]
                  %3821 = vst [vmem:[%s3801 + $0x90] sm:$0xff] %v3820
                  %v3822 = vld [vmem:[%s3800 + $0x50] sm:$0xff]
                  %3823 = vst [vmem:[%s3801 + $0xa0] sm:$0xff] %v3822
                  %v3824 = vld [vmem:[%s3800 + $0x58] sm:$0xff]
                  %3825 = vst [vmem:[%s3801 + $0xb0] sm:$0xff] %v3824
                  %v3826 = vld [vmem:[%s3800 + $0x60] sm:$0xff]
                  %3827 = vst [vmem:[%s3801 + $0xc0] sm:$0xff] %v3826
                $region109: #{reduction_a_forward.8} parent=103 // loop_footer
                  %s3799 = sadd.s32 1, %s3795
                $region110: #{reduction_a_forward.8} parent=103 // loop_footer_branch
                  %3794 = sbr.rel target = $region106
                $region111: #{reduction_a_forward.8} parent=103 // loop_exit
                  _
              $region104: #{reduction_a_forward.8} parent=88 // pred_fallthru
                _
              // Predicated region
              $region112: #{reduction_a_forward.8} parent=88 // pred_check
                _
              $region113: #{reduction_a_forward.8} parent=88 // pred_check_branch
                %3829 = sbr.rel target = $region115
              $region114: #{reduction_a_forward.8} parent=88 // pred_region
                _
              $region115: #{reduction_a_forward.8} parent=88 // pred_fallthru
                _
            $region89: #{reduction_a_forward.8} parent=84 // pred_fallthru
              _
            // Predicated region
            $region90: #{reduction_a_forward.8} parent=84 // pred_check
              _
            $region91: #{reduction_a_forward.8} parent=84 // pred_check_branch
              %3756 = sbr.rel target = $region93
            $region92: #{reduction_a_forward.8} parent=84 // pred_region
              loop: start=0, step=1, limit=1
              $region94: #{reduction_a_forward.8} parent=92 // loop_pre_header
                _
              $region95: #{reduction_a_forward.8} parent=92 // loop_header
                %s3759 = sphi 0, %s3763
                %p3760 = scmp.ge.s32.totalorder %s3759, 1
                %s3764 = sphi %s3742, %s3742
                %s3765 = sphi %s3750, %s3750
              $region96: #{reduction_a_forward.8} parent=92 // loop_header_branch
                %3762 = sbr.rel (%p3760) target = $region100
              $region97: #{reduction_a_forward.8} parent=92 // loop_body
                %v3766 = vld [vmem:[%s3764] sm:$0xff]
                %3767 = vst [vmem:[%s3765] sm:$0xff] %v3766
                %v3768 = vld [vmem:[%s3764 + $0x8] sm:$0xff]
                %3769 = vst [vmem:[%s3765 + $0x10] sm:$0xff] %v3768
                %v3770 = vld [vmem:[%s3764 + $0x10] sm:$0xff]
                %3771 = vst [vmem:[%s3765 + $0x20] sm:$0xff] %v3770
                %v3772 = vld [vmem:[%s3764 + $0x18] sm:$0xff]
                %3773 = vst [vmem:[%s3765 + $0x30] sm:$0xff] %v3772
                %v3774 = vld [vmem:[%s3764 + $0x20] sm:$0xff]
                %3775 = vst [vmem:[%s3765 + $0x40] sm:$0xff] %v3774
                %v3776 = vld [vmem:[%s3764 + $0x28] sm:$0xff]
                %3777 = vst [vmem:[%s3765 + $0x50] sm:$0xff] %v3776
                %v3778 = vld [vmem:[%s3764 + $0x30] sm:$0xff]
                %3779 = vst [vmem:[%s3765 + $0x60] sm:$0xff] %v3778
                %v3780 = vld [vmem:[%s3764 + $0x38] sm:$0xff]
                %3781 = vst [vmem:[%s3765 + $0x70] sm:$0xff] %v3780
                %v3782 = vld [vmem:[%s3764 + $0x40] sm:$0xff]
                %3783 = vst [vmem:[%s3765 + $0x80] sm:$0xff] %v3782
                %v3784 = vld [vmem:[%s3764 + $0x48] sm:$0xff]
                %3785 = vst [vmem:[%s3765 + $0x90] sm:$0xff] %v3784
                %v3786 = vld [vmem:[%s3764 + $0x50] sm:$0xff]
                %3787 = vst [vmem:[%s3765 + $0xa0] sm:$0xff] %v3786
                %v3788 = vld [vmem:[%s3764 + $0x58] sm:$0xff]
                %3789 = vst [vmem:[%s3765 + $0xb0] sm:$0xff] %v3788
                %v3790 = vld [vmem:[%s3764 + $0x60] sm:$0xff]
                %3791 = vst [vmem:[%s3765 + $0xc0] sm:$0xff] %v3790
              $region98: #{reduction_a_forward.8} parent=92 // loop_footer
                %s3763 = sadd.s32 1, %s3759
              $region99: #{reduction_a_forward.8} parent=92 // loop_footer_branch
                %3758 = sbr.rel target = $region95
              $region100: #{reduction_a_forward.8} parent=92 // loop_exit
                _
            $region93: #{reduction_a_forward.8} parent=84 // pred_fallthru
              _
          $region85: #{reduction_a_forward.8} parent=80 // pred_fallthru
            _
          %3830 = vnop
        $region81: #{reduction_a_forward.8} parent=72 // pred_fallthru
          _
      $region73: #{reduction_a_forward.8} parent=5 // pred_fallthru
        _
      %p3831 = scmp.le.s32.totalorder 2, %s10
      // Predicated region
      $region116: #{reduction_a_forward.8} parent=5 // pred_check
        %p3832 = pneg %p3831
      $region117: #{reduction_a_forward.8} parent=5 // pred_check_branch
        %3834 = sbr.rel (%p3832) target = $region119
      $region118: #{reduction_a_forward.8} parent=5 // pred_region
        %s3835 = ssub.s32 %s10, 2
        // Predicated region
        $region120: #{reduction_a_forward.8} parent=118 // pred_check
          %p3836 = pneg %p157
        $region121: #{reduction_a_forward.8} parent=118 // pred_check_branch
          %3838 = sbr.rel (%p3836) target = $region123
        $region122: #{reduction_a_forward.8} parent=118 // pred_region
          %s3839 = sand.u32 %s142, 1
          %s3840 = sand.u32 %s142, 1
          %s3841 = smul.addr %s3840, 104
          %s3842 = scalar_lea.vmem [#allocation3], %s3841
        $region123: #{reduction_a_forward.8} parent=118 // pred_fallthru
          _
      $region119: #{reduction_a_forward.8} parent=5 // pred_fallthru
        _
    $region6: #{reduction_a_forward.8} parent=1 // loop_footer
      %s14 = sadd.s32 1, %s10
    $region7: #{reduction_a_forward.8} parent=1 // loop_footer_branch
      %9 = sbr.rel target = $region3
    $region8: #{reduction_a_forward.8} parent=1 // loop_exit
      _

// kernel: reduction_a_forward.5
$region0: #{reduction_a_forward.5}
  #allocation0 [shape = 'u32[]', space=smem, size = 0x4, offset = 0x4, fixed_abs, tag = 'smem constant byte address 0x4 - core index']
  #allocation1 [shape = 'u32[144,128]{1,0:T(1,128)}', space=vmem, size = 0x12000, scoped, tag = 'internal scratch']
  %s0 = inlined_call_operand.vmem [shape: bf16[98,36], index: 0, kind: input, shape index: {}]
  %s1 = inlined_call_operand.vmem [shape: bf16[36,384], index: 1, kind: input, shape index: {}]
  %s2 = inlined_call_operand.vmem [shape: f32[1,384], index: 2, kind: input, shape index: {}]
  %s3 = inlined_call_operand.vmem [shape: f32[1,384], index: 3, kind: input, shape index: {}]
  %s4 = inlined_call_operand.vmem [shape: f32[98,384], index: 4, kind: output, shape index: {}]
  %s5 = sld [smem:[#allocation0]]
  $region124: #{reduction_a_forward.5} parent=0
    _
  %s7 = ssub.s32 1, %s5
  %s8 = scalar_select 0, %s7, %s5
  $region1: #{reduction_a_forward.5} parent=0
    #allocation2 [shape = 'u8[20480]{0}', space=vmem, size = 0x5000, scoped, tag = 'input window, operand 1']
    #allocation3 [shape = 'u8[106496]{0}', space=vmem, size = 0x1a000, scoped, tag = 'output window, operand 0']
    loop: start=0, step=1, limit=5
    $region2: #{reduction_a_forward.5} parent=1 // loop_pre_header
      _
    $region3: #{reduction_a_forward.5} parent=1 // loop_header
      %s10 = sphi 0, %s14
      %p11 = scmp.ge.s32.totalorder %s10, 5
      %s17 = sphi 0, %s29
      %s18 = sphi 0, %s25
      %s19 = sphi 0, %s17
      %s20 = sphi 0, %s18
      %s21 = sphi 0, %s19
      %s22 = sphi 0, %s20
      %s32 = sphi 0, %s34
      %s35 = sphi 0, %s32
      %s36 = sphi 0, %s35
      %s52 = sphi 0, %s36
      %s58 = sphi 0, %s60
      %s61 = sphi 0, %s58
      %s62 = sphi 0, %s61
      %s78 = sphi 0, %s62
      %s84 = sphi 0, %s86
      %s87 = sphi 0, %s84
      %s88 = sphi 0, %s87
      %s104 = sphi 0, %s88
      %s110 = sphi 0, %s112
      %s113 = sphi 0, %s110
      %s114 = sphi 0, %s113
      %s130 = sphi 0, %s114
      %s138 = sphi 0, %s140
      %s141 = sphi 0, %s138
      %s142 = sphi 0, %s141
      %s158 = sphi 0, %s142
    $region4: #{reduction_a_forward.5} parent=1 // loop_header_branch
      %13 = sbr.rel (%p11) target = $region8
    $region5: #{reduction_a_forward.5} parent=1 // loop_body
      %s15 = ssub.s32 %s10, 1
      %s16 = ssub.s32 %s10, 2
      %s23 = sadd.s32 1, %s18
      %p24 = scmp.ge.s32.totalorder %s23, 3
      %s25 = scalar_select %p24, 0, %s23
      %s26 = sadd.s32 1, %s17
      %s27 = scalar_select %p24, %s26, %s17
      %p28 = scmp.ge.s32.totalorder %s27, 1
      %s29 = scalar_select %p28, 0, %s27
      %s30 = ssub.s32 %s17, %s29
      %p31 = scmp.eq.s32.totalorder %s30, 0
      %s33 = sadd.s32 %s32, 1
      %s34 = scalar_select %p31, %s32, %s33
      %p37 = pneg %p31
      %p38 = scmp.eq.s32.totalorder %s10, 2
      %p39 = por %p37, %p38
      %p40 = scmp.ne.s32.totalorder %s32, %s35
      %p41 = scmp.eq.s32.totalorder %s10, 0
      %p42 = por %p40, %p41
      %p43 = scmp.ne.s32.totalorder %s32, %s35
      %p44 = scmp.eq.s32.totalorder %s15, 2
      %p45 = por %p43, %p44
      %p46 = scmp.ne.s32.totalorder %s35, %s36
      %p47 = scmp.eq.s32.totalorder %s15, 0
      %p48 = por %p46, %p47
      %p49 = scmp.ne.s32.totalorder %s35, %s36
      %p50 = scmp.eq.s32.totalorder %s16, 2
      %p51 = por %p49, %p50
      %p53 = scmp.ne.s32.totalorder %s36, %s52
      %p54 = scmp.eq.s32.totalorder %s16, 0
      %p55 = por %p53, %p54
      %s56 = ssub.s32 %s18, %s25
      %p57 = scmp.eq.s32.totalorder %s56, 0
      %s59 = sadd.s32 %s58, 1
      %s60 = scalar_select %p57, %s58, %s59
      %p63 = pneg %p57
      %p64 = scmp.eq.s32.totalorder %s10, 2
      %p65 = por %p63, %p64
      %p66 = scmp.ne.s32.totalorder %s58, %s61
      %p67 = scmp.eq.s32.totalorder %s10, 0
      %p68 = por %p66, %p67
      %p69 = scmp.ne.s32.totalorder %s58, %s61
      %p70 = scmp.eq.s32.totalorder %s15, 2
      %p71 = por %p69, %p70
      %p72 = scmp.ne.s32.totalorder %s61, %s62
      %p73 = scmp.eq.s32.totalorder %s15, 0
      %p74 = por %p72, %p73
      %p75 = scmp.ne.s32.totalorder %s61, %s62
      %p76 = scmp.eq.s32.totalorder %s16, 2
      %p77 = por %p75, %p76
      %p79 = scmp.ne.s32.totalorder %s62, %s78
      %p80 = scmp.eq.s32.totalorder %s16, 0
      %p81 = por %p79, %p80
      %s82 = ssub.s32 %s18, %s25
      %p83 = scmp.eq.s32.totalorder %s82, 0
      %s85 = sadd.s32 %s84, 1
      %s86 = scalar_select %p83, %s84, %s85
      %p89 = pneg %p83
      %p90 = scmp.eq.s32.totalorder %s10, 2
      %p91 = por %p89, %p90
      %p92 = scmp.ne.s32.totalorder %s84, %s87
      %p93 = scmp.eq.s32.totalorder %s10, 0
      %p94 = por %p92, %p93
      %p95 = scmp.ne.s32.totalorder %s84, %s87
      %p96 = scmp.eq.s32.totalorder %s15, 2
      %p97 = por %p95, %p96
      %p98 = scmp.ne.s32.totalorder %s87, %s88
      %p99 = scmp.eq.s32.totalorder %s15, 0
      %p100 = por %p98, %p99
      %p101 = scmp.ne.s32.totalorder %s87, %s88
      %p102 = scmp.eq.s32.totalorder %s16, 2
      %p103 = por %p101, %p102
      %p105 = scmp.ne.s32.totalorder %s88, %s104
      %p106 = scmp.eq.s32.totalorder %s16, 0
      %p107 = por %p105, %p106
      %s108 = ssub.s32 %s18, %s25
      %p109 = scmp.eq.s32.totalorder %s108, 0
      %s111 = sadd.s32 %s110, 1
      %s112 = scalar_select %p109, %s110, %s111
      %p115 = pneg %p109
      %p116 = scmp.eq.s32.totalorder %s10, 2
      %p117 = por %p115, %p116
      %p118 = scmp.ne.s32.totalorder %s110, %s113
      %p119 = scmp.eq.s32.totalorder %s10, 0
      %p120 = por %p118, %p119
      %p121 = scmp.ne.s32.totalorder %s110, %s113
      %p122 = scmp.eq.s32.totalorder %s15, 2
      %p123 = por %p121, %p122
      %p124 = scmp.ne.s32.totalorder %s113, %s114
      %p125 = scmp.eq.s32.totalorder %s15, 0
      %p126 = por %p124, %p125
      %p127 = scmp.ne.s32.totalorder %s113, %s114
      %p128 = scmp.eq.s32.totalorder %s16, 2
      %p129 = por %p127, %p128
      %p131 = scmp.ne.s32.totalorder %s114, %s130
      %p132 = scmp.eq.s32.totalorder %s16, 0
      %p133 = por %p131, %p132
      %s134 = ssub.s32 %s17, %s29
      %s135 = ssub.s32 %s18, %s25
      %s136 = sor.u32 %s134, %s135
      %p137 = scmp.eq.s32.totalorder %s136, 0
      %s139 = sadd.s32 %s138, 1
      %s140 = scalar_select %p137, %s138, %s139
      %p143 = pneg %p137
      %p144 = scmp.eq.s32.totalorder %s10, 2
      %p145 = por %p143, %p144
      %p146 = scmp.ne.s32.totalorder %s138, %s141
      %p147 = scmp.eq.s32.totalorder %s10, 0
      %p148 = por %p146, %p147
      %p149 = scmp.ne.s32.totalorder %s138, %s141
      %p150 = scmp.eq.s32.totalorder %s15, 2
      %p151 = por %p149, %p150
      %p152 = scmp.ne.s32.totalorder %s141, %s142
      %p153 = scmp.eq.s32.totalorder %s15, 0
      %p154 = por %p152, %p153
      %p155 = scmp.ne.s32.totalorder %s141, %s142
      %p156 = scmp.eq.s32.totalorder %s16, 2
      %p157 = por %p155, %p156
      %p159 = scmp.ne.s32.totalorder %s142, %s158
      %p160 = scmp.eq.s32.totalorder %s16, 0
      %p161 = por %p159, %p160
      %p162 = scmp.le.s32.totalorder 1, %s10
      %p163 = scmp.lt.s32.totalorder %s10, 4
      %p164 = pnand %p162, %p163
      %p165 = pneg %p164
      // Predicated region
      $region9: #{reduction_a_forward.5} parent=5 // pred_check
        _
      $region10: #{reduction_a_forward.5} parent=5 // pred_check_branch
        %167 = sbr.rel (%p164) target = $region12
      $region11: #{reduction_a_forward.5} parent=5 // pred_region
        %s168 = ssub.s32 %s10, 1
        // Predicated region
        $region13: #{reduction_a_forward.5} parent=11 // pred_check
          %p169 = pneg %p48
        $region14: #{reduction_a_forward.5} parent=11 // pred_check_branch
          %171 = sbr.rel (%p169) target = $region16
        $region15: #{reduction_a_forward.5} parent=11 // pred_region
          %s172 = smul.u32 13, %s19
          %p173 = scmp.lt.s32.totalorder %s172, 12
          %s174 = scalar_select %p173, %s172, 12
          %s175 = smul.addr %s174, 4
          %s176 = scalar_lea.vmem %s0, %s175
          %s177 = smul.u32 13, %s19
        $region16: #{reduction_a_forward.5} parent=11 // pred_fallthru
          _
      $region12: #{reduction_a_forward.5} parent=5 // pred_fallthru
        _
      %p178 = scmp.lt.s32.totalorder %s10, 3
      // Predicated region
      $region17: #{reduction_a_forward.5} parent=5 // pred_check
        %p179 = pneg %p178
      $region18: #{reduction_a_forward.5} parent=5 // pred_check_branch
        %181 = sbr.rel (%p179) target = $region20
      $region19: #{reduction_a_forward.5} parent=5 // pred_region
        // Predicated region
        $region21: #{reduction_a_forward.5} parent=19 // pred_check
          %p182 = pneg %p68
        $region22: #{reduction_a_forward.5} parent=19 // pred_check_branch
          %184 = sbr.rel (%p182) target = $region24
        $region23: #{reduction_a_forward.5} parent=19 // pred_region
          %s185 = sand.u32 %s58, 1
          %s186 = sand.u32 %s58, 1
          %s187 = smul.addr %s186, 20
          %s188 = scalar_lea.vmem [#allocation2], %s187
          %s189 = smul.addr %s18, 4
          %s190 = scalar_lea.vmem %s1, %s189
          // Predicated region
          $region25: #{reduction_a_forward.5} parent=23 // pred_check
            _
          $region26: #{reduction_a_forward.5} parent=23 // pred_check_branch
            %192 = sbr.rel (0) target = $region28
          $region27: #{reduction_a_forward.5} parent=23 // pred_region
            // Predicated region
            $region29: #{reduction_a_forward.5} parent=27 // pred_check
              _
            $region30: #{reduction_a_forward.5} parent=27 // pred_check_branch
              %194 = sbr.rel target = $region32
            $region31: #{reduction_a_forward.5} parent=27 // pred_region
              // Predicated region
              $region44: #{reduction_a_forward.5} parent=31 // pred_check
                _
              $region45: #{reduction_a_forward.5} parent=31 // pred_check_branch
                %217 = sbr.rel (0) target = $region47
              $region46: #{reduction_a_forward.5} parent=31 // pred_region
                loop: start=0, step=1, limit=1
                $region48: #{reduction_a_forward.5} parent=46 // loop_pre_header
                  _
                $region49: #{reduction_a_forward.5} parent=46 // loop_header
                  %s219 = sphi 0, %s223
                  %p220 = scmp.ge.s32.totalorder %s219, 1
                  %s224 = sphi %s190, %s190
                  %s225 = sphi %s188, %s188
                $region50: #{reduction_a_forward.5} parent=46 // loop_header_branch
                  %222 = sbr.rel (%p220) target = $region54
                $region51: #{reduction_a_forward.5} parent=46 // loop_body
                  _
                $region52: #{reduction_a_forward.5} parent=46 // loop_footer
                  %s223 = sadd.s32 1, %s219
                $region53: #{reduction_a_forward.5} parent=46 // loop_footer_branch
                  %218 = sbr.rel target = $region49
                $region54: #{reduction_a_forward.5} parent=46 // loop_exit
                  _
                loop: start=0, step=1, limit=1
                $region55: #{reduction_a_forward.5} parent=46 // loop_pre_header
                  _
                $region56: #{reduction_a_forward.5} parent=46 // loop_header
                  %s228 = sphi 0, %s232
                  %p229 = scmp.ge.s32.totalorder %s228, 1
                  %s233 = sphi %s190, %s190
                  %s234 = sphi %s188, %s188
                $region57: #{reduction_a_forward.5} parent=46 // loop_header_branch
                  %231 = sbr.rel (%p229) target = $region61
                $region58: #{reduction_a_forward.5} parent=46 // loop_body
                  %v235 = vld [vmem:[%s233] sm:$0xf]
                  %236 = vst [vmem:[%s234] sm:$0xf] %v235
                  %v237 = vld [vmem:[%s233 + $0xc] sm:$0xf]
                  %238 = vst [vmem:[%s234 + $0x4] sm:$0xf] %v237
                  %v239 = vld [vmem:[%s233 + $0x18] sm:$0xf]
                  %240 = vst [vmem:[%s234 + $0x8] sm:$0xf] %v239
                  %v241 = vld [vmem:[%s233 + $0x24] sm:$0xf]
                  %242 = vst [vmem:[%s234 + $0xc] sm:$0xf] %v241
                  %v243 = vld [vmem:[%s233 + $0x30] sm:$0xf]
                  %244 = vst [vmem:[%s234 + $0x10] sm:$0xf] %v243
                $region59: #{reduction_a_forward.5} parent=46 // loop_footer
                  %s232 = sadd.s32 1, %s228
                $region60: #{reduction_a_forward.5} parent=46 // loop_footer_branch
                  %227 = sbr.rel target = $region56
                $region61: #{reduction_a_forward.5} parent=46 // loop_exit
                  _
              $region47: #{reduction_a_forward.5} parent=31 // pred_fallthru
                _
            $region32: #{reduction_a_forward.5} parent=27 // pred_fallthru
              _
            // Predicated region
            $region33: #{reduction_a_forward.5} parent=27 // pred_check
              _
            $region34: #{reduction_a_forward.5} parent=27 // pred_check_branch
              %196 = sbr.rel (0) target = $region36
            $region35: #{reduction_a_forward.5} parent=27 // pred_region
              loop: start=0, step=1, limit=1
              $region37: #{reduction_a_forward.5} parent=35 // loop_pre_header
                _
              $region38: #{reduction_a_forward.5} parent=35 // loop_header
                %s199 = sphi 0, %s203
                %p200 = scmp.ge.s32.totalorder %s199, 1
                %s204 = sphi %s190, %s190
                %s205 = sphi %s188, %s188
              $region39: #{reduction_a_forward.5} parent=35 // loop_header_branch
                %202 = sbr.rel (%p200) target = $region43
              $region40: #{reduction_a_forward.5} parent=35 // loop_body
                %v206 = vld [vmem:[%s204] sm:$0xf]
                %207 = vst [vmem:[%s205] sm:$0xf] %v206
                %v208 = vld [vmem:[%s204 + $0xc] sm:$0xf]
                %209 = vst [vmem:[%s205 + $0x4] sm:$0xf] %v208
                %v210 = vld [vmem:[%s204 + $0x18] sm:$0xf]
                %211 = vst [vmem:[%s205 + $0x8] sm:$0xf] %v210
                %v212 = vld [vmem:[%s204 + $0x24] sm:$0xf]
                %213 = vst [vmem:[%s205 + $0xc] sm:$0xf] %v212
                %v214 = vld [vmem:[%s204 + $0x30] sm:$0xf]
                %215 = vst [vmem:[%s205 + $0x10] sm:$0xf] %v214
              $region41: #{reduction_a_forward.5} parent=35 // loop_footer
                %s203 = sadd.s32 1, %s199
              $region42: #{reduction_a_forward.5} parent=35 // loop_footer_branch
                %198 = sbr.rel target = $region38
              $region43: #{reduction_a_forward.5} parent=35 // loop_exit
                _
            $region36: #{reduction_a_forward.5} parent=27 // pred_fallthru
              _
          $region28: #{reduction_a_forward.5} parent=23 // pred_fallthru
            _
          %245 = vnop
        $region24: #{reduction_a_forward.5} parent=19 // pred_fallthru
          _
        // Predicated region
        $region62: #{reduction_a_forward.5} parent=19 // pred_check
          %p246 = pneg %p94
        $region63: #{reduction_a_forward.5} parent=19 // pred_check_branch
          %248 = sbr.rel (%p246) target = $region65
        $region64: #{reduction_a_forward.5} parent=19 // pred_region
          %p249 = scmp.lt.s32.totalorder %s18, 2
          %s250 = scalar_select %p249, %s18, 2
          %s251 = scalar_lea.vmem %s2, %s250
        $region65: #{reduction_a_forward.5} parent=19 // pred_fallthru
          _
        // Predicated region
        $region66: #{reduction_a_forward.5} parent=19 // pred_check
          %p252 = pneg %p120
        $region67: #{reduction_a_forward.5} parent=19 // pred_check_branch
          %254 = sbr.rel (%p252) target = $region69
        $region68: #{reduction_a_forward.5} parent=19 // pred_region
          %p255 = scmp.lt.s32.totalorder %s18, 2
          %s256 = scalar_select %p255, %s18, 2
          %s257 = scalar_lea.vmem %s3, %s256
        $region69: #{reduction_a_forward.5} parent=19 // pred_fallthru
          _
      $region20: #{reduction_a_forward.5} parent=5 // pred_fallthru
        _
      %p258 = scmp.le.s32.totalorder 1, %s10
      %p259 = scmp.lt.s32.totalorder %s10, 4
      %p260 = pnand %p258, %p259
      %p261 = pneg %p260
      // Predicated region
      $region70: #{reduction_a_forward.5} parent=5 // pred_check
        _
      $region71: #{reduction_a_forward.5} parent=5 // pred_check_branch
        %263 = sbr.rel (%p260) target = $region73
      $region72: #{reduction_a_forward.5} parent=5 // pred_region
        %s264 = ssub.s32 %s10, 1
        %s265 = sand.u32 %s61, 1
        %s266 = sand.u32 %s61, 1
        %s267 = smul.addr %s266, 20
        %s268 = scalar_lea.vmem [#allocation2], %s267
        // Predicated region
        $region74: #{reduction_a_forward.5} parent=72 // pred_check
          %p269 = pneg %p74
        $region75: #{reduction_a_forward.5} parent=72 // pred_check_branch
          %271 = sbr.rel (%p269) target = $region77
        $region76: #{reduction_a_forward.5} parent=72 // pred_region
          _
        $region77: #{reduction_a_forward.5} parent=72 // pred_fallthru
          _
        %s272 = smul.u32 13, %s19
        %p273 = scmp.lt.s32.totalorder %s272, 12
        %s274 = scalar_select %p273, %s272, 12
        %s275 = smul.addr %s274, 4
        %s276 = scalar_lea.vmem %s0, %s275
        %p277 = pneg %p48
        %p278 = pneg %p45
        %s279 = sand.u32 %s61, 1
        %s280 = sand.u32 %s61, 1
        %s281 = smul.addr %s280, 20
        %s282 = scalar_lea.vmem [#allocation2], %s281
        %p283 = pneg %p74
        %p284 = pneg %p71
        %p285 = scmp.lt.s32.totalorder %s20, 2
        %s286 = scalar_select %p285, %s20, 2
        %s287 = scalar_lea.vmem %s2, %s286
        %p288 = pneg %p100
        %p289 = pneg %p97
        %p290 = scmp.lt.s32.totalorder %s20, 2
        %s291 = scalar_select %p290, %s20, 2
        %s292 = scalar_lea.vmem %s3, %s291
        %p293 = pneg %p126
        %p294 = pneg %p123
        %p295 = pneg %p154
        %p296 = pneg %p151
        %s297 = sand.u32 %s141, 1
        %s298 = sand.u32 %s141, 1
        %s299 = smul.addr %s298, 104
        %s300 = scalar_lea.vmem [#allocation3], %s299
        %s301 = smul.u32 13, %s19
        %p302 = scmp.lt.s32.totalorder %s301, 12
        %s303 = scalar_select %p302, %s301, 12
        %s304 = smul.addr %s303, 4
        %s305 = scalar_lea.vmem %s0, %s304
        %s306 = smul.u32 13, %s19
        %p307 = scmp.lt.s32.totalorder %s20, 2
        %s308 = scalar_select %p307, %s20, 2
        %s309 = scalar_lea.vmem %s2, %s308
        %p310 = scmp.lt.s32.totalorder %s20, 2
        %s311 = scalar_select %p310, %s20, 2
        %s312 = scalar_lea.vmem %s3, %s311
        %s313 = smul.u32 13, %s19
        %v315 = vld [vmem:[%s305] sm:$0xf]
        %v316 = vld [vmem:[%s305 + $0x4] sm:$0xf]
        %v317 = vld [vmem:[%s305 + $0x8] sm:$0xf]
        %v318 = vld [vmem:[%s305 + $0xc] sm:$0xf]
        %v319 = vld [vmem:[%s305 + $0x10] sm:$0xf]
        %v320 = vld [vmem:[%s305 + $0x14] sm:$0xf]
        %v321 = vld [vmem:[%s305 + $0x18] sm:$0xf]
        %v322 = vld [vmem:[%s305 + $0x1c] sm:$0xf]
        %v323 = vld [vmem:[%s305 + $0x20] sm:$0xf]
        %v324 = vld [vmem:[%s305 + $0x24] sm:$0xf]
        %v325 = vld [vmem:[%s305 + $0x28] sm:$0xf]
        %v326 = vld [vmem:[%s305 + $0x2c] sm:$0xf]
        %v327 = vld [vmem:[%s305 + $0x30] sm:$0x1]
        %v328 = vld [vmem:[%s268] sm:$0xf]
        %v329 = vld [vmem:[%s268 + $0x4] sm:$0xf]
        %v330 = vld [vmem:[%s268 + $0x8] sm:$0xf]
        %v331 = vld [vmem:[%s268 + $0xc] sm:$0xf]
        %v332 = vld [vmem:[%s268 + $0x10] sm:$0x3]
        %v346 = vunpack.c.l.b16 %v315
        %v347 = vunpack.c.l.b16 %v316
        %v348 = vunpack.c.l.b16 %v317
        %v349 = vunpack.c.l.b16 %v318
        %v350 = vunpack.c.l.b16 %v319
        %v351 = vunpack.c.l.b16 %v320
        %v352 = vunpack.c.l.b16 %v321
        %v353 = vunpack.c.l.b16 %v322
        %v354 = vunpack.c.l.b16 %v323
        %v355 = vunpack.c.l.b16 %v324
        %v356 = vunpack.c.l.b16 %v325
        %v357 = vunpack.c.l.b16 %v326
        %v358 = vunpack.c.l.b16 %v327
        %v359 = vpack.c.b16 %v347, %v346
        %v360 = vpack.c.b16 %v349, %v348
        %v361 = vpack.c.b16 %v351, %v350
        %v362 = vpack.c.b16 %v353, %v352
        %v363 = vpack.c.b16 %v355, %v354
        %v364 = vpack.c.b16 %v357, %v356
        %v365 = vpack.c.b16 %v358, %v358
        %v371 = vunpack.c.l.b16 %v328
        %v372 = vunpack.c.l.b16 %v329
        %v373 = vunpack.c.l.b16 %v330
        %v374 = vunpack.c.l.b16 %v331
        %v375 = vunpack.c.l.b16 %v332
        %v376 = vpack.c.b16 %v372, %v371
        %v377 = vpack.c.b16 %v374, %v373
        %v378 = vpack.c.b16 %v375, %v375
        %vm381 = vcmask 293888
        %v383 = vsel %vm381, %v359, 0
        %v386 = vsel %vm381, %v360, 0
        %v389 = vsel %vm381, %v361, 0
        %v392 = vsel %vm381, %v362, 0
        %v395 = vsel %vm381, %v363, 0
        %v398 = vsel %vm381, %v364, 0
        %v401 = vsel %vm381, %v365, 0
        %vm403 = vcmask 1041408
        %v405 = vsel %vm403, %v378, 0
        %407 = vmatprep.subr.bf16.mxu0 0
        %408 = vmatpush1.bf16.msra.mxu0 %v376
        %409 = vmatprep.subr.bf16.mxu0 0
        %410 = vmatpush1.bf16.msra.mxu0 %v377
        %411 = vmatprep.subr.bf16.mxu0 0
        %412 = vmatpush1.bf16.msra.mxu0 %v405
        %413 = vmatprep.subr.bf16.mxu0 0
        %414 = vmatpush1.bf16.msra.mxu0 0
        %415 = vmatprep.subr.bf16.mxu0 0
        %416 = vmatpush1.bf16.msra.mxu0 0
        %417 = vmatprep.subr.bf16.mxu0 0
        %418 = vmatpush1.bf16.msra.mxu0 0
        %419 = vmatprep.subr.bf16.mxu0 0
        %420 = vmatpush1.bf16.msra.mxu0 0
        %421 = vmatprep.subr.bf16.mxu0 0
        %422 = vmatpush1.bf16.msra.mxu0 0
        %423 = vmatprep.subr.bf16.mxu0 0
        %424 = vmatpush1.bf16.msra.mxu0 0
        %425 = vmatprep.subr.bf16.mxu0 0
        %426 = vmatpush1.bf16.msra.mxu0 0
        %427 = vmatprep.subr.bf16.mxu0 0
        %428 = vmatpush1.bf16.msra.mxu0 0
        %429 = vmatprep.subr.bf16.mxu0 0
        %430 = vmatpush1.bf16.msra.mxu0 0
        %431 = vmatprep.subr.bf16.mxu0 0
        %432 = vmatpush1.bf16.msra.mxu0 0
        %433 = vmatprep.subr.bf16.mxu0 0
        %434 = vmatpush1.bf16.msra.mxu0 0
        %435 = vmatprep.subr.bf16.mxu0 0
        %436 = vmatpush1.bf16.msra.mxu0 0
        %437 = vmatprep.subr.bf16.mxu0 0
        %438 = vmatpush1.bf16.msra.mxu0 0
        %439 = vmatprep.mubr.bf16.mxu0 0
        %440 = vmatmul.mubr.bf16.gmra.mrb[0].mxu0 %v383
        %v441 = vpop.f32.mrb[0].mxu0
        %v442 = vadd.f32 0.0, %v441
        %v443 = vpop.f32.mrb[0].mxu0
        %v444 = vpop.f32.mrb[0].mxu0
        %v445 = vadd.f32 0.0, %v444
        %v446 = vpop.f32.mrb[0].mxu0
        %447 = vmatprep.mubr.bf16.mxu0 0
        %448 = vmatmul.mubr.bf16.gmra.mrb[0].mxu0 %v386
        %v449 = vpop.f32.mrb[0].mxu0
        %v450 = vadd.f32 0.0, %v449
        %v451 = vpop.f32.mrb[0].mxu0
        %v452 = vpop.f32.mrb[0].mxu0
        %v453 = vadd.f32 0.0, %v452
        %v454 = vpop.f32.mrb[0].mxu0
        %455 = vmatprep.mubr.bf16.mxu0 0
        %456 = vmatmul.mubr.bf16.gmra.mrb[0].mxu0 %v389
        %v457 = vpop.f32.mrb[0].mxu0
        %v458 = vadd.f32 0.0, %v457
        %v459 = vpop.f32.mrb[0].mxu0
        %v460 = vpop.f32.mrb[0].mxu0
        %v461 = vadd.f32 0.0, %v460
        %v462 = vpop.f32.mrb[0].mxu0
        %463 = vmatprep.mubr.bf16.mxu0 0
        %464 = vmatmul.mubr.bf16.gmra.mrb[0].mxu0 %v392
        %v465 = vpop.f32.mrb[0].mxu0
        %v466 = vadd.f32 0.0, %v465
        %v467 = vpop.f32.mrb[0].mxu0
        %v468 = vpop.f32.mrb[0].mxu0
        %v469 = vadd.f32 0.0, %v468
        %v470 = vpop.f32.mrb[0].mxu0
        %471 = vmatprep.mubr.bf16.mxu0 0
        %472 = vmatmul.mubr.bf16.gmra.mrb[0].mxu0 %v395
        %v473 = vpop.f32.mrb[0].mxu0
        %v474 = vadd.f32 0.0, %v473
        %v475 = vpop.f32.mrb[0].mxu0
        %v476 = vpop.f32.mrb[0].mxu0
        %v477 = vadd.f32 0.0, %v476
        %v478 = vpop.f32.mrb[0].mxu0
        %479 = vmatprep.mubr.bf16.mxu0 0
        %480 = vmatmul.mubr.bf16.gmra.mrb[0].mxu0 %v398
        %v481 = vpop.f32.mrb[0].mxu0
        %v482 = vadd.f32 0.0, %v481
        %v483 = vpop.f32.mrb[0].mxu0
        %v484 = vpop.f32.mrb[0].mxu0
        %v485 = vadd.f32 0.0, %v484
        %v486 = vpop.f32.mrb[0].mxu0
        %487 = vmatprep.mubr.bf16.mxu0 0
        %488 = vmatmul.mubr.bf16.gmra.mrb[0].mxu0 %v401
        %v489 = vpop.f32.mrb[0].mxu0
        %v490 = vadd.f32 0.0, %v489
        %v491 = vpop.f32.mrb[0].mxu0
        %v492 = vpop.f32.mrb[0].mxu0
        %v493 = vpop.f32.mrb[0].mxu0
        %494 = vdwg.mxu0
        %v495 = vld [vmem:[%s309] sm:$0x1]
        %v497 = vlaneseq
        %v498 = vshrl.u32 %v497, 7
        %v499 = vsub.s32 0, %v498
        %v500 = vrot.slane %v495, %v499
        %v502 = vmul.f32 %v442, %v500
        %v503 = vmul.f32 %v445, %v500
        %v504 = vmul.f32 %v450, %v500
        %v505 = vmul.f32 %v453, %v500
        %v506 = vmul.f32 %v458, %v500
        %v507 = vmul.f32 %v461, %v500
        %v508 = vmul.f32 %v466, %v500
        %v509 = vmul.f32 %v469, %v500
        %v510 = vmul.f32 %v474, %v500
        %v511 = vmul.f32 %v477, %v500
        %v512 = vmul.f32 %v482, %v500
        %v513 = vmul.f32 %v485, %v500
        %v514 = vmul.f32 %v490, %v500
        %v515 = vld [vmem:[%s312] sm:$0x1]
        %v517 = vlaneseq
        %v518 = vshrl.u32 %v517, 7
        %v519 = vsub.s32 0, %v518
        %v520 = vrot.slane %v515, %v519
        %v522 = vadd.f32 %v502, %v520
        %v523 = vadd.f32 %v503, %v520
        %v524 = vadd.f32 %v504, %v520
        %v525 = vadd.f32 %v505, %v520
        %v526 = vadd.f32 %v506, %v520
        %v527 = vadd.f32 %v507, %v520
        %v528 = vadd.f32 %v508, %v520
        %v529 = vadd.f32 %v509, %v520
        %v530 = vadd.f32 %v510, %v520
        %v531 = vadd.f32 %v511, %v520
        %v532 = vadd.f32 %v512, %v520
        %v533 = vadd.f32 %v513, %v520
        %v534 = vadd.f32 %v514, %v520
        %v535 = vmax.f32 %v522, 0.0
        %v536 = vmax.f32 %v523, 0.0
        %v537 = vmax.f32 %v524, 0.0
        %v538 = vmax.f32 %v525, 0.0
        %v539 = vmax.f32 %v526, 0.0
        %v540 = vmax.f32 %v527, 0.0
        %v541 = vmax.f32 %v528, 0.0
        %v542 = vmax.f32 %v529, 0.0
        %v543 = vmax.f32 %v530, 0.0
        %v544 = vmax.f32 %v531, 0.0
        %v545 = vmax.f32 %v532, 0.0
        %v546 = vmax.f32 %v533, 0.0
        %v547 = vmax.f32 %v534, 0.0
        %548 = vst [vmem:[%s300] sm:$0xff] %v535
        %549 = vst [vmem:[%s300 + $0x8] sm:$0xff] %v536
        %550 = vst [vmem:[%s300 + $0x10] sm:$0xff] %v537
        %551 = vst [vmem:[%s300 + $0x18] sm:$0xff] %v538
        %552 = vst [vmem:[%s300 + $0x20] sm:$0xff] %v539
        %553 = vst [vmem:[%s300 + $0x28] sm:$0xff] %v540
        %554 = vst [vmem:[%s300 + $0x30] sm:$0xff] %v541
        %555 = vst [vmem:[%s300 + $0x38] sm:$0xff] %v542
        %556 = vst [vmem:[%s300 + $0x40] sm:$0xff] %v543
        %557 = vst [vmem:[%s300 + $0x48] sm:$0xff] %v544
        %558 = vst [vmem:[%s300 + $0x50] sm:$0xff] %v545
        %559 = vst [vmem:[%s300 + $0x58] sm:$0xff] %v546
        %560 = vst [vmem:[%s300 + $0x60] sm:$0x3] %v547
        %s561 = sand.u32 %s141, 1
        %s562 = sand.u32 %s141, 1
        %s563 = smul.addr %s562, 104
        %s564 = scalar_lea.vmem [#allocation3], %s563
        // Predicated region
        $region78: #{reduction_a_forward.5} parent=72 // pred_check
          %p565 = pneg %p151
        $region79: #{reduction_a_forward.5} parent=72 // pred_check_branch
          %567 = sbr.rel (%p565) target = $region81
        $region80: #{reduction_a_forward.5} parent=72 // pred_region
          %s568 = smul.u32 13, %s19
          %s569 = smul.addr %s568, 3
          %s570 = sadd.s32 %s20, %s569
          %s571 = smul.addr %s570, 8
          %s572 = scalar_lea.vmem %s4, %s571
          // Predicated region
          $region82: #{reduction_a_forward.5} parent=80 // pred_check
            _
          $region83: #{reduction_a_forward.5} parent=80 // pred_check_branch
            %574 = sbr.rel (0) target = $region85
          $region84: #{reduction_a_forward.5} parent=80 // pred_region
            // Predicated region
            $region86: #{reduction_a_forward.5} parent=84 // pred_check
              _
            $region87: #{reduction_a_forward.5} parent=84 // pred_check_branch
              %576 = sbr.rel (0) target = $region89
            $region88: #{reduction_a_forward.5} parent=84 // pred_region
              // Predicated region
              $region101: #{reduction_a_forward.5} parent=88 // pred_check
                _
              $region102: #{reduction_a_forward.5} parent=88 // pred_check_branch
                %615 = sbr.rel (0) target = $region104
              $region103: #{reduction_a_forward.5} parent=88 // pred_region
                loop: start=0, step=1, limit=1
                $region105: #{reduction_a_forward.5} parent=103 // loop_pre_header
                  _
                $region106: #{reduction_a_forward.5} parent=103 // loop_header
                  %s617 = sphi 0, %s621
                  %p618 = scmp.ge.s32.totalorder %s617, 1
                  %s622 = sphi %s564, %s564
                  %s623 = sphi %s572, %s572
                $region107: #{reduction_a_forward.5} parent=103 // loop_header_branch
                  %620 = sbr.rel (%p618) target = $region111
                $region108: #{reduction_a_forward.5} parent=103 // loop_body
                  %v624 = vld [vmem:[%s622] sm:$0xff]
                  %625 = vst [vmem:[%s623] sm:$0xff] %v624
                  %v626 = vld [vmem:[%s622 + $0x8] sm:$0xff]
                  %627 = vst [vmem:[%s623 + $0x18] sm:$0xff] %v626
                  %v628 = vld [vmem:[%s622 + $0x10] sm:$0xff]
                  %629 = vst [vmem:[%s623 + $0x30] sm:$0xff] %v628
                  %v630 = vld [vmem:[%s622 + $0x18] sm:$0xff]
                  %631 = vst [vmem:[%s623 + $0x48] sm:$0xff] %v630
                  %v632 = vld [vmem:[%s622 + $0x20] sm:$0xff]
                  %633 = vst [vmem:[%s623 + $0x60] sm:$0xff] %v632
                  %v634 = vld [vmem:[%s622 + $0x28] sm:$0xff]
                  %635 = vst [vmem:[%s623 + $0x78] sm:$0xff] %v634
                  %v636 = vld [vmem:[%s622 + $0x30] sm:$0xff]
                  %637 = vst [vmem:[%s623 + $0x90] sm:$0xff] %v636
                  %v638 = vld [vmem:[%s622 + $0x38] sm:$0xff]
                  %639 = vst [vmem:[%s623 + $0xa8] sm:$0xff] %v638
                  %v640 = vld [vmem:[%s622 + $0x40] sm:$0xff]
                  %641 = vst [vmem:[%s623 + $0xc0] sm:$0xff] %v640
                  %v642 = vld [vmem:[%s622 + $0x48] sm:$0xff]
                  %643 = vst [vmem:[%s623 + $0xd8] sm:$0xff] %v642
                  %v644 = vld [vmem:[%s622 + $0x50] sm:$0xff]
                  %645 = vst [vmem:[%s623 + $0xf0] sm:$0xff] %v644
                  %v646 = vld [vmem:[%s622 + $0x58] sm:$0xff]
                  %647 = vst [vmem:[%s623 + $0x108] sm:$0xff] %v646
                  %v648 = vld [vmem:[%s622 + $0x60] sm:$0xff]
                  %649 = vst [vmem:[%s623 + $0x120] sm:$0xff] %v648
                $region109: #{reduction_a_forward.5} parent=103 // loop_footer
                  %s621 = sadd.s32 1, %s617
                $region110: #{reduction_a_forward.5} parent=103 // loop_footer_branch
                  %616 = sbr.rel target = $region106
                $region111: #{reduction_a_forward.5} parent=103 // loop_exit
                  _
              $region104: #{reduction_a_forward.5} parent=88 // pred_fallthru
                _
              // Predicated region
              $region112: #{reduction_a_forward.5} parent=88 // pred_check
                _
              $region113: #{reduction_a_forward.5} parent=88 // pred_check_branch
                %651 = sbr.rel target = $region115
              $region114: #{reduction_a_forward.5} parent=88 // pred_region
                _
              $region115: #{reduction_a_forward.5} parent=88 // pred_fallthru
                _
            $region89: #{reduction_a_forward.5} parent=84 // pred_fallthru
              _
            // Predicated region
            $region90: #{reduction_a_forward.5} parent=84 // pred_check
              _
            $region91: #{reduction_a_forward.5} parent=84 // pred_check_branch
              %578 = sbr.rel target = $region93
            $region92: #{reduction_a_forward.5} parent=84 // pred_region
              loop: start=0, step=1, limit=1
              $region94: #{reduction_a_forward.5} parent=92 // loop_pre_header
                _
              $region95: #{reduction_a_forward.5} parent=92 // loop_header
                %s581 = sphi 0, %s585
                %p582 = scmp.ge.s32.totalorder %s581, 1
                %s586 = sphi %s564, %s564
                %s587 = sphi %s572, %s572
              $region96: #{reduction_a_forward.5} parent=92 // loop_header_branch
                %584 = sbr.rel (%p582) target = $region100
              $region97: #{reduction_a_forward.5} parent=92 // loop_body
                %v588 = vld [vmem:[%s586] sm:$0xff]
                %589 = vst [vmem:[%s587] sm:$0xff] %v588
                %v590 = vld [vmem:[%s586 + $0x8] sm:$0xff]
                %591 = vst [vmem:[%s587 + $0x18] sm:$0xff] %v590
                %v592 = vld [vmem:[%s586 + $0x10] sm:$0xff]
                %593 = vst [vmem:[%s587 + $0x30] sm:$0xff] %v592
                %v594 = vld [vmem:[%s586 + $0x18] sm:$0xff]
                %595 = vst [vmem:[%s587 + $0x48] sm:$0xff] %v594
                %v596 = vld [vmem:[%s586 + $0x20] sm:$0xff]
                %597 = vst [vmem:[%s587 + $0x60] sm:$0xff] %v596
                %v598 = vld [vmem:[%s586 + $0x28] sm:$0xff]
                %599 = vst [vmem:[%s587 + $0x78] sm:$0xff] %v598
                %v600 = vld [vmem:[%s586 + $0x30] sm:$0xff]
                %601 = vst [vmem:[%s587 + $0x90] sm:$0xff] %v600
                %v602 = vld [vmem:[%s586 + $0x38] sm:$0xff]
                %603 = vst [vmem:[%s587 + $0xa8] sm:$0xff] %v602
                %v604 = vld [vmem:[%s586 + $0x40] sm:$0xff]
                %605 = vst [vmem:[%s587 + $0xc0] sm:$0xff] %v604
                %v606 = vld [vmem:[%s586 + $0x48] sm:$0xff]
                %607 = vst [vmem:[%s587 + $0xd8] sm:$0xff] %v606
                %v608 = vld [vmem:[%s586 + $0x50] sm:$0xff]
                %609 = vst [vmem:[%s587 + $0xf0] sm:$0xff] %v608
                %v610 = vld [vmem:[%s586 + $0x58] sm:$0xff]
                %611 = vst [vmem:[%s587 + $0x108] sm:$0xff] %v610
                %v612 = vld [vmem:[%s586 + $0x60] sm:$0xff]
                %613 = vst [vmem:[%s587 + $0x120] sm:$0xff] %v612
              $region98: #{reduction_a_forward.5} parent=92 // loop_footer
                %s585 = sadd.s32 1, %s581
              $region99: #{reduction_a_forward.5} parent=92 // loop_footer_branch
                %580 = sbr.rel target = $region95
              $region100: #{reduction_a_forward.5} parent=92 // loop_exit
                _
            $region93: #{reduction_a_forward.5} parent=84 // pred_fallthru
              _
          $region85: #{reduction_a_forward.5} parent=80 // pred_fallthru
            _
          %652 = vnop
        $region81: #{reduction_a_forward.5} parent=72 // pred_fallthru
          _
      $region73: #{reduction_a_forward.5} parent=5 // pred_fallthru
        _
      %p653 = scmp.le.s32.totalorder 2, %s10
      // Predicated region
      $region116: #{reduction_a_forward.5} parent=5 // pred_check
        %p654 = pneg %p653
      $region117: #{reduction_a_forward.5} parent=5 // pred_check_branch
        %656 = sbr.rel (%p654) target = $region119
      $region118: #{reduction_a_forward.5} parent=5 // pred_region
        %s657 = ssub.s32 %s10, 2
        // Predicated region
        $region120: #{reduction_a_forward.5} parent=118 // pred_check
          %p658 = pneg %p157
        $region121: #{reduction_a_forward.5} parent=118 // pred_check_branch
          %660 = sbr.rel (%p658) target = $region123
        $region122: #{reduction_a_forward.5} parent=118 // pred_region
          %s661 = sand.u32 %s142, 1
          %s662 = sand.u32 %s142, 1
          %s663 = smul.addr %s662, 104
          %s664 = scalar_lea.vmem [#allocation3], %s663
        $region123: #{reduction_a_forward.5} parent=118 // pred_fallthru
          _
      $region119: #{reduction_a_forward.5} parent=5 // pred_fallthru
        _
    $region6: #{reduction_a_forward.5} parent=1 // loop_footer
      %s14 = sadd.s32 1, %s10
    $region7: #{reduction_a_forward.5} parent=1 // loop_footer_branch
      %9 = sbr.rel target = $region3
    $region8: #{reduction_a_forward.5} parent=1 // loop_exit
      _

</llo_original>
